<compile_context>
chip_gen: v6e
topology: v6e:2x2x1
jax: 0.10.0
libtpu: 0.0.40
codegen_flags: <defaults>
</compile_context>

<pallas_src>
import functools

import jax
import jax.numpy as jnp
from jax import lax
from jax.experimental import pallas as pl
from jax.experimental.pallas import tpu as pltpu

EPS = 1e-5  # nn.BatchNorm2d default

_PARALLEL = pltpu.CompilerParams(dimension_semantics=("parallel",))


# ----------------------------- Pallas kernels ------------------------------

def _conv1_stats_kernel(x_ref, w_ref, y_ref, stats_ref, apad_ref, col_ref,
                        *, H, W, C):
    """3x3 stride-1 'same' conv (bias=False) for one batch element + partial
    BN1 stats.

    x_ref:     (1, H, W, C)   f32   un-padded input slab
    w_ref:     (9*C, C)       bf16  tap-major weights [ (kh*3+kw)*C + cin, cout ]
    y_ref:     (1, H, W, C)   bf16  conv output
    stats_ref: (1, 2, C)      f32   (sum, sum_sq) over this slab's H*W rows
    apad_ref:  (H+2, W+2, C)  f32   VMEM scratch, zero-padded activation
    col_ref:   (H*W, 9*C)     bf16  VMEM scratch, K-concatenated taps
    """
    # Zero only the 1-pixel border each step (interior is fully rewritten).
    zr = jnp.zeros((1, W + 2, C), jnp.float32)
    zc = jnp.zeros((H + 2, 1, C), jnp.float32)
    apad_ref[0:1, :, :] = zr
    apad_ref[H + 1:H + 2, :, :] = zr
    apad_ref[:, 0:1, :] = zc
    apad_ref[:, W + 1:W + 2, :] = zc
    apad_ref[1:H + 1, 1:W + 1, :] = x_ref[0]

    # Build the [H*W, 9C] bf16 im2col tile in VMEM (lane offsets are multiples
    # of 128 -> aligned stores).
    for kh in range(3):
        for kw in range(3):
            t = kh * 3 + kw
            col_ref[:, t * C:(t + 1) * C] = (
                apad_ref[kh:kh + H, kw:kw + W, :]
                .reshape(H * W, C).astype(jnp.bfloat16))

    # One MXU matmul: [H*W, 9C] x [9C, C] -> f32.
    acc = jnp.dot(col_ref[...], w_ref[...], preferred_element_type=jnp.float32)

    y_ref[0] = acc.reshape(H, W, C).astype(y_ref.dtype)
    s = jnp.sum(acc, axis=0, keepdims=True)
    ss = jnp.sum(acc * acc, axis=0, keepdims=True)
    stats_ref[0] = jnp.concatenate([s, ss], axis=0)


def _bn_relu_conv2_stats_kernel(y1_ref, scale_ref, shift_ref, w_ref,
                                y2_ref, stats_ref, apad_ref, col_ref,
                                *, H, W, C):
    """Fused: BN1 (folded scale/shift) + ReLU + zero-pad (VMEM scratch) +
    3x3 conv as one K-concatenated matmul + partial BN2 stats.

    y1_ref:      (1, H, W, C) bf16  conv1 output
    scale/shift: (1, C)       f32   folded BN1 parameters (global batch stats)
    w_ref:       (9*C, C)     bf16
    y2_ref:      (1, H, W, C) bf16
    stats_ref:   (1, 2, C)    f32
    apad_ref:    (H+2, W+2, C) f32  scratch
    col_ref:     (H*W, 9*C)    bf16 scratch
    """
    zr = jnp.zeros((1, W + 2, C), jnp.float32)
    zc = jnp.zeros((H + 2, 1, C), jnp.float32)
    apad_ref[0:1, :, :] = zr
    apad_ref[H + 1:H + 2, :, :] = zr
    apad_ref[:, 0:1, :] = zc
    apad_ref[:, W + 1:W + 2, :] = zc

    a = jnp.maximum(
        y1_ref[0].reshape(H * W, C).astype(jnp.float32) * scale_ref[...]
        + shift_ref[...], 0.0)
    apad_ref[1:H + 1, 1:W + 1, :] = a.reshape(H, W, C)

    for kh in range(3):
        for kw in range(3):
            t = kh * 3 + kw
            col_ref[:, t * C:(t + 1) * C] = (
                apad_ref[kh:kh + H, kw:kw + W, :]
                .reshape(H * W, C).astype(jnp.bfloat16))

    acc = jnp.dot(col_ref[...], w_ref[...], preferred_element_type=jnp.float32)

    y2_ref[0] = acc.reshape(H, W, C).astype(y2_ref.dtype)
    s = jnp.sum(acc, axis=0, keepdims=True)
    ss = jnp.sum(acc * acc, axis=0, keepdims=True)
    stats_ref[0] = jnp.concatenate([s, ss], axis=0)


def _bn_add_relu_kernel(y_ref, res_ref, scale_ref, shift_ref, o_ref):
    """Epilogue: BN2 (folded) + residual add + ReLU on a [tile_m, C] slab."""
    o_ref[...] = jnp.maximum(
        y_ref[...].astype(jnp.float32) * scale_ref[...] + shift_ref[...]
        + res_ref[...], 0.0)


# ------------------------------ pallas_call wrappers ------------------------

def conv1_with_stats(x, w_cat, H, W, C):
    N = x.shape[0]
    return pl.pallas_call(
        functools.partial(_conv1_stats_kernel, H=H, W=W, C=C),
        grid=(N,),
        in_specs=[pl.BlockSpec((1, H, W, C), lambda n: (n, 0, 0, 0)),
                  # Constant weights; left double-buffered (288 KiB at C=128 is
                  # negligible) to keep lowering simple.
                  pl.BlockSpec((9 * C, C), lambda n: (0, 0))],
        out_specs=[pl.BlockSpec((1, H, W, C), lambda n: (n, 0, 0, 0)),
                   pl.BlockSpec((1, 2, C), lambda n: (n, 0, 0))],
        out_shape=(jax.ShapeDtypeStruct((N, H, W, C), jnp.bfloat16),
                   jax.ShapeDtypeStruct((N, 2, C), jnp.float32)),
        scratch_shapes=[pltpu.VMEM((H + 2, W + 2, C), jnp.float32),
                        pltpu.VMEM((H * W, 9 * C), jnp.bfloat16)],
        compiler_params=_PARALLEL,
    )(x, w_cat)


def bn_relu_conv2_with_stats(y1, scale, shift, w_cat, H, W, C):
    N = y1.shape[0]
    return pl.pallas_call(
        functools.partial(_bn_relu_conv2_stats_kernel, H=H, W=W, C=C),
        grid=(N,),
        in_specs=[pl.BlockSpec((1, H, W, C), lambda n: (n, 0, 0, 0)),
                  pl.BlockSpec((1, C), lambda n: (0, 0)),
                  pl.BlockSpec((1, C), lambda n: (0, 0)),
                  pl.BlockSpec((9 * C, C), lambda n: (0, 0))],
        out_specs=[pl.BlockSpec((1, H, W, C), lambda n: (n, 0, 0, 0)),
                   pl.BlockSpec((1, 2, C), lambda n: (n, 0, 0))],
        out_shape=(jax.ShapeDtypeStruct((N, H, W, C), jnp.bfloat16),
                   jax.ShapeDtypeStruct((N, 2, C), jnp.float32)),
        scratch_shapes=[pltpu.VMEM((H + 2, W + 2, C), jnp.float32),
                        pltpu.VMEM((H * W, 9 * C), jnp.bfloat16)],
        compiler_params=_PARALLEL,
    )(y1, scale, shift, w_cat)


def bn_add_relu(y2d, res2d, scale, shift, tile_m=1024):
    """Lane-dense [M, C] epilogue, tiled over M with pl.cdiv (partial last
    tile is masked by Pallas; the kernel is elementwise so that's safe)."""
    M, C = y2d.shape
    tm = min(tile_m, M)   # tm == M (full dim) or tm == 1024 (multiple of 8)
    return pl.pallas_call(
        _bn_add_relu_kernel,
        grid=(pl.cdiv(M, tm),),
        in_specs=[pl.BlockSpec((tm, C), lambda i: (i, 0)),
                  pl.BlockSpec((tm, C), lambda i: (i, 0)),
                  pl.BlockSpec((1, C), lambda i: (0, 0)),
                  pl.BlockSpec((1, C), lambda i: (0, 0))],
        out_specs=pl.BlockSpec((tm, C), lambda i: (i, 0)),
        out_shape=jax.ShapeDtypeStruct((M, C), jnp.float32),
        compiler_params=_PARALLEL,
    )(y2d, res2d, scale, shift)


# ------------------------------ JAX-side glue -------------------------------

def _prep_weight(w_oihw):
    """PyTorch Conv2d weight [Cout, Cin, 3, 3] -> K-concatenated [9*Cin, Cout]
    bf16, row index = (kh*3+kw)*Cin + cin (matches the col tile layout)."""
    cout, cin = w_oihw.shape[0], w_oihw.shape[1]
    w = jnp.transpose(w_oihw, (2, 3, 1, 0)).reshape(9 * cin, cout)
    return w.astype(jnp.bfloat16)


def _fold_bn(stats, gamma, beta, count):
    """Reduce per-tile (sum, sum_sq) -> folded per-channel scale/shift
    (train-mode BN, biased variance, eps=1e-5)."""
    s = jnp.sum(stats[:, 0, :], axis=0)
    ss = jnp.sum(stats[:, 1, :], axis=0)
    mean = s / count
    var = jnp.maximum(ss / count - mean * mean, 0.0)
    scale = gamma * lax.rsqrt(var + EPS)
    shift = beta - mean * scale
    return scale.reshape(1, -1), shift.reshape(1, -1)


def residual_block_forward_nhwc(x, params):
    """Core NHWC forward (no layout transposes). x: [N, H, W, C] f32."""
    N, H, W, C = x.shape
    assert C % 128 == 0, "channel count must be lane-dense (multiple of 128)"
    w1 = _prep_weight(params["w1"])
    w2 = _prep_weight(params["w2"])
    count = N * H * W

    # conv1 + partial BN1 stats (padding folded into the kernel's VMEM scratch)
    y1, st1 = conv1_with_stats(x, w1, H, W, C)
    sc1, sh1 = _fold_bn(st1, params["g1"], params["b1"], count)

    # bn1 + relu + conv2 + partial BN2 stats (fused, per-batch tiles)
    y2, st2 = bn_relu_conv2_with_stats(y1, sc1, sh1, w2, H, W, C)
    sc2, sh2 = _fold_bn(st2, params["g2"], params["b2"], count)

    # bn2 + residual add + relu (lane-dense [M, C] epilogue)
    out2d = bn_add_relu(y2.reshape(count, C), x.reshape(count, C), sc2, sh2)
    return out2d.reshape(N, H, W, C)


def residual_block_forward(x_nchw, params):
    """NCHW boundary wrapper for PyTorch-layout parity.  Models that already
    run NHWC should call residual_block_forward_nhwc directly and skip these
    two full-tensor transposes."""
    x = jnp.transpose(x_nchw, (0, 2, 3, 1))
    out = residual_block_forward_nhwc(x, params)
    return jnp.transpose(out, (0, 3, 1, 2))


# ------------------------------- reference ----------------------------------

def _bn_train_ref(y, gamma, beta):
    mean = jnp.mean(y, axis=(0, 1, 2))
    var = jnp.mean((y - mean) ** 2, axis=(0, 1, 2))   # biased variance
    return (y - mean) * lax.rsqrt(var + EPS) * gamma + beta


def _reference_forward(x_nchw, params):
    """Pure-JAX f32 reference matching the PyTorch module in training mode."""
    x = jnp.transpose(x_nchw, (0, 2, 3, 1))
    w1 = jnp.transpose(params["w1"], (2, 3, 1, 0))
    w2 = jnp.transpose(params["w2"], (2, 3, 1, 0))
    dn = lax.conv_dimension_numbers(x.shape, w1.shape, ("NHWC", "HWIO", "NHWC"))
    y1 = lax.conv_general_dilated(x, w1, (1, 1), "SAME", dimension_numbers=dn)
    a1 = jnp.maximum(_bn_train_ref(y1, params["g1"], params["b1"]), 0.0)
    y2 = lax.conv_general_dilated(a1, w2, (1, 1), "SAME", dimension_numbers=dn)
    out = jnp.maximum(_bn_train_ref(y2, params["g2"], params["b2"]) + x, 0.0)
    return jnp.transpose(out, (0, 3, 1, 2))


# ---------------------------------- main ------------------------------------

def make_params(key, C):
    ks = jax.random.split(key, 6)
    return {
        # conv1 / conv2: Conv2d(C, C, 3, stride=1, padding=1, bias=False)
        "w1": jax.random.normal(ks[0], (C, C, 3, 3), jnp.float32) * 0.05,
        "g1": jax.random.uniform(ks[1], (C,), jnp.float32, 0.5, 1.5),
        "b1": jax.random.normal(ks[2], (C,), jnp.float32) * 0.1,
        "w2": jax.random.normal(ks[3], (C, C, 3, 3), jnp.float32) * 0.05,
        "g2": jax.random.uniform(ks[4], (C,), jnp.float32, 0.5, 1.5),
        "b2": jax.random.normal(ks[5], (C,), jnp.float32) * 0.1,
    }


if __name__ == "__main__":
    key = jax.random.PRNGKey(0)
    kx, kp = jax.random.split(key)

    N, C, H, W = 2, 128, 16, 16          # lane-dense channel count (ResNet-style)
    x = jax.random.normal(kx, (N, C, H, W), jnp.float32)   # NCHW like PyTorch
    params = make_params(kp, C)

    fwd = jax.jit(residual_block_forward)
    out = jax.block_until_ready(fwd(x, params))

    assert out.shape == (N, C, H, W), out.shape
    assert out.dtype == jnp.float32
    assert bool(jnp.isfinite(out).all())

    # Sanity check vs f32 reference (loose tolerance: conv operands are bf16).
    ref = _reference_forward(x, params)
    max_err = float(jnp.max(jnp.abs(out - ref)))
    assert max_err < 0.25, max_err

    print("KERNEL_OK")
</pallas_src>

<mosaic_0001>
module attributes {stable_mosaic.version = 11 : i64} {
  func.func @_conv1_stats_kernel(%arg0: i32, %arg1: memref<1x16x16x128xf32, #tpu.memory_space<vmem>>, %arg2: memref<1152x128xbf16, #tpu.memory_space<vmem>>, %arg3: memref<1x16x16x128xbf16, #tpu.memory_space<vmem>>, %arg4: memref<1x2x128xf32, #tpu.memory_space<vmem>>, %arg5: memref<18x18x128xf32, #tpu.memory_space<vmem>>, %arg6: memref<256x1152xbf16, #tpu.memory_space<vmem>>) attributes {dimension_semantics = [#tpu.dimension_semantics<parallel>], iteration_bounds = array<i64: 2>, scalar_prefetch = 0 : i64, scratch_operands = 2 : i64, tpu.core_type = #tpu.core_type<tc>, window_params = [{transform_indices = @transform_0, window_bounds = array<i64: 1, 16, 16, 128>}, {pipeline_mode = #tpu.pipeline_mode<synchronous>, transform_indices = @transform_1, window_bounds = array<i64: 1152, 128>}, {transform_indices = @transform_2, window_bounds = array<i64: 1, 16, 16, 128>}, {transform_indices = @transform_3, window_bounds = array<i64: 1, 2, 128>}]} {
    %cst = arith.constant 0.000000e+00 : f32
    %0 = vector.broadcast %cst : f32 to vector<1x18x128xf32>
    %cst_0 = arith.constant 0.000000e+00 : f32
    %1 = vector.broadcast %cst_0 : f32 to vector<18x1x128xf32>
    %c0 = arith.constant 0 : index
    %c0_1 = arith.constant 0 : index
    %c0_2 = arith.constant 0 : index
    %2 = vector.load %arg5[%c0, %c0_1, %c0_2] : memref<18x18x128xf32, #tpu.memory_space<vmem>>, vector<1x18x128xf32>
    tpu.vector_store %arg5[%c0, %c0_1, %c0_2], %0 {strides = array<i32>} : memref<18x18x128xf32, #tpu.memory_space<vmem>>, vector<1x18x128xf32>,
    %c17 = arith.constant 17 : index
    %c0_3 = arith.constant 0 : index
    %c0_4 = arith.constant 0 : index
    %3 = vector.load %arg5[%c17, %c0_3, %c0_4] : memref<18x18x128xf32, #tpu.memory_space<vmem>>, vector<1x18x128xf32>
    tpu.vector_store %arg5[%c17, %c0_3, %c0_4], %0 {strides = array<i32>} : memref<18x18x128xf32, #tpu.memory_space<vmem>>, vector<1x18x128xf32>,
    %c0_5 = arith.constant 0 : index
    %c0_6 = arith.constant 0 : index
    %c0_7 = arith.constant 0 : index
    %4 = vector.load %arg5[%c0_5, %c0_6, %c0_7] : memref<18x18x128xf32, #tpu.memory_space<vmem>>, vector<18x1x128xf32>
    tpu.vector_store %arg5[%c0_5, %c0_6, %c0_7], %1 {strides = array<i32>} : memref<18x18x128xf32, #tpu.memory_space<vmem>>, vector<18x1x128xf32>,
    %c0_8 = arith.constant 0 : index
    %c17_9 = arith.constant 17 : index
    %c0_10 = arith.constant 0 : index
    %5 = vector.load %arg5[%c0_8, %c17_9, %c0_10] : memref<18x18x128xf32, #tpu.memory_space<vmem>>, vector<18x1x128xf32>
    tpu.vector_store %arg5[%c0_8, %c17_9, %c0_10], %1 {strides = array<i32>} : memref<18x18x128xf32, #tpu.memory_space<vmem>>, vector<18x1x128xf32>,
    %c0_11 = arith.constant 0 : index
    %c0_12 = arith.constant 0 : index
    %c0_13 = arith.constant 0 : index
    %c0_14 = arith.constant 0 : index
    %6 = vector.load %arg1[%c0_11, %c0_12, %c0_13, %c0_14] : memref<1x16x16x128xf32, #tpu.memory_space<vmem>>, vector<1x16x16x128xf32>
    %7 = vector.shape_cast %6 : vector<1x16x16x128xf32> to vector<16x16x128xf32>
    %c1 = arith.constant 1 : index
    %c1_15 = arith.constant 1 : index
    %c0_16 = arith.constant 0 : index
    %8 = vector.load %arg5[%c1, %c1_15, %c0_16] : memref<18x18x128xf32, #tpu.memory_space<vmem>>, vector<16x16x128xf32>
    tpu.vector_store %arg5[%c1, %c1_15, %c0_16], %7 {strides = array<i32>} : memref<18x18x128xf32, #tpu.memory_space<vmem>>, vector<16x16x128xf32>,
    %c0_17 = arith.constant 0 : index
    %c0_18 = arith.constant 0 : index
    %c0_19 = arith.constant 0 : index
    %9 = vector.load %arg5[%c0_17, %c0_18, %c0_19] : memref<18x18x128xf32, #tpu.memory_space<vmem>>, vector<16x16x128xf32>
    %10 = vector.shape_cast %9 : vector<16x16x128xf32> to vector<256x128xf32>
    %11 = arith.truncf %10 : vector<256x128xf32> to vector<256x128xbf16>
    %c0_20 = arith.constant 0 : index
    %c0_21 = arith.constant 0 : index
    %12 = vector.load %arg6[%c0_20, %c0_21] : memref<256x1152xbf16, #tpu.memory_space<vmem>>, vector<256x128xbf16>
    tpu.vector_store %arg6[%c0_20, %c0_21], %11 {strides = array<i32>} : memref<256x1152xbf16, #tpu.memory_space<vmem>>, vector<256x128xbf16>,
    %c0_22 = arith.constant 0 : index
    %c1_23 = arith.constant 1 : index
    %c0_24 = arith.constant 0 : index
    %13 = vector.load %arg5[%c0_22, %c1_23, %c0_24] : memref<18x18x128xf32, #tpu.memory_space<vmem>>, vector<16x16x128xf32>
    %14 = vector.shape_cast %13 : vector<16x16x128xf32> to vector<256x128xf32>
    %15 = arith.truncf %14 : vector<256x128xf32> to vector<256x128xbf16>
    %c0_25 = arith.constant 0 : index
    %c128 = arith.constant 128 : index
    %16 = vector.load %arg6[%c0_25, %c128] : memref<256x1152xbf16, #tpu.memory_space<vmem>>, vector<256x128xbf16>
    tpu.vector_store %arg6[%c0_25, %c128], %15 {strides = array<i32>} : memref<256x1152xbf16, #tpu.memory_space<vmem>>, vector<256x128xbf16>,
    %c0_26 = arith.constant 0 : index
    %c2 = arith.constant 2 : index
    %c0_27 = arith.constant 0 : index
    %17 = vector.load %arg5[%c0_26, %c2, %c0_27] : memref<18x18x128xf32, #tpu.memory_space<vmem>>, vector<16x16x128xf32>
    %18 = vector.shape_cast %17 : vector<16x16x128xf32> to vector<256x128xf32>
    %19 = arith.truncf %18 : vector<256x128xf32> to vector<256x128xbf16>
    %c0_28 = arith.constant 0 : index
    %c256 = arith.constant 256 : index
    %20 = vector.load %arg6[%c0_28, %c256] : memref<256x1152xbf16, #tpu.memory_space<vmem>>, vector<256x128xbf16>
    tpu.vector_store %arg6[%c0_28, %c256], %19 {strides = array<i32>} : memref<256x1152xbf16, #tpu.memory_space<vmem>>, vector<256x128xbf16>,
    %c1_29 = arith.constant 1 : index
    %c0_30 = arith.constant 0 : index
    %c0_31 = arith.constant 0 : index
    %21 = vector.load %arg5[%c1_29, %c0_30, %c0_31] : memref<18x18x128xf32, #tpu.memory_space<vmem>>, vector<16x16x128xf32>
    %22 = vector.shape_cast %21 : vector<16x16x128xf32> to vector<256x128xf32>
    %23 = arith.truncf %22 : vector<256x128xf32> to vector<256x128xbf16>
    %c0_32 = arith.constant 0 : index
    %c384 = arith.constant 384 : index
    %24 = vector.load %arg6[%c0_32, %c384] : memref<256x1152xbf16, #tpu.memory_space<vmem>>, vector<256x128xbf16>
    tpu.vector_store %arg6[%c0_32, %c384], %23 {strides = array<i32>} : memref<256x1152xbf16, #tpu.memory_space<vmem>>, vector<256x128xbf16>,
    %c1_33 = arith.constant 1 : index
    %c1_34 = arith.constant 1 : index
    %c0_35 = arith.constant 0 : index
    %25 = vector.load %arg5[%c1_33, %c1_34, %c0_35] : memref<18x18x128xf32, #tpu.memory_space<vmem>>, vector<16x16x128xf32>
    %26 = vector.shape_cast %25 : vector<16x16x128xf32> to vector<256x128xf32>
    %27 = arith.truncf %26 : vector<256x128xf32> to vector<256x128xbf16>
    %c0_36 = arith.constant 0 : index
    %c512 = arith.constant 512 : index
    %28 = vector.load %arg6[%c0_36, %c512] : memref<256x1152xbf16, #tpu.memory_space<vmem>>, vector<256x128xbf16>
    tpu.vector_store %arg6[%c0_36, %c512], %27 {strides = array<i32>} : memref<256x1152xbf16, #tpu.memory_space<vmem>>, vector<256x128xbf16>,
    %c1_37 = arith.constant 1 : index
    %c2_38 = arith.constant 2 : index
    %c0_39 = arith.constant 0 : index
    %29 = vector.load %arg5[%c1_37, %c2_38, %c0_39] : memref<18x18x128xf32, #tpu.memory_space<vmem>>, vector<16x16x128xf32>
    %30 = vector.shape_cast %29 : vector<16x16x128xf32> to vector<256x128xf32>
    %31 = arith.truncf %30 : vector<256x128xf32> to vector<256x128xbf16>
    %c0_40 = arith.constant 0 : index
    %c640 = arith.constant 640 : index
    %32 = vector.load %arg6[%c0_40, %c640] : memref<256x1152xbf16, #tpu.memory_space<vmem>>, vector<256x128xbf16>
    tpu.vector_store %arg6[%c0_40, %c640], %31 {strides = array<i32>} : memref<256x1152xbf16, #tpu.memory_space<vmem>>, vector<256x128xbf16>,
    %c2_41 = arith.constant 2 : index
    %c0_42 = arith.constant 0 : index
    %c0_43 = arith.constant 0 : index
    %33 = vector.load %arg5[%c2_41, %c0_42, %c0_43] : memref<18x18x128xf32, #tpu.memory_space<vmem>>, vector<16x16x128xf32>
    %34 = vector.shape_cast %33 : vector<16x16x128xf32> to vector<256x128xf32>
    %35 = arith.truncf %34 : vector<256x128xf32> to vector<256x128xbf16>
    %c0_44 = arith.constant 0 : index
    %c768 = arith.constant 768 : index
    %36 = vector.load %arg6[%c0_44, %c768] : memref<256x1152xbf16, #tpu.memory_space<vmem>>, vector<256x128xbf16>
    tpu.vector_store %arg6[%c0_44, %c768], %35 {strides = array<i32>} : memref<256x1152xbf16, #tpu.memory_space<vmem>>, vector<256x128xbf16>,
    %c2_45 = arith.constant 2 : index
    %c1_46 = arith.constant 1 : index
    %c0_47 = arith.constant 0 : index
    %37 = vector.load %arg5[%c2_45, %c1_46, %c0_47] : memref<18x18x128xf32, #tpu.memory_space<vmem>>, vector<16x16x128xf32>
    %38 = vector.shape_cast %37 : vector<16x16x128xf32> to vector<256x128xf32>
    %39 = arith.truncf %38 : vector<256x128xf32> to vector<256x128xbf16>
    %c0_48 = arith.constant 0 : index
    %c896 = arith.constant 896 : index
    %40 = vector.load %arg6[%c0_48, %c896] : memref<256x1152xbf16, #tpu.memory_space<vmem>>, vector<256x128xbf16>
    tpu.vector_store %arg6[%c0_48, %c896], %39 {strides = array<i32>} : memref<256x1152xbf16, #tpu.memory_space<vmem>>, vector<256x128xbf16>,
    %c2_49 = arith.constant 2 : index
    %c2_50 = arith.constant 2 : index
    %c0_51 = arith.constant 0 : index
    %41 = vector.load %arg5[%c2_49, %c2_50, %c0_51] : memref<18x18x128xf32, #tpu.memory_space<vmem>>, vector<16x16x128xf32>
    %42 = vector.shape_cast %41 : vector<16x16x128xf32> to vector<256x128xf32>
    %43 = arith.truncf %42 : vector<256x128xf32> to vector<256x128xbf16>
    %c0_52 = arith.constant 0 : index
    %c1024 = arith.constant 1024 : index
    %44 = vector.load %arg6[%c0_52, %c1024] : memref<256x1152xbf16, #tpu.memory_space<vmem>>, vector<256x128xbf16>
    tpu.vector_store %arg6[%c0_52, %c1024], %43 {strides = array<i32>} : memref<256x1152xbf16, #tpu.memory_space<vmem>>, vector<256x128xbf16>,
    %c0_53 = arith.constant 0 : index
    %c0_54 = arith.constant 0 : index
    %45 = vector.load %arg6[%c0_53, %c0_54] : memref<256x1152xbf16, #tpu.memory_space<vmem>>, vector<256x1152xbf16>
    %c0_55 = arith.constant 0 : index
    %c0_56 = arith.constant 0 : index
    %46 = vector.load %arg2[%c0_55, %c0_56] : memref<1152x128xbf16, #tpu.memory_space<vmem>>, vector<1152x128xbf16>
    %cst_57 = arith.constant dense<0.000000e+00> : vector<256x128xf32>
    %47 = tpu.matmul %45, %46, %cst_57 {dimension_numbers = #tpu.dot_dimension_numbers<[1], [0], [0], [1], [0, 0, 1, 1], [], []>} : vector<256x1152xbf16>, vector<1152x128xbf16>, vector<256x128xf32> -> vector<256x128xf32>
    %48 = vector.shape_cast %47 : vector<256x128xf32> to vector<16x16x128xf32>
    %49 = arith.truncf %48 : vector<16x16x128xf32> to vector<16x16x128xbf16>
    %c0_58 = arith.constant 0 : index
    %c0_59 = arith.constant 0 : index
    %c0_60 = arith.constant 0 : index
    %c0_61 = arith.constant 0 : index
    %50 = vector.load %arg3[%c0_58, %c0_59, %c0_60, %c0_61] : memref<1x16x16x128xbf16, #tpu.memory_space<vmem>>, vector<1x16x16x128xbf16>
    %51 = vector.shape_cast %50 : vector<1x16x16x128xbf16> to vector<16x16x128xbf16>
    %52 = vector.shape_cast %49 : vector<16x16x128xbf16> to vector<1x16x16x128xbf16>
    tpu.vector_store %arg3[%c0_58, %c0_59, %c0_60, %c0_61], %52 {strides = array<i32>} : memref<1x16x16x128xbf16, #tpu.memory_space<vmem>>, vector<1x16x16x128xbf16>,
    %cst_62 = arith.constant dense<0.000000e+00> : vector<128xf32>
    %53 = vector.multi_reduction <add>, %47, %cst_62 [0] : vector<256x128xf32> to vector<128xf32>
    %54 = vector.shape_cast %53 : vector<128xf32> to vector<1x128xf32>
    %55 = arith.mulf %47, %47 : vector<256x128xf32>
    %cst_63 = arith.constant dense<0.000000e+00> : vector<128xf32>
    %56 = vector.multi_reduction <add>, %55, %cst_63 [0] : vector<256x128xf32> to vector<128xf32>
    %57 = vector.shape_cast %56 : vector<128xf32> to vector<1x128xf32>
    %58 = tpu.concatenate %54, %57 in 0 : vector<1x128xf32>, vector<1x128xf32> -> vector<2x128xf32>
    %c0_64 = arith.constant 0 : index
    %c0_65 = arith.constant 0 : index
    %c0_66 = arith.constant 0 : index
    %59 = vector.load %arg4[%c0_64, %c0_65, %c0_66] : memref<1x2x128xf32, #tpu.memory_space<vmem>>, vector<1x2x128xf32>
    %60 = vector.shape_cast %59 : vector<1x2x128xf32> to vector<2x128xf32>
    %61 = vector.shape_cast %58 : vector<2x128xf32> to vector<1x2x128xf32>
    tpu.vector_store %arg4[%c0_64, %c0_65, %c0_66], %61 {strides = array<i32>} : memref<1x2x128xf32, #tpu.memory_space<vmem>>, vector<1x2x128xf32>,
    return
  }
  func.func @transform_0(%arg0: i32) -> (i32, i32, i32, i32) {
    %c0_i32 = arith.constant 0 : i32
    %c0_i32_0 = arith.constant 0 : i32
    %c0_i32_1 = arith.constant 0 : i32
    %c0_i32_2 = arith.constant 0 : i32
    return %arg0, %c0_i32, %c0_i32_0, %c0_i32_1 : i32, i32, i32, i32
  }
  func.func @transform_1(%arg0: i32) -> (i32, i32) {
    %c0_i32 = arith.constant 0 : i32
    %c0_i32_0 = arith.constant 0 : i32
    %c0_i32_1 = arith.constant 0 : i32
    return %c0_i32, %c0_i32_0 : i32, i32
  }
  func.func @transform_2(%arg0: i32) -> (i32, i32, i32, i32) {
    %c0_i32 = arith.constant 0 : i32
    %c0_i32_0 = arith.constant 0 : i32
    %c0_i32_1 = arith.constant 0 : i32
    %c0_i32_2 = arith.constant 0 : i32
    return %arg0, %c0_i32, %c0_i32_0, %c0_i32_1 : i32, i32, i32, i32
  }
  func.func @transform_3(%arg0: i32) -> (i32, i32, i32) {
    %c0_i32 = arith.constant 0 : i32
    %c0_i32_0 = arith.constant 0 : i32
    %c0_i32_1 = arith.constant 0 : i32
    return %arg0, %c0_i32, %c0_i32_0 : i32, i32, i32
  }
}

module attributes {stable_mosaic.version = 11 : i64} {
  func.func @_bn_relu_conv2_stats_kernel(%arg0: i32, %arg1: memref<1x16x16x128xbf16, #tpu.memory_space<vmem>>, %arg2: memref<1x128xf32, #tpu.memory_space<vmem>>, %arg3: memref<1x128xf32, #tpu.memory_space<vmem>>, %arg4: memref<1152x128xbf16, #tpu.memory_space<vmem>>, %arg5: memref<1x16x16x128xbf16, #tpu.memory_space<vmem>>, %arg6: memref<1x2x128xf32, #tpu.memory_space<vmem>>, %arg7: memref<18x18x128xf32, #tpu.memory_space<vmem>>, %arg8: memref<256x1152xbf16, #tpu.memory_space<vmem>>) attributes {dimension_semantics = [#tpu.dimension_semantics<parallel>], iteration_bounds = array<i64: 2>, scalar_prefetch = 0 : i64, scratch_operands = 2 : i64, tpu.core_type = #tpu.core_type<tc>, window_params = [{transform_indices = @transform_0, window_bounds = array<i64: 1, 16, 16, 128>}, {pipeline_mode = #tpu.pipeline_mode<synchronous>, transform_indices = @transform_1, window_bounds = array<i64: 1, 128>}, {pipeline_mode = #tpu.pipeline_mode<synchronous>, transform_indices = @transform_2, window_bounds = array<i64: 1, 128>}, {pipeline_mode = #tpu.pipeline_mode<synchronous>, transform_indices = @transform_3, window_bounds = array<i64: 1152, 128>}, {transform_indices = @transform_4, window_bounds = array<i64: 1, 16, 16, 128>}, {transform_indices = @transform_5, window_bounds = array<i64: 1, 2, 128>}]} {
    %cst = arith.constant 0.000000e+00 : f32
    %0 = vector.broadcast %cst : f32 to vector<1x18x128xf32>
    %cst_0 = arith.constant 0.000000e+00 : f32
    %1 = vector.broadcast %cst_0 : f32 to vector<18x1x128xf32>
    %c0 = arith.constant 0 : index
    %c0_1 = arith.constant 0 : index
    %c0_2 = arith.constant 0 : index
    %2 = vector.load %arg7[%c0, %c0_1, %c0_2] : memref<18x18x128xf32, #tpu.memory_space<vmem>>, vector<1x18x128xf32>
    tpu.vector_store %arg7[%c0, %c0_1, %c0_2], %0 {strides = array<i32>} : memref<18x18x128xf32, #tpu.memory_space<vmem>>, vector<1x18x128xf32>,
    %c17 = arith.constant 17 : index
    %c0_3 = arith.constant 0 : index
    %c0_4 = arith.constant 0 : index
    %3 = vector.load %arg7[%c17, %c0_3, %c0_4] : memref<18x18x128xf32, #tpu.memory_space<vmem>>, vector<1x18x128xf32>
    tpu.vector_store %arg7[%c17, %c0_3, %c0_4], %0 {strides = array<i32>} : memref<18x18x128xf32, #tpu.memory_space<vmem>>, vector<1x18x128xf32>,
    %c0_5 = arith.constant 0 : index
    %c0_6 = arith.constant 0 : index
    %c0_7 = arith.constant 0 : index
    %4 = vector.load %arg7[%c0_5, %c0_6, %c0_7] : memref<18x18x128xf32, #tpu.memory_space<vmem>>, vector<18x1x128xf32>
    tpu.vector_store %arg7[%c0_5, %c0_6, %c0_7], %1 {strides = array<i32>} : memref<18x18x128xf32, #tpu.memory_space<vmem>>, vector<18x1x128xf32>,
    %c0_8 = arith.constant 0 : index
    %c17_9 = arith.constant 17 : index
    %c0_10 = arith.constant 0 : index
    %5 = vector.load %arg7[%c0_8, %c17_9, %c0_10] : memref<18x18x128xf32, #tpu.memory_space<vmem>>, vector<18x1x128xf32>
    tpu.vector_store %arg7[%c0_8, %c17_9, %c0_10], %1 {strides = array<i32>} : memref<18x18x128xf32, #tpu.memory_space<vmem>>, vector<18x1x128xf32>,
    %c0_11 = arith.constant 0 : index
    %c0_12 = arith.constant 0 : index
    %c0_13 = arith.constant 0 : index
    %c0_14 = arith.constant 0 : index
    %6 = vector.load %arg1[%c0_11, %c0_12, %c0_13, %c0_14] : memref<1x16x16x128xbf16, #tpu.memory_space<vmem>>, vector<1x16x16x128xbf16>
    %7 = vector.shape_cast %6 : vector<1x16x16x128xbf16> to vector<16x16x128xbf16>
    %8 = vector.shape_cast %7 : vector<16x16x128xbf16> to vector<256x128xbf16>
    %9 = arith.extf %8 : vector<256x128xbf16> to vector<256x128xf32>
    %c0_15 = arith.constant 0 : index
    %c0_16 = arith.constant 0 : index
    %10 = vector.load %arg2[%c0_15, %c0_16] : memref<1x128xf32, #tpu.memory_space<vmem>>, vector<1x128xf32>
    %11 = vector.broadcast %10 : vector<1x128xf32> to vector<256x128xf32>
    %12 = arith.mulf %9, %11 : vector<256x128xf32>
    %c0_17 = arith.constant 0 : index
    %c0_18 = arith.constant 0 : index
    %13 = vector.load %arg3[%c0_17, %c0_18] : memref<1x128xf32, #tpu.memory_space<vmem>>, vector<1x128xf32>
    %14 = vector.broadcast %13 : vector<1x128xf32> to vector<256x128xf32>
    %15 = arith.addf %12, %14 : vector<256x128xf32>
    %cst_19 = arith.constant 0.000000e+00 : f32
    %16 = vector.broadcast %cst_19 : f32 to vector<256x128xf32>
    %17 = arith.maximumf %15, %16 : vector<256x128xf32>
    %18 = vector.shape_cast %17 : vector<256x128xf32> to vector<16x16x128xf32>
    %c1 = arith.constant 1 : index
    %c1_20 = arith.constant 1 : index
    %c0_21 = arith.constant 0 : index
    %19 = vector.load %arg7[%c1, %c1_20, %c0_21] : memref<18x18x128xf32, #tpu.memory_space<vmem>>, vector<16x16x128xf32>
    tpu.vector_store %arg7[%c1, %c1_20, %c0_21], %18 {strides = array<i32>} : memref<18x18x128xf32, #tpu.memory_space<vmem>>, vector<16x16x128xf32>,
    %c0_22 = arith.constant 0 : index
    %c0_23 = arith.constant 0 : index
    %c0_24 = arith.constant 0 : index
    %20 = vector.load %arg7[%c0_22, %c0_23, %c0_24] : memref<18x18x128xf32, #tpu.memory_space<vmem>>, vector<16x16x128xf32>
    %21 = vector.shape_cast %20 : vector<16x16x128xf32> to vector<256x128xf32>
    %22 = arith.truncf %21 : vector<256x128xf32> to vector<256x128xbf16>
    %c0_25 = arith.constant 0 : index
    %c0_26 = arith.constant 0 : index
    %23 = vector.load %arg8[%c0_25, %c0_26] : memref<256x1152xbf16, #tpu.memory_space<vmem>>, vector<256x128xbf16>
    tpu.vector_store %arg8[%c0_25, %c0_26], %22 {strides = array<i32>} : memref<256x1152xbf16, #tpu.memory_space<vmem>>, vector<256x128xbf16>,
    %c0_27 = arith.constant 0 : index
    %c1_28 = arith.constant 1 : index
    %c0_29 = arith.constant 0 : index
    %24 = vector.load %arg7[%c0_27, %c1_28, %c0_29] : memref<18x18x128xf32, #tpu.memory_space<vmem>>, vector<16x16x128xf32>
    %25 = vector.shape_cast %24 : vector<16x16x128xf32> to vector<256x128xf32>
    %26 = arith.truncf %25 : vector<256x128xf32> to vector<256x128xbf16>
    %c0_30 = arith.constant 0 : index
    %c128 = arith.constant 128 : index
    %27 = vector.load %arg8[%c0_30, %c128] : memref<256x1152xbf16, #tpu.memory_space<vmem>>, vector<256x128xbf16>
    tpu.vector_store %arg8[%c0_30, %c128], %26 {strides = array<i32>} : memref<256x1152xbf16, #tpu.memory_space<vmem>>, vector<256x128xbf16>,
    %c0_31 = arith.constant 0 : index
    %c2 = arith.constant 2 : index
    %c0_32 = arith.constant 0 : index
    %28 = vector.load %arg7[%c0_31, %c2, %c0_32] : memref<18x18x128xf32, #tpu.memory_space<vmem>>, vector<16x16x128xf32>
    %29 = vector.shape_cast %28 : vector<16x16x128xf32> to vector<256x128xf32>
    %30 = arith.truncf %29 : vector<256x128xf32> to vector<256x128xbf16>
    %c0_33 = arith.constant 0 : index
    %c256 = arith.constant 256 : index
    %31 = vector.load %arg8[%c0_33, %c256] : memref<256x1152xbf16, #tpu.memory_space<vmem>>, vector<256x128xbf16>
    tpu.vector_store %arg8[%c0_33, %c256], %30 {strides = array<i32>} : memref<256x1152xbf16, #tpu.memory_space<vmem>>, vector<256x128xbf16>,
    %c1_34 = arith.constant 1 : index
    %c0_35 = arith.constant 0 : index
    %c0_36 = arith.constant 0 : index
    %32 = vector.load %arg7[%c1_34, %c0_35, %c0_36] : memref<18x18x128xf32, #tpu.memory_space<vmem>>, vector<16x16x128xf32>
    %33 = vector.shape_cast %32 : vector<16x16x128xf32> to vector<256x128xf32>
    %34 = arith.truncf %33 : vector<256x128xf32> to vector<256x128xbf16>
    %c0_37 = arith.constant 0 : index
    %c384 = arith.constant 384 : index
    %35 = vector.load %arg8[%c0_37, %c384] : memref<256x1152xbf16, #tpu.memory_space<vmem>>, vector<256x128xbf16>
    tpu.vector_store %arg8[%c0_37, %c384], %34 {strides = array<i32>} : memref<256x1152xbf16, #tpu.memory_space<vmem>>, vector<256x128xbf16>,
    %c1_38 = arith.constant 1 : index
    %c1_39 = arith.constant 1 : index
    %c0_40 = arith.constant 0 : index
    %36 = vector.load %arg7[%c1_38, %c1_39, %c0_40] : memref<18x18x128xf32, #tpu.memory_space<vmem>>, vector<16x16x128xf32>
    %37 = vector.shape_cast %36 : vector<16x16x128xf32> to vector<256x128xf32>
    %38 = arith.truncf %37 : vector<256x128xf32> to vector<256x128xbf16>
    %c0_41 = arith.constant 0 : index
    %c512 = arith.constant 512 : index
    %39 = vector.load %arg8[%c0_41, %c512] : memref<256x1152xbf16, #tpu.memory_space<vmem>>, vector<256x128xbf16>
    tpu.vector_store %arg8[%c0_41, %c512], %38 {strides = array<i32>} : memref<256x1152xbf16, #tpu.memory_space<vmem>>, vector<256x128xbf16>,
    %c1_42 = arith.constant 1 : index
    %c2_43 = arith.constant 2 : index
    %c0_44 = arith.constant 0 : index
    %40 = vector.load %arg7[%c1_42, %c2_43, %c0_44] : memref<18x18x128xf32, #tpu.memory_space<vmem>>, vector<16x16x128xf32>
    %41 = vector.shape_cast %40 : vector<16x16x128xf32> to vector<256x128xf32>
    %42 = arith.truncf %41 : vector<256x128xf32> to vector<256x128xbf16>
    %c0_45 = arith.constant 0 : index
    %c640 = arith.constant 640 : index
    %43 = vector.load %arg8[%c0_45, %c640] : memref<256x1152xbf16, #tpu.memory_space<vmem>>, vector<256x128xbf16>
    tpu.vector_store %arg8[%c0_45, %c640], %42 {strides = array<i32>} : memref<256x1152xbf16, #tpu.memory_space<vmem>>, vector<256x128xbf16>,
    %c2_46 = arith.constant 2 : index
    %c0_47 = arith.constant 0 : index
    %c0_48 = arith.constant 0 : index
    %44 = vector.load %arg7[%c2_46, %c0_47, %c0_48] : memref<18x18x128xf32, #tpu.memory_space<vmem>>, vector<16x16x128xf32>
    %45 = vector.shape_cast %44 : vector<16x16x128xf32> to vector<256x128xf32>
    %46 = arith.truncf %45 : vector<256x128xf32> to vector<256x128xbf16>
    %c0_49 = arith.constant 0 : index
    %c768 = arith.constant 768 : index
    %47 = vector.load %arg8[%c0_49, %c768] : memref<256x1152xbf16, #tpu.memory_space<vmem>>, vector<256x128xbf16>
    tpu.vector_store %arg8[%c0_49, %c768], %46 {strides = array<i32>} : memref<256x1152xbf16, #tpu.memory_space<vmem>>, vector<256x128xbf16>,
    %c2_50 = arith.constant 2 : index
    %c1_51 = arith.constant 1 : index
    %c0_52 = arith.constant 0 : index
    %48 = vector.load %arg7[%c2_50, %c1_51, %c0_52] : memref<18x18x128xf32, #tpu.memory_space<vmem>>, vector<16x16x128xf32>
    %49 = vector.shape_cast %48 : vector<16x16x128xf32> to vector<256x128xf32>
    %50 = arith.truncf %49 : vector<256x128xf32> to vector<256x128xbf16>
    %c0_53 = arith.constant 0 : index
    %c896 = arith.constant 896 : index
    %51 = vector.load %arg8[%c0_53, %c896] : memref<256x1152xbf16, #tpu.memory_space<vmem>>, vector<256x128xbf16>
    tpu.vector_store %arg8[%c0_53, %c896], %50 {strides = array<i32>} : memref<256x1152xbf16, #tpu.memory_space<vmem>>, vector<256x128xbf16>,
    %c2_54 = arith.constant 2 : index
    %c2_55 = arith.constant 2 : index
    %c0_56 = arith.constant 0 : index
    %52 = vector.load %arg7[%c2_54, %c2_55, %c0_56] : memref<18x18x128xf32, #tpu.memory_space<vmem>>, vector<16x16x128xf32>
    %53 = vector.shape_cast %52 : vector<16x16x128xf32> to vector<256x128xf32>
    %54 = arith.truncf %53 : vector<256x128xf32> to vector<256x128xbf16>
    %c0_57 = arith.constant 0 : index
    %c1024 = arith.constant 1024 : index
    %55 = vector.load %arg8[%c0_57, %c1024] : memref<256x1152xbf16, #tpu.memory_space<vmem>>, vector<256x128xbf16>
    tpu.vector_store %arg8[%c0_57, %c1024], %54 {strides = array<i32>} : memref<256x1152xbf16, #tpu.memory_space<vmem>>, vector<256x128xbf16>,
    %c0_58 = arith.constant 0 : index
    %c0_59 = arith.constant 0 : index
    %56 = vector.load %arg8[%c0_58, %c0_59] : memref<256x1152xbf16, #tpu.memory_space<vmem>>, vector<256x1152xbf16>
    %c0_60 = arith.constant 0 : index
    %c0_61 = arith.constant 0 : index
    %57 = vector.load %arg4[%c0_60, %c0_61] : memref<1152x128xbf16, #tpu.memory_space<vmem>>, vector<1152x128xbf16>
    %cst_62 = arith.constant dense<0.000000e+00> : vector<256x128xf32>
    %58 = tpu.matmul %56, %57, %cst_62 {dimension_numbers = #tpu.dot_dimension_numbers<[1], [0], [0], [1], [0, 0, 1, 1], [], []>} : vector<256x1152xbf16>, vector<1152x128xbf16>, vector<256x128xf32> -> vector<256x128xf32>
    %59 = vector.shape_cast %58 : vector<256x128xf32> to vector<16x16x128xf32>
    %60 = arith.truncf %59 : vector<16x16x128xf32> to vector<16x16x128xbf16>
    %c0_63 = arith.constant 0 : index
    %c0_64 = arith.constant 0 : index
    %c0_65 = arith.constant 0 : index
    %c0_66 = arith.constant 0 : index
    %61 = vector.load %arg5[%c0_63, %c0_64, %c0_65, %c0_66] : memref<1x16x16x128xbf16, #tpu.memory_space<vmem>>, vector<1x16x16x128xbf16>
    %62 = vector.shape_cast %61 : vector<1x16x16x128xbf16> to vector<16x16x128xbf16>
    %63 = vector.shape_cast %60 : vector<16x16x128xbf16> to vector<1x16x16x128xbf16>
    tpu.vector_store %arg5[%c0_63, %c0_64, %c0_65, %c0_66], %63 {strides = array<i32>} : memref<1x16x16x128xbf16, #tpu.memory_space<vmem>>, vector<1x16x16x128xbf16>,
    %cst_67 = arith.constant dense<0.000000e+00> : vector<128xf32>
    %64 = vector.multi_reduction <add>, %58, %cst_67 [0] : vector<256x128xf32> to vector<128xf32>
    %65 = vector.shape_cast %64 : vector<128xf32> to vector<1x128xf32>
    %66 = arith.mulf %58, %58 : vector<256x128xf32>
    %cst_68 = arith.constant dense<0.000000e+00> : vector<128xf32>
    %67 = vector.multi_reduction <add>, %66, %cst_68 [0] : vector<256x128xf32> to vector<128xf32>
    %68 = vector.shape_cast %67 : vector<128xf32> to vector<1x128xf32>
    %69 = tpu.concatenate %65, %68 in 0 : vector<1x128xf32>, vector<1x128xf32> -> vector<2x128xf32>
    %c0_69 = arith.constant 0 : index
    %c0_70 = arith.constant 0 : index
    %c0_71 = arith.constant 0 : index
    %70 = vector.load %arg6[%c0_69, %c0_70, %c0_71] : memref<1x2x128xf32, #tpu.memory_space<vmem>>, vector<1x2x128xf32>
    %71 = vector.shape_cast %70 : vector<1x2x128xf32> to vector<2x128xf32>
    %72 = vector.shape_cast %69 : vector<2x128xf32> to vector<1x2x128xf32>
    tpu.vector_store %arg6[%c0_69, %c0_70, %c0_71], %72 {strides = array<i32>} : memref<1x2x128xf32, #tpu.memory_space<vmem>>, vector<1x2x128xf32>,
    return
  }
  func.func @transform_0(%arg0: i32) -> (i32, i32, i32, i32) {
    %c0_i32 = arith.constant 0 : i32
    %c0_i32_0 = arith.constant 0 : i32
    %c0_i32_1 = arith.constant 0 : i32
    %c0_i32_2 = arith.constant 0 : i32
    return %arg0, %c0_i32, %c0_i32_0, %c0_i32_1 : i32, i32, i32, i32
  }
  func.func @transform_1(%arg0: i32) -> (i32, i32) {
    %c0_i32 = arith.constant 0 : i32
    %c0_i32_0 = arith.constant 0 : i32
    %c0_i32_1 = arith.constant 0 : i32
    return %c0_i32, %c0_i32_0 : i32, i32
  }
  func.func @transform_2(%arg0: i32) -> (i32, i32) {
    %c0_i32 = arith.constant 0 : i32
    %c0_i32_0 = arith.constant 0 : i32
    %c0_i32_1 = arith.constant 0 : i32
    return %c0_i32, %c0_i32_0 : i32, i32
  }
  func.func @transform_3(%arg0: i32) -> (i32, i32) {
    %c0_i32 = arith.constant 0 : i32
    %c0_i32_0 = arith.constant 0 : i32
    %c0_i32_1 = arith.constant 0 : i32
    return %c0_i32, %c0_i32_0 : i32, i32
  }
  func.func @transform_4(%arg0: i32) -> (i32, i32, i32, i32) {
    %c0_i32 = arith.constant 0 : i32
    %c0_i32_0 = arith.constant 0 : i32
    %c0_i32_1 = arith.constant 0 : i32
    %c0_i32_2 = arith.constant 0 : i32
    return %arg0, %c0_i32, %c0_i32_0, %c0_i32_1 : i32, i32, i32, i32
  }
  func.func @transform_5(%arg0: i32) -> (i32, i32, i32) {
    %c0_i32 = arith.constant 0 : i32
    %c0_i32_0 = arith.constant 0 : i32
    %c0_i32_1 = arith.constant 0 : i32
    return %arg0, %c0_i32, %c0_i32_0 : i32, i32, i32
  }
}

module attributes {stable_mosaic.version = 11 : i64} {
  func.func @_bn_add_relu_kernel(%arg0: i32, %arg1: memref<512x128xbf16, #tpu.memory_space<vmem>>, %arg2: memref<512x128xf32, #tpu.memory_space<vmem>>, %arg3: memref<1x128xf32, #tpu.memory_space<vmem>>, %arg4: memref<1x128xf32, #tpu.memory_space<vmem>>, %arg5: memref<512x128xf32, #tpu.memory_space<vmem>>) attributes {dimension_semantics = [#tpu.dimension_semantics<parallel>], iteration_bounds = array<i64: 1>, scalar_prefetch = 0 : i64, scratch_operands = 0 : i64, tpu.core_type = #tpu.core_type<tc>, window_params = [{transform_indices = @transform_0, window_bounds = array<i64: 512, 128>}, {transform_indices = @transform_1, window_bounds = array<i64: 512, 128>}, {pipeline_mode = #tpu.pipeline_mode<synchronous>, transform_indices = @transform_2, window_bounds = array<i64: 1, 128>}, {pipeline_mode = #tpu.pipeline_mode<synchronous>, transform_indices = @transform_3, window_bounds = array<i64: 1, 128>}, {transform_indices = @transform_4, window_bounds = array<i64: 512, 128>}]} {
    %c0 = arith.constant 0 : index
    %c0_0 = arith.constant 0 : index
    %0 = vector.load %arg1[%c0, %c0_0] : memref<512x128xbf16, #tpu.memory_space<vmem>>, vector<512x128xbf16>
    %1 = arith.extf %0 : vector<512x128xbf16> to vector<512x128xf32>
    %c0_1 = arith.constant 0 : index
    %c0_2 = arith.constant 0 : index
    %2 = vector.load %arg3[%c0_1, %c0_2] : memref<1x128xf32, #tpu.memory_space<vmem>>, vector<1x128xf32>
    %3 = vector.broadcast %2 : vector<1x128xf32> to vector<512x128xf32>
    %4 = arith.mulf %1, %3 : vector<512x128xf32>
    %c0_3 = arith.constant 0 : index
    %c0_4 = arith.constant 0 : index
    %5 = vector.load %arg4[%c0_3, %c0_4] : memref<1x128xf32, #tpu.memory_space<vmem>>, vector<1x128xf32>
    %6 = vector.broadcast %5 : vector<1x128xf32> to vector<512x128xf32>
    %7 = arith.addf %4, %6 : vector<512x128xf32>
    %c0_5 = arith.constant 0 : index
    %c0_6 = arith.constant 0 : index
    %8 = vector.load %arg2[%c0_5, %c0_6] : memref<512x128xf32, #tpu.memory_space<vmem>>, vector<512x128xf32>
    %9 = arith.addf %7, %8 : vector<512x128xf32>
    %cst = arith.constant 0.000000e+00 : f32
    %10 = vector.broadcast %cst : f32 to vector<512x128xf32>
    %11 = arith.maximumf %9, %10 : vector<512x128xf32>
    %c0_7 = arith.constant 0 : index
    %c0_8 = arith.constant 0 : index
    %12 = vector.load %arg5[%c0_7, %c0_8] : memref<512x128xf32, #tpu.memory_space<vmem>>, vector<512x128xf32>
    tpu.vector_store %arg5[%c0_7, %c0_8], %11 {strides = array<i32>} : memref<512x128xf32, #tpu.memory_space<vmem>>, vector<512x128xf32>,
    return
  }
  func.func @transform_0(%arg0: i32) -> (i32, i32) {
    %c0_i32 = arith.constant 0 : i32
    %c0_i32_0 = arith.constant 0 : i32
    return %arg0, %c0_i32 : i32, i32
  }
  func.func @transform_1(%arg0: i32) -> (i32, i32) {
    %c0_i32 = arith.constant 0 : i32
    %c0_i32_0 = arith.constant 0 : i32
    return %arg0, %c0_i32 : i32, i32
  }
  func.func @transform_2(%arg0: i32) -> (i32, i32) {
    %c0_i32 = arith.constant 0 : i32
    %c0_i32_0 = arith.constant 0 : i32
    %c0_i32_1 = arith.constant 0 : i32
    return %c0_i32, %c0_i32_0 : i32, i32
  }
  func.func @transform_3(%arg0: i32) -> (i32, i32) {
    %c0_i32 = arith.constant 0 : i32
    %c0_i32_0 = arith.constant 0 : i32
    %c0_i32_1 = arith.constant 0 : i32
    return %c0_i32, %c0_i32_0 : i32, i32
  }
  func.func @transform_4(%arg0: i32) -> (i32, i32) {
    %c0_i32 = arith.constant 0 : i32
    %c0_i32_0 = arith.constant 0 : i32
    return %arg0, %c0_i32 : i32, i32
  }
}

</mosaic_0001>

<llo_original>
// kernel: residual_block_forward.5
$region0: #{residual_block_forward.5}
  #allocation0 [shape = 'u32[]', space=smem, size = 0x4, offset = 0x4, fixed_abs, tag = 'smem constant byte address 0x4 - core index']
  #allocation1 [shape = 'u32[144,128]{1,0:T(1,128)}', space=vmem, size = 0x12000, scoped, tag = 'internal scratch']
  %s0 = inlined_call_operand.vmem [shape: bf16[512,128], index: 0, kind: input, shape index: {}]
  %s1 = inlined_call_operand.vmem [shape: f32[512,128], index: 1, kind: input, shape index: {}]
  %s2 = inlined_call_operand.vmem [shape: f32[1,128], index: 2, kind: input, shape index: {}]
  %s3 = inlined_call_operand.vmem [shape: f32[1,128], index: 3, kind: input, shape index: {}]
  %s4 = inlined_call_operand.hbm [shape: f32[512,128], index: 4, kind: output, shape index: {}]
  %s5 = sld [smem:[#allocation0]]
  $region26: #{residual_block_forward.5} parent=0
    _
  %s7 = ssub.s32 1, %s5
  %s8 = scalar_select 0, %s7, %s5
  $region1: #{residual_block_forward.5} parent=0
    #allocation2 [shape = 'u8[262144]{0}', space=vmem, size = 0x40000, scoped, tag = 'output window, operand 0, single buffered']
    #allocation3 [shape = 's32[1]{0}', space=sflag, size = 0x4, scoped, tag = 'scoped memory for residual_block_forward.5']
    %9 = vsyncpa [#allocation3], 0
    // Predicated region
    $region2: #{residual_block_forward.5} parent=1 // pred_check
      _
    $region3: #{residual_block_forward.5} parent=1 // pred_check_branch
      %11 = sbr.rel (0) target = $region5
    $region4: #{residual_block_forward.5} parent=1 // pred_region
      _
    $region5: #{residual_block_forward.5} parent=1 // pred_fallthru
      _
    // Predicated region
    $region6: #{residual_block_forward.5} parent=1 // pred_check
      _
    $region7: #{residual_block_forward.5} parent=1 // pred_check_branch
      %13 = sbr.rel (0) target = $region9
    $region8: #{residual_block_forward.5} parent=1 // pred_region
      _
    $region9: #{residual_block_forward.5} parent=1 // pred_fallthru
      _
    // Predicated region
    $region10: #{residual_block_forward.5} parent=1 // pred_check
      _
    $region11: #{residual_block_forward.5} parent=1 // pred_check_branch
      %15 = sbr.rel (0) target = $region13
    $region12: #{residual_block_forward.5} parent=1 // pred_region
      _
    $region13: #{residual_block_forward.5} parent=1 // pred_fallthru
      _
    // Predicated region
    $region14: #{residual_block_forward.5} parent=1 // pred_check
      _
    $region15: #{residual_block_forward.5} parent=1 // pred_check_branch
      %17 = sbr.rel (0) target = $region17
    $region16: #{residual_block_forward.5} parent=1 // pred_region
      _
    $region17: #{residual_block_forward.5} parent=1 // pred_fallthru
      _
    %v18 = vld [vmem:[%s0] sm:$0xf]
    %v19 = vld [vmem:[%s0 + $0x4] sm:$0xf]
    %v20 = vld [vmem:[%s0 + $0x8] sm:$0xf]
    %v21 = vld [vmem:[%s0 + $0xc] sm:$0xf]
    %v22 = vld [vmem:[%s0 + $0x10] sm:$0xf]
    %v23 = vld [vmem:[%s0 + $0x14] sm:$0xf]
    %v24 = vld [vmem:[%s0 + $0x18] sm:$0xf]
    %v25 = vld [vmem:[%s0 + $0x1c] sm:$0xf]
    %v26 = vld [vmem:[%s0 + $0x20] sm:$0xf]
    %v27 = vld [vmem:[%s0 + $0x24] sm:$0xf]
    %v28 = vld [vmem:[%s0 + $0x28] sm:$0xf]
    %v29 = vld [vmem:[%s0 + $0x2c] sm:$0xf]
    %v30 = vld [vmem:[%s0 + $0x30] sm:$0xf]
    %v31 = vld [vmem:[%s0 + $0x34] sm:$0xf]
    %v32 = vld [vmem:[%s0 + $0x38] sm:$0xf]
    %v33 = vld [vmem:[%s0 + $0x3c] sm:$0xf]
    %v34 = vld [vmem:[%s0 + $0x40] sm:$0xf]
    %v35 = vld [vmem:[%s0 + $0x44] sm:$0xf]
    %v36 = vld [vmem:[%s0 + $0x48] sm:$0xf]
    %v37 = vld [vmem:[%s0 + $0x4c] sm:$0xf]
    %v38 = vld [vmem:[%s0 + $0x50] sm:$0xf]
    %v39 = vld [vmem:[%s0 + $0x54] sm:$0xf]
    %v40 = vld [vmem:[%s0 + $0x58] sm:$0xf]
    %v41 = vld [vmem:[%s0 + $0x5c] sm:$0xf]
    %v42 = vld [vmem:[%s0 + $0x60] sm:$0xf]
    %v43 = vld [vmem:[%s0 + $0x64] sm:$0xf]
    %v44 = vld [vmem:[%s0 + $0x68] sm:$0xf]
    %v45 = vld [vmem:[%s0 + $0x6c] sm:$0xf]
    %v46 = vld [vmem:[%s0 + $0x70] sm:$0xf]
    %v47 = vld [vmem:[%s0 + $0x74] sm:$0xf]
    %v48 = vld [vmem:[%s0 + $0x78] sm:$0xf]
    %v49 = vld [vmem:[%s0 + $0x7c] sm:$0xf]
    %v50 = vld [vmem:[%s0 + $0x80] sm:$0xf]
    %v51 = vld [vmem:[%s0 + $0x84] sm:$0xf]
    %v52 = vld [vmem:[%s0 + $0x88] sm:$0xf]
    %v53 = vld [vmem:[%s0 + $0x8c] sm:$0xf]
    %v54 = vld [vmem:[%s0 + $0x90] sm:$0xf]
    %v55 = vld [vmem:[%s0 + $0x94] sm:$0xf]
    %v56 = vld [vmem:[%s0 + $0x98] sm:$0xf]
    %v57 = vld [vmem:[%s0 + $0x9c] sm:$0xf]
    %v58 = vld [vmem:[%s0 + $0xa0] sm:$0xf]
    %v59 = vld [vmem:[%s0 + $0xa4] sm:$0xf]
    %v60 = vld [vmem:[%s0 + $0xa8] sm:$0xf]
    %v61 = vld [vmem:[%s0 + $0xac] sm:$0xf]
    %v62 = vld [vmem:[%s0 + $0xb0] sm:$0xf]
    %v63 = vld [vmem:[%s0 + $0xb4] sm:$0xf]
    %v64 = vld [vmem:[%s0 + $0xb8] sm:$0xf]
    %v65 = vld [vmem:[%s0 + $0xbc] sm:$0xf]
    %v66 = vld [vmem:[%s0 + $0xc0] sm:$0xf]
    %v67 = vld [vmem:[%s0 + $0xc4] sm:$0xf]
    %v68 = vld [vmem:[%s0 + $0xc8] sm:$0xf]
    %v69 = vld [vmem:[%s0 + $0xcc] sm:$0xf]
    %v70 = vld [vmem:[%s0 + $0xd0] sm:$0xf]
    %v71 = vld [vmem:[%s0 + $0xd4] sm:$0xf]
    %v72 = vld [vmem:[%s0 + $0xd8] sm:$0xf]
    %v73 = vld [vmem:[%s0 + $0xdc] sm:$0xf]
    %v74 = vld [vmem:[%s0 + $0xe0] sm:$0xf]
    %v75 = vld [vmem:[%s0 + $0xe4] sm:$0xf]
    %v76 = vld [vmem:[%s0 + $0xe8] sm:$0xf]
    %v77 = vld [vmem:[%s0 + $0xec] sm:$0xf]
    %v78 = vld [vmem:[%s0 + $0xf0] sm:$0xf]
    %v79 = vld [vmem:[%s0 + $0xf4] sm:$0xf]
    %v80 = vld [vmem:[%s0 + $0xf8] sm:$0xf]
    %v81 = vld [vmem:[%s0 + $0xfc] sm:$0xf]
    %v82 = vunpack.c.l.bf16 %v18
    %v83 = vunpack.c.l.bf16 %v19
    %v84 = vunpack.c.l.bf16 %v20
    %v85 = vunpack.c.l.bf16 %v21
    %v86 = vunpack.c.l.bf16 %v22
    %v87 = vunpack.c.l.bf16 %v23
    %v88 = vunpack.c.l.bf16 %v24
    %v89 = vunpack.c.l.bf16 %v25
    %v90 = vunpack.c.l.bf16 %v26
    %v91 = vunpack.c.l.bf16 %v27
    %v92 = vunpack.c.l.bf16 %v28
    %v93 = vunpack.c.l.bf16 %v29
    %v94 = vunpack.c.l.bf16 %v30
    %v95 = vunpack.c.l.bf16 %v31
    %v96 = vunpack.c.l.bf16 %v32
    %v97 = vunpack.c.l.bf16 %v33
    %v98 = vunpack.c.l.bf16 %v34
    %v99 = vunpack.c.l.bf16 %v35
    %v100 = vunpack.c.l.bf16 %v36
    %v101 = vunpack.c.l.bf16 %v37
    %v102 = vunpack.c.l.bf16 %v38
    %v103 = vunpack.c.l.bf16 %v39
    %v104 = vunpack.c.l.bf16 %v40
    %v105 = vunpack.c.l.bf16 %v41
    %v106 = vunpack.c.l.bf16 %v42
    %v107 = vunpack.c.l.bf16 %v43
    %v108 = vunpack.c.l.bf16 %v44
    %v109 = vunpack.c.l.bf16 %v45
    %v110 = vunpack.c.l.bf16 %v46
    %v111 = vunpack.c.l.bf16 %v47
    %v112 = vunpack.c.l.bf16 %v48
    %v113 = vunpack.c.l.bf16 %v49
    %v114 = vunpack.c.l.bf16 %v50
    %v115 = vunpack.c.l.bf16 %v51
    %v116 = vunpack.c.l.bf16 %v52
    %v117 = vunpack.c.l.bf16 %v53
    %v118 = vunpack.c.l.bf16 %v54
    %v119 = vunpack.c.l.bf16 %v55
    %v120 = vunpack.c.l.bf16 %v56
    %v121 = vunpack.c.l.bf16 %v57
    %v122 = vunpack.c.l.bf16 %v58
    %v123 = vunpack.c.l.bf16 %v59
    %v124 = vunpack.c.l.bf16 %v60
    %v125 = vunpack.c.l.bf16 %v61
    %v126 = vunpack.c.l.bf16 %v62
    %v127 = vunpack.c.l.bf16 %v63
    %v128 = vunpack.c.l.bf16 %v64
    %v129 = vunpack.c.l.bf16 %v65
    %v130 = vunpack.c.l.bf16 %v66
    %v131 = vunpack.c.l.bf16 %v67
    %v132 = vunpack.c.l.bf16 %v68
    %v133 = vunpack.c.l.bf16 %v69
    %v134 = vunpack.c.l.bf16 %v70
    %v135 = vunpack.c.l.bf16 %v71
    %v136 = vunpack.c.l.bf16 %v72
    %v137 = vunpack.c.l.bf16 %v73
    %v138 = vunpack.c.l.bf16 %v74
    %v139 = vunpack.c.l.bf16 %v75
    %v140 = vunpack.c.l.bf16 %v76
    %v141 = vunpack.c.l.bf16 %v77
    %v142 = vunpack.c.l.bf16 %v78
    %v143 = vunpack.c.l.bf16 %v79
    %v144 = vunpack.c.l.bf16 %v80
    %v145 = vunpack.c.l.bf16 %v81
    %v146 = vld [vmem:[%s2] sm:$0x1]
    %v148 = vlaneseq
    %v149 = vshrl.u32 %v148, 7
    %v150 = vsub.s32 0, %v149
    %v151 = vrot.slane %v146, %v150
    %v153 = vmul.f32 %v82, %v151
    %v154 = vmul.f32 %v83, %v151
    %v155 = vmul.f32 %v84, %v151
    %v156 = vmul.f32 %v85, %v151
    %v157 = vmul.f32 %v86, %v151
    %v158 = vmul.f32 %v87, %v151
    %v159 = vmul.f32 %v88, %v151
    %v160 = vmul.f32 %v89, %v151
    %v161 = vmul.f32 %v90, %v151
    %v162 = vmul.f32 %v91, %v151
    %v163 = vmul.f32 %v92, %v151
    %v164 = vmul.f32 %v93, %v151
    %v165 = vmul.f32 %v94, %v151
    %v166 = vmul.f32 %v95, %v151
    %v167 = vmul.f32 %v96, %v151
    %v168 = vmul.f32 %v97, %v151
    %v169 = vmul.f32 %v98, %v151
    %v170 = vmul.f32 %v99, %v151
    %v171 = vmul.f32 %v100, %v151
    %v172 = vmul.f32 %v101, %v151
    %v173 = vmul.f32 %v102, %v151
    %v174 = vmul.f32 %v103, %v151
    %v175 = vmul.f32 %v104, %v151
    %v176 = vmul.f32 %v105, %v151
    %v177 = vmul.f32 %v106, %v151
    %v178 = vmul.f32 %v107, %v151
    %v179 = vmul.f32 %v108, %v151
    %v180 = vmul.f32 %v109, %v151
    %v181 = vmul.f32 %v110, %v151
    %v182 = vmul.f32 %v111, %v151
    %v183 = vmul.f32 %v112, %v151
    %v184 = vmul.f32 %v113, %v151
    %v185 = vmul.f32 %v114, %v151
    %v186 = vmul.f32 %v115, %v151
    %v187 = vmul.f32 %v116, %v151
    %v188 = vmul.f32 %v117, %v151
    %v189 = vmul.f32 %v118, %v151
    %v190 = vmul.f32 %v119, %v151
    %v191 = vmul.f32 %v120, %v151
    %v192 = vmul.f32 %v121, %v151
    %v193 = vmul.f32 %v122, %v151
    %v194 = vmul.f32 %v123, %v151
    %v195 = vmul.f32 %v124, %v151
    %v196 = vmul.f32 %v125, %v151
    %v197 = vmul.f32 %v126, %v151
    %v198 = vmul.f32 %v127, %v151
    %v199 = vmul.f32 %v128, %v151
    %v200 = vmul.f32 %v129, %v151
    %v201 = vmul.f32 %v130, %v151
    %v202 = vmul.f32 %v131, %v151
    %v203 = vmul.f32 %v132, %v151
    %v204 = vmul.f32 %v133, %v151
    %v205 = vmul.f32 %v134, %v151
    %v206 = vmul.f32 %v135, %v151
    %v207 = vmul.f32 %v136, %v151
    %v208 = vmul.f32 %v137, %v151
    %v209 = vmul.f32 %v138, %v151
    %v210 = vmul.f32 %v139, %v151
    %v211 = vmul.f32 %v140, %v151
    %v212 = vmul.f32 %v141, %v151
    %v213 = vmul.f32 %v142, %v151
    %v214 = vmul.f32 %v143, %v151
    %v215 = vmul.f32 %v144, %v151
    %v216 = vmul.f32 %v145, %v151
    %v217 = vld [vmem:[%s3] sm:$0x1]
    %v219 = vlaneseq
    %v220 = vshrl.u32 %v219, 7
    %v221 = vsub.s32 0, %v220
    %v222 = vrot.slane %v217, %v221
    %v224 = vadd.f32 %v153, %v222
    %v225 = vadd.f32 %v154, %v222
    %v226 = vadd.f32 %v155, %v222
    %v227 = vadd.f32 %v156, %v222
    %v228 = vadd.f32 %v157, %v222
    %v229 = vadd.f32 %v158, %v222
    %v230 = vadd.f32 %v159, %v222
    %v231 = vadd.f32 %v160, %v222
    %v232 = vadd.f32 %v161, %v222
    %v233 = vadd.f32 %v162, %v222
    %v234 = vadd.f32 %v163, %v222
    %v235 = vadd.f32 %v164, %v222
    %v236 = vadd.f32 %v165, %v222
    %v237 = vadd.f32 %v166, %v222
    %v238 = vadd.f32 %v167, %v222
    %v239 = vadd.f32 %v168, %v222
    %v240 = vadd.f32 %v169, %v222
    %v241 = vadd.f32 %v170, %v222
    %v242 = vadd.f32 %v171, %v222
    %v243 = vadd.f32 %v172, %v222
    %v244 = vadd.f32 %v173, %v222
    %v245 = vadd.f32 %v174, %v222
    %v246 = vadd.f32 %v175, %v222
    %v247 = vadd.f32 %v176, %v222
    %v248 = vadd.f32 %v177, %v222
    %v249 = vadd.f32 %v178, %v222
    %v250 = vadd.f32 %v179, %v222
    %v251 = vadd.f32 %v180, %v222
    %v252 = vadd.f32 %v181, %v222
    %v253 = vadd.f32 %v182, %v222
    %v254 = vadd.f32 %v183, %v222
    %v255 = vadd.f32 %v184, %v222
    %v256 = vadd.f32 %v185, %v222
    %v257 = vadd.f32 %v186, %v222
    %v258 = vadd.f32 %v187, %v222
    %v259 = vadd.f32 %v188, %v222
    %v260 = vadd.f32 %v189, %v222
    %v261 = vadd.f32 %v190, %v222
    %v262 = vadd.f32 %v191, %v222
    %v263 = vadd.f32 %v192, %v222
    %v264 = vadd.f32 %v193, %v222
    %v265 = vadd.f32 %v194, %v222
    %v266 = vadd.f32 %v195, %v222
    %v267 = vadd.f32 %v196, %v222
    %v268 = vadd.f32 %v197, %v222
    %v269 = vadd.f32 %v198, %v222
    %v270 = vadd.f32 %v199, %v222
    %v271 = vadd.f32 %v200, %v222
    %v272 = vadd.f32 %v201, %v222
    %v273 = vadd.f32 %v202, %v222
    %v274 = vadd.f32 %v203, %v222
    %v275 = vadd.f32 %v204, %v222
    %v276 = vadd.f32 %v205, %v222
    %v277 = vadd.f32 %v206, %v222
    %v278 = vadd.f32 %v207, %v222
    %v279 = vadd.f32 %v208, %v222
    %v280 = vadd.f32 %v209, %v222
    %v281 = vadd.f32 %v210, %v222
    %v282 = vadd.f32 %v211, %v222
    %v283 = vadd.f32 %v212, %v222
    %v284 = vadd.f32 %v213, %v222
    %v285 = vadd.f32 %v214, %v222
    %v286 = vadd.f32 %v215, %v222
    %v287 = vadd.f32 %v216, %v222
    %v288 = vld [vmem:[%s1] sm:$0xff]
    %v289 = vld [vmem:[%s1 + $0x8] sm:$0xff]
    %v290 = vld [vmem:[%s1 + $0x10] sm:$0xff]
    %v291 = vld [vmem:[%s1 + $0x18] sm:$0xff]
    %v292 = vld [vmem:[%s1 + $0x20] sm:$0xff]
    %v293 = vld [vmem:[%s1 + $0x28] sm:$0xff]
    %v294 = vld [vmem:[%s1 + $0x30] sm:$0xff]
    %v295 = vld [vmem:[%s1 + $0x38] sm:$0xff]
    %v296 = vld [vmem:[%s1 + $0x40] sm:$0xff]
    %v297 = vld [vmem:[%s1 + $0x48] sm:$0xff]
    %v298 = vld [vmem:[%s1 + $0x50] sm:$0xff]
    %v299 = vld [vmem:[%s1 + $0x58] sm:$0xff]
    %v300 = vld [vmem:[%s1 + $0x60] sm:$0xff]
    %v301 = vld [vmem:[%s1 + $0x68] sm:$0xff]
    %v302 = vld [vmem:[%s1 + $0x70] sm:$0xff]
    %v303 = vld [vmem:[%s1 + $0x78] sm:$0xff]
    %v304 = vld [vmem:[%s1 + $0x80] sm:$0xff]
    %v305 = vld [vmem:[%s1 + $0x88] sm:$0xff]
    %v306 = vld [vmem:[%s1 + $0x90] sm:$0xff]
    %v307 = vld [vmem:[%s1 + $0x98] sm:$0xff]
    %v308 = vld [vmem:[%s1 + $0xa0] sm:$0xff]
    %v309 = vld [vmem:[%s1 + $0xa8] sm:$0xff]
    %v310 = vld [vmem:[%s1 + $0xb0] sm:$0xff]
    %v311 = vld [vmem:[%s1 + $0xb8] sm:$0xff]
    %v312 = vld [vmem:[%s1 + $0xc0] sm:$0xff]
    %v313 = vld [vmem:[%s1 + $0xc8] sm:$0xff]
    %v314 = vld [vmem:[%s1 + $0xd0] sm:$0xff]
    %v315 = vld [vmem:[%s1 + $0xd8] sm:$0xff]
    %v316 = vld [vmem:[%s1 + $0xe0] sm:$0xff]
    %v317 = vld [vmem:[%s1 + $0xe8] sm:$0xff]
    %v318 = vld [vmem:[%s1 + $0xf0] sm:$0xff]
    %v319 = vld [vmem:[%s1 + $0xf8] sm:$0xff]
    %v320 = vld [vmem:[%s1 + $0x100] sm:$0xff]
    %v321 = vld [vmem:[%s1 + $0x108] sm:$0xff]
    %v322 = vld [vmem:[%s1 + $0x110] sm:$0xff]
    %v323 = vld [vmem:[%s1 + $0x118] sm:$0xff]
    %v324 = vld [vmem:[%s1 + $0x120] sm:$0xff]
    %v325 = vld [vmem:[%s1 + $0x128] sm:$0xff]
    %v326 = vld [vmem:[%s1 + $0x130] sm:$0xff]
    %v327 = vld [vmem:[%s1 + $0x138] sm:$0xff]
    %v328 = vld [vmem:[%s1 + $0x140] sm:$0xff]
    %v329 = vld [vmem:[%s1 + $0x148] sm:$0xff]
    %v330 = vld [vmem:[%s1 + $0x150] sm:$0xff]
    %v331 = vld [vmem:[%s1 + $0x158] sm:$0xff]
    %v332 = vld [vmem:[%s1 + $0x160] sm:$0xff]
    %v333 = vld [vmem:[%s1 + $0x168] sm:$0xff]
    %v334 = vld [vmem:[%s1 + $0x170] sm:$0xff]
    %v335 = vld [vmem:[%s1 + $0x178] sm:$0xff]
    %v336 = vld [vmem:[%s1 + $0x180] sm:$0xff]
    %v337 = vld [vmem:[%s1 + $0x188] sm:$0xff]
    %v338 = vld [vmem:[%s1 + $0x190] sm:$0xff]
    %v339 = vld [vmem:[%s1 + $0x198] sm:$0xff]
    %v340 = vld [vmem:[%s1 + $0x1a0] sm:$0xff]
    %v341 = vld [vmem:[%s1 + $0x1a8] sm:$0xff]
    %v342 = vld [vmem:[%s1 + $0x1b0] sm:$0xff]
    %v343 = vld [vmem:[%s1 + $0x1b8] sm:$0xff]
    %v344 = vld [vmem:[%s1 + $0x1c0] sm:$0xff]
    %v345 = vld [vmem:[%s1 + $0x1c8] sm:$0xff]
    %v346 = vld [vmem:[%s1 + $0x1d0] sm:$0xff]
    %v347 = vld [vmem:[%s1 + $0x1d8] sm:$0xff]
    %v348 = vld [vmem:[%s1 + $0x1e0] sm:$0xff]
    %v349 = vld [vmem:[%s1 + $0x1e8] sm:$0xff]
    %v350 = vld [vmem:[%s1 + $0x1f0] sm:$0xff]
    %v351 = vld [vmem:[%s1 + $0x1f8] sm:$0xff]
    %v352 = vadd.f32 %v224, %v288
    %v353 = vadd.f32 %v225, %v289
    %v354 = vadd.f32 %v226, %v290
    %v355 = vadd.f32 %v227, %v291
    %v356 = vadd.f32 %v228, %v292
    %v357 = vadd.f32 %v229, %v293
    %v358 = vadd.f32 %v230, %v294
    %v359 = vadd.f32 %v231, %v295
    %v360 = vadd.f32 %v232, %v296
    %v361 = vadd.f32 %v233, %v297
    %v362 = vadd.f32 %v234, %v298
    %v363 = vadd.f32 %v235, %v299
    %v364 = vadd.f32 %v236, %v300
    %v365 = vadd.f32 %v237, %v301
    %v366 = vadd.f32 %v238, %v302
    %v367 = vadd.f32 %v239, %v303
    %v368 = vadd.f32 %v240, %v304
    %v369 = vadd.f32 %v241, %v305
    %v370 = vadd.f32 %v242, %v306
    %v371 = vadd.f32 %v243, %v307
    %v372 = vadd.f32 %v244, %v308
    %v373 = vadd.f32 %v245, %v309
    %v374 = vadd.f32 %v246, %v310
    %v375 = vadd.f32 %v247, %v311
    %v376 = vadd.f32 %v248, %v312
    %v377 = vadd.f32 %v249, %v313
    %v378 = vadd.f32 %v250, %v314
    %v379 = vadd.f32 %v251, %v315
    %v380 = vadd.f32 %v252, %v316
    %v381 = vadd.f32 %v253, %v317
    %v382 = vadd.f32 %v254, %v318
    %v383 = vadd.f32 %v255, %v319
    %v384 = vadd.f32 %v256, %v320
    %v385 = vadd.f32 %v257, %v321
    %v386 = vadd.f32 %v258, %v322
    %v387 = vadd.f32 %v259, %v323
    %v388 = vadd.f32 %v260, %v324
    %v389 = vadd.f32 %v261, %v325
    %v390 = vadd.f32 %v262, %v326
    %v391 = vadd.f32 %v263, %v327
    %v392 = vadd.f32 %v264, %v328
    %v393 = vadd.f32 %v265, %v329
    %v394 = vadd.f32 %v266, %v330
    %v395 = vadd.f32 %v267, %v331
    %v396 = vadd.f32 %v268, %v332
    %v397 = vadd.f32 %v269, %v333
    %v398 = vadd.f32 %v270, %v334
    %v399 = vadd.f32 %v271, %v335
    %v400 = vadd.f32 %v272, %v336
    %v401 = vadd.f32 %v273, %v337
    %v402 = vadd.f32 %v274, %v338
    %v403 = vadd.f32 %v275, %v339
    %v404 = vadd.f32 %v276, %v340
    %v405 = vadd.f32 %v277, %v341
    %v406 = vadd.f32 %v278, %v342
    %v407 = vadd.f32 %v279, %v343
    %v408 = vadd.f32 %v280, %v344
    %v409 = vadd.f32 %v281, %v345
    %v410 = vadd.f32 %v282, %v346
    %v411 = vadd.f32 %v283, %v347
    %v412 = vadd.f32 %v284, %v348
    %v413 = vadd.f32 %v285, %v349
    %v414 = vadd.f32 %v286, %v350
    %v415 = vadd.f32 %v287, %v351
    %v416 = vmax.f32 %v352, 0.0
    %v417 = vmax.f32 %v353, 0.0
    %v418 = vmax.f32 %v354, 0.0
    %v419 = vmax.f32 %v355, 0.0
    %v420 = vmax.f32 %v356, 0.0
    %v421 = vmax.f32 %v357, 0.0
    %v422 = vmax.f32 %v358, 0.0
    %v423 = vmax.f32 %v359, 0.0
    %v424 = vmax.f32 %v360, 0.0
    %v425 = vmax.f32 %v361, 0.0
    %v426 = vmax.f32 %v362, 0.0
    %v427 = vmax.f32 %v363, 0.0
    %v428 = vmax.f32 %v364, 0.0
    %v429 = vmax.f32 %v365, 0.0
    %v430 = vmax.f32 %v366, 0.0
    %v431 = vmax.f32 %v367, 0.0
    %v432 = vmax.f32 %v368, 0.0
    %v433 = vmax.f32 %v369, 0.0
    %v434 = vmax.f32 %v370, 0.0
    %v435 = vmax.f32 %v371, 0.0
    %v436 = vmax.f32 %v372, 0.0
    %v437 = vmax.f32 %v373, 0.0
    %v438 = vmax.f32 %v374, 0.0
    %v439 = vmax.f32 %v375, 0.0
    %v440 = vmax.f32 %v376, 0.0
    %v441 = vmax.f32 %v377, 0.0
    %v442 = vmax.f32 %v378, 0.0
    %v443 = vmax.f32 %v379, 0.0
    %v444 = vmax.f32 %v380, 0.0
    %v445 = vmax.f32 %v381, 0.0
    %v446 = vmax.f32 %v382, 0.0
    %v447 = vmax.f32 %v383, 0.0
    %v448 = vmax.f32 %v384, 0.0
    %v449 = vmax.f32 %v385, 0.0
    %v450 = vmax.f32 %v386, 0.0
    %v451 = vmax.f32 %v387, 0.0
    %v452 = vmax.f32 %v388, 0.0
    %v453 = vmax.f32 %v389, 0.0
    %v454 = vmax.f32 %v390, 0.0
    %v455 = vmax.f32 %v391, 0.0
    %v456 = vmax.f32 %v392, 0.0
    %v457 = vmax.f32 %v393, 0.0
    %v458 = vmax.f32 %v394, 0.0
    %v459 = vmax.f32 %v395, 0.0
    %v460 = vmax.f32 %v396, 0.0
    %v461 = vmax.f32 %v397, 0.0
    %v462 = vmax.f32 %v398, 0.0
    %v463 = vmax.f32 %v399, 0.0
    %v464 = vmax.f32 %v400, 0.0
    %v465 = vmax.f32 %v401, 0.0
    %v466 = vmax.f32 %v402, 0.0
    %v467 = vmax.f32 %v403, 0.0
    %v468 = vmax.f32 %v404, 0.0
    %v469 = vmax.f32 %v405, 0.0
    %v470 = vmax.f32 %v406, 0.0
    %v471 = vmax.f32 %v407, 0.0
    %v472 = vmax.f32 %v408, 0.0
    %v473 = vmax.f32 %v409, 0.0
    %v474 = vmax.f32 %v410, 0.0
    %v475 = vmax.f32 %v411, 0.0
    %v476 = vmax.f32 %v412, 0.0
    %v477 = vmax.f32 %v413, 0.0
    %v478 = vmax.f32 %v414, 0.0
    %v479 = vmax.f32 %v415, 0.0
    %480 = vst [vmem:[#allocation2] sm:$0xff] %v416
    %481 = vst [vmem:[#allocation2 + $0x8] sm:$0xff] %v417
    %482 = vst [vmem:[#allocation2 + $0x10] sm:$0xff] %v418
    %483 = vst [vmem:[#allocation2 + $0x18] sm:$0xff] %v419
    %484 = vst [vmem:[#allocation2 + $0x20] sm:$0xff] %v420
    %485 = vst [vmem:[#allocation2 + $0x28] sm:$0xff] %v421
    %486 = vst [vmem:[#allocation2 + $0x30] sm:$0xff] %v422
    %487 = vst [vmem:[#allocation2 + $0x38] sm:$0xff] %v423
    %488 = vst [vmem:[#allocation2 + $0x40] sm:$0xff] %v424
    %489 = vst [vmem:[#allocation2 + $0x48] sm:$0xff] %v425
    %490 = vst [vmem:[#allocation2 + $0x50] sm:$0xff] %v426
    %491 = vst [vmem:[#allocation2 + $0x58] sm:$0xff] %v427
    %492 = vst [vmem:[#allocation2 + $0x60] sm:$0xff] %v428
    %493 = vst [vmem:[#allocation2 + $0x68] sm:$0xff] %v429
    %494 = vst [vmem:[#allocation2 + $0x70] sm:$0xff] %v430
    %495 = vst [vmem:[#allocation2 + $0x78] sm:$0xff] %v431
    %496 = vst [vmem:[#allocation2 + $0x80] sm:$0xff] %v432
    %497 = vst [vmem:[#allocation2 + $0x88] sm:$0xff] %v433
    %498 = vst [vmem:[#allocation2 + $0x90] sm:$0xff] %v434
    %499 = vst [vmem:[#allocation2 + $0x98] sm:$0xff] %v435
    %500 = vst [vmem:[#allocation2 + $0xa0] sm:$0xff] %v436
    %501 = vst [vmem:[#allocation2 + $0xa8] sm:$0xff] %v437
    %502 = vst [vmem:[#allocation2 + $0xb0] sm:$0xff] %v438
    %503 = vst [vmem:[#allocation2 + $0xb8] sm:$0xff] %v439
    %504 = vst [vmem:[#allocation2 + $0xc0] sm:$0xff] %v440
    %505 = vst [vmem:[#allocation2 + $0xc8] sm:$0xff] %v441
    %506 = vst [vmem:[#allocation2 + $0xd0] sm:$0xff] %v442
    %507 = vst [vmem:[#allocation2 + $0xd8] sm:$0xff] %v443
    %508 = vst [vmem:[#allocation2 + $0xe0] sm:$0xff] %v444
    %509 = vst [vmem:[#allocation2 + $0xe8] sm:$0xff] %v445
    %510 = vst [vmem:[#allocation2 + $0xf0] sm:$0xff] %v446
    %511 = vst [vmem:[#allocation2 + $0xf8] sm:$0xff] %v447
    %512 = vst [vmem:[#allocation2 + $0x100] sm:$0xff] %v448
    %513 = vst [vmem:[#allocation2 + $0x108] sm:$0xff] %v449
    %514 = vst [vmem:[#allocation2 + $0x110] sm:$0xff] %v450
    %515 = vst [vmem:[#allocation2 + $0x118] sm:$0xff] %v451
    %516 = vst [vmem:[#allocation2 + $0x120] sm:$0xff] %v452
    %517 = vst [vmem:[#allocation2 + $0x128] sm:$0xff] %v453
    %518 = vst [vmem:[#allocation2 + $0x130] sm:$0xff] %v454
    %519 = vst [vmem:[#allocation2 + $0x138] sm:$0xff] %v455
    %520 = vst [vmem:[#allocation2 + $0x140] sm:$0xff] %v456
    %521 = vst [vmem:[#allocation2 + $0x148] sm:$0xff] %v457
    %522 = vst [vmem:[#allocation2 + $0x150] sm:$0xff] %v458
    %523 = vst [vmem:[#allocation2 + $0x158] sm:$0xff] %v459
    %524 = vst [vmem:[#allocation2 + $0x160] sm:$0xff] %v460
    %525 = vst [vmem:[#allocation2 + $0x168] sm:$0xff] %v461
    %526 = vst [vmem:[#allocation2 + $0x170] sm:$0xff] %v462
    %527 = vst [vmem:[#allocation2 + $0x178] sm:$0xff] %v463
    %528 = vst [vmem:[#allocation2 + $0x180] sm:$0xff] %v464
    %529 = vst [vmem:[#allocation2 + $0x188] sm:$0xff] %v465
    %530 = vst [vmem:[#allocation2 + $0x190] sm:$0xff] %v466
    %531 = vst [vmem:[#allocation2 + $0x198] sm:$0xff] %v467
    %532 = vst [vmem:[#allocation2 + $0x1a0] sm:$0xff] %v468
    %533 = vst [vmem:[#allocation2 + $0x1a8] sm:$0xff] %v469
    %534 = vst [vmem:[#allocation2 + $0x1b0] sm:$0xff] %v470
    %535 = vst [vmem:[#allocation2 + $0x1b8] sm:$0xff] %v471
    %536 = vst [vmem:[#allocation2 + $0x1c0] sm:$0xff] %v472
    %537 = vst [vmem:[#allocation2 + $0x1c8] sm:$0xff] %v473
    %538 = vst [vmem:[#allocation2 + $0x1d0] sm:$0xff] %v474
    %539 = vst [vmem:[#allocation2 + $0x1d8] sm:$0xff] %v475
    %540 = vst [vmem:[#allocation2 + $0x1e0] sm:$0xff] %v476
    %541 = vst [vmem:[#allocation2 + $0x1e8] sm:$0xff] %v477
    %542 = vst [vmem:[#allocation2 + $0x1f0] sm:$0xff] %v478
    %543 = vst [vmem:[#allocation2 + $0x1f8] sm:$0xff] %v479
    // Predicated region
    $region18: #{residual_block_forward.5} parent=1 // pred_check
      _
    $region19: #{residual_block_forward.5} parent=1 // pred_check_branch
      %545 = sbr.rel (0) target = $region21
    $region20: #{residual_block_forward.5} parent=1 // pred_region
      %s547 = ssub.s32 8192, 8192
      %548 = vsyncadd [#allocation3], %s547
      %s549 = sshll.u32 [#allocation2], 4
      %s550 = int_to_ptr.vmem [resolvable:$true] %s549
      %555 = dma.vmem_to_hbm [thread:$0]  %s550, 8192, %s4, [#allocation3], 128, 128, 8
    $region21: #{residual_block_forward.5} parent=1 // pred_fallthru
      _
    // Predicated region
    $region22: #{residual_block_forward.5} parent=1 // pred_check
      _
    $region23: #{residual_block_forward.5} parent=1 // pred_check_branch
      %557 = sbr.rel (0) target = $region25
    $region24: #{residual_block_forward.5} parent=1 // pred_region
      %558 = dma.done [#allocation3], 8192
    $region25: #{residual_block_forward.5} parent=1 // pred_fallthru
      _
    %559 = vsyncpa [#allocation3], 1

// kernel: residual_block_forward.3
$region0: #{residual_block_forward.3}
  #allocation0 [shape = 'u32[]', space=smem, size = 0x4, offset = 0x4, fixed_abs, tag = 'smem constant byte address 0x4 - core index']
  #allocation1 [shape = 'u32[144,128]{1,0:T(1,128)}', space=vmem, size = 0x12000, scoped, tag = 'internal scratch']
  #allocation2 [shape = 'f32[18,18,128]{2,1,0:T(8,128)}', space=vmem, size = 0x36000, scoped, tag = 'scratch operand']
  #allocation3 [shape = 'bf16[256,1152]{1,0:T(8,128)(2,1)}', space=vmem, size = 0x90000, scoped, tag = 'scratch operand']
  %s0 = inlined_call_operand.vmem [shape: f32[2,16,16,128], index: 0, kind: input, shape index: {}]
  %s1 = inlined_call_operand.vmem [shape: bf16[1152,128], index: 1, kind: input, shape index: {}]
  %s2 = inlined_call_operand.vmem [shape: bf16[2,16,16,128], index: 2, kind: output, shape index: {0}]
  %s3 = inlined_call_operand.vmem [shape: f32[2,2,128], index: 3, kind: output, shape index: {1}]
  %4 = xla_tuple %s2, %s3
  %s5 = sld [smem:[#allocation0]]
  $region49: #{residual_block_forward.3} parent=0
    _
  %s7 = ssub.s32 1, %s5
  %s8 = scalar_select 0, %s7, %s5
  loop: start=0, step=1, limit=4
  $region2: #{residual_block_forward.3} parent=0 // loop_pre_header
    _
  $region3: #{residual_block_forward.3} parent=0 // loop_header
    %s10 = sphi 0, %s14
    %p11 = scmp.ge.s32.totalorder %s10, 4
    %s20 = sphi 0, %s22
    %s23 = sphi 0, %s20
    %s24 = sphi 0, %s23
    %s40 = sphi 0, %s24
    %s44 = sphi 0, %s44
    %s46 = sphi 0, %s44
    %s47 = sphi 0, %s46
    %s61 = sphi 0, %s47
    %s67 = sphi 0, %s69
    %s70 = sphi 0, %s67
    %s71 = sphi 0, %s70
    %s87 = sphi 0, %s71
    %s93 = sphi 0, %s95
    %s96 = sphi 0, %s93
    %s97 = sphi 0, %s96
    %s113 = sphi 0, %s97
  $region4: #{residual_block_forward.3} parent=0 // loop_header_branch
    %13 = sbr.rel (%p11) target = $region8
  $region5: #{residual_block_forward.3} parent=0 // loop_body
    %s15 = ssub.s32 %s10, 1
    %s16 = ssub.s32 %s10, 2
    %s17 = sadd.s32 %s10, 1
    %s18 = ssub.s32 %s10, %s17
    %p19 = scmp.eq.s32.totalorder %s18, 0
    %s21 = sadd.s32 %s20, 1
    %s22 = scalar_select %p19, %s20, %s21
    %p25 = pneg %p19
    %p26 = scmp.eq.s32.totalorder %s10, 1
    %p27 = por %p25, %p26
    %p28 = scmp.ne.s32.totalorder %s20, %s23
    %p29 = scmp.eq.s32.totalorder %s10, 0
    %p30 = por %p28, %p29
    %p31 = scmp.ne.s32.totalorder %s20, %s23
    %p32 = scmp.eq.s32.totalorder %s15, 1
    %p33 = por %p31, %p32
    %p34 = scmp.ne.s32.totalorder %s23, %s24
    %p35 = scmp.eq.s32.totalorder %s15, 0
    %p36 = por %p34, %p35
    %p37 = scmp.ne.s32.totalorder %s23, %s24
    %p38 = scmp.eq.s32.totalorder %s16, 1
    %p39 = por %p37, %p38
    %p41 = scmp.ne.s32.totalorder %s24, %s40
    %p42 = scmp.eq.s32.totalorder %s16, 0
    %p43 = por %p41, %p42
    %s45 = sadd.s32 %s44, 1
    %p48 = scmp.eq.s32.totalorder %s10, 1
    %p49 = scmp.ne.s32.totalorder %s44, %s46
    %p50 = scmp.eq.s32.totalorder %s10, 0
    %p51 = por %p49, %p50
    %p52 = scmp.ne.s32.totalorder %s44, %s46
    %p53 = scmp.eq.s32.totalorder %s15, 1
    %p54 = por %p52, %p53
    %p55 = scmp.ne.s32.totalorder %s46, %s47
    %p56 = scmp.eq.s32.totalorder %s15, 0
    %p57 = por %p55, %p56
    %p58 = scmp.ne.s32.totalorder %s46, %s47
    %p59 = scmp.eq.s32.totalorder %s16, 1
    %p60 = por %p58, %p59
    %p62 = scmp.ne.s32.totalorder %s47, %s61
    %p63 = scmp.eq.s32.totalorder %s16, 0
    %p64 = por %p62, %p63
    %s65 = ssub.s32 %s10, %s17
    %p66 = scmp.eq.s32.totalorder %s65, 0
    %s68 = sadd.s32 %s67, 1
    %s69 = scalar_select %p66, %s67, %s68
    %p72 = pneg %p66
    %p73 = scmp.eq.s32.totalorder %s10, 1
    %p74 = por %p72, %p73
    %p75 = scmp.ne.s32.totalorder %s67, %s70
    %p76 = scmp.eq.s32.totalorder %s10, 0
    %p77 = por %p75, %p76
    %p78 = scmp.ne.s32.totalorder %s67, %s70
    %p79 = scmp.eq.s32.totalorder %s15, 1
    %p80 = por %p78, %p79
    %p81 = scmp.ne.s32.totalorder %s70, %s71
    %p82 = scmp.eq.s32.totalorder %s15, 0
    %p83 = por %p81, %p82
    %p84 = scmp.ne.s32.totalorder %s70, %s71
    %p85 = scmp.eq.s32.totalorder %s16, 1
    %p86 = por %p84, %p85
    %p88 = scmp.ne.s32.totalorder %s71, %s87
    %p89 = scmp.eq.s32.totalorder %s16, 0
    %p90 = por %p88, %p89
    %s91 = ssub.s32 %s10, %s17
    %p92 = scmp.eq.s32.totalorder %s91, 0
    %s94 = sadd.s32 %s93, 1
    %s95 = scalar_select %p92, %s93, %s94
    %p98 = pneg %p92
    %p99 = scmp.eq.s32.totalorder %s10, 1
    %p100 = por %p98, %p99
    %p101 = scmp.ne.s32.totalorder %s93, %s96
    %p102 = scmp.eq.s32.totalorder %s10, 0
    %p103 = por %p101, %p102
    %p104 = scmp.ne.s32.totalorder %s93, %s96
    %p105 = scmp.eq.s32.totalorder %s15, 1
    %p106 = por %p104, %p105
    %p107 = scmp.ne.s32.totalorder %s96, %s97
    %p108 = scmp.eq.s32.totalorder %s15, 0
    %p109 = por %p107, %p108
    %p110 = scmp.ne.s32.totalorder %s96, %s97
    %p111 = scmp.eq.s32.totalorder %s16, 1
    %p112 = por %p110, %p111
    %p114 = scmp.ne.s32.totalorder %s97, %s113
    %p115 = scmp.eq.s32.totalorder %s16, 0
    %p116 = por %p114, %p115
    %p117 = scmp.le.s32.totalorder 1, %s10
    %p118 = scmp.lt.s32.totalorder %s10, 3
    %p119 = pnand %p117, %p118
    %p120 = pneg %p119
    // Predicated region
    $region9: #{residual_block_forward.3} parent=5 // pred_check
      _
    $region10: #{residual_block_forward.3} parent=5 // pred_check_branch
      %122 = sbr.rel (%p119) target = $region12
    $region11: #{residual_block_forward.3} parent=5 // pred_region
      %s123 = ssub.s32 %s10, 1
      // Predicated region
      $region13: #{residual_block_forward.3} parent=11 // pred_check
        %p124 = pneg %p57
      $region14: #{residual_block_forward.3} parent=11 // pred_check_branch
        %126 = sbr.rel (%p124) target = $region16
      $region15: #{residual_block_forward.3} parent=11 // pred_region
        _
      $region16: #{residual_block_forward.3} parent=11 // pred_fallthru
        _
    $region12: #{residual_block_forward.3} parent=5 // pred_fallthru
      _
    %p127 = scmp.lt.s32.totalorder %s10, 2
    // Predicated region
    $region17: #{residual_block_forward.3} parent=5 // pred_check
      %p128 = pneg %p127
    $region18: #{residual_block_forward.3} parent=5 // pred_check_branch
      %130 = sbr.rel (%p128) target = $region20
    $region19: #{residual_block_forward.3} parent=5 // pred_region
      // Predicated region
      $region21: #{residual_block_forward.3} parent=19 // pred_check
        %p131 = pneg %p30
      $region22: #{residual_block_forward.3} parent=19 // pred_check_branch
        %133 = sbr.rel (%p131) target = $region24
      $region23: #{residual_block_forward.3} parent=19 // pred_region
        %p134 = scmp.lt.s32.totalorder %s10, 1
        %s135 = scalar_select %p134, %s10, 1
        %s136 = smul.addr %s135, 32
        %s137 = smul.addr %s136, 8
        %s138 = scalar_lea.vmem %s0, %s137
      $region24: #{residual_block_forward.3} parent=19 // pred_fallthru
        _
    $region20: #{residual_block_forward.3} parent=5 // pred_fallthru
      _
    %p139 = scmp.le.s32.totalorder 1, %s10
    %p140 = scmp.lt.s32.totalorder %s10, 3
    %p141 = pnand %p139, %p140
    %p142 = pneg %p141
    // Predicated region
    $region25: #{residual_block_forward.3} parent=5 // pred_check
      _
    $region26: #{residual_block_forward.3} parent=5 // pred_check_branch
      %144 = sbr.rel (%p141) target = $region28
    $region27: #{residual_block_forward.3} parent=5 // pred_region
      %s145 = ssub.s32 %s10, 1
      %p146 = scmp.lt.s32.totalorder %s15, 1
      %s147 = scalar_select %p146, %s15, 1
      %s148 = smul.addr %s147, 32
      %s149 = smul.addr %s148, 8
      %s150 = scalar_lea.vmem %s0, %s149
      %p151 = pneg %p36
      %p152 = pneg %p33
      %p153 = pneg %p57
      %p154 = pneg %p54
      %p155 = pneg %p83
      %p156 = pneg %p80
      %p157 = scmp.lt.s32.totalorder %s15, 1
      %s158 = scalar_select %p157, %s15, 1
      %s159 = smul.addr %s158, 32
      %s160 = smul.addr %s159, 4
      %s161 = scalar_lea.vmem %s2, %s160
      %p162 = pneg %p109
      %p163 = pneg %p106
      %p164 = scmp.lt.s32.totalorder %s15, 1
      %s165 = scalar_select %p164, %s15, 1
      %s166 = smul.addr %s165, 2
      %s167 = scalar_lea.vmem %s3, %s166
      %p168 = scmp.lt.s32.totalorder %s15, 1
      %s169 = scalar_select %p168, %s15, 1
      %s170 = smul.addr %s169, 32
      %s171 = smul.addr %s170, 8
      %s172 = scalar_lea.vmem %s0, %s171
      %p173 = scmp.lt.s32.totalorder %s15, 1
      %s174 = scalar_select %p173, %s15, 1
      %s175 = smul.addr %s174, 32
      %s176 = smul.addr %s175, 4
      %s177 = scalar_lea.vmem %s2, %s176
      %p178 = scmp.lt.s32.totalorder %s15, 1
      %s179 = scalar_select %p178, %s15, 1
      %s180 = smul.addr %s179, 2
      %s181 = scalar_lea.vmem %s3, %s180
      %183 = vst [vmem:[#allocation2] sm:$0xff] 0.0
      %184 = vst [vmem:[#allocation2 + $0x8] sm:$0xff] 0.0
      %185 = vst [vmem:[#allocation2 + $0x10] sm:$0x3] 0.0
      %s186 = scalar_lea.vmem [#allocation2], 408
      %187 = vst [vmem:[%s186] sm:$0xff] 0.0
      %188 = vst [vmem:[%s186 + $0x8] sm:$0xff] 0.0
      %189 = vst [vmem:[%s186 + $0x10] sm:$0x3] 0.0
      %190 = vst [vmem:[#allocation2] sm:$0x1] 0.0
      %191 = vst [vmem:[#allocation2 + $0x18] sm:$0x1] 0.0
      %192 = vst [vmem:[#allocation2 + $0x30] sm:$0x1] 0.0
      %193 = vst [vmem:[#allocation2 + $0x48] sm:$0x1] 0.0
      %194 = vst [vmem:[#allocation2 + $0x60] sm:$0x1] 0.0
      %195 = vst [vmem:[#allocation2 + $0x78] sm:$0x1] 0.0
      %196 = vst [vmem:[#allocation2 + $0x90] sm:$0x1] 0.0
      %197 = vst [vmem:[#allocation2 + $0xa8] sm:$0x1] 0.0
      %198 = vst [vmem:[#allocation2 + $0xc0] sm:$0x1] 0.0
      %199 = vst [vmem:[#allocation2 + $0xd8] sm:$0x1] 0.0
      %200 = vst [vmem:[#allocation2 + $0xf0] sm:$0x1] 0.0
      %201 = vst [vmem:[#allocation2 + $0x108] sm:$0x1] 0.0
      %202 = vst [vmem:[#allocation2 + $0x120] sm:$0x1] 0.0
      %203 = vst [vmem:[#allocation2 + $0x138] sm:$0x1] 0.0
      %204 = vst [vmem:[#allocation2 + $0x150] sm:$0x1] 0.0
      %205 = vst [vmem:[#allocation2 + $0x168] sm:$0x1] 0.0
      %206 = vst [vmem:[#allocation2 + $0x180] sm:$0x1] 0.0
      %207 = vst [vmem:[#allocation2 + $0x198] sm:$0x1] 0.0
      %208 = vst [vmem:[#allocation2 + $0x11] sm:$0x1] 0.0
      %209 = vst [vmem:[#allocation2 + $0x29] sm:$0x1] 0.0
      %210 = vst [vmem:[#allocation2 + $0x41] sm:$0x1] 0.0
      %211 = vst [vmem:[#allocation2 + $0x59] sm:$0x1] 0.0
      %212 = vst [vmem:[#allocation2 + $0x71] sm:$0x1] 0.0
      %213 = vst [vmem:[#allocation2 + $0x89] sm:$0x1] 0.0
      %214 = vst [vmem:[#allocation2 + $0xa1] sm:$0x1] 0.0
      %215 = vst [vmem:[#allocation2 + $0xb9] sm:$0x1] 0.0
      %216 = vst [vmem:[#allocation2 + $0xd1] sm:$0x1] 0.0
      %217 = vst [vmem:[#allocation2 + $0xe9] sm:$0x1] 0.0
      %218 = vst [vmem:[#allocation2 + $0x101] sm:$0x1] 0.0
      %219 = vst [vmem:[#allocation2 + $0x119] sm:$0x1] 0.0
      %220 = vst [vmem:[#allocation2 + $0x131] sm:$0x1] 0.0
      %221 = vst [vmem:[#allocation2 + $0x149] sm:$0x1] 0.0
      %222 = vst [vmem:[#allocation2 + $0x161] sm:$0x1] 0.0
      %223 = vst [vmem:[#allocation2 + $0x179] sm:$0x1] 0.0
      %224 = vst [vmem:[#allocation2 + $0x191] sm:$0x1] 0.0
      %225 = vst [vmem:[#allocation2 + $0x1a9] sm:$0x1] 0.0
      %v226 = vld [vmem:[%s172] sm:$0xff]
      %v227 = vld [vmem:[%s172 + $0x8] sm:$0xff]
      %v228 = vld [vmem:[%s172 + $0x10] sm:$0xff]
      %v229 = vld [vmem:[%s172 + $0x18] sm:$0xff]
      %v230 = vld [vmem:[%s172 + $0x20] sm:$0xff]
      %v231 = vld [vmem:[%s172 + $0x28] sm:$0xff]
      %v232 = vld [vmem:[%s172 + $0x30] sm:$0xff]
      %v233 = vld [vmem:[%s172 + $0x38] sm:$0xff]
      %v234 = vld [vmem:[%s172 + $0x40] sm:$0xff]
      %v235 = vld [vmem:[%s172 + $0x48] sm:$0xff]
      %v236 = vld [vmem:[%s172 + $0x50] sm:$0xff]
      %v237 = vld [vmem:[%s172 + $0x58] sm:$0xff]
      %v238 = vld [vmem:[%s172 + $0x60] sm:$0xff]
      %v239 = vld [vmem:[%s172 + $0x68] sm:$0xff]
      %v240 = vld [vmem:[%s172 + $0x70] sm:$0xff]
      %v241 = vld [vmem:[%s172 + $0x78] sm:$0xff]
      %v242 = vld [vmem:[%s172 + $0x80] sm:$0xff]
      %v243 = vld [vmem:[%s172 + $0x88] sm:$0xff]
      %v244 = vld [vmem:[%s172 + $0x90] sm:$0xff]
      %v245 = vld [vmem:[%s172 + $0x98] sm:$0xff]
      %v246 = vld [vmem:[%s172 + $0xa0] sm:$0xff]
      %v247 = vld [vmem:[%s172 + $0xa8] sm:$0xff]
      %v248 = vld [vmem:[%s172 + $0xb0] sm:$0xff]
      %v249 = vld [vmem:[%s172 + $0xb8] sm:$0xff]
      %v250 = vld [vmem:[%s172 + $0xc0] sm:$0xff]
      %v251 = vld [vmem:[%s172 + $0xc8] sm:$0xff]
      %v252 = vld [vmem:[%s172 + $0xd0] sm:$0xff]
      %v253 = vld [vmem:[%s172 + $0xd8] sm:$0xff]
      %v254 = vld [vmem:[%s172 + $0xe0] sm:$0xff]
      %v255 = vld [vmem:[%s172 + $0xe8] sm:$0xff]
      %v256 = vld [vmem:[%s172 + $0xf0] sm:$0xff]
      %v257 = vld [vmem:[%s172 + $0xf8] sm:$0xff]
      %s258 = scalar_lea.vmem [#allocation2], 24
      %259 = vst [vmem:[%s258 + $0x1] sm:$0xff] %v226
      %260 = vst [vmem:[%s258 + $0x9] sm:$0xff] %v227
      %261 = vst [vmem:[%s258 + $0x19] sm:$0xff] %v228
      %262 = vst [vmem:[%s258 + $0x21] sm:$0xff] %v229
      %263 = vst [vmem:[%s258 + $0x31] sm:$0xff] %v230
      %264 = vst [vmem:[%s258 + $0x39] sm:$0xff] %v231
      %265 = vst [vmem:[%s258 + $0x49] sm:$0xff] %v232
      %266 = vst [vmem:[%s258 + $0x51] sm:$0xff] %v233
      %267 = vst [vmem:[%s258 + $0x61] sm:$0xff] %v234
      %268 = vst [vmem:[%s258 + $0x69] sm:$0xff] %v235
      %269 = vst [vmem:[%s258 + $0x79] sm:$0xff] %v236
      %270 = vst [vmem:[%s258 + $0x81] sm:$0xff] %v237
      %271 = vst [vmem:[%s258 + $0x91] sm:$0xff] %v238
      %272 = vst [vmem:[%s258 + $0x99] sm:$0xff] %v239
      %273 = vst [vmem:[%s258 + $0xa9] sm:$0xff] %v240
      %274 = vst [vmem:[%s258 + $0xb1] sm:$0xff] %v241
      %275 = vst [vmem:[%s258 + $0xc1] sm:$0xff] %v242
      %276 = vst [vmem:[%s258 + $0xc9] sm:$0xff] %v243
      %277 = vst [vmem:[%s258 + $0xd9] sm:$0xff] %v244
      %278 = vst [vmem:[%s258 + $0xe1] sm:$0xff] %v245
      %279 = vst [vmem:[%s258 + $0xf1] sm:$0xff] %v246
      %280 = vst [vmem:[%s258 + $0xf9] sm:$0xff] %v247
      %281 = vst [vmem:[%s258 + $0x109] sm:$0xff] %v248
      %282 = vst [vmem:[%s258 + $0x111] sm:$0xff] %v249
      %283 = vst [vmem:[%s258 + $0x121] sm:$0xff] %v250
      %284 = vst [vmem:[%s258 + $0x129] sm:$0xff] %v251
      %285 = vst [vmem:[%s258 + $0x139] sm:$0xff] %v252
      %286 = vst [vmem:[%s258 + $0x141] sm:$0xff] %v253
      %287 = vst [vmem:[%s258 + $0x151] sm:$0xff] %v254
      %288 = vst [vmem:[%s258 + $0x159] sm:$0xff] %v255
      %289 = vst [vmem:[%s258 + $0x169] sm:$0xff] %v256
      %290 = vst [vmem:[%s258 + $0x171] sm:$0xff] %v257
      %v291 = vld [vmem:[#allocation2] sm:$0xff]
      %v292 = vld [vmem:[#allocation2 + $0x8] sm:$0xff]
      %v293 = vld [vmem:[#allocation2 + $0x18] sm:$0xff]
      %v294 = vld [vmem:[#allocation2 + $0x20] sm:$0xff]
      %v295 = vld [vmem:[#allocation2 + $0x30] sm:$0xff]
      %v296 = vld [vmem:[#allocation2 + $0x38] sm:$0xff]
      %v297 = vld [vmem:[#allocation2 + $0x48] sm:$0xff]
      %v298 = vld [vmem:[#allocation2 + $0x50] sm:$0xff]
      %v299 = vld [vmem:[#allocation2 + $0x60] sm:$0xff]
      %v300 = vld [vmem:[#allocation2 + $0x68] sm:$0xff]
      %v301 = vld [vmem:[#allocation2 + $0x78] sm:$0xff]
      %v302 = vld [vmem:[#allocation2 + $0x80] sm:$0xff]
      %v303 = vld [vmem:[#allocation2 + $0x90] sm:$0xff]
      %v304 = vld [vmem:[#allocation2 + $0x98] sm:$0xff]
      %v305 = vld [vmem:[#allocation2 + $0xa8] sm:$0xff]
      %v306 = vld [vmem:[#allocation2 + $0xb0] sm:$0xff]
      %v307 = vld [vmem:[#allocation2 + $0xc0] sm:$0xff]
      %v308 = vld [vmem:[#allocation2 + $0xc8] sm:$0xff]
      %v309 = vld [vmem:[#allocation2 + $0xd8] sm:$0xff]
      %v310 = vld [vmem:[#allocation2 + $0xe0] sm:$0xff]
      %v311 = vld [vmem:[#allocation2 + $0xf0] sm:$0xff]
      %v312 = vld [vmem:[#allocation2 + $0xf8] sm:$0xff]
      %v313 = vld [vmem:[#allocation2 + $0x108] sm:$0xff]
      %v314 = vld [vmem:[#allocation2 + $0x110] sm:$0xff]
      %v315 = vld [vmem:[#allocation2 + $0x120] sm:$0xff]
      %v316 = vld [vmem:[#allocation2 + $0x128] sm:$0xff]
      %v317 = vld [vmem:[#allocation2 + $0x138] sm:$0xff]
      %v318 = vld [vmem:[#allocation2 + $0x140] sm:$0xff]
      %v319 = vld [vmem:[#allocation2 + $0x150] sm:$0xff]
      %v320 = vld [vmem:[#allocation2 + $0x158] sm:$0xff]
      %v321 = vld [vmem:[#allocation2 + $0x168] sm:$0xff]
      %v322 = vld [vmem:[#allocation2 + $0x170] sm:$0xff]
      %v323 = vpack.c.bf16 %v292, %v291
      %v324 = vpack.c.bf16 %v294, %v293
      %v325 = vpack.c.bf16 %v296, %v295
      %v326 = vpack.c.bf16 %v298, %v297
      %v327 = vpack.c.bf16 %v300, %v299
      %v328 = vpack.c.bf16 %v302, %v301
      %v329 = vpack.c.bf16 %v304, %v303
      %v330 = vpack.c.bf16 %v306, %v305
      %v331 = vpack.c.bf16 %v308, %v307
      %v332 = vpack.c.bf16 %v310, %v309
      %v333 = vpack.c.bf16 %v312, %v311
      %v334 = vpack.c.bf16 %v314, %v313
      %v335 = vpack.c.bf16 %v316, %v315
      %v336 = vpack.c.bf16 %v318, %v317
      %v337 = vpack.c.bf16 %v320, %v319
      %v338 = vpack.c.bf16 %v322, %v321
      %v355 = vunpack.c.l.b16 %v323
      %v356 = vunpack.c.h.b16 %v323
      %v357 = vunpack.c.l.b16 %v324
      %v358 = vunpack.c.h.b16 %v324
      %v359 = vunpack.c.l.b16 %v325
      %v360 = vunpack.c.h.b16 %v325
      %v361 = vunpack.c.l.b16 %v326
      %v362 = vunpack.c.h.b16 %v326
      %v363 = vunpack.c.l.b16 %v327
      %v364 = vunpack.c.h.b16 %v327
      %v365 = vunpack.c.l.b16 %v328
      %v366 = vunpack.c.h.b16 %v328
      %v367 = vunpack.c.l.b16 %v329
      %v368 = vunpack.c.h.b16 %v329
      %v369 = vunpack.c.l.b16 %v330
      %v370 = vunpack.c.h.b16 %v330
      %v371 = vunpack.c.l.b16 %v331
      %v372 = vunpack.c.h.b16 %v331
      %v373 = vunpack.c.l.b16 %v332
      %v374 = vunpack.c.h.b16 %v332
      %v375 = vunpack.c.l.b16 %v333
      %v376 = vunpack.c.h.b16 %v333
      %v377 = vunpack.c.l.b16 %v334
      %v378 = vunpack.c.h.b16 %v334
      %v379 = vunpack.c.l.b16 %v335
      %v380 = vunpack.c.h.b16 %v335
      %v381 = vunpack.c.l.b16 %v336
      %v382 = vunpack.c.h.b16 %v336
      %v383 = vunpack.c.l.b16 %v337
      %v384 = vunpack.c.h.b16 %v337
      %v385 = vunpack.c.l.b16 %v338
      %v386 = vunpack.c.h.b16 %v338
      %v387 = vpack.c.b16 %v355, %v355
      %v388 = vpack.c.b16 %v356, %v356
      %v389 = vpack.c.b16 %v357, %v357
      %v390 = vpack.c.b16 %v358, %v358
      %v391 = vpack.c.b16 %v359, %v359
      %v392 = vpack.c.b16 %v360, %v360
      %v393 = vpack.c.b16 %v361, %v361
      %v394 = vpack.c.b16 %v362, %v362
      %v395 = vpack.c.b16 %v363, %v363
      %v396 = vpack.c.b16 %v364, %v364
      %v397 = vpack.c.b16 %v365, %v365
      %v398 = vpack.c.b16 %v366, %v366
      %v399 = vpack.c.b16 %v367, %v367
      %v400 = vpack.c.b16 %v368, %v368
      %v401 = vpack.c.b16 %v369, %v369
      %v402 = vpack.c.b16 %v370, %v370
      %v403 = vpack.c.b16 %v371, %v371
      %v404 = vpack.c.b16 %v372, %v372
      %v405 = vpack.c.b16 %v373, %v373
      %v406 = vpack.c.b16 %v374, %v374
      %v407 = vpack.c.b16 %v375, %v375
      %v408 = vpack.c.b16 %v376, %v376
      %v409 = vpack.c.b16 %v377, %v377
      %v410 = vpack.c.b16 %v378, %v378
      %v411 = vpack.c.b16 %v379, %v379
      %v412 = vpack.c.b16 %v380, %v380
      %v413 = vpack.c.b16 %v381, %v381
      %v414 = vpack.c.b16 %v382, %v382
      %v415 = vpack.c.b16 %v383, %v383
      %v416 = vpack.c.b16 %v384, %v384
      %v417 = vpack.c.b16 %v385, %v385
      %v418 = vpack.c.b16 %v386, %v386
      %451 = vst [vmem:[#allocation3] sm:$0xf] %v387
      %452 = vst [vmem:[#allocation3 + $0x24] sm:$0xf] %v388
      %453 = vst [vmem:[#allocation3 + $0x48] sm:$0xf] %v389
      %454 = vst [vmem:[#allocation3 + $0x6c] sm:$0xf] %v390
      %455 = vst [vmem:[#allocation3 + $0x90] sm:$0xf] %v391
      %456 = vst [vmem:[#allocation3 + $0xb4] sm:$0xf] %v392
      %457 = vst [vmem:[#allocation3 + $0xd8] sm:$0xf] %v393
      %458 = vst [vmem:[#allocation3 + $0xfc] sm:$0xf] %v394
      %459 = vst [vmem:[#allocation3 + $0x120] sm:$0xf] %v395
      %460 = vst [vmem:[#allocation3 + $0x144] sm:$0xf] %v396
      %461 = vst [vmem:[#allocation3 + $0x168] sm:$0xf] %v397
      %462 = vst [vmem:[#allocation3 + $0x18c] sm:$0xf] %v398
      %463 = vst [vmem:[#allocation3 + $0x1b0] sm:$0xf] %v399
      %464 = vst [vmem:[#allocation3 + $0x1d4] sm:$0xf] %v400
      %465 = vst [vmem:[#allocation3 + $0x1f8] sm:$0xf] %v401
      %466 = vst [vmem:[#allocation3 + $0x21c] sm:$0xf] %v402
      %467 = vst [vmem:[#allocation3 + $0x240] sm:$0xf] %v403
      %468 = vst [vmem:[#allocation3 + $0x264] sm:$0xf] %v404
      %469 = vst [vmem:[#allocation3 + $0x288] sm:$0xf] %v405
      %470 = vst [vmem:[#allocation3 + $0x2ac] sm:$0xf] %v406
      %471 = vst [vmem:[#allocation3 + $0x2d0] sm:$0xf] %v407
      %472 = vst [vmem:[#allocation3 + $0x2f4] sm:$0xf] %v408
      %473 = vst [vmem:[#allocation3 + $0x318] sm:$0xf] %v409
      %474 = vst [vmem:[#allocation3 + $0x33c] sm:$0xf] %v410
      %475 = vst [vmem:[#allocation3 + $0x360] sm:$0xf] %v411
      %476 = vst [vmem:[#allocation3 + $0x384] sm:$0xf] %v412
      %477 = vst [vmem:[#allocation3 + $0x3a8] sm:$0xf] %v413
      %478 = vst [vmem:[#allocation3 + $0x3cc] sm:$0xf] %v414
      %479 = vst [vmem:[#allocation3 + $0x3f0] sm:$0xf] %v415
      %480 = vst [vmem:[#allocation3 + $0x414] sm:$0xf] %v416
      %481 = vst [vmem:[#allocation3 + $0x438] sm:$0xf] %v417
      %482 = vst [vmem:[#allocation3 + $0x45c] sm:$0xf] %v418
      %v483 = vld [vmem:[#allocation2 + $0x1] sm:$0xff]
      %v484 = vld [vmem:[#allocation2 + $0x9] sm:$0xff]
      %v485 = vld [vmem:[#allocation2 + $0x19] sm:$0xff]
      %v486 = vld [vmem:[#allocation2 + $0x21] sm:$0xff]
      %v487 = vld [vmem:[#allocation2 + $0x31] sm:$0xff]
      %v488 = vld [vmem:[#allocation2 + $0x39] sm:$0xff]
      %v489 = vld [vmem:[#allocation2 + $0x49] sm:$0xff]
      %v490 = vld [vmem:[#allocation2 + $0x51] sm:$0xff]
      %v491 = vld [vmem:[#allocation2 + $0x61] sm:$0xff]
      %v492 = vld [vmem:[#allocation2 + $0x69] sm:$0xff]
      %v493 = vld [vmem:[#allocation2 + $0x79] sm:$0xff]
      %v494 = vld [vmem:[#allocation2 + $0x81] sm:$0xff]
      %v495 = vld [vmem:[#allocation2 + $0x91] sm:$0xff]
      %v496 = vld [vmem:[#allocation2 + $0x99] sm:$0xff]
      %v497 = vld [vmem:[#allocation2 + $0xa9] sm:$0xff]
      %v498 = vld [vmem:[#allocation2 + $0xb1] sm:$0xff]
      %v499 = vld [vmem:[#allocation2 + $0xc1] sm:$0xff]
      %v500 = vld [vmem:[#allocation2 + $0xc9] sm:$0xff]
      %v501 = vld [vmem:[#allocation2 + $0xd9] sm:$0xff]
      %v502 = vld [vmem:[#allocation2 + $0xe1] sm:$0xff]
      %v503 = vld [vmem:[#allocation2 + $0xf1] sm:$0xff]
      %v504 = vld [vmem:[#allocation2 + $0xf9] sm:$0xff]
      %v505 = vld [vmem:[#allocation2 + $0x109] sm:$0xff]
      %v506 = vld [vmem:[#allocation2 + $0x111] sm:$0xff]
      %v507 = vld [vmem:[#allocation2 + $0x121] sm:$0xff]
      %v508 = vld [vmem:[#allocation2 + $0x129] sm:$0xff]
      %v509 = vld [vmem:[#allocation2 + $0x139] sm:$0xff]
      %v510 = vld [vmem:[#allocation2 + $0x141] sm:$0xff]
      %v511 = vld [vmem:[#allocation2 + $0x151] sm:$0xff]
      %v512 = vld [vmem:[#allocation2 + $0x159] sm:$0xff]
      %v513 = vld [vmem:[#allocation2 + $0x169] sm:$0xff]
      %v514 = vld [vmem:[#allocation2 + $0x171] sm:$0xff]
      %v515 = vpack.c.bf16 %v484, %v483
      %v516 = vpack.c.bf16 %v486, %v485
      %v517 = vpack.c.bf16 %v488, %v487
      %v518 = vpack.c.bf16 %v490, %v489
      %v519 = vpack.c.bf16 %v492, %v491
      %v520 = vpack.c.bf16 %v494, %v493
      %v521 = vpack.c.bf16 %v496, %v495
      %v522 = vpack.c.bf16 %v498, %v497
      %v523 = vpack.c.bf16 %v500, %v499
      %v524 = vpack.c.bf16 %v502, %v501
      %v525 = vpack.c.bf16 %v504, %v503
      %v526 = vpack.c.bf16 %v506, %v505
      %v527 = vpack.c.bf16 %v508, %v507
      %v528 = vpack.c.bf16 %v510, %v509
      %v529 = vpack.c.bf16 %v512, %v511
      %v530 = vpack.c.bf16 %v514, %v513
      %v547 = vunpack.c.l.b16 %v515
      %v548 = vunpack.c.h.b16 %v515
      %v549 = vunpack.c.l.b16 %v516
      %v550 = vunpack.c.h.b16 %v516
      %v551 = vunpack.c.l.b16 %v517
      %v552 = vunpack.c.h.b16 %v517
      %v553 = vunpack.c.l.b16 %v518
      %v554 = vunpack.c.h.b16 %v518
      %v555 = vunpack.c.l.b16 %v519
      %v556 = vunpack.c.h.b16 %v519
      %v557 = vunpack.c.l.b16 %v520
      %v558 = vunpack.c.h.b16 %v520
      %v559 = vunpack.c.l.b16 %v521
      %v560 = vunpack.c.h.b16 %v521
      %v561 = vunpack.c.l.b16 %v522
      %v562 = vunpack.c.h.b16 %v522
      %v563 = vunpack.c.l.b16 %v523
      %v564 = vunpack.c.h.b16 %v523
      %v565 = vunpack.c.l.b16 %v524
      %v566 = vunpack.c.h.b16 %v524
      %v567 = vunpack.c.l.b16 %v525
      %v568 = vunpack.c.h.b16 %v525
      %v569 = vunpack.c.l.b16 %v526
      %v570 = vunpack.c.h.b16 %v526
      %v571 = vunpack.c.l.b16 %v527
      %v572 = vunpack.c.h.b16 %v527
      %v573 = vunpack.c.l.b16 %v528
      %v574 = vunpack.c.h.b16 %v528
      %v575 = vunpack.c.l.b16 %v529
      %v576 = vunpack.c.h.b16 %v529
      %v577 = vunpack.c.l.b16 %v530
      %v578 = vunpack.c.h.b16 %v530
      %v579 = vpack.c.b16 %v547, %v547
      %v580 = vpack.c.b16 %v548, %v548
      %v581 = vpack.c.b16 %v549, %v549
      %v582 = vpack.c.b16 %v550, %v550
      %v583 = vpack.c.b16 %v551, %v551
      %v584 = vpack.c.b16 %v552, %v552
      %v585 = vpack.c.b16 %v553, %v553
      %v586 = vpack.c.b16 %v554, %v554
      %v587 = vpack.c.b16 %v555, %v555
      %v588 = vpack.c.b16 %v556, %v556
      %v589 = vpack.c.b16 %v557, %v557
      %v590 = vpack.c.b16 %v558, %v558
      %v591 = vpack.c.b16 %v559, %v559
      %v592 = vpack.c.b16 %v560, %v560
      %v593 = vpack.c.b16 %v561, %v561
      %v594 = vpack.c.b16 %v562, %v562
      %v595 = vpack.c.b16 %v563, %v563
      %v596 = vpack.c.b16 %v564, %v564
      %v597 = vpack.c.b16 %v565, %v565
      %v598 = vpack.c.b16 %v566, %v566
      %v599 = vpack.c.b16 %v567, %v567
      %v600 = vpack.c.b16 %v568, %v568
      %v601 = vpack.c.b16 %v569, %v569
      %v602 = vpack.c.b16 %v570, %v570
      %v603 = vpack.c.b16 %v571, %v571
      %v604 = vpack.c.b16 %v572, %v572
      %v605 = vpack.c.b16 %v573, %v573
      %v606 = vpack.c.b16 %v574, %v574
      %v607 = vpack.c.b16 %v575, %v575
      %v608 = vpack.c.b16 %v576, %v576
      %v609 = vpack.c.b16 %v577, %v577
      %v610 = vpack.c.b16 %v578, %v578
      %643 = vst [vmem:[#allocation3 + $0x4] sm:$0xf] %v579
      %644 = vst [vmem:[#allocation3 + $0x28] sm:$0xf] %v580
      %645 = vst [vmem:[#allocation3 + $0x4c] sm:$0xf] %v581
      %646 = vst [vmem:[#allocation3 + $0x70] sm:$0xf] %v582
      %647 = vst [vmem:[#allocation3 + $0x94] sm:$0xf] %v583
      %648 = vst [vmem:[#allocation3 + $0xb8] sm:$0xf] %v584
      %649 = vst [vmem:[#allocation3 + $0xdc] sm:$0xf] %v585
      %650 = vst [vmem:[#allocation3 + $0x100] sm:$0xf] %v586
      %651 = vst [vmem:[#allocation3 + $0x124] sm:$0xf] %v587
      %652 = vst [vmem:[#allocation3 + $0x148] sm:$0xf] %v588
      %653 = vst [vmem:[#allocation3 + $0x16c] sm:$0xf] %v589
      %654 = vst [vmem:[#allocation3 + $0x190] sm:$0xf] %v590
      %655 = vst [vmem:[#allocation3 + $0x1b4] sm:$0xf] %v591
      %656 = vst [vmem:[#allocation3 + $0x1d8] sm:$0xf] %v592
      %657 = vst [vmem:[#allocation3 + $0x1fc] sm:$0xf] %v593
      %658 = vst [vmem:[#allocation3 + $0x220] sm:$0xf] %v594
      %659 = vst [vmem:[#allocation3 + $0x244] sm:$0xf] %v595
      %660 = vst [vmem:[#allocation3 + $0x268] sm:$0xf] %v596
      %661 = vst [vmem:[#allocation3 + $0x28c] sm:$0xf] %v597
      %662 = vst [vmem:[#allocation3 + $0x2b0] sm:$0xf] %v598
      %663 = vst [vmem:[#allocation3 + $0x2d4] sm:$0xf] %v599
      %664 = vst [vmem:[#allocation3 + $0x2f8] sm:$0xf] %v600
      %665 = vst [vmem:[#allocation3 + $0x31c] sm:$0xf] %v601
      %666 = vst [vmem:[#allocation3 + $0x340] sm:$0xf] %v602
      %667 = vst [vmem:[#allocation3 + $0x364] sm:$0xf] %v603
      %668 = vst [vmem:[#allocation3 + $0x388] sm:$0xf] %v604
      %669 = vst [vmem:[#allocation3 + $0x3ac] sm:$0xf] %v605
      %670 = vst [vmem:[#allocation3 + $0x3d0] sm:$0xf] %v606
      %671 = vst [vmem:[#allocation3 + $0x3f4] sm:$0xf] %v607
      %672 = vst [vmem:[#allocation3 + $0x418] sm:$0xf] %v608
      %673 = vst [vmem:[#allocation3 + $0x43c] sm:$0xf] %v609
      %674 = vst [vmem:[#allocation3 + $0x460] sm:$0xf] %v610
      %v675 = vld [vmem:[#allocation2 + $0x2] sm:$0xff]
      %v676 = vld [vmem:[#allocation2 + $0xa] sm:$0xff]
      %v677 = vld [vmem:[#allocation2 + $0x1a] sm:$0xff]
      %v678 = vld [vmem:[#allocation2 + $0x22] sm:$0xff]
      %v679 = vld [vmem:[#allocation2 + $0x32] sm:$0xff]
      %v680 = vld [vmem:[#allocation2 + $0x3a] sm:$0xff]
      %v681 = vld [vmem:[#allocation2 + $0x4a] sm:$0xff]
      %v682 = vld [vmem:[#allocation2 + $0x52] sm:$0xff]
      %v683 = vld [vmem:[#allocation2 + $0x62] sm:$0xff]
      %v684 = vld [vmem:[#allocation2 + $0x6a] sm:$0xff]
      %v685 = vld [vmem:[#allocation2 + $0x7a] sm:$0xff]
      %v686 = vld [vmem:[#allocation2 + $0x82] sm:$0xff]
      %v687 = vld [vmem:[#allocation2 + $0x92] sm:$0xff]
      %v688 = vld [vmem:[#allocation2 + $0x9a] sm:$0xff]
      %v689 = vld [vmem:[#allocation2 + $0xaa] sm:$0xff]
      %v690 = vld [vmem:[#allocation2 + $0xb2] sm:$0xff]
      %v691 = vld [vmem:[#allocation2 + $0xc2] sm:$0xff]
      %v692 = vld [vmem:[#allocation2 + $0xca] sm:$0xff]
      %v693 = vld [vmem:[#allocation2 + $0xda] sm:$0xff]
      %v694 = vld [vmem:[#allocation2 + $0xe2] sm:$0xff]
      %v695 = vld [vmem:[#allocation2 + $0xf2] sm:$0xff]
      %v696 = vld [vmem:[#allocation2 + $0xfa] sm:$0xff]
      %v697 = vld [vmem:[#allocation2 + $0x10a] sm:$0xff]
      %v698 = vld [vmem:[#allocation2 + $0x112] sm:$0xff]
      %v699 = vld [vmem:[#allocation2 + $0x122] sm:$0xff]
      %v700 = vld [vmem:[#allocation2 + $0x12a] sm:$0xff]
      %v701 = vld [vmem:[#allocation2 + $0x13a] sm:$0xff]
      %v702 = vld [vmem:[#allocation2 + $0x142] sm:$0xff]
      %v703 = vld [vmem:[#allocation2 + $0x152] sm:$0xff]
      %v704 = vld [vmem:[#allocation2 + $0x15a] sm:$0xff]
      %v705 = vld [vmem:[#allocation2 + $0x16a] sm:$0xff]
      %v706 = vld [vmem:[#allocation2 + $0x172] sm:$0xff]
      %v707 = vpack.c.bf16 %v676, %v675
      %v708 = vpack.c.bf16 %v678, %v677
      %v709 = vpack.c.bf16 %v680, %v679
      %v710 = vpack.c.bf16 %v682, %v681
      %v711 = vpack.c.bf16 %v684, %v683
      %v712 = vpack.c.bf16 %v686, %v685
      %v713 = vpack.c.bf16 %v688, %v687
      %v714 = vpack.c.bf16 %v690, %v689
      %v715 = vpack.c.bf16 %v692, %v691
      %v716 = vpack.c.bf16 %v694, %v693
      %v717 = vpack.c.bf16 %v696, %v695
      %v718 = vpack.c.bf16 %v698, %v697
      %v719 = vpack.c.bf16 %v700, %v699
      %v720 = vpack.c.bf16 %v702, %v701
      %v721 = vpack.c.bf16 %v704, %v703
      %v722 = vpack.c.bf16 %v706, %v705
      %v739 = vunpack.c.l.b16 %v707
      %v740 = vunpack.c.h.b16 %v707
      %v741 = vunpack.c.l.b16 %v708
      %v742 = vunpack.c.h.b16 %v708
      %v743 = vunpack.c.l.b16 %v709
      %v744 = vunpack.c.h.b16 %v709
      %v745 = vunpack.c.l.b16 %v710
      %v746 = vunpack.c.h.b16 %v710
      %v747 = vunpack.c.l.b16 %v711
      %v748 = vunpack.c.h.b16 %v711
      %v749 = vunpack.c.l.b16 %v712
      %v750 = vunpack.c.h.b16 %v712
      %v751 = vunpack.c.l.b16 %v713
      %v752 = vunpack.c.h.b16 %v713
      %v753 = vunpack.c.l.b16 %v714
      %v754 = vunpack.c.h.b16 %v714
      %v755 = vunpack.c.l.b16 %v715
      %v756 = vunpack.c.h.b16 %v715
      %v757 = vunpack.c.l.b16 %v716
      %v758 = vunpack.c.h.b16 %v716
      %v759 = vunpack.c.l.b16 %v717
      %v760 = vunpack.c.h.b16 %v717
      %v761 = vunpack.c.l.b16 %v718
      %v762 = vunpack.c.h.b16 %v718
      %v763 = vunpack.c.l.b16 %v719
      %v764 = vunpack.c.h.b16 %v719
      %v765 = vunpack.c.l.b16 %v720
      %v766 = vunpack.c.h.b16 %v720
      %v767 = vunpack.c.l.b16 %v721
      %v768 = vunpack.c.h.b16 %v721
      %v769 = vunpack.c.l.b16 %v722
      %v770 = vunpack.c.h.b16 %v722
      %v771 = vpack.c.b16 %v739, %v739
      %v772 = vpack.c.b16 %v740, %v740
      %v773 = vpack.c.b16 %v741, %v741
      %v774 = vpack.c.b16 %v742, %v742
      %v775 = vpack.c.b16 %v743, %v743
      %v776 = vpack.c.b16 %v744, %v744
      %v777 = vpack.c.b16 %v745, %v745
      %v778 = vpack.c.b16 %v746, %v746
      %v779 = vpack.c.b16 %v747, %v747
      %v780 = vpack.c.b16 %v748, %v748
      %v781 = vpack.c.b16 %v749, %v749
      %v782 = vpack.c.b16 %v750, %v750
      %v783 = vpack.c.b16 %v751, %v751
      %v784 = vpack.c.b16 %v752, %v752
      %v785 = vpack.c.b16 %v753, %v753
      %v786 = vpack.c.b16 %v754, %v754
      %v787 = vpack.c.b16 %v755, %v755
      %v788 = vpack.c.b16 %v756, %v756
      %v789 = vpack.c.b16 %v757, %v757
      %v790 = vpack.c.b16 %v758, %v758
      %v791 = vpack.c.b16 %v759, %v759
      %v792 = vpack.c.b16 %v760, %v760
      %v793 = vpack.c.b16 %v761, %v761
      %v794 = vpack.c.b16 %v762, %v762
      %v795 = vpack.c.b16 %v763, %v763
      %v796 = vpack.c.b16 %v764, %v764
      %v797 = vpack.c.b16 %v765, %v765
      %v798 = vpack.c.b16 %v766, %v766
      %v799 = vpack.c.b16 %v767, %v767
      %v800 = vpack.c.b16 %v768, %v768
      %v801 = vpack.c.b16 %v769, %v769
      %v802 = vpack.c.b16 %v770, %v770
      %835 = vst [vmem:[#allocation3 + $0x8] sm:$0xf] %v771
      %836 = vst [vmem:[#allocation3 + $0x2c] sm:$0xf] %v772
      %837 = vst [vmem:[#allocation3 + $0x50] sm:$0xf] %v773
      %838 = vst [vmem:[#allocation3 + $0x74] sm:$0xf] %v774
      %839 = vst [vmem:[#allocation3 + $0x98] sm:$0xf] %v775
      %840 = vst [vmem:[#allocation3 + $0xbc] sm:$0xf] %v776
      %841 = vst [vmem:[#allocation3 + $0xe0] sm:$0xf] %v777
      %842 = vst [vmem:[#allocation3 + $0x104] sm:$0xf] %v778
      %843 = vst [vmem:[#allocation3 + $0x128] sm:$0xf] %v779
      %844 = vst [vmem:[#allocation3 + $0x14c] sm:$0xf] %v780
      %845 = vst [vmem:[#allocation3 + $0x170] sm:$0xf] %v781
      %846 = vst [vmem:[#allocation3 + $0x194] sm:$0xf] %v782
      %847 = vst [vmem:[#allocation3 + $0x1b8] sm:$0xf] %v783
      %848 = vst [vmem:[#allocation3 + $0x1dc] sm:$0xf] %v784
      %849 = vst [vmem:[#allocation3 + $0x200] sm:$0xf] %v785
      %850 = vst [vmem:[#allocation3 + $0x224] sm:$0xf] %v786
      %851 = vst [vmem:[#allocation3 + $0x248] sm:$0xf] %v787
      %852 = vst [vmem:[#allocation3 + $0x26c] sm:$0xf] %v788
      %853 = vst [vmem:[#allocation3 + $0x290] sm:$0xf] %v789
      %854 = vst [vmem:[#allocation3 + $0x2b4] sm:$0xf] %v790
      %855 = vst [vmem:[#allocation3 + $0x2d8] sm:$0xf] %v791
      %856 = vst [vmem:[#allocation3 + $0x2fc] sm:$0xf] %v792
      %857 = vst [vmem:[#allocation3 + $0x320] sm:$0xf] %v793
      %858 = vst [vmem:[#allocation3 + $0x344] sm:$0xf] %v794
      %859 = vst [vmem:[#allocation3 + $0x368] sm:$0xf] %v795
      %860 = vst [vmem:[#allocation3 + $0x38c] sm:$0xf] %v796
      %861 = vst [vmem:[#allocation3 + $0x3b0] sm:$0xf] %v797
      %862 = vst [vmem:[#allocation3 + $0x3d4] sm:$0xf] %v798
      %863 = vst [vmem:[#allocation3 + $0x3f8] sm:$0xf] %v799
      %864 = vst [vmem:[#allocation3 + $0x41c] sm:$0xf] %v800
      %865 = vst [vmem:[#allocation3 + $0x440] sm:$0xf] %v801
      %866 = vst [vmem:[#allocation3 + $0x464] sm:$0xf] %v802
      %v867 = vld [vmem:[%s258] sm:$0xff]
      %v868 = vld [vmem:[%s258 + $0x8] sm:$0xff]
      %v869 = vld [vmem:[%s258 + $0x18] sm:$0xff]
      %v870 = vld [vmem:[%s258 + $0x20] sm:$0xff]
      %v871 = vld [vmem:[%s258 + $0x30] sm:$0xff]
      %v872 = vld [vmem:[%s258 + $0x38] sm:$0xff]
      %v873 = vld [vmem:[%s258 + $0x48] sm:$0xff]
      %v874 = vld [vmem:[%s258 + $0x50] sm:$0xff]
      %v875 = vld [vmem:[%s258 + $0x60] sm:$0xff]
      %v876 = vld [vmem:[%s258 + $0x68] sm:$0xff]
      %v877 = vld [vmem:[%s258 + $0x78] sm:$0xff]
      %v878 = vld [vmem:[%s258 + $0x80] sm:$0xff]
      %v879 = vld [vmem:[%s258 + $0x90] sm:$0xff]
      %v880 = vld [vmem:[%s258 + $0x98] sm:$0xff]
      %v881 = vld [vmem:[%s258 + $0xa8] sm:$0xff]
      %v882 = vld [vmem:[%s258 + $0xb0] sm:$0xff]
      %v883 = vld [vmem:[%s258 + $0xc0] sm:$0xff]
      %v884 = vld [vmem:[%s258 + $0xc8] sm:$0xff]
      %v885 = vld [vmem:[%s258 + $0xd8] sm:$0xff]
      %v886 = vld [vmem:[%s258 + $0xe0] sm:$0xff]
      %v887 = vld [vmem:[%s258 + $0xf0] sm:$0xff]
      %v888 = vld [vmem:[%s258 + $0xf8] sm:$0xff]
      %v889 = vld [vmem:[%s258 + $0x108] sm:$0xff]
      %v890 = vld [vmem:[%s258 + $0x110] sm:$0xff]
      %v891 = vld [vmem:[%s258 + $0x120] sm:$0xff]
      %v892 = vld [vmem:[%s258 + $0x128] sm:$0xff]
      %v893 = vld [vmem:[%s258 + $0x138] sm:$0xff]
      %v894 = vld [vmem:[%s258 + $0x140] sm:$0xff]
      %v895 = vld [vmem:[%s258 + $0x150] sm:$0xff]
      %v896 = vld [vmem:[%s258 + $0x158] sm:$0xff]
      %v897 = vld [vmem:[%s258 + $0x168] sm:$0xff]
      %v898 = vld [vmem:[%s258 + $0x170] sm:$0xff]
      %v899 = vpack.c.bf16 %v868, %v867
      %v900 = vpack.c.bf16 %v870, %v869
      %v901 = vpack.c.bf16 %v872, %v871
      %v902 = vpack.c.bf16 %v874, %v873
      %v903 = vpack.c.bf16 %v876, %v875
      %v904 = vpack.c.bf16 %v878, %v877
      %v905 = vpack.c.bf16 %v880, %v879
      %v906 = vpack.c.bf16 %v882, %v881
      %v907 = vpack.c.bf16 %v884, %v883
      %v908 = vpack.c.bf16 %v886, %v885
      %v909 = vpack.c.bf16 %v888, %v887
      %v910 = vpack.c.bf16 %v890, %v889
      %v911 = vpack.c.bf16 %v892, %v891
      %v912 = vpack.c.bf16 %v894, %v893
      %v913 = vpack.c.bf16 %v896, %v895
      %v914 = vpack.c.bf16 %v898, %v897
      %v931 = vunpack.c.l.b16 %v899
      %v932 = vunpack.c.h.b16 %v899
      %v933 = vunpack.c.l.b16 %v900
      %v934 = vunpack.c.h.b16 %v900
      %v935 = vunpack.c.l.b16 %v901
      %v936 = vunpack.c.h.b16 %v901
      %v937 = vunpack.c.l.b16 %v902
      %v938 = vunpack.c.h.b16 %v902
      %v939 = vunpack.c.l.b16 %v903
      %v940 = vunpack.c.h.b16 %v903
      %v941 = vunpack.c.l.b16 %v904
      %v942 = vunpack.c.h.b16 %v904
      %v943 = vunpack.c.l.b16 %v905
      %v944 = vunpack.c.h.b16 %v905
      %v945 = vunpack.c.l.b16 %v906
      %v946 = vunpack.c.h.b16 %v906
      %v947 = vunpack.c.l.b16 %v907
      %v948 = vunpack.c.h.b16 %v907
      %v949 = vunpack.c.l.b16 %v908
      %v950 = vunpack.c.h.b16 %v908
      %v951 = vunpack.c.l.b16 %v909
      %v952 = vunpack.c.h.b16 %v909
      %v953 = vunpack.c.l.b16 %v910
      %v954 = vunpack.c.h.b16 %v910
      %v955 = vunpack.c.l.b16 %v911
      %v956 = vunpack.c.h.b16 %v911
      %v957 = vunpack.c.l.b16 %v912
      %v958 = vunpack.c.h.b16 %v912
      %v959 = vunpack.c.l.b16 %v913
      %v960 = vunpack.c.h.b16 %v913
      %v961 = vunpack.c.l.b16 %v914
      %v962 = vunpack.c.h.b16 %v914
      %v963 = vpack.c.b16 %v931, %v931
      %v964 = vpack.c.b16 %v932, %v932
      %v965 = vpack.c.b16 %v933, %v933
      %v966 = vpack.c.b16 %v934, %v934
      %v967 = vpack.c.b16 %v935, %v935
      %v968 = vpack.c.b16 %v936, %v936
      %v969 = vpack.c.b16 %v937, %v937
      %v970 = vpack.c.b16 %v938, %v938
      %v971 = vpack.c.b16 %v939, %v939
      %v972 = vpack.c.b16 %v940, %v940
      %v973 = vpack.c.b16 %v941, %v941
      %v974 = vpack.c.b16 %v942, %v942
      %v975 = vpack.c.b16 %v943, %v943
      %v976 = vpack.c.b16 %v944, %v944
      %v977 = vpack.c.b16 %v945, %v945
      %v978 = vpack.c.b16 %v946, %v946
      %v979 = vpack.c.b16 %v947, %v947
      %v980 = vpack.c.b16 %v948, %v948
      %v981 = vpack.c.b16 %v949, %v949
      %v982 = vpack.c.b16 %v950, %v950
      %v983 = vpack.c.b16 %v951, %v951
      %v984 = vpack.c.b16 %v952, %v952
      %v985 = vpack.c.b16 %v953, %v953
      %v986 = vpack.c.b16 %v954, %v954
      %v987 = vpack.c.b16 %v955, %v955
      %v988 = vpack.c.b16 %v956, %v956
      %v989 = vpack.c.b16 %v957, %v957
      %v990 = vpack.c.b16 %v958, %v958
      %v991 = vpack.c.b16 %v959, %v959
      %v992 = vpack.c.b16 %v960, %v960
      %v993 = vpack.c.b16 %v961, %v961
      %v994 = vpack.c.b16 %v962, %v962
      %1027 = vst [vmem:[#allocation3 + $0xc] sm:$0xf] %v963
      %1028 = vst [vmem:[#allocation3 + $0x30] sm:$0xf] %v964
      %1029 = vst [vmem:[#allocation3 + $0x54] sm:$0xf] %v965
      %1030 = vst [vmem:[#allocation3 + $0x78] sm:$0xf] %v966
      %1031 = vst [vmem:[#allocation3 + $0x9c] sm:$0xf] %v967
      %1032 = vst [vmem:[#allocation3 + $0xc0] sm:$0xf] %v968
      %1033 = vst [vmem:[#allocation3 + $0xe4] sm:$0xf] %v969
      %1034 = vst [vmem:[#allocation3 + $0x108] sm:$0xf] %v970
      %1035 = vst [vmem:[#allocation3 + $0x12c] sm:$0xf] %v971
      %1036 = vst [vmem:[#allocation3 + $0x150] sm:$0xf] %v972
      %1037 = vst [vmem:[#allocation3 + $0x174] sm:$0xf] %v973
      %1038 = vst [vmem:[#allocation3 + $0x198] sm:$0xf] %v974
      %1039 = vst [vmem:[#allocation3 + $0x1bc] sm:$0xf] %v975
      %1040 = vst [vmem:[#allocation3 + $0x1e0] sm:$0xf] %v976
      %1041 = vst [vmem:[#allocation3 + $0x204] sm:$0xf] %v977
      %1042 = vst [vmem:[#allocation3 + $0x228] sm:$0xf] %v978
      %1043 = vst [vmem:[#allocation3 + $0x24c] sm:$0xf] %v979
      %1044 = vst [vmem:[#allocation3 + $0x270] sm:$0xf] %v980
      %1045 = vst [vmem:[#allocation3 + $0x294] sm:$0xf] %v981
      %1046 = vst [vmem:[#allocation3 + $0x2b8] sm:$0xf] %v982
      %1047 = vst [vmem:[#allocation3 + $0x2dc] sm:$0xf] %v983
      %1048 = vst [vmem:[#allocation3 + $0x300] sm:$0xf] %v984
      %1049 = vst [vmem:[#allocation3 + $0x324] sm:$0xf] %v985
      %1050 = vst [vmem:[#allocation3 + $0x348] sm:$0xf] %v986
      %1051 = vst [vmem:[#allocation3 + $0x36c] sm:$0xf] %v987
      %1052 = vst [vmem:[#allocation3 + $0x390] sm:$0xf] %v988
      %1053 = vst [vmem:[#allocation3 + $0x3b4] sm:$0xf] %v989
      %1054 = vst [vmem:[#allocation3 + $0x3d8] sm:$0xf] %v990
      %1055 = vst [vmem:[#allocation3 + $0x3fc] sm:$0xf] %v991
      %1056 = vst [vmem:[#allocation3 + $0x420] sm:$0xf] %v992
      %1057 = vst [vmem:[#allocation3 + $0x444] sm:$0xf] %v993
      %1058 = vst [vmem:[#allocation3 + $0x468] sm:$0xf] %v994
      %v1059 = vld [vmem:[%s258 + $0x1] sm:$0xff]
      %v1060 = vld [vmem:[%s258 + $0x9] sm:$0xff]
      %v1061 = vld [vmem:[%s258 + $0x19] sm:$0xff]
      %v1062 = vld [vmem:[%s258 + $0x21] sm:$0xff]
      %v1063 = vld [vmem:[%s258 + $0x31] sm:$0xff]
      %v1064 = vld [vmem:[%s258 + $0x39] sm:$0xff]
      %v1065 = vld [vmem:[%s258 + $0x49] sm:$0xff]
      %v1066 = vld [vmem:[%s258 + $0x51] sm:$0xff]
      %v1067 = vld [vmem:[%s258 + $0x61] sm:$0xff]
      %v1068 = vld [vmem:[%s258 + $0x69] sm:$0xff]
      %v1069 = vld [vmem:[%s258 + $0x79] sm:$0xff]
      %v1070 = vld [vmem:[%s258 + $0x81] sm:$0xff]
      %v1071 = vld [vmem:[%s258 + $0x91] sm:$0xff]
      %v1072 = vld [vmem:[%s258 + $0x99] sm:$0xff]
      %v1073 = vld [vmem:[%s258 + $0xa9] sm:$0xff]
      %v1074 = vld [vmem:[%s258 + $0xb1] sm:$0xff]
      %v1075 = vld [vmem:[%s258 + $0xc1] sm:$0xff]
      %v1076 = vld [vmem:[%s258 + $0xc9] sm:$0xff]
      %v1077 = vld [vmem:[%s258 + $0xd9] sm:$0xff]
      %v1078 = vld [vmem:[%s258 + $0xe1] sm:$0xff]
      %v1079 = vld [vmem:[%s258 + $0xf1] sm:$0xff]
      %v1080 = vld [vmem:[%s258 + $0xf9] sm:$0xff]
      %v1081 = vld [vmem:[%s258 + $0x109] sm:$0xff]
      %v1082 = vld [vmem:[%s258 + $0x111] sm:$0xff]
      %v1083 = vld [vmem:[%s258 + $0x121] sm:$0xff]
      %v1084 = vld [vmem:[%s258 + $0x129] sm:$0xff]
      %v1085 = vld [vmem:[%s258 + $0x139] sm:$0xff]
      %v1086 = vld [vmem:[%s258 + $0x141] sm:$0xff]
      %v1087 = vld [vmem:[%s258 + $0x151] sm:$0xff]
      %v1088 = vld [vmem:[%s258 + $0x159] sm:$0xff]
      %v1089 = vld [vmem:[%s258 + $0x169] sm:$0xff]
      %v1090 = vld [vmem:[%s258 + $0x171] sm:$0xff]
      %v1091 = vpack.c.bf16 %v1060, %v1059
      %v1092 = vpack.c.bf16 %v1062, %v1061
      %v1093 = vpack.c.bf16 %v1064, %v1063
      %v1094 = vpack.c.bf16 %v1066, %v1065
      %v1095 = vpack.c.bf16 %v1068, %v1067
      %v1096 = vpack.c.bf16 %v1070, %v1069
      %v1097 = vpack.c.bf16 %v1072, %v1071
      %v1098 = vpack.c.bf16 %v1074, %v1073
      %v1099 = vpack.c.bf16 %v1076, %v1075
      %v1100 = vpack.c.bf16 %v1078, %v1077
      %v1101 = vpack.c.bf16 %v1080, %v1079
      %v1102 = vpack.c.bf16 %v1082, %v1081
      %v1103 = vpack.c.bf16 %v1084, %v1083
      %v1104 = vpack.c.bf16 %v1086, %v1085
      %v1105 = vpack.c.bf16 %v1088, %v1087
      %v1106 = vpack.c.bf16 %v1090, %v1089
      %v1123 = vunpack.c.l.b16 %v1091
      %v1124 = vunpack.c.h.b16 %v1091
      %v1125 = vunpack.c.l.b16 %v1092
      %v1126 = vunpack.c.h.b16 %v1092
      %v1127 = vunpack.c.l.b16 %v1093
      %v1128 = vunpack.c.h.b16 %v1093
      %v1129 = vunpack.c.l.b16 %v1094
      %v1130 = vunpack.c.h.b16 %v1094
      %v1131 = vunpack.c.l.b16 %v1095
      %v1132 = vunpack.c.h.b16 %v1095
      %v1133 = vunpack.c.l.b16 %v1096
      %v1134 = vunpack.c.h.b16 %v1096
      %v1135 = vunpack.c.l.b16 %v1097
      %v1136 = vunpack.c.h.b16 %v1097
      %v1137 = vunpack.c.l.b16 %v1098
      %v1138 = vunpack.c.h.b16 %v1098
      %v1139 = vunpack.c.l.b16 %v1099
      %v1140 = vunpack.c.h.b16 %v1099
      %v1141 = vunpack.c.l.b16 %v1100
      %v1142 = vunpack.c.h.b16 %v1100
      %v1143 = vunpack.c.l.b16 %v1101
      %v1144 = vunpack.c.h.b16 %v1101
      %v1145 = vunpack.c.l.b16 %v1102
      %v1146 = vunpack.c.h.b16 %v1102
      %v1147 = vunpack.c.l.b16 %v1103
      %v1148 = vunpack.c.h.b16 %v1103
      %v1149 = vunpack.c.l.b16 %v1104
      %v1150 = vunpack.c.h.b16 %v1104
      %v1151 = vunpack.c.l.b16 %v1105
      %v1152 = vunpack.c.h.b16 %v1105
      %v1153 = vunpack.c.l.b16 %v1106
      %v1154 = vunpack.c.h.b16 %v1106
      %v1155 = vpack.c.b16 %v1123, %v1123
      %v1156 = vpack.c.b16 %v1124, %v1124
      %v1157 = vpack.c.b16 %v1125, %v1125
      %v1158 = vpack.c.b16 %v1126, %v1126
      %v1159 = vpack.c.b16 %v1127, %v1127
      %v1160 = vpack.c.b16 %v1128, %v1128
      %v1161 = vpack.c.b16 %v1129, %v1129
      %v1162 = vpack.c.b16 %v1130, %v1130
      %v1163 = vpack.c.b16 %v1131, %v1131
      %v1164 = vpack.c.b16 %v1132, %v1132
      %v1165 = vpack.c.b16 %v1133, %v1133
      %v1166 = vpack.c.b16 %v1134, %v1134
      %v1167 = vpack.c.b16 %v1135, %v1135
      %v1168 = vpack.c.b16 %v1136, %v1136
      %v1169 = vpack.c.b16 %v1137, %v1137
      %v1170 = vpack.c.b16 %v1138, %v1138
      %v1171 = vpack.c.b16 %v1139, %v1139
      %v1172 = vpack.c.b16 %v1140, %v1140
      %v1173 = vpack.c.b16 %v1141, %v1141
      %v1174 = vpack.c.b16 %v1142, %v1142
      %v1175 = vpack.c.b16 %v1143, %v1143
      %v1176 = vpack.c.b16 %v1144, %v1144
      %v1177 = vpack.c.b16 %v1145, %v1145
      %v1178 = vpack.c.b16 %v1146, %v1146
      %v1179 = vpack.c.b16 %v1147, %v1147
      %v1180 = vpack.c.b16 %v1148, %v1148
      %v1181 = vpack.c.b16 %v1149, %v1149
      %v1182 = vpack.c.b16 %v1150, %v1150
      %v1183 = vpack.c.b16 %v1151, %v1151
      %v1184 = vpack.c.b16 %v1152, %v1152
      %v1185 = vpack.c.b16 %v1153, %v1153
      %v1186 = vpack.c.b16 %v1154, %v1154
      %1219 = vst [vmem:[#allocation3 + $0x10] sm:$0xf] %v1155
      %1220 = vst [vmem:[#allocation3 + $0x34] sm:$0xf] %v1156
      %1221 = vst [vmem:[#allocation3 + $0x58] sm:$0xf] %v1157
      %1222 = vst [vmem:[#allocation3 + $0x7c] sm:$0xf] %v1158
      %1223 = vst [vmem:[#allocation3 + $0xa0] sm:$0xf] %v1159
      %1224 = vst [vmem:[#allocation3 + $0xc4] sm:$0xf] %v1160
      %1225 = vst [vmem:[#allocation3 + $0xe8] sm:$0xf] %v1161
      %1226 = vst [vmem:[#allocation3 + $0x10c] sm:$0xf] %v1162
      %1227 = vst [vmem:[#allocation3 + $0x130] sm:$0xf] %v1163
      %1228 = vst [vmem:[#allocation3 + $0x154] sm:$0xf] %v1164
      %1229 = vst [vmem:[#allocation3 + $0x178] sm:$0xf] %v1165
      %1230 = vst [vmem:[#allocation3 + $0x19c] sm:$0xf] %v1166
      %1231 = vst [vmem:[#allocation3 + $0x1c0] sm:$0xf] %v1167
      %1232 = vst [vmem:[#allocation3 + $0x1e4] sm:$0xf] %v1168
      %1233 = vst [vmem:[#allocation3 + $0x208] sm:$0xf] %v1169
      %1234 = vst [vmem:[#allocation3 + $0x22c] sm:$0xf] %v1170
      %1235 = vst [vmem:[#allocation3 + $0x250] sm:$0xf] %v1171
      %1236 = vst [vmem:[#allocation3 + $0x274] sm:$0xf] %v1172
      %1237 = vst [vmem:[#allocation3 + $0x298] sm:$0xf] %v1173
      %1238 = vst [vmem:[#allocation3 + $0x2bc] sm:$0xf] %v1174
      %1239 = vst [vmem:[#allocation3 + $0x2e0] sm:$0xf] %v1175
      %1240 = vst [vmem:[#allocation3 + $0x304] sm:$0xf] %v1176
      %1241 = vst [vmem:[#allocation3 + $0x328] sm:$0xf] %v1177
      %1242 = vst [vmem:[#allocation3 + $0x34c] sm:$0xf] %v1178
      %1243 = vst [vmem:[#allocation3 + $0x370] sm:$0xf] %v1179
      %1244 = vst [vmem:[#allocation3 + $0x394] sm:$0xf] %v1180
      %1245 = vst [vmem:[#allocation3 + $0x3b8] sm:$0xf] %v1181
      %1246 = vst [vmem:[#allocation3 + $0x3dc] sm:$0xf] %v1182
      %1247 = vst [vmem:[#allocation3 + $0x400] sm:$0xf] %v1183
      %1248 = vst [vmem:[#allocation3 + $0x424] sm:$0xf] %v1184
      %1249 = vst [vmem:[#allocation3 + $0x448] sm:$0xf] %v1185
      %1250 = vst [vmem:[#allocation3 + $0x46c] sm:$0xf] %v1186
      %v1251 = vld [vmem:[%s258 + $0x2] sm:$0xff]
      %v1252 = vld [vmem:[%s258 + $0xa] sm:$0xff]
      %v1253 = vld [vmem:[%s258 + $0x1a] sm:$0xff]
      %v1254 = vld [vmem:[%s258 + $0x22] sm:$0xff]
      %v1255 = vld [vmem:[%s258 + $0x32] sm:$0xff]
      %v1256 = vld [vmem:[%s258 + $0x3a] sm:$0xff]
      %v1257 = vld [vmem:[%s258 + $0x4a] sm:$0xff]
      %v1258 = vld [vmem:[%s258 + $0x52] sm:$0xff]
      %v1259 = vld [vmem:[%s258 + $0x62] sm:$0xff]
      %v1260 = vld [vmem:[%s258 + $0x6a] sm:$0xff]
      %v1261 = vld [vmem:[%s258 + $0x7a] sm:$0xff]
      %v1262 = vld [vmem:[%s258 + $0x82] sm:$0xff]
      %v1263 = vld [vmem:[%s258 + $0x92] sm:$0xff]
      %v1264 = vld [vmem:[%s258 + $0x9a] sm:$0xff]
      %v1265 = vld [vmem:[%s258 + $0xaa] sm:$0xff]
      %v1266 = vld [vmem:[%s258 + $0xb2] sm:$0xff]
      %v1267 = vld [vmem:[%s258 + $0xc2] sm:$0xff]
      %v1268 = vld [vmem:[%s258 + $0xca] sm:$0xff]
      %v1269 = vld [vmem:[%s258 + $0xda] sm:$0xff]
      %v1270 = vld [vmem:[%s258 + $0xe2] sm:$0xff]
      %v1271 = vld [vmem:[%s258 + $0xf2] sm:$0xff]
      %v1272 = vld [vmem:[%s258 + $0xfa] sm:$0xff]
      %v1273 = vld [vmem:[%s258 + $0x10a] sm:$0xff]
      %v1274 = vld [vmem:[%s258 + $0x112] sm:$0xff]
      %v1275 = vld [vmem:[%s258 + $0x122] sm:$0xff]
      %v1276 = vld [vmem:[%s258 + $0x12a] sm:$0xff]
      %v1277 = vld [vmem:[%s258 + $0x13a] sm:$0xff]
      %v1278 = vld [vmem:[%s258 + $0x142] sm:$0xff]
      %v1279 = vld [vmem:[%s258 + $0x152] sm:$0xff]
      %v1280 = vld [vmem:[%s258 + $0x15a] sm:$0xff]
      %v1281 = vld [vmem:[%s258 + $0x16a] sm:$0xff]
      %v1282 = vld [vmem:[%s258 + $0x172] sm:$0xff]
      %v1283 = vpack.c.bf16 %v1252, %v1251
      %v1284 = vpack.c.bf16 %v1254, %v1253
      %v1285 = vpack.c.bf16 %v1256, %v1255
      %v1286 = vpack.c.bf16 %v1258, %v1257
      %v1287 = vpack.c.bf16 %v1260, %v1259
      %v1288 = vpack.c.bf16 %v1262, %v1261
      %v1289 = vpack.c.bf16 %v1264, %v1263
      %v1290 = vpack.c.bf16 %v1266, %v1265
      %v1291 = vpack.c.bf16 %v1268, %v1267
      %v1292 = vpack.c.bf16 %v1270, %v1269
      %v1293 = vpack.c.bf16 %v1272, %v1271
      %v1294 = vpack.c.bf16 %v1274, %v1273
      %v1295 = vpack.c.bf16 %v1276, %v1275
      %v1296 = vpack.c.bf16 %v1278, %v1277
      %v1297 = vpack.c.bf16 %v1280, %v1279
      %v1298 = vpack.c.bf16 %v1282, %v1281
      %v1315 = vunpack.c.l.b16 %v1283
      %v1316 = vunpack.c.h.b16 %v1283
      %v1317 = vunpack.c.l.b16 %v1284
      %v1318 = vunpack.c.h.b16 %v1284
      %v1319 = vunpack.c.l.b16 %v1285
      %v1320 = vunpack.c.h.b16 %v1285
      %v1321 = vunpack.c.l.b16 %v1286
      %v1322 = vunpack.c.h.b16 %v1286
      %v1323 = vunpack.c.l.b16 %v1287
      %v1324 = vunpack.c.h.b16 %v1287
      %v1325 = vunpack.c.l.b16 %v1288
      %v1326 = vunpack.c.h.b16 %v1288
      %v1327 = vunpack.c.l.b16 %v1289
      %v1328 = vunpack.c.h.b16 %v1289
      %v1329 = vunpack.c.l.b16 %v1290
      %v1330 = vunpack.c.h.b16 %v1290
      %v1331 = vunpack.c.l.b16 %v1291
      %v1332 = vunpack.c.h.b16 %v1291
      %v1333 = vunpack.c.l.b16 %v1292
      %v1334 = vunpack.c.h.b16 %v1292
      %v1335 = vunpack.c.l.b16 %v1293
      %v1336 = vunpack.c.h.b16 %v1293
      %v1337 = vunpack.c.l.b16 %v1294
      %v1338 = vunpack.c.h.b16 %v1294
      %v1339 = vunpack.c.l.b16 %v1295
      %v1340 = vunpack.c.h.b16 %v1295
      %v1341 = vunpack.c.l.b16 %v1296
      %v1342 = vunpack.c.h.b16 %v1296
      %v1343 = vunpack.c.l.b16 %v1297
      %v1344 = vunpack.c.h.b16 %v1297
      %v1345 = vunpack.c.l.b16 %v1298
      %v1346 = vunpack.c.h.b16 %v1298
      %v1347 = vpack.c.b16 %v1315, %v1315
      %v1348 = vpack.c.b16 %v1316, %v1316
      %v1349 = vpack.c.b16 %v1317, %v1317
      %v1350 = vpack.c.b16 %v1318, %v1318
      %v1351 = vpack.c.b16 %v1319, %v1319
      %v1352 = vpack.c.b16 %v1320, %v1320
      %v1353 = vpack.c.b16 %v1321, %v1321
      %v1354 = vpack.c.b16 %v1322, %v1322
      %v1355 = vpack.c.b16 %v1323, %v1323
      %v1356 = vpack.c.b16 %v1324, %v1324
      %v1357 = vpack.c.b16 %v1325, %v1325
      %v1358 = vpack.c.b16 %v1326, %v1326
      %v1359 = vpack.c.b16 %v1327, %v1327
      %v1360 = vpack.c.b16 %v1328, %v1328
      %v1361 = vpack.c.b16 %v1329, %v1329
      %v1362 = vpack.c.b16 %v1330, %v1330
      %v1363 = vpack.c.b16 %v1331, %v1331
      %v1364 = vpack.c.b16 %v1332, %v1332
      %v1365 = vpack.c.b16 %v1333, %v1333
      %v1366 = vpack.c.b16 %v1334, %v1334
      %v1367 = vpack.c.b16 %v1335, %v1335
      %v1368 = vpack.c.b16 %v1336, %v1336
      %v1369 = vpack.c.b16 %v1337, %v1337
      %v1370 = vpack.c.b16 %v1338, %v1338
      %v1371 = vpack.c.b16 %v1339, %v1339
      %v1372 = vpack.c.b16 %v1340, %v1340
      %v1373 = vpack.c.b16 %v1341, %v1341
      %v1374 = vpack.c.b16 %v1342, %v1342
      %v1375 = vpack.c.b16 %v1343, %v1343
      %v1376 = vpack.c.b16 %v1344, %v1344
      %v1377 = vpack.c.b16 %v1345, %v1345
      %v1378 = vpack.c.b16 %v1346, %v1346
      %1411 = vst [vmem:[#allocation3 + $0x14] sm:$0xf] %v1347
      %1412 = vst [vmem:[#allocation3 + $0x38] sm:$0xf] %v1348
      %1413 = vst [vmem:[#allocation3 + $0x5c] sm:$0xf] %v1349
      %1414 = vst [vmem:[#allocation3 + $0x80] sm:$0xf] %v1350
      %1415 = vst [vmem:[#allocation3 + $0xa4] sm:$0xf] %v1351
      %1416 = vst [vmem:[#allocation3 + $0xc8] sm:$0xf] %v1352
      %1417 = vst [vmem:[#allocation3 + $0xec] sm:$0xf] %v1353
      %1418 = vst [vmem:[#allocation3 + $0x110] sm:$0xf] %v1354
      %1419 = vst [vmem:[#allocation3 + $0x134] sm:$0xf] %v1355
      %1420 = vst [vmem:[#allocation3 + $0x158] sm:$0xf] %v1356
      %1421 = vst [vmem:[#allocation3 + $0x17c] sm:$0xf] %v1357
      %1422 = vst [vmem:[#allocation3 + $0x1a0] sm:$0xf] %v1358
      %1423 = vst [vmem:[#allocation3 + $0x1c4] sm:$0xf] %v1359
      %1424 = vst [vmem:[#allocation3 + $0x1e8] sm:$0xf] %v1360
      %1425 = vst [vmem:[#allocation3 + $0x20c] sm:$0xf] %v1361
      %1426 = vst [vmem:[#allocation3 + $0x230] sm:$0xf] %v1362
      %1427 = vst [vmem:[#allocation3 + $0x254] sm:$0xf] %v1363
      %1428 = vst [vmem:[#allocation3 + $0x278] sm:$0xf] %v1364
      %1429 = vst [vmem:[#allocation3 + $0x29c] sm:$0xf] %v1365
      %1430 = vst [vmem:[#allocation3 + $0x2c0] sm:$0xf] %v1366
      %1431 = vst [vmem:[#allocation3 + $0x2e4] sm:$0xf] %v1367
      %1432 = vst [vmem:[#allocation3 + $0x308] sm:$0xf] %v1368
      %1433 = vst [vmem:[#allocation3 + $0x32c] sm:$0xf] %v1369
      %1434 = vst [vmem:[#allocation3 + $0x350] sm:$0xf] %v1370
      %1435 = vst [vmem:[#allocation3 + $0x374] sm:$0xf] %v1371
      %1436 = vst [vmem:[#allocation3 + $0x398] sm:$0xf] %v1372
      %1437 = vst [vmem:[#allocation3 + $0x3bc] sm:$0xf] %v1373
      %1438 = vst [vmem:[#allocation3 + $0x3e0] sm:$0xf] %v1374
      %1439 = vst [vmem:[#allocation3 + $0x404] sm:$0xf] %v1375
      %1440 = vst [vmem:[#allocation3 + $0x428] sm:$0xf] %v1376
      %1441 = vst [vmem:[#allocation3 + $0x44c] sm:$0xf] %v1377
      %1442 = vst [vmem:[#allocation3 + $0x470] sm:$0xf] %v1378
      %s1443 = scalar_lea.vmem [#allocation2], 48
      %v1444 = vld [vmem:[%s1443] sm:$0xff]
      %v1445 = vld [vmem:[%s1443 + $0x8] sm:$0xff]
      %v1446 = vld [vmem:[%s1443 + $0x18] sm:$0xff]
      %v1447 = vld [vmem:[%s1443 + $0x20] sm:$0xff]
      %v1448 = vld [vmem:[%s1443 + $0x30] sm:$0xff]
      %v1449 = vld [vmem:[%s1443 + $0x38] sm:$0xff]
      %v1450 = vld [vmem:[%s1443 + $0x48] sm:$0xff]
      %v1451 = vld [vmem:[%s1443 + $0x50] sm:$0xff]
      %v1452 = vld [vmem:[%s1443 + $0x60] sm:$0xff]
      %v1453 = vld [vmem:[%s1443 + $0x68] sm:$0xff]
      %v1454 = vld [vmem:[%s1443 + $0x78] sm:$0xff]
      %v1455 = vld [vmem:[%s1443 + $0x80] sm:$0xff]
      %v1456 = vld [vmem:[%s1443 + $0x90] sm:$0xff]
      %v1457 = vld [vmem:[%s1443 + $0x98] sm:$0xff]
      %v1458 = vld [vmem:[%s1443 + $0xa8] sm:$0xff]
      %v1459 = vld [vmem:[%s1443 + $0xb0] sm:$0xff]
      %v1460 = vld [vmem:[%s1443 + $0xc0] sm:$0xff]
      %v1461 = vld [vmem:[%s1443 + $0xc8] sm:$0xff]
      %v1462 = vld [vmem:[%s1443 + $0xd8] sm:$0xff]
      %v1463 = vld [vmem:[%s1443 + $0xe0] sm:$0xff]
      %v1464 = vld [vmem:[%s1443 + $0xf0] sm:$0xff]
      %v1465 = vld [vmem:[%s1443 + $0xf8] sm:$0xff]
      %v1466 = vld [vmem:[%s1443 + $0x108] sm:$0xff]
      %v1467 = vld [vmem:[%s1443 + $0x110] sm:$0xff]
      %v1468 = vld [vmem:[%s1443 + $0x120] sm:$0xff]
      %v1469 = vld [vmem:[%s1443 + $0x128] sm:$0xff]
      %v1470 = vld [vmem:[%s1443 + $0x138] sm:$0xff]
      %v1471 = vld [vmem:[%s1443 + $0x140] sm:$0xff]
      %v1472 = vld [vmem:[%s1443 + $0x150] sm:$0xff]
      %v1473 = vld [vmem:[%s1443 + $0x158] sm:$0xff]
      %v1474 = vld [vmem:[%s1443 + $0x168] sm:$0xff]
      %v1475 = vld [vmem:[%s1443 + $0x170] sm:$0xff]
      %v1476 = vpack.c.bf16 %v1445, %v1444
      %v1477 = vpack.c.bf16 %v1447, %v1446
      %v1478 = vpack.c.bf16 %v1449, %v1448
      %v1479 = vpack.c.bf16 %v1451, %v1450
      %v1480 = vpack.c.bf16 %v1453, %v1452
      %v1481 = vpack.c.bf16 %v1455, %v1454
      %v1482 = vpack.c.bf16 %v1457, %v1456
      %v1483 = vpack.c.bf16 %v1459, %v1458
      %v1484 = vpack.c.bf16 %v1461, %v1460
      %v1485 = vpack.c.bf16 %v1463, %v1462
      %v1486 = vpack.c.bf16 %v1465, %v1464
      %v1487 = vpack.c.bf16 %v1467, %v1466
      %v1488 = vpack.c.bf16 %v1469, %v1468
      %v1489 = vpack.c.bf16 %v1471, %v1470
      %v1490 = vpack.c.bf16 %v1473, %v1472
      %v1491 = vpack.c.bf16 %v1475, %v1474
      %v1508 = vunpack.c.l.b16 %v1476
      %v1509 = vunpack.c.h.b16 %v1476
      %v1510 = vunpack.c.l.b16 %v1477
      %v1511 = vunpack.c.h.b16 %v1477
      %v1512 = vunpack.c.l.b16 %v1478
      %v1513 = vunpack.c.h.b16 %v1478
      %v1514 = vunpack.c.l.b16 %v1479
      %v1515 = vunpack.c.h.b16 %v1479
      %v1516 = vunpack.c.l.b16 %v1480
      %v1517 = vunpack.c.h.b16 %v1480
      %v1518 = vunpack.c.l.b16 %v1481
      %v1519 = vunpack.c.h.b16 %v1481
      %v1520 = vunpack.c.l.b16 %v1482
      %v1521 = vunpack.c.h.b16 %v1482
      %v1522 = vunpack.c.l.b16 %v1483
      %v1523 = vunpack.c.h.b16 %v1483
      %v1524 = vunpack.c.l.b16 %v1484
      %v1525 = vunpack.c.h.b16 %v1484
      %v1526 = vunpack.c.l.b16 %v1485
      %v1527 = vunpack.c.h.b16 %v1485
      %v1528 = vunpack.c.l.b16 %v1486
      %v1529 = vunpack.c.h.b16 %v1486
      %v1530 = vunpack.c.l.b16 %v1487
      %v1531 = vunpack.c.h.b16 %v1487
      %v1532 = vunpack.c.l.b16 %v1488
      %v1533 = vunpack.c.h.b16 %v1488
      %v1534 = vunpack.c.l.b16 %v1489
      %v1535 = vunpack.c.h.b16 %v1489
      %v1536 = vunpack.c.l.b16 %v1490
      %v1537 = vunpack.c.h.b16 %v1490
      %v1538 = vunpack.c.l.b16 %v1491
      %v1539 = vunpack.c.h.b16 %v1491
      %v1540 = vpack.c.b16 %v1508, %v1508
      %v1541 = vpack.c.b16 %v1509, %v1509
      %v1542 = vpack.c.b16 %v1510, %v1510
      %v1543 = vpack.c.b16 %v1511, %v1511
      %v1544 = vpack.c.b16 %v1512, %v1512
      %v1545 = vpack.c.b16 %v1513, %v1513
      %v1546 = vpack.c.b16 %v1514, %v1514
      %v1547 = vpack.c.b16 %v1515, %v1515
      %v1548 = vpack.c.b16 %v1516, %v1516
      %v1549 = vpack.c.b16 %v1517, %v1517
      %v1550 = vpack.c.b16 %v1518, %v1518
      %v1551 = vpack.c.b16 %v1519, %v1519
      %v1552 = vpack.c.b16 %v1520, %v1520
      %v1553 = vpack.c.b16 %v1521, %v1521
      %v1554 = vpack.c.b16 %v1522, %v1522
      %v1555 = vpack.c.b16 %v1523, %v1523
      %v1556 = vpack.c.b16 %v1524, %v1524
      %v1557 = vpack.c.b16 %v1525, %v1525
      %v1558 = vpack.c.b16 %v1526, %v1526
      %v1559 = vpack.c.b16 %v1527, %v1527
      %v1560 = vpack.c.b16 %v1528, %v1528
      %v1561 = vpack.c.b16 %v1529, %v1529
      %v1562 = vpack.c.b16 %v1530, %v1530
      %v1563 = vpack.c.b16 %v1531, %v1531
      %v1564 = vpack.c.b16 %v1532, %v1532
      %v1565 = vpack.c.b16 %v1533, %v1533
      %v1566 = vpack.c.b16 %v1534, %v1534
      %v1567 = vpack.c.b16 %v1535, %v1535
      %v1568 = vpack.c.b16 %v1536, %v1536
      %v1569 = vpack.c.b16 %v1537, %v1537
      %v1570 = vpack.c.b16 %v1538, %v1538
      %v1571 = vpack.c.b16 %v1539, %v1539
      %1604 = vst [vmem:[#allocation3 + $0x18] sm:$0xf] %v1540
      %1605 = vst [vmem:[#allocation3 + $0x3c] sm:$0xf] %v1541
      %1606 = vst [vmem:[#allocation3 + $0x60] sm:$0xf] %v1542
      %1607 = vst [vmem:[#allocation3 + $0x84] sm:$0xf] %v1543
      %1608 = vst [vmem:[#allocation3 + $0xa8] sm:$0xf] %v1544
      %1609 = vst [vmem:[#allocation3 + $0xcc] sm:$0xf] %v1545
      %1610 = vst [vmem:[#allocation3 + $0xf0] sm:$0xf] %v1546
      %1611 = vst [vmem:[#allocation3 + $0x114] sm:$0xf] %v1547
      %1612 = vst [vmem:[#allocation3 + $0x138] sm:$0xf] %v1548
      %1613 = vst [vmem:[#allocation3 + $0x15c] sm:$0xf] %v1549
      %1614 = vst [vmem:[#allocation3 + $0x180] sm:$0xf] %v1550
      %1615 = vst [vmem:[#allocation3 + $0x1a4] sm:$0xf] %v1551
      %1616 = vst [vmem:[#allocation3 + $0x1c8] sm:$0xf] %v1552
      %1617 = vst [vmem:[#allocation3 + $0x1ec] sm:$0xf] %v1553
      %1618 = vst [vmem:[#allocation3 + $0x210] sm:$0xf] %v1554
      %1619 = vst [vmem:[#allocation3 + $0x234] sm:$0xf] %v1555
      %1620 = vst [vmem:[#allocation3 + $0x258] sm:$0xf] %v1556
      %1621 = vst [vmem:[#allocation3 + $0x27c] sm:$0xf] %v1557
      %1622 = vst [vmem:[#allocation3 + $0x2a0] sm:$0xf] %v1558
      %1623 = vst [vmem:[#allocation3 + $0x2c4] sm:$0xf] %v1559
      %1624 = vst [vmem:[#allocation3 + $0x2e8] sm:$0xf] %v1560
      %1625 = vst [vmem:[#allocation3 + $0x30c] sm:$0xf] %v1561
      %1626 = vst [vmem:[#allocation3 + $0x330] sm:$0xf] %v1562
      %1627 = vst [vmem:[#allocation3 + $0x354] sm:$0xf] %v1563
      %1628 = vst [vmem:[#allocation3 + $0x378] sm:$0xf] %v1564
      %1629 = vst [vmem:[#allocation3 + $0x39c] sm:$0xf] %v1565
      %1630 = vst [vmem:[#allocation3 + $0x3c0] sm:$0xf] %v1566
      %1631 = vst [vmem:[#allocation3 + $0x3e4] sm:$0xf] %v1567
      %1632 = vst [vmem:[#allocation3 + $0x408] sm:$0xf] %v1568
      %1633 = vst [vmem:[#allocation3 + $0x42c] sm:$0xf] %v1569
      %1634 = vst [vmem:[#allocation3 + $0x450] sm:$0xf] %v1570
      %1635 = vst [vmem:[#allocation3 + $0x474] sm:$0xf] %v1571
      %v1636 = vld [vmem:[%s1443 + $0x1] sm:$0xff]
      %v1637 = vld [vmem:[%s1443 + $0x9] sm:$0xff]
      %v1638 = vld [vmem:[%s1443 + $0x19] sm:$0xff]
      %v1639 = vld [vmem:[%s1443 + $0x21] sm:$0xff]
      %v1640 = vld [vmem:[%s1443 + $0x31] sm:$0xff]
      %v1641 = vld [vmem:[%s1443 + $0x39] sm:$0xff]
      %v1642 = vld [vmem:[%s1443 + $0x49] sm:$0xff]
      %v1643 = vld [vmem:[%s1443 + $0x51] sm:$0xff]
      %v1644 = vld [vmem:[%s1443 + $0x61] sm:$0xff]
      %v1645 = vld [vmem:[%s1443 + $0x69] sm:$0xff]
      %v1646 = vld [vmem:[%s1443 + $0x79] sm:$0xff]
      %v1647 = vld [vmem:[%s1443 + $0x81] sm:$0xff]
      %v1648 = vld [vmem:[%s1443 + $0x91] sm:$0xff]
      %v1649 = vld [vmem:[%s1443 + $0x99] sm:$0xff]
      %v1650 = vld [vmem:[%s1443 + $0xa9] sm:$0xff]
      %v1651 = vld [vmem:[%s1443 + $0xb1] sm:$0xff]
      %v1652 = vld [vmem:[%s1443 + $0xc1] sm:$0xff]
      %v1653 = vld [vmem:[%s1443 + $0xc9] sm:$0xff]
      %v1654 = vld [vmem:[%s1443 + $0xd9] sm:$0xff]
      %v1655 = vld [vmem:[%s1443 + $0xe1] sm:$0xff]
      %v1656 = vld [vmem:[%s1443 + $0xf1] sm:$0xff]
      %v1657 = vld [vmem:[%s1443 + $0xf9] sm:$0xff]
      %v1658 = vld [vmem:[%s1443 + $0x109] sm:$0xff]
      %v1659 = vld [vmem:[%s1443 + $0x111] sm:$0xff]
      %v1660 = vld [vmem:[%s1443 + $0x121] sm:$0xff]
      %v1661 = vld [vmem:[%s1443 + $0x129] sm:$0xff]
      %v1662 = vld [vmem:[%s1443 + $0x139] sm:$0xff]
      %v1663 = vld [vmem:[%s1443 + $0x141] sm:$0xff]
      %v1664 = vld [vmem:[%s1443 + $0x151] sm:$0xff]
      %v1665 = vld [vmem:[%s1443 + $0x159] sm:$0xff]
      %v1666 = vld [vmem:[%s1443 + $0x169] sm:$0xff]
      %v1667 = vld [vmem:[%s1443 + $0x171] sm:$0xff]
      %v1668 = vpack.c.bf16 %v1637, %v1636
      %v1669 = vpack.c.bf16 %v1639, %v1638
      %v1670 = vpack.c.bf16 %v1641, %v1640
      %v1671 = vpack.c.bf16 %v1643, %v1642
      %v1672 = vpack.c.bf16 %v1645, %v1644
      %v1673 = vpack.c.bf16 %v1647, %v1646
      %v1674 = vpack.c.bf16 %v1649, %v1648
      %v1675 = vpack.c.bf16 %v1651, %v1650
      %v1676 = vpack.c.bf16 %v1653, %v1652
      %v1677 = vpack.c.bf16 %v1655, %v1654
      %v1678 = vpack.c.bf16 %v1657, %v1656
      %v1679 = vpack.c.bf16 %v1659, %v1658
      %v1680 = vpack.c.bf16 %v1661, %v1660
      %v1681 = vpack.c.bf16 %v1663, %v1662
      %v1682 = vpack.c.bf16 %v1665, %v1664
      %v1683 = vpack.c.bf16 %v1667, %v1666
      %v1700 = vunpack.c.l.b16 %v1668
      %v1701 = vunpack.c.h.b16 %v1668
      %v1702 = vunpack.c.l.b16 %v1669
      %v1703 = vunpack.c.h.b16 %v1669
      %v1704 = vunpack.c.l.b16 %v1670
      %v1705 = vunpack.c.h.b16 %v1670
      %v1706 = vunpack.c.l.b16 %v1671
      %v1707 = vunpack.c.h.b16 %v1671
      %v1708 = vunpack.c.l.b16 %v1672
      %v1709 = vunpack.c.h.b16 %v1672
      %v1710 = vunpack.c.l.b16 %v1673
      %v1711 = vunpack.c.h.b16 %v1673
      %v1712 = vunpack.c.l.b16 %v1674
      %v1713 = vunpack.c.h.b16 %v1674
      %v1714 = vunpack.c.l.b16 %v1675
      %v1715 = vunpack.c.h.b16 %v1675
      %v1716 = vunpack.c.l.b16 %v1676
      %v1717 = vunpack.c.h.b16 %v1676
      %v1718 = vunpack.c.l.b16 %v1677
      %v1719 = vunpack.c.h.b16 %v1677
      %v1720 = vunpack.c.l.b16 %v1678
      %v1721 = vunpack.c.h.b16 %v1678
      %v1722 = vunpack.c.l.b16 %v1679
      %v1723 = vunpack.c.h.b16 %v1679
      %v1724 = vunpack.c.l.b16 %v1680
      %v1725 = vunpack.c.h.b16 %v1680
      %v1726 = vunpack.c.l.b16 %v1681
      %v1727 = vunpack.c.h.b16 %v1681
      %v1728 = vunpack.c.l.b16 %v1682
      %v1729 = vunpack.c.h.b16 %v1682
      %v1730 = vunpack.c.l.b16 %v1683
      %v1731 = vunpack.c.h.b16 %v1683
      %v1732 = vpack.c.b16 %v1700, %v1700
      %v1733 = vpack.c.b16 %v1701, %v1701
      %v1734 = vpack.c.b16 %v1702, %v1702
      %v1735 = vpack.c.b16 %v1703, %v1703
      %v1736 = vpack.c.b16 %v1704, %v1704
      %v1737 = vpack.c.b16 %v1705, %v1705
      %v1738 = vpack.c.b16 %v1706, %v1706
      %v1739 = vpack.c.b16 %v1707, %v1707
      %v1740 = vpack.c.b16 %v1708, %v1708
      %v1741 = vpack.c.b16 %v1709, %v1709
      %v1742 = vpack.c.b16 %v1710, %v1710
      %v1743 = vpack.c.b16 %v1711, %v1711
      %v1744 = vpack.c.b16 %v1712, %v1712
      %v1745 = vpack.c.b16 %v1713, %v1713
      %v1746 = vpack.c.b16 %v1714, %v1714
      %v1747 = vpack.c.b16 %v1715, %v1715
      %v1748 = vpack.c.b16 %v1716, %v1716
      %v1749 = vpack.c.b16 %v1717, %v1717
      %v1750 = vpack.c.b16 %v1718, %v1718
      %v1751 = vpack.c.b16 %v1719, %v1719
      %v1752 = vpack.c.b16 %v1720, %v1720
      %v1753 = vpack.c.b16 %v1721, %v1721
      %v1754 = vpack.c.b16 %v1722, %v1722
      %v1755 = vpack.c.b16 %v1723, %v1723
      %v1756 = vpack.c.b16 %v1724, %v1724
      %v1757 = vpack.c.b16 %v1725, %v1725
      %v1758 = vpack.c.b16 %v1726, %v1726
      %v1759 = vpack.c.b16 %v1727, %v1727
      %v1760 = vpack.c.b16 %v1728, %v1728
      %v1761 = vpack.c.b16 %v1729, %v1729
      %v1762 = vpack.c.b16 %v1730, %v1730
      %v1763 = vpack.c.b16 %v1731, %v1731
      %1796 = vst [vmem:[#allocation3 + $0x1c] sm:$0xf] %v1732
      %1797 = vst [vmem:[#allocation3 + $0x40] sm:$0xf] %v1733
      %1798 = vst [vmem:[#allocation3 + $0x64] sm:$0xf] %v1734
      %1799 = vst [vmem:[#allocation3 + $0x88] sm:$0xf] %v1735
      %1800 = vst [vmem:[#allocation3 + $0xac] sm:$0xf] %v1736
      %1801 = vst [vmem:[#allocation3 + $0xd0] sm:$0xf] %v1737
      %1802 = vst [vmem:[#allocation3 + $0xf4] sm:$0xf] %v1738
      %1803 = vst [vmem:[#allocation3 + $0x118] sm:$0xf] %v1739
      %1804 = vst [vmem:[#allocation3 + $0x13c] sm:$0xf] %v1740
      %1805 = vst [vmem:[#allocation3 + $0x160] sm:$0xf] %v1741
      %1806 = vst [vmem:[#allocation3 + $0x184] sm:$0xf] %v1742
      %1807 = vst [vmem:[#allocation3 + $0x1a8] sm:$0xf] %v1743
      %1808 = vst [vmem:[#allocation3 + $0x1cc] sm:$0xf] %v1744
      %1809 = vst [vmem:[#allocation3 + $0x1f0] sm:$0xf] %v1745
      %1810 = vst [vmem:[#allocation3 + $0x214] sm:$0xf] %v1746
      %1811 = vst [vmem:[#allocation3 + $0x238] sm:$0xf] %v1747
      %1812 = vst [vmem:[#allocation3 + $0x25c] sm:$0xf] %v1748
      %1813 = vst [vmem:[#allocation3 + $0x280] sm:$0xf] %v1749
      %1814 = vst [vmem:[#allocation3 + $0x2a4] sm:$0xf] %v1750
      %1815 = vst [vmem:[#allocation3 + $0x2c8] sm:$0xf] %v1751
      %1816 = vst [vmem:[#allocation3 + $0x2ec] sm:$0xf] %v1752
      %1817 = vst [vmem:[#allocation3 + $0x310] sm:$0xf] %v1753
      %1818 = vst [vmem:[#allocation3 + $0x334] sm:$0xf] %v1754
      %1819 = vst [vmem:[#allocation3 + $0x358] sm:$0xf] %v1755
      %1820 = vst [vmem:[#allocation3 + $0x37c] sm:$0xf] %v1756
      %1821 = vst [vmem:[#allocation3 + $0x3a0] sm:$0xf] %v1757
      %1822 = vst [vmem:[#allocation3 + $0x3c4] sm:$0xf] %v1758
      %1823 = vst [vmem:[#allocation3 + $0x3e8] sm:$0xf] %v1759
      %1824 = vst [vmem:[#allocation3 + $0x40c] sm:$0xf] %v1760
      %1825 = vst [vmem:[#allocation3 + $0x430] sm:$0xf] %v1761
      %1826 = vst [vmem:[#allocation3 + $0x454] sm:$0xf] %v1762
      %1827 = vst [vmem:[#allocation3 + $0x478] sm:$0xf] %v1763
      %v1828 = vld [vmem:[%s1443 + $0x2] sm:$0xff]
      %v1829 = vld [vmem:[%s1443 + $0xa] sm:$0xff]
      %v1830 = vld [vmem:[%s1443 + $0x1a] sm:$0xff]
      %v1831 = vld [vmem:[%s1443 + $0x22] sm:$0xff]
      %v1832 = vld [vmem:[%s1443 + $0x32] sm:$0xff]
      %v1833 = vld [vmem:[%s1443 + $0x3a] sm:$0xff]
      %v1834 = vld [vmem:[%s1443 + $0x4a] sm:$0xff]
      %v1835 = vld [vmem:[%s1443 + $0x52] sm:$0xff]
      %v1836 = vld [vmem:[%s1443 + $0x62] sm:$0xff]
      %v1837 = vld [vmem:[%s1443 + $0x6a] sm:$0xff]
      %v1838 = vld [vmem:[%s1443 + $0x7a] sm:$0xff]
      %v1839 = vld [vmem:[%s1443 + $0x82] sm:$0xff]
      %v1840 = vld [vmem:[%s1443 + $0x92] sm:$0xff]
      %v1841 = vld [vmem:[%s1443 + $0x9a] sm:$0xff]
      %v1842 = vld [vmem:[%s1443 + $0xaa] sm:$0xff]
      %v1843 = vld [vmem:[%s1443 + $0xb2] sm:$0xff]
      %v1844 = vld [vmem:[%s1443 + $0xc2] sm:$0xff]
      %v1845 = vld [vmem:[%s1443 + $0xca] sm:$0xff]
      %v1846 = vld [vmem:[%s1443 + $0xda] sm:$0xff]
      %v1847 = vld [vmem:[%s1443 + $0xe2] sm:$0xff]
      %v1848 = vld [vmem:[%s1443 + $0xf2] sm:$0xff]
      %v1849 = vld [vmem:[%s1443 + $0xfa] sm:$0xff]
      %v1850 = vld [vmem:[%s1443 + $0x10a] sm:$0xff]
      %v1851 = vld [vmem:[%s1443 + $0x112] sm:$0xff]
      %v1852 = vld [vmem:[%s1443 + $0x122] sm:$0xff]
      %v1853 = vld [vmem:[%s1443 + $0x12a] sm:$0xff]
      %v1854 = vld [vmem:[%s1443 + $0x13a] sm:$0xff]
      %v1855 = vld [vmem:[%s1443 + $0x142] sm:$0xff]
      %v1856 = vld [vmem:[%s1443 + $0x152] sm:$0xff]
      %v1857 = vld [vmem:[%s1443 + $0x15a] sm:$0xff]
      %v1858 = vld [vmem:[%s1443 + $0x16a] sm:$0xff]
      %v1859 = vld [vmem:[%s1443 + $0x172] sm:$0xff]
      %v1860 = vpack.c.bf16 %v1829, %v1828
      %v1861 = vpack.c.bf16 %v1831, %v1830
      %v1862 = vpack.c.bf16 %v1833, %v1832
      %v1863 = vpack.c.bf16 %v1835, %v1834
      %v1864 = vpack.c.bf16 %v1837, %v1836
      %v1865 = vpack.c.bf16 %v1839, %v1838
      %v1866 = vpack.c.bf16 %v1841, %v1840
      %v1867 = vpack.c.bf16 %v1843, %v1842
      %v1868 = vpack.c.bf16 %v1845, %v1844
      %v1869 = vpack.c.bf16 %v1847, %v1846
      %v1870 = vpack.c.bf16 %v1849, %v1848
      %v1871 = vpack.c.bf16 %v1851, %v1850
      %v1872 = vpack.c.bf16 %v1853, %v1852
      %v1873 = vpack.c.bf16 %v1855, %v1854
      %v1874 = vpack.c.bf16 %v1857, %v1856
      %v1875 = vpack.c.bf16 %v1859, %v1858
      %v1892 = vunpack.c.l.b16 %v1860
      %v1893 = vunpack.c.h.b16 %v1860
      %v1894 = vunpack.c.l.b16 %v1861
      %v1895 = vunpack.c.h.b16 %v1861
      %v1896 = vunpack.c.l.b16 %v1862
      %v1897 = vunpack.c.h.b16 %v1862
      %v1898 = vunpack.c.l.b16 %v1863
      %v1899 = vunpack.c.h.b16 %v1863
      %v1900 = vunpack.c.l.b16 %v1864
      %v1901 = vunpack.c.h.b16 %v1864
      %v1902 = vunpack.c.l.b16 %v1865
      %v1903 = vunpack.c.h.b16 %v1865
      %v1904 = vunpack.c.l.b16 %v1866
      %v1905 = vunpack.c.h.b16 %v1866
      %v1906 = vunpack.c.l.b16 %v1867
      %v1907 = vunpack.c.h.b16 %v1867
      %v1908 = vunpack.c.l.b16 %v1868
      %v1909 = vunpack.c.h.b16 %v1868
      %v1910 = vunpack.c.l.b16 %v1869
      %v1911 = vunpack.c.h.b16 %v1869
      %v1912 = vunpack.c.l.b16 %v1870
      %v1913 = vunpack.c.h.b16 %v1870
      %v1914 = vunpack.c.l.b16 %v1871
      %v1915 = vunpack.c.h.b16 %v1871
      %v1916 = vunpack.c.l.b16 %v1872
      %v1917 = vunpack.c.h.b16 %v1872
      %v1918 = vunpack.c.l.b16 %v1873
      %v1919 = vunpack.c.h.b16 %v1873
      %v1920 = vunpack.c.l.b16 %v1874
      %v1921 = vunpack.c.h.b16 %v1874
      %v1922 = vunpack.c.l.b16 %v1875
      %v1923 = vunpack.c.h.b16 %v1875
      %v1924 = vpack.c.b16 %v1892, %v1892
      %v1925 = vpack.c.b16 %v1893, %v1893
      %v1926 = vpack.c.b16 %v1894, %v1894
      %v1927 = vpack.c.b16 %v1895, %v1895
      %v1928 = vpack.c.b16 %v1896, %v1896
      %v1929 = vpack.c.b16 %v1897, %v1897
      %v1930 = vpack.c.b16 %v1898, %v1898
      %v1931 = vpack.c.b16 %v1899, %v1899
      %v1932 = vpack.c.b16 %v1900, %v1900
      %v1933 = vpack.c.b16 %v1901, %v1901
      %v1934 = vpack.c.b16 %v1902, %v1902
      %v1935 = vpack.c.b16 %v1903, %v1903
      %v1936 = vpack.c.b16 %v1904, %v1904
      %v1937 = vpack.c.b16 %v1905, %v1905
      %v1938 = vpack.c.b16 %v1906, %v1906
      %v1939 = vpack.c.b16 %v1907, %v1907
      %v1940 = vpack.c.b16 %v1908, %v1908
      %v1941 = vpack.c.b16 %v1909, %v1909
      %v1942 = vpack.c.b16 %v1910, %v1910
      %v1943 = vpack.c.b16 %v1911, %v1911
      %v1944 = vpack.c.b16 %v1912, %v1912
      %v1945 = vpack.c.b16 %v1913, %v1913
      %v1946 = vpack.c.b16 %v1914, %v1914
      %v1947 = vpack.c.b16 %v1915, %v1915
      %v1948 = vpack.c.b16 %v1916, %v1916
      %v1949 = vpack.c.b16 %v1917, %v1917
      %v1950 = vpack.c.b16 %v1918, %v1918
      %v1951 = vpack.c.b16 %v1919, %v1919
      %v1952 = vpack.c.b16 %v1920, %v1920
      %v1953 = vpack.c.b16 %v1921, %v1921
      %v1954 = vpack.c.b16 %v1922, %v1922
      %v1955 = vpack.c.b16 %v1923, %v1923
      %1988 = vst [vmem:[#allocation3 + $0x20] sm:$0xf] %v1924
      %1989 = vst [vmem:[#allocation3 + $0x44] sm:$0xf] %v1925
      %1990 = vst [vmem:[#allocation3 + $0x68] sm:$0xf] %v1926
      %1991 = vst [vmem:[#allocation3 + $0x8c] sm:$0xf] %v1927
      %1992 = vst [vmem:[#allocation3 + $0xb0] sm:$0xf] %v1928
      %1993 = vst [vmem:[#allocation3 + $0xd4] sm:$0xf] %v1929
      %1994 = vst [vmem:[#allocation3 + $0xf8] sm:$0xf] %v1930
      %1995 = vst [vmem:[#allocation3 + $0x11c] sm:$0xf] %v1931
      %1996 = vst [vmem:[#allocation3 + $0x140] sm:$0xf] %v1932
      %1997 = vst [vmem:[#allocation3 + $0x164] sm:$0xf] %v1933
      %1998 = vst [vmem:[#allocation3 + $0x188] sm:$0xf] %v1934
      %1999 = vst [vmem:[#allocation3 + $0x1ac] sm:$0xf] %v1935
      %2000 = vst [vmem:[#allocation3 + $0x1d0] sm:$0xf] %v1936
      %2001 = vst [vmem:[#allocation3 + $0x1f4] sm:$0xf] %v1937
      %2002 = vst [vmem:[#allocation3 + $0x218] sm:$0xf] %v1938
      %2003 = vst [vmem:[#allocation3 + $0x23c] sm:$0xf] %v1939
      %2004 = vst [vmem:[#allocation3 + $0x260] sm:$0xf] %v1940
      %2005 = vst [vmem:[#allocation3 + $0x284] sm:$0xf] %v1941
      %2006 = vst [vmem:[#allocation3 + $0x2a8] sm:$0xf] %v1942
      %2007 = vst [vmem:[#allocation3 + $0x2cc] sm:$0xf] %v1943
      %2008 = vst [vmem:[#allocation3 + $0x2f0] sm:$0xf] %v1944
      %2009 = vst [vmem:[#allocation3 + $0x314] sm:$0xf] %v1945
      %2010 = vst [vmem:[#allocation3 + $0x338] sm:$0xf] %v1946
      %2011 = vst [vmem:[#allocation3 + $0x35c] sm:$0xf] %v1947
      %2012 = vst [vmem:[#allocation3 + $0x380] sm:$0xf] %v1948
      %2013 = vst [vmem:[#allocation3 + $0x3a4] sm:$0xf] %v1949
      %2014 = vst [vmem:[#allocation3 + $0x3c8] sm:$0xf] %v1950
      %2015 = vst [vmem:[#allocation3 + $0x3ec] sm:$0xf] %v1951
      %2016 = vst [vmem:[#allocation3 + $0x410] sm:$0xf] %v1952
      %2017 = vst [vmem:[#allocation3 + $0x434] sm:$0xf] %v1953
      %2018 = vst [vmem:[#allocation3 + $0x458] sm:$0xf] %v1954
      %2019 = vst [vmem:[#allocation3 + $0x47c] sm:$0xf] %v1955
      %v2020 = vld [vmem:[#allocation3] sm:$0xff]
      %v2021 = vld [vmem:[#allocation3 + $0x8] sm:$0xff]
      %v2022 = vld [vmem:[#allocation3 + $0x10] sm:$0xff]
      %v2023 = vld [vmem:[#allocation3 + $0x18] sm:$0xff]
      %v2024 = vld [vmem:[#allocation3 + $0x20] sm:$0xf]
      %v2025 = vld [vmem:[#allocation3 + $0x24] sm:$0xff]
      %v2026 = vld [vmem:[#allocation3 + $0x2c] sm:$0xff]
      %v2027 = vld [vmem:[#allocation3 + $0x34] sm:$0xff]
      %v2028 = vld [vmem:[#allocation3 + $0x3c] sm:$0xff]
      %v2029 = vld [vmem:[#allocation3 + $0x44] sm:$0xf]
      %v2030 = vld [vmem:[#allocation3 + $0x48] sm:$0xff]
      %v2031 = vld [vmem:[#allocation3 + $0x50] sm:$0xff]
      %v2032 = vld [vmem:[#allocation3 + $0x58] sm:$0xff]
      %v2033 = vld [vmem:[#allocation3 + $0x60] sm:$0xff]
      %v2034 = vld [vmem:[#allocation3 + $0x68] sm:$0xf]
      %v2035 = vld [vmem:[#allocation3 + $0x6c] sm:$0xff]
      %v2036 = vld [vmem:[#allocation3 + $0x74] sm:$0xff]
      %v2037 = vld [vmem:[#allocation3 + $0x7c] sm:$0xff]
      %v2038 = vld [vmem:[#allocation3 + $0x84] sm:$0xff]
      %v2039 = vld [vmem:[#allocation3 + $0x8c] sm:$0xf]
      %v2040 = vld [vmem:[#allocation3 + $0x90] sm:$0xff]
      %v2041 = vld [vmem:[#allocation3 + $0x98] sm:$0xff]
      %v2042 = vld [vmem:[#allocation3 + $0xa0] sm:$0xff]
      %v2043 = vld [vmem:[#allocation3 + $0xa8] sm:$0xff]
      %v2044 = vld [vmem:[#allocation3 + $0xb0] sm:$0xf]
      %v2045 = vld [vmem:[#allocation3 + $0xb4] sm:$0xff]
      %v2046 = vld [vmem:[#allocation3 + $0xbc] sm:$0xff]
      %v2047 = vld [vmem:[#allocation3 + $0xc4] sm:$0xff]
      %v2048 = vld [vmem:[#allocation3 + $0xcc] sm:$0xff]
      %v2049 = vld [vmem:[#allocation3 + $0xd4] sm:$0xf]
      %v2050 = vld [vmem:[#allocation3 + $0xd8] sm:$0xff]
      %v2051 = vld [vmem:[#allocation3 + $0xe0] sm:$0xff]
      %v2052 = vld [vmem:[#allocation3 + $0xe8] sm:$0xff]
      %v2053 = vld [vmem:[#allocation3 + $0xf0] sm:$0xff]
      %v2054 = vld [vmem:[#allocation3 + $0xf8] sm:$0xf]
      %v2055 = vld [vmem:[#allocation3 + $0xfc] sm:$0xff]
      %v2056 = vld [vmem:[#allocation3 + $0x104] sm:$0xff]
      %v2057 = vld [vmem:[#allocation3 + $0x10c] sm:$0xff]
      %v2058 = vld [vmem:[#allocation3 + $0x114] sm:$0xff]
      %v2059 = vld [vmem:[#allocation3 + $0x11c] sm:$0xf]
      %v2060 = vld [vmem:[#allocation3 + $0x120] sm:$0xff]
      %v2061 = vld [vmem:[#allocation3 + $0x128] sm:$0xff]
      %v2062 = vld [vmem:[#allocation3 + $0x130] sm:$0xff]
      %v2063 = vld [vmem:[#allocation3 + $0x138] sm:$0xff]
      %v2064 = vld [vmem:[#allocation3 + $0x140] sm:$0xf]
      %v2065 = vld [vmem:[#allocation3 + $0x144] sm:$0xff]
      %v2066 = vld [vmem:[#allocation3 + $0x14c] sm:$0xff]
      %v2067 = vld [vmem:[#allocation3 + $0x154] sm:$0xff]
      %v2068 = vld [vmem:[#allocation3 + $0x15c] sm:$0xff]
      %v2069 = vld [vmem:[#allocation3 + $0x164] sm:$0xf]
      %v2070 = vld [vmem:[#allocation3 + $0x168] sm:$0xff]
      %v2071 = vld [vmem:[#allocation3 + $0x170] sm:$0xff]
      %v2072 = vld [vmem:[#allocation3 + $0x178] sm:$0xff]
      %v2073 = vld [vmem:[#allocation3 + $0x180] sm:$0xff]
      %v2074 = vld [vmem:[#allocation3 + $0x188] sm:$0xf]
      %v2075 = vld [vmem:[#allocation3 + $0x18c] sm:$0xff]
      %v2076 = vld [vmem:[#allocation3 + $0x194] sm:$0xff]
      %v2077 = vld [vmem:[#allocation3 + $0x19c] sm:$0xff]
      %v2078 = vld [vmem:[#allocation3 + $0x1a4] sm:$0xff]
      %v2079 = vld [vmem:[#allocation3 + $0x1ac] sm:$0xf]
      %v2080 = vld [vmem:[#allocation3 + $0x1b0] sm:$0xff]
      %v2081 = vld [vmem:[#allocation3 + $0x1b8] sm:$0xff]
      %v2082 = vld [vmem:[#allocation3 + $0x1c0] sm:$0xff]
      %v2083 = vld [vmem:[#allocation3 + $0x1c8] sm:$0xff]
      %v2084 = vld [vmem:[#allocation3 + $0x1d0] sm:$0xf]
      %v2085 = vld [vmem:[#allocation3 + $0x1d4] sm:$0xff]
      %v2086 = vld [vmem:[#allocation3 + $0x1dc] sm:$0xff]
      %v2087 = vld [vmem:[#allocation3 + $0x1e4] sm:$0xff]
      %v2088 = vld [vmem:[#allocation3 + $0x1ec] sm:$0xff]
      %v2089 = vld [vmem:[#allocation3 + $0x1f4] sm:$0xf]
      %v2090 = vld [vmem:[#allocation3 + $0x1f8] sm:$0xff]
      %v2091 = vld [vmem:[#allocation3 + $0x200] sm:$0xff]
      %v2092 = vld [vmem:[#allocation3 + $0x208] sm:$0xff]
      %v2093 = vld [vmem:[#allocation3 + $0x210] sm:$0xff]
      %v2094 = vld [vmem:[#allocation3 + $0x218] sm:$0xf]
      %v2095 = vld [vmem:[#allocation3 + $0x21c] sm:$0xff]
      %v2096 = vld [vmem:[#allocation3 + $0x224] sm:$0xff]
      %v2097 = vld [vmem:[#allocation3 + $0x22c] sm:$0xff]
      %v2098 = vld [vmem:[#allocation3 + $0x234] sm:$0xff]
      %v2099 = vld [vmem:[#allocation3 + $0x23c] sm:$0xf]
      %v2100 = vld [vmem:[#allocation3 + $0x240] sm:$0xff]
      %v2101 = vld [vmem:[#allocation3 + $0x248] sm:$0xff]
      %v2102 = vld [vmem:[#allocation3 + $0x250] sm:$0xff]
      %v2103 = vld [vmem:[#allocation3 + $0x258] sm:$0xff]
      %v2104 = vld [vmem:[#allocation3 + $0x260] sm:$0xf]
      %v2105 = vld [vmem:[#allocation3 + $0x264] sm:$0xff]
      %v2106 = vld [vmem:[#allocation3 + $0x26c] sm:$0xff]
      %v2107 = vld [vmem:[#allocation3 + $0x274] sm:$0xff]
      %v2108 = vld [vmem:[#allocation3 + $0x27c] sm:$0xff]
      %v2109 = vld [vmem:[#allocation3 + $0x284] sm:$0xf]
      %v2110 = vld [vmem:[#allocation3 + $0x288] sm:$0xff]
      %v2111 = vld [vmem:[#allocation3 + $0x290] sm:$0xff]
      %v2112 = vld [vmem:[#allocation3 + $0x298] sm:$0xff]
      %v2113 = vld [vmem:[#allocation3 + $0x2a0] sm:$0xff]
      %v2114 = vld [vmem:[#allocation3 + $0x2a8] sm:$0xf]
      %v2115 = vld [vmem:[#allocation3 + $0x2ac] sm:$0xff]
      %v2116 = vld [vmem:[#allocation3 + $0x2b4] sm:$0xff]
      %v2117 = vld [vmem:[#allocation3 + $0x2bc] sm:$0xff]
      %v2118 = vld [vmem:[#allocation3 + $0x2c4] sm:$0xff]
      %v2119 = vld [vmem:[#allocation3 + $0x2cc] sm:$0xf]
      %v2120 = vld [vmem:[#allocation3 + $0x2d0] sm:$0xff]
      %v2121 = vld [vmem:[#allocation3 + $0x2d8] sm:$0xff]
      %v2122 = vld [vmem:[#allocation3 + $0x2e0] sm:$0xff]
      %v2123 = vld [vmem:[#allocation3 + $0x2e8] sm:$0xff]
      %v2124 = vld [vmem:[#allocation3 + $0x2f0] sm:$0xf]
      %v2125 = vld [vmem:[#allocation3 + $0x2f4] sm:$0xff]
      %v2126 = vld [vmem:[#allocation3 + $0x2fc] sm:$0xff]
      %v2127 = vld [vmem:[#allocation3 + $0x304] sm:$0xff]
      %v2128 = vld [vmem:[#allocation3 + $0x30c] sm:$0xff]
      %v2129 = vld [vmem:[#allocation3 + $0x314] sm:$0xf]
      %v2130 = vld [vmem:[#allocation3 + $0x318] sm:$0xff]
      %v2131 = vld [vmem:[#allocation3 + $0x320] sm:$0xff]
      %v2132 = vld [vmem:[#allocation3 + $0x328] sm:$0xff]
      %v2133 = vld [vmem:[#allocation3 + $0x330] sm:$0xff]
      %v2134 = vld [vmem:[#allocation3 + $0x338] sm:$0xf]
      %v2135 = vld [vmem:[#allocation3 + $0x33c] sm:$0xff]
      %v2136 = vld [vmem:[#allocation3 + $0x344] sm:$0xff]
      %v2137 = vld [vmem:[#allocation3 + $0x34c] sm:$0xff]
      %v2138 = vld [vmem:[#allocation3 + $0x354] sm:$0xff]
      %v2139 = vld [vmem:[#allocation3 + $0x35c] sm:$0xf]
      %v2140 = vld [vmem:[#allocation3 + $0x360] sm:$0xff]
      %v2141 = vld [vmem:[#allocation3 + $0x368] sm:$0xff]
      %v2142 = vld [vmem:[#allocation3 + $0x370] sm:$0xff]
      %v2143 = vld [vmem:[#allocation3 + $0x378] sm:$0xff]
      %v2144 = vld [vmem:[#allocation3 + $0x380] sm:$0xf]
      %v2145 = vld [vmem:[#allocation3 + $0x384] sm:$0xff]
      %v2146 = vld [vmem:[#allocation3 + $0x38c] sm:$0xff]
      %v2147 = vld [vmem:[#allocation3 + $0x394] sm:$0xff]
      %v2148 = vld [vmem:[#allocation3 + $0x39c] sm:$0xff]
      %v2149 = vld [vmem:[#allocation3 + $0x3a4] sm:$0xf]
      %v2150 = vld [vmem:[#allocation3 + $0x3a8] sm:$0xff]
      %v2151 = vld [vmem:[#allocation3 + $0x3b0] sm:$0xff]
      %v2152 = vld [vmem:[#allocation3 + $0x3b8] sm:$0xff]
      %v2153 = vld [vmem:[#allocation3 + $0x3c0] sm:$0xff]
      %v2154 = vld [vmem:[#allocation3 + $0x3c8] sm:$0xf]
      %v2155 = vld [vmem:[#allocation3 + $0x3cc] sm:$0xff]
      %v2156 = vld [vmem:[#allocation3 + $0x3d4] sm:$0xff]
      %v2157 = vld [vmem:[#allocation3 + $0x3dc] sm:$0xff]
      %v2158 = vld [vmem:[#allocation3 + $0x3e4] sm:$0xff]
      %v2159 = vld [vmem:[#allocation3 + $0x3ec] sm:$0xf]
      %v2160 = vld [vmem:[#allocation3 + $0x3f0] sm:$0xff]
      %v2161 = vld [vmem:[#allocation3 + $0x3f8] sm:$0xff]
      %v2162 = vld [vmem:[#allocation3 + $0x400] sm:$0xff]
      %v2163 = vld [vmem:[#allocation3 + $0x408] sm:$0xff]
      %v2164 = vld [vmem:[#allocation3 + $0x410] sm:$0xf]
      %v2165 = vld [vmem:[#allocation3 + $0x414] sm:$0xff]
      %v2166 = vld [vmem:[#allocation3 + $0x41c] sm:$0xff]
      %v2167 = vld [vmem:[#allocation3 + $0x424] sm:$0xff]
      %v2168 = vld [vmem:[#allocation3 + $0x42c] sm:$0xff]
      %v2169 = vld [vmem:[#allocation3 + $0x434] sm:$0xf]
      %v2170 = vld [vmem:[#allocation3 + $0x438] sm:$0xff]
      %v2171 = vld [vmem:[#allocation3 + $0x440] sm:$0xff]
      %v2172 = vld [vmem:[#allocation3 + $0x448] sm:$0xff]
      %v2173 = vld [vmem:[#allocation3 + $0x450] sm:$0xff]
      %v2174 = vld [vmem:[#allocation3 + $0x458] sm:$0xf]
      %v2175 = vld [vmem:[#allocation3 + $0x45c] sm:$0xff]
      %v2176 = vld [vmem:[#allocation3 + $0x464] sm:$0xff]
      %v2177 = vld [vmem:[#allocation3 + $0x46c] sm:$0xff]
      %v2178 = vld [vmem:[#allocation3 + $0x474] sm:$0xff]
      %v2179 = vld [vmem:[#allocation3 + $0x47c] sm:$0xf]
      %v2180 = vld [vmem:[%s1] sm:$0xf]
      %v2181 = vld [vmem:[%s1 + $0x4] sm:$0xf]
      %v2182 = vld [vmem:[%s1 + $0x8] sm:$0xf]
      %v2183 = vld [vmem:[%s1 + $0xc] sm:$0xf]
      %v2184 = vld [vmem:[%s1 + $0x10] sm:$0xf]
      %v2185 = vld [vmem:[%s1 + $0x14] sm:$0xf]
      %v2186 = vld [vmem:[%s1 + $0x18] sm:$0xf]
      %v2187 = vld [vmem:[%s1 + $0x1c] sm:$0xf]
      %v2188 = vld [vmem:[%s1 + $0x20] sm:$0xf]
      %v2189 = vld [vmem:[%s1 + $0x24] sm:$0xf]
      %v2190 = vld [vmem:[%s1 + $0x28] sm:$0xf]
      %v2191 = vld [vmem:[%s1 + $0x2c] sm:$0xf]
      %v2192 = vld [vmem:[%s1 + $0x30] sm:$0xf]
      %v2193 = vld [vmem:[%s1 + $0x34] sm:$0xf]
      %v2194 = vld [vmem:[%s1 + $0x38] sm:$0xf]
      %v2195 = vld [vmem:[%s1 + $0x3c] sm:$0xf]
      %v2196 = vld [vmem:[%s1 + $0x40] sm:$0xf]
      %v2197 = vld [vmem:[%s1 + $0x44] sm:$0xf]
      %v2198 = vld [vmem:[%s1 + $0x48] sm:$0xf]
      %v2199 = vld [vmem:[%s1 + $0x4c] sm:$0xf]
      %v2200 = vld [vmem:[%s1 + $0x50] sm:$0xf]
      %v2201 = vld [vmem:[%s1 + $0x54] sm:$0xf]
      %v2202 = vld [vmem:[%s1 + $0x58] sm:$0xf]
      %v2203 = vld [vmem:[%s1 + $0x5c] sm:$0xf]
      %v2204 = vld [vmem:[%s1 + $0x60] sm:$0xf]
      %v2205 = vld [vmem:[%s1 + $0x64] sm:$0xf]
      %v2206 = vld [vmem:[%s1 + $0x68] sm:$0xf]
      %v2207 = vld [vmem:[%s1 + $0x6c] sm:$0xf]
      %v2208 = vld [vmem:[%s1 + $0x70] sm:$0xf]
      %v2209 = vld [vmem:[%s1 + $0x74] sm:$0xf]
      %v2210 = vld [vmem:[%s1 + $0x78] sm:$0xf]
      %v2211 = vld [vmem:[%s1 + $0x7c] sm:$0xf]
      %v2212 = vld [vmem:[%s1 + $0x80] sm:$0xf]
      %v2213 = vld [vmem:[%s1 + $0x84] sm:$0xf]
      %v2214 = vld [vmem:[%s1 + $0x88] sm:$0xf]
      %v2215 = vld [vmem:[%s1 + $0x8c] sm:$0xf]
      %v2216 = vld [vmem:[%s1 + $0x90] sm:$0xf]
      %v2217 = vld [vmem:[%s1 + $0x94] sm:$0xf]
      %v2218 = vld [vmem:[%s1 + $0x98] sm:$0xf]
      %v2219 = vld [vmem:[%s1 + $0x9c] sm:$0xf]
      %v2220 = vld [vmem:[%s1 + $0xa0] sm:$0xf]
      %v2221 = vld [vmem:[%s1 + $0xa4] sm:$0xf]
      %v2222 = vld [vmem:[%s1 + $0xa8] sm:$0xf]
      %v2223 = vld [vmem:[%s1 + $0xac] sm:$0xf]
      %v2224 = vld [vmem:[%s1 + $0xb0] sm:$0xf]
      %v2225 = vld [vmem:[%s1 + $0xb4] sm:$0xf]
      %v2226 = vld [vmem:[%s1 + $0xb8] sm:$0xf]
      %v2227 = vld [vmem:[%s1 + $0xbc] sm:$0xf]
      %v2228 = vld [vmem:[%s1 + $0xc0] sm:$0xf]
      %v2229 = vld [vmem:[%s1 + $0xc4] sm:$0xf]
      %v2230 = vld [vmem:[%s1 + $0xc8] sm:$0xf]
      %v2231 = vld [vmem:[%s1 + $0xcc] sm:$0xf]
      %v2232 = vld [vmem:[%s1 + $0xd0] sm:$0xf]
      %v2233 = vld [vmem:[%s1 + $0xd4] sm:$0xf]
      %v2234 = vld [vmem:[%s1 + $0xd8] sm:$0xf]
      %v2235 = vld [vmem:[%s1 + $0xdc] sm:$0xf]
      %v2236 = vld [vmem:[%s1 + $0xe0] sm:$0xf]
      %v2237 = vld [vmem:[%s1 + $0xe4] sm:$0xf]
      %v2238 = vld [vmem:[%s1 + $0xe8] sm:$0xf]
      %v2239 = vld [vmem:[%s1 + $0xec] sm:$0xf]
      %v2240 = vld [vmem:[%s1 + $0xf0] sm:$0xf]
      %v2241 = vld [vmem:[%s1 + $0xf4] sm:$0xf]
      %v2242 = vld [vmem:[%s1 + $0xf8] sm:$0xf]
      %v2243 = vld [vmem:[%s1 + $0xfc] sm:$0xf]
      %v2244 = vld [vmem:[%s1 + $0x100] sm:$0xf]
      %v2245 = vld [vmem:[%s1 + $0x104] sm:$0xf]
      %v2246 = vld [vmem:[%s1 + $0x108] sm:$0xf]
      %v2247 = vld [vmem:[%s1 + $0x10c] sm:$0xf]
      %v2248 = vld [vmem:[%s1 + $0x110] sm:$0xf]
      %v2249 = vld [vmem:[%s1 + $0x114] sm:$0xf]
      %v2250 = vld [vmem:[%s1 + $0x118] sm:$0xf]
      %v2251 = vld [vmem:[%s1 + $0x11c] sm:$0xf]
      %v2252 = vld [vmem:[%s1 + $0x120] sm:$0xf]
      %v2253 = vld [vmem:[%s1 + $0x124] sm:$0xf]
      %v2254 = vld [vmem:[%s1 + $0x128] sm:$0xf]
      %v2255 = vld [vmem:[%s1 + $0x12c] sm:$0xf]
      %v2256 = vld [vmem:[%s1 + $0x130] sm:$0xf]
      %v2257 = vld [vmem:[%s1 + $0x134] sm:$0xf]
      %v2258 = vld [vmem:[%s1 + $0x138] sm:$0xf]
      %v2259 = vld [vmem:[%s1 + $0x13c] sm:$0xf]
      %v2260 = vld [vmem:[%s1 + $0x140] sm:$0xf]
      %v2261 = vld [vmem:[%s1 + $0x144] sm:$0xf]
      %v2262 = vld [vmem:[%s1 + $0x148] sm:$0xf]
      %v2263 = vld [vmem:[%s1 + $0x14c] sm:$0xf]
      %v2264 = vld [vmem:[%s1 + $0x150] sm:$0xf]
      %v2265 = vld [vmem:[%s1 + $0x154] sm:$0xf]
      %v2266 = vld [vmem:[%s1 + $0x158] sm:$0xf]
      %v2267 = vld [vmem:[%s1 + $0x15c] sm:$0xf]
      %v2268 = vld [vmem:[%s1 + $0x160] sm:$0xf]
      %v2269 = vld [vmem:[%s1 + $0x164] sm:$0xf]
      %v2270 = vld [vmem:[%s1 + $0x168] sm:$0xf]
      %v2271 = vld [vmem:[%s1 + $0x16c] sm:$0xf]
      %v2272 = vld [vmem:[%s1 + $0x170] sm:$0xf]
      %v2273 = vld [vmem:[%s1 + $0x174] sm:$0xf]
      %v2274 = vld [vmem:[%s1 + $0x178] sm:$0xf]
      %v2275 = vld [vmem:[%s1 + $0x17c] sm:$0xf]
      %v2276 = vld [vmem:[%s1 + $0x180] sm:$0xf]
      %v2277 = vld [vmem:[%s1 + $0x184] sm:$0xf]
      %v2278 = vld [vmem:[%s1 + $0x188] sm:$0xf]
      %v2279 = vld [vmem:[%s1 + $0x18c] sm:$0xf]
      %v2280 = vld [vmem:[%s1 + $0x190] sm:$0xf]
      %v2281 = vld [vmem:[%s1 + $0x194] sm:$0xf]
      %v2282 = vld [vmem:[%s1 + $0x198] sm:$0xf]
      %v2283 = vld [vmem:[%s1 + $0x19c] sm:$0xf]
      %v2284 = vld [vmem:[%s1 + $0x1a0] sm:$0xf]
      %v2285 = vld [vmem:[%s1 + $0x1a4] sm:$0xf]
      %v2286 = vld [vmem:[%s1 + $0x1a8] sm:$0xf]
      %v2287 = vld [vmem:[%s1 + $0x1ac] sm:$0xf]
      %v2288 = vld [vmem:[%s1 + $0x1b0] sm:$0xf]
      %v2289 = vld [vmem:[%s1 + $0x1b4] sm:$0xf]
      %v2290 = vld [vmem:[%s1 + $0x1b8] sm:$0xf]
      %v2291 = vld [vmem:[%s1 + $0x1bc] sm:$0xf]
      %v2292 = vld [vmem:[%s1 + $0x1c0] sm:$0xf]
      %v2293 = vld [vmem:[%s1 + $0x1c4] sm:$0xf]
      %v2294 = vld [vmem:[%s1 + $0x1c8] sm:$0xf]
      %v2295 = vld [vmem:[%s1 + $0x1cc] sm:$0xf]
      %v2296 = vld [vmem:[%s1 + $0x1d0] sm:$0xf]
      %v2297 = vld [vmem:[%s1 + $0x1d4] sm:$0xf]
      %v2298 = vld [vmem:[%s1 + $0x1d8] sm:$0xf]
      %v2299 = vld [vmem:[%s1 + $0x1dc] sm:$0xf]
      %v2300 = vld [vmem:[%s1 + $0x1e0] sm:$0xf]
      %v2301 = vld [vmem:[%s1 + $0x1e4] sm:$0xf]
      %v2302 = vld [vmem:[%s1 + $0x1e8] sm:$0xf]
      %v2303 = vld [vmem:[%s1 + $0x1ec] sm:$0xf]
      %v2304 = vld [vmem:[%s1 + $0x1f0] sm:$0xf]
      %v2305 = vld [vmem:[%s1 + $0x1f4] sm:$0xf]
      %v2306 = vld [vmem:[%s1 + $0x1f8] sm:$0xf]
      %v2307 = vld [vmem:[%s1 + $0x1fc] sm:$0xf]
      %v2308 = vld [vmem:[%s1 + $0x200] sm:$0xf]
      %v2309 = vld [vmem:[%s1 + $0x204] sm:$0xf]
      %v2310 = vld [vmem:[%s1 + $0x208] sm:$0xf]
      %v2311 = vld [vmem:[%s1 + $0x20c] sm:$0xf]
      %v2312 = vld [vmem:[%s1 + $0x210] sm:$0xf]
      %v2313 = vld [vmem:[%s1 + $0x214] sm:$0xf]
      %v2314 = vld [vmem:[%s1 + $0x218] sm:$0xf]
      %v2315 = vld [vmem:[%s1 + $0x21c] sm:$0xf]
      %v2316 = vld [vmem:[%s1 + $0x220] sm:$0xf]
      %v2317 = vld [vmem:[%s1 + $0x224] sm:$0xf]
      %v2318 = vld [vmem:[%s1 + $0x228] sm:$0xf]
      %v2319 = vld [vmem:[%s1 + $0x22c] sm:$0xf]
      %v2320 = vld [vmem:[%s1 + $0x230] sm:$0xf]
      %v2321 = vld [vmem:[%s1 + $0x234] sm:$0xf]
      %v2322 = vld [vmem:[%s1 + $0x238] sm:$0xf]
      %v2323 = vld [vmem:[%s1 + $0x23c] sm:$0xf]
      %v2484 = vunpack.c.l.b16 %v2020
      %v2485 = vunpack.c.h.b16 %v2020
      %v2486 = vunpack.c.l.b16 %v2021
      %v2487 = vunpack.c.h.b16 %v2021
      %v2488 = vunpack.c.l.b16 %v2022
      %v2489 = vunpack.c.h.b16 %v2022
      %v2490 = vunpack.c.l.b16 %v2023
      %v2491 = vunpack.c.h.b16 %v2023
      %v2492 = vunpack.c.l.b16 %v2024
      %v2493 = vunpack.c.l.b16 %v2025
      %v2494 = vunpack.c.h.b16 %v2025
      %v2495 = vunpack.c.l.b16 %v2026
      %v2496 = vunpack.c.h.b16 %v2026
      %v2497 = vunpack.c.l.b16 %v2027
      %v2498 = vunpack.c.h.b16 %v2027
      %v2499 = vunpack.c.l.b16 %v2028
      %v2500 = vunpack.c.h.b16 %v2028
      %v2501 = vunpack.c.l.b16 %v2029
      %v2502 = vunpack.c.l.b16 %v2030
      %v2503 = vunpack.c.h.b16 %v2030
      %v2504 = vunpack.c.l.b16 %v2031
      %v2505 = vunpack.c.h.b16 %v2031
      %v2506 = vunpack.c.l.b16 %v2032
      %v2507 = vunpack.c.h.b16 %v2032
      %v2508 = vunpack.c.l.b16 %v2033
      %v2509 = vunpack.c.h.b16 %v2033
      %v2510 = vunpack.c.l.b16 %v2034
      %v2511 = vunpack.c.l.b16 %v2035
      %v2512 = vunpack.c.h.b16 %v2035
      %v2513 = vunpack.c.l.b16 %v2036
      %v2514 = vunpack.c.h.b16 %v2036
      %v2515 = vunpack.c.l.b16 %v2037
      %v2516 = vunpack.c.h.b16 %v2037
      %v2517 = vunpack.c.l.b16 %v2038
      %v2518 = vunpack.c.h.b16 %v2038
      %v2519 = vunpack.c.l.b16 %v2039
      %v2520 = vunpack.c.l.b16 %v2040
      %v2521 = vunpack.c.h.b16 %v2040
      %v2522 = vunpack.c.l.b16 %v2041
      %v2523 = vunpack.c.h.b16 %v2041
      %v2524 = vunpack.c.l.b16 %v2042
      %v2525 = vunpack.c.h.b16 %v2042
      %v2526 = vunpack.c.l.b16 %v2043
      %v2527 = vunpack.c.h.b16 %v2043
      %v2528 = vunpack.c.l.b16 %v2044
      %v2529 = vunpack.c.l.b16 %v2045
      %v2530 = vunpack.c.h.b16 %v2045
      %v2531 = vunpack.c.l.b16 %v2046
      %v2532 = vunpack.c.h.b16 %v2046
      %v2533 = vunpack.c.l.b16 %v2047
      %v2534 = vunpack.c.h.b16 %v2047
      %v2535 = vunpack.c.l.b16 %v2048
      %v2536 = vunpack.c.h.b16 %v2048
      %v2537 = vunpack.c.l.b16 %v2049
      %v2538 = vunpack.c.l.b16 %v2050
      %v2539 = vunpack.c.h.b16 %v2050
      %v2540 = vunpack.c.l.b16 %v2051
      %v2541 = vunpack.c.h.b16 %v2051
      %v2542 = vunpack.c.l.b16 %v2052
      %v2543 = vunpack.c.h.b16 %v2052
      %v2544 = vunpack.c.l.b16 %v2053
      %v2545 = vunpack.c.h.b16 %v2053
      %v2546 = vunpack.c.l.b16 %v2054
      %v2547 = vunpack.c.l.b16 %v2055
      %v2548 = vunpack.c.h.b16 %v2055
      %v2549 = vunpack.c.l.b16 %v2056
      %v2550 = vunpack.c.h.b16 %v2056
      %v2551 = vunpack.c.l.b16 %v2057
      %v2552 = vunpack.c.h.b16 %v2057
      %v2553 = vunpack.c.l.b16 %v2058
      %v2554 = vunpack.c.h.b16 %v2058
      %v2555 = vunpack.c.l.b16 %v2059
      %v2556 = vunpack.c.l.b16 %v2060
      %v2557 = vunpack.c.h.b16 %v2060
      %v2558 = vunpack.c.l.b16 %v2061
      %v2559 = vunpack.c.h.b16 %v2061
      %v2560 = vunpack.c.l.b16 %v2062
      %v2561 = vunpack.c.h.b16 %v2062
      %v2562 = vunpack.c.l.b16 %v2063
      %v2563 = vunpack.c.h.b16 %v2063
      %v2564 = vunpack.c.l.b16 %v2064
      %v2565 = vunpack.c.l.b16 %v2065
      %v2566 = vunpack.c.h.b16 %v2065
      %v2567 = vunpack.c.l.b16 %v2066
      %v2568 = vunpack.c.h.b16 %v2066
      %v2569 = vunpack.c.l.b16 %v2067
      %v2570 = vunpack.c.h.b16 %v2067
      %v2571 = vunpack.c.l.b16 %v2068
      %v2572 = vunpack.c.h.b16 %v2068
      %v2573 = vunpack.c.l.b16 %v2069
      %v2574 = vunpack.c.l.b16 %v2070
      %v2575 = vunpack.c.h.b16 %v2070
      %v2576 = vunpack.c.l.b16 %v2071
      %v2577 = vunpack.c.h.b16 %v2071
      %v2578 = vunpack.c.l.b16 %v2072
      %v2579 = vunpack.c.h.b16 %v2072
      %v2580 = vunpack.c.l.b16 %v2073
      %v2581 = vunpack.c.h.b16 %v2073
      %v2582 = vunpack.c.l.b16 %v2074
      %v2583 = vunpack.c.l.b16 %v2075
      %v2584 = vunpack.c.h.b16 %v2075
      %v2585 = vunpack.c.l.b16 %v2076
      %v2586 = vunpack.c.h.b16 %v2076
      %v2587 = vunpack.c.l.b16 %v2077
      %v2588 = vunpack.c.h.b16 %v2077
      %v2589 = vunpack.c.l.b16 %v2078
      %v2590 = vunpack.c.h.b16 %v2078
      %v2591 = vunpack.c.l.b16 %v2079
      %v2592 = vunpack.c.l.b16 %v2080
      %v2593 = vunpack.c.h.b16 %v2080
      %v2594 = vunpack.c.l.b16 %v2081
      %v2595 = vunpack.c.h.b16 %v2081
      %v2596 = vunpack.c.l.b16 %v2082
      %v2597 = vunpack.c.h.b16 %v2082
      %v2598 = vunpack.c.l.b16 %v2083
      %v2599 = vunpack.c.h.b16 %v2083
      %v2600 = vunpack.c.l.b16 %v2084
      %v2601 = vunpack.c.l.b16 %v2085
      %v2602 = vunpack.c.h.b16 %v2085
      %v2603 = vunpack.c.l.b16 %v2086
      %v2604 = vunpack.c.h.b16 %v2086
      %v2605 = vunpack.c.l.b16 %v2087
      %v2606 = vunpack.c.h.b16 %v2087
      %v2607 = vunpack.c.l.b16 %v2088
      %v2608 = vunpack.c.h.b16 %v2088
      %v2609 = vunpack.c.l.b16 %v2089
      %v2610 = vunpack.c.l.b16 %v2090
      %v2611 = vunpack.c.h.b16 %v2090
      %v2612 = vunpack.c.l.b16 %v2091
      %v2613 = vunpack.c.h.b16 %v2091
      %v2614 = vunpack.c.l.b16 %v2092
      %v2615 = vunpack.c.h.b16 %v2092
      %v2616 = vunpack.c.l.b16 %v2093
      %v2617 = vunpack.c.h.b16 %v2093
      %v2618 = vunpack.c.l.b16 %v2094
      %v2619 = vunpack.c.l.b16 %v2095
      %v2620 = vunpack.c.h.b16 %v2095
      %v2621 = vunpack.c.l.b16 %v2096
      %v2622 = vunpack.c.h.b16 %v2096
      %v2623 = vunpack.c.l.b16 %v2097
      %v2624 = vunpack.c.h.b16 %v2097
      %v2625 = vunpack.c.l.b16 %v2098
      %v2626 = vunpack.c.h.b16 %v2098
      %v2627 = vunpack.c.l.b16 %v2099
      %v2628 = vunpack.c.l.b16 %v2100
      %v2629 = vunpack.c.h.b16 %v2100
      %v2630 = vunpack.c.l.b16 %v2101
      %v2631 = vunpack.c.h.b16 %v2101
      %v2632 = vunpack.c.l.b16 %v2102
      %v2633 = vunpack.c.h.b16 %v2102
      %v2634 = vunpack.c.l.b16 %v2103
      %v2635 = vunpack.c.h.b16 %v2103
      %v2636 = vunpack.c.l.b16 %v2104
      %v2637 = vunpack.c.l.b16 %v2105
      %v2638 = vunpack.c.h.b16 %v2105
      %v2639 = vunpack.c.l.b16 %v2106
      %v2640 = vunpack.c.h.b16 %v2106
      %v2641 = vunpack.c.l.b16 %v2107
      %v2642 = vunpack.c.h.b16 %v2107
      %v2643 = vunpack.c.l.b16 %v2108
      %v2644 = vunpack.c.h.b16 %v2108
      %v2645 = vunpack.c.l.b16 %v2109
      %v2646 = vunpack.c.l.b16 %v2110
      %v2647 = vunpack.c.h.b16 %v2110
      %v2648 = vunpack.c.l.b16 %v2111
      %v2649 = vunpack.c.h.b16 %v2111
      %v2650 = vunpack.c.l.b16 %v2112
      %v2651 = vunpack.c.h.b16 %v2112
      %v2652 = vunpack.c.l.b16 %v2113
      %v2653 = vunpack.c.h.b16 %v2113
      %v2654 = vunpack.c.l.b16 %v2114
      %v2655 = vunpack.c.l.b16 %v2115
      %v2656 = vunpack.c.h.b16 %v2115
      %v2657 = vunpack.c.l.b16 %v2116
      %v2658 = vunpack.c.h.b16 %v2116
      %v2659 = vunpack.c.l.b16 %v2117
      %v2660 = vunpack.c.h.b16 %v2117
      %v2661 = vunpack.c.l.b16 %v2118
      %v2662 = vunpack.c.h.b16 %v2118
      %v2663 = vunpack.c.l.b16 %v2119
      %v2664 = vunpack.c.l.b16 %v2120
      %v2665 = vunpack.c.h.b16 %v2120
      %v2666 = vunpack.c.l.b16 %v2121
      %v2667 = vunpack.c.h.b16 %v2121
      %v2668 = vunpack.c.l.b16 %v2122
      %v2669 = vunpack.c.h.b16 %v2122
      %v2670 = vunpack.c.l.b16 %v2123
      %v2671 = vunpack.c.h.b16 %v2123
      %v2672 = vunpack.c.l.b16 %v2124
      %v2673 = vunpack.c.l.b16 %v2125
      %v2674 = vunpack.c.h.b16 %v2125
      %v2675 = vunpack.c.l.b16 %v2126
      %v2676 = vunpack.c.h.b16 %v2126
      %v2677 = vunpack.c.l.b16 %v2127
      %v2678 = vunpack.c.h.b16 %v2127
      %v2679 = vunpack.c.l.b16 %v2128
      %v2680 = vunpack.c.h.b16 %v2128
      %v2681 = vunpack.c.l.b16 %v2129
      %v2682 = vunpack.c.l.b16 %v2130
      %v2683 = vunpack.c.h.b16 %v2130
      %v2684 = vunpack.c.l.b16 %v2131
      %v2685 = vunpack.c.h.b16 %v2131
      %v2686 = vunpack.c.l.b16 %v2132
      %v2687 = vunpack.c.h.b16 %v2132
      %v2688 = vunpack.c.l.b16 %v2133
      %v2689 = vunpack.c.h.b16 %v2133
      %v2690 = vunpack.c.l.b16 %v2134
      %v2691 = vunpack.c.l.b16 %v2135
      %v2692 = vunpack.c.h.b16 %v2135
      %v2693 = vunpack.c.l.b16 %v2136
      %v2694 = vunpack.c.h.b16 %v2136
      %v2695 = vunpack.c.l.b16 %v2137
      %v2696 = vunpack.c.h.b16 %v2137
      %v2697 = vunpack.c.l.b16 %v2138
      %v2698 = vunpack.c.h.b16 %v2138
      %v2699 = vunpack.c.l.b16 %v2139
      %v2700 = vunpack.c.l.b16 %v2140
      %v2701 = vunpack.c.h.b16 %v2140
      %v2702 = vunpack.c.l.b16 %v2141
      %v2703 = vunpack.c.h.b16 %v2141
      %v2704 = vunpack.c.l.b16 %v2142
      %v2705 = vunpack.c.h.b16 %v2142
      %v2706 = vunpack.c.l.b16 %v2143
      %v2707 = vunpack.c.h.b16 %v2143
      %v2708 = vunpack.c.l.b16 %v2144
      %v2709 = vunpack.c.l.b16 %v2145
      %v2710 = vunpack.c.h.b16 %v2145
      %v2711 = vunpack.c.l.b16 %v2146
      %v2712 = vunpack.c.h.b16 %v2146
      %v2713 = vunpack.c.l.b16 %v2147
      %v2714 = vunpack.c.h.b16 %v2147
      %v2715 = vunpack.c.l.b16 %v2148
      %v2716 = vunpack.c.h.b16 %v2148
      %v2717 = vunpack.c.l.b16 %v2149
      %v2718 = vunpack.c.l.b16 %v2150
      %v2719 = vunpack.c.h.b16 %v2150
      %v2720 = vunpack.c.l.b16 %v2151
      %v2721 = vunpack.c.h.b16 %v2151
      %v2722 = vunpack.c.l.b16 %v2152
      %v2723 = vunpack.c.h.b16 %v2152
      %v2724 = vunpack.c.l.b16 %v2153
      %v2725 = vunpack.c.h.b16 %v2153
      %v2726 = vunpack.c.l.b16 %v2154
      %v2727 = vunpack.c.l.b16 %v2155
      %v2728 = vunpack.c.h.b16 %v2155
      %v2729 = vunpack.c.l.b16 %v2156
      %v2730 = vunpack.c.h.b16 %v2156
      %v2731 = vunpack.c.l.b16 %v2157
      %v2732 = vunpack.c.h.b16 %v2157
      %v2733 = vunpack.c.l.b16 %v2158
      %v2734 = vunpack.c.h.b16 %v2158
      %v2735 = vunpack.c.l.b16 %v2159
      %v2736 = vunpack.c.l.b16 %v2160
      %v2737 = vunpack.c.h.b16 %v2160
      %v2738 = vunpack.c.l.b16 %v2161
      %v2739 = vunpack.c.h.b16 %v2161
      %v2740 = vunpack.c.l.b16 %v2162
      %v2741 = vunpack.c.h.b16 %v2162
      %v2742 = vunpack.c.l.b16 %v2163
      %v2743 = vunpack.c.h.b16 %v2163
      %v2744 = vunpack.c.l.b16 %v2164
      %v2745 = vunpack.c.l.b16 %v2165
      %v2746 = vunpack.c.h.b16 %v2165
      %v2747 = vunpack.c.l.b16 %v2166
      %v2748 = vunpack.c.h.b16 %v2166
      %v2749 = vunpack.c.l.b16 %v2167
      %v2750 = vunpack.c.h.b16 %v2167
      %v2751 = vunpack.c.l.b16 %v2168
      %v2752 = vunpack.c.h.b16 %v2168
      %v2753 = vunpack.c.l.b16 %v2169
      %v2754 = vunpack.c.l.b16 %v2170
      %v2755 = vunpack.c.h.b16 %v2170
      %v2756 = vunpack.c.l.b16 %v2171
      %v2757 = vunpack.c.h.b16 %v2171
      %v2758 = vunpack.c.l.b16 %v2172
      %v2759 = vunpack.c.h.b16 %v2172
      %v2760 = vunpack.c.l.b16 %v2173
      %v2761 = vunpack.c.h.b16 %v2173
      %v2762 = vunpack.c.l.b16 %v2174
      %v2763 = vunpack.c.l.b16 %v2175
      %v2764 = vunpack.c.h.b16 %v2175
      %v2765 = vunpack.c.l.b16 %v2176
      %v2766 = vunpack.c.h.b16 %v2176
      %v2767 = vunpack.c.l.b16 %v2177
      %v2768 = vunpack.c.h.b16 %v2177
      %v2769 = vunpack.c.l.b16 %v2178
      %v2770 = vunpack.c.h.b16 %v2178
      %v2771 = vunpack.c.l.b16 %v2179
      %v2772 = vpack.c.b16 %v2493, %v2484
      %v2773 = vpack.c.b16 %v2494, %v2485
      %v2774 = vpack.c.b16 %v2495, %v2486
      %v2775 = vpack.c.b16 %v2496, %v2487
      %v2776 = vpack.c.b16 %v2497, %v2488
      %v2777 = vpack.c.b16 %v2498, %v2489
      %v2778 = vpack.c.b16 %v2499, %v2490
      %v2779 = vpack.c.b16 %v2500, %v2491
      %v2780 = vpack.c.b16 %v2501, %v2492
      %v2781 = vpack.c.b16 %v2511, %v2502
      %v2782 = vpack.c.b16 %v2512, %v2503
      %v2783 = vpack.c.b16 %v2513, %v2504
      %v2784 = vpack.c.b16 %v2514, %v2505
      %v2785 = vpack.c.b16 %v2515, %v2506
      %v2786 = vpack.c.b16 %v2516, %v2507
      %v2787 = vpack.c.b16 %v2517, %v2508
      %v2788 = vpack.c.b16 %v2518, %v2509
      %v2789 = vpack.c.b16 %v2519, %v2510
      %v2790 = vpack.c.b16 %v2529, %v2520
      %v2791 = vpack.c.b16 %v2530, %v2521
      %v2792 = vpack.c.b16 %v2531, %v2522
      %v2793 = vpack.c.b16 %v2532, %v2523
      %v2794 = vpack.c.b16 %v2533, %v2524
      %v2795 = vpack.c.b16 %v2534, %v2525
      %v2796 = vpack.c.b16 %v2535, %v2526
      %v2797 = vpack.c.b16 %v2536, %v2527
      %v2798 = vpack.c.b16 %v2537, %v2528
      %v2799 = vpack.c.b16 %v2547, %v2538
      %v2800 = vpack.c.b16 %v2548, %v2539
      %v2801 = vpack.c.b16 %v2549, %v2540
      %v2802 = vpack.c.b16 %v2550, %v2541
      %v2803 = vpack.c.b16 %v2551, %v2542
      %v2804 = vpack.c.b16 %v2552, %v2543
      %v2805 = vpack.c.b16 %v2553, %v2544
      %v2806 = vpack.c.b16 %v2554, %v2545
      %v2807 = vpack.c.b16 %v2555, %v2546
      %v2808 = vpack.c.b16 %v2565, %v2556
      %v2809 = vpack.c.b16 %v2566, %v2557
      %v2810 = vpack.c.b16 %v2567, %v2558
      %v2811 = vpack.c.b16 %v2568, %v2559
      %v2812 = vpack.c.b16 %v2569, %v2560
      %v2813 = vpack.c.b16 %v2570, %v2561
      %v2814 = vpack.c.b16 %v2571, %v2562
      %v2815 = vpack.c.b16 %v2572, %v2563
      %v2816 = vpack.c.b16 %v2573, %v2564
      %v2817 = vpack.c.b16 %v2583, %v2574
      %v2818 = vpack.c.b16 %v2584, %v2575
      %v2819 = vpack.c.b16 %v2585, %v2576
      %v2820 = vpack.c.b16 %v2586, %v2577
      %v2821 = vpack.c.b16 %v2587, %v2578
      %v2822 = vpack.c.b16 %v2588, %v2579
      %v2823 = vpack.c.b16 %v2589, %v2580
      %v2824 = vpack.c.b16 %v2590, %v2581
      %v2825 = vpack.c.b16 %v2591, %v2582
      %v2826 = vpack.c.b16 %v2601, %v2592
      %v2827 = vpack.c.b16 %v2602, %v2593
      %v2828 = vpack.c.b16 %v2603, %v2594
      %v2829 = vpack.c.b16 %v2604, %v2595
      %v2830 = vpack.c.b16 %v2605, %v2596
      %v2831 = vpack.c.b16 %v2606, %v2597
      %v2832 = vpack.c.b16 %v2607, %v2598
      %v2833 = vpack.c.b16 %v2608, %v2599
      %v2834 = vpack.c.b16 %v2609, %v2600
      %v2835 = vpack.c.b16 %v2619, %v2610
      %v2836 = vpack.c.b16 %v2620, %v2611
      %v2837 = vpack.c.b16 %v2621, %v2612
      %v2838 = vpack.c.b16 %v2622, %v2613
      %v2839 = vpack.c.b16 %v2623, %v2614
      %v2840 = vpack.c.b16 %v2624, %v2615
      %v2841 = vpack.c.b16 %v2625, %v2616
      %v2842 = vpack.c.b16 %v2626, %v2617
      %v2843 = vpack.c.b16 %v2627, %v2618
      %v2844 = vpack.c.b16 %v2637, %v2628
      %v2845 = vpack.c.b16 %v2638, %v2629
      %v2846 = vpack.c.b16 %v2639, %v2630
      %v2847 = vpack.c.b16 %v2640, %v2631
      %v2848 = vpack.c.b16 %v2641, %v2632
      %v2849 = vpack.c.b16 %v2642, %v2633
      %v2850 = vpack.c.b16 %v2643, %v2634
      %v2851 = vpack.c.b16 %v2644, %v2635
      %v2852 = vpack.c.b16 %v2645, %v2636
      %v2853 = vpack.c.b16 %v2655, %v2646
      %v2854 = vpack.c.b16 %v2656, %v2647
      %v2855 = vpack.c.b16 %v2657, %v2648
      %v2856 = vpack.c.b16 %v2658, %v2649
      %v2857 = vpack.c.b16 %v2659, %v2650
      %v2858 = vpack.c.b16 %v2660, %v2651
      %v2859 = vpack.c.b16 %v2661, %v2652
      %v2860 = vpack.c.b16 %v2662, %v2653
      %v2861 = vpack.c.b16 %v2663, %v2654
      %v2862 = vpack.c.b16 %v2673, %v2664
      %v2863 = vpack.c.b16 %v2674, %v2665
      %v2864 = vpack.c.b16 %v2675, %v2666
      %v2865 = vpack.c.b16 %v2676, %v2667
      %v2866 = vpack.c.b16 %v2677, %v2668
      %v2867 = vpack.c.b16 %v2678, %v2669
      %v2868 = vpack.c.b16 %v2679, %v2670
      %v2869 = vpack.c.b16 %v2680, %v2671
      %v2870 = vpack.c.b16 %v2681, %v2672
      %v2871 = vpack.c.b16 %v2691, %v2682
      %v2872 = vpack.c.b16 %v2692, %v2683
      %v2873 = vpack.c.b16 %v2693, %v2684
      %v2874 = vpack.c.b16 %v2694, %v2685
      %v2875 = vpack.c.b16 %v2695, %v2686
      %v2876 = vpack.c.b16 %v2696, %v2687
      %v2877 = vpack.c.b16 %v2697, %v2688
      %v2878 = vpack.c.b16 %v2698, %v2689
      %v2879 = vpack.c.b16 %v2699, %v2690
      %v2880 = vpack.c.b16 %v2709, %v2700
      %v2881 = vpack.c.b16 %v2710, %v2701
      %v2882 = vpack.c.b16 %v2711, %v2702
      %v2883 = vpack.c.b16 %v2712, %v2703
      %v2884 = vpack.c.b16 %v2713, %v2704
      %v2885 = vpack.c.b16 %v2714, %v2705
      %v2886 = vpack.c.b16 %v2715, %v2706
      %v2887 = vpack.c.b16 %v2716, %v2707
      %v2888 = vpack.c.b16 %v2717, %v2708
      %v2889 = vpack.c.b16 %v2727, %v2718
      %v2890 = vpack.c.b16 %v2728, %v2719
      %v2891 = vpack.c.b16 %v2729, %v2720
      %v2892 = vpack.c.b16 %v2730, %v2721
      %v2893 = vpack.c.b16 %v2731, %v2722
      %v2894 = vpack.c.b16 %v2732, %v2723
      %v2895 = vpack.c.b16 %v2733, %v2724
      %v2896 = vpack.c.b16 %v2734, %v2725
      %v2897 = vpack.c.b16 %v2735, %v2726
      %v2898 = vpack.c.b16 %v2745, %v2736
      %v2899 = vpack.c.b16 %v2746, %v2737
      %v2900 = vpack.c.b16 %v2747, %v2738
      %v2901 = vpack.c.b16 %v2748, %v2739
      %v2902 = vpack.c.b16 %v2749, %v2740
      %v2903 = vpack.c.b16 %v2750, %v2741
      %v2904 = vpack.c.b16 %v2751, %v2742
      %v2905 = vpack.c.b16 %v2752, %v2743
      %v2906 = vpack.c.b16 %v2753, %v2744
      %v2907 = vpack.c.b16 %v2763, %v2754
      %v2908 = vpack.c.b16 %v2764, %v2755
      %v2909 = vpack.c.b16 %v2765, %v2756
      %v2910 = vpack.c.b16 %v2766, %v2757
      %v2911 = vpack.c.b16 %v2767, %v2758
      %v2912 = vpack.c.b16 %v2768, %v2759
      %v2913 = vpack.c.b16 %v2769, %v2760
      %v2914 = vpack.c.b16 %v2770, %v2761
      %v2915 = vpack.c.b16 %v2771, %v2762
      %v3204 = vunpack.c.l.b16 %v2180
      %v3205 = vunpack.c.l.b16 %v2181
      %v3206 = vunpack.c.l.b16 %v2182
      %v3207 = vunpack.c.l.b16 %v2183
      %v3208 = vunpack.c.l.b16 %v2184
      %v3209 = vunpack.c.l.b16 %v2185
      %v3210 = vunpack.c.l.b16 %v2186
      %v3211 = vunpack.c.l.b16 %v2187
      %v3212 = vunpack.c.l.b16 %v2188
      %v3213 = vunpack.c.l.b16 %v2189
      %v3214 = vunpack.c.l.b16 %v2190
      %v3215 = vunpack.c.l.b16 %v2191
      %v3216 = vunpack.c.l.b16 %v2192
      %v3217 = vunpack.c.l.b16 %v2193
      %v3218 = vunpack.c.l.b16 %v2194
      %v3219 = vunpack.c.l.b16 %v2195
      %v3220 = vunpack.c.l.b16 %v2196
      %v3221 = vunpack.c.l.b16 %v2197
      %v3222 = vunpack.c.l.b16 %v2198
      %v3223 = vunpack.c.l.b16 %v2199
      %v3224 = vunpack.c.l.b16 %v2200
      %v3225 = vunpack.c.l.b16 %v2201
      %v3226 = vunpack.c.l.b16 %v2202
      %v3227 = vunpack.c.l.b16 %v2203
      %v3228 = vunpack.c.l.b16 %v2204
      %v3229 = vunpack.c.l.b16 %v2205
      %v3230 = vunpack.c.l.b16 %v2206
      %v3231 = vunpack.c.l.b16 %v2207
      %v3232 = vunpack.c.l.b16 %v2208
      %v3233 = vunpack.c.l.b16 %v2209
      %v3234 = vunpack.c.l.b16 %v2210
      %v3235 = vunpack.c.l.b16 %v2211
      %v3236 = vunpack.c.l.b16 %v2212
      %v3237 = vunpack.c.l.b16 %v2213
      %v3238 = vunpack.c.l.b16 %v2214
      %v3239 = vunpack.c.l.b16 %v2215
      %v3240 = vunpack.c.l.b16 %v2216
      %v3241 = vunpack.c.l.b16 %v2217
      %v3242 = vunpack.c.l.b16 %v2218
      %v3243 = vunpack.c.l.b16 %v2219
      %v3244 = vunpack.c.l.b16 %v2220
      %v3245 = vunpack.c.l.b16 %v2221
      %v3246 = vunpack.c.l.b16 %v2222
      %v3247 = vunpack.c.l.b16 %v2223
      %v3248 = vunpack.c.l.b16 %v2224
      %v3249 = vunpack.c.l.b16 %v2225
      %v3250 = vunpack.c.l.b16 %v2226
      %v3251 = vunpack.c.l.b16 %v2227
      %v3252 = vunpack.c.l.b16 %v2228
      %v3253 = vunpack.c.l.b16 %v2229
      %v3254 = vunpack.c.l.b16 %v2230
      %v3255 = vunpack.c.l.b16 %v2231
      %v3256 = vunpack.c.l.b16 %v2232
      %v3257 = vunpack.c.l.b16 %v2233
      %v3258 = vunpack.c.l.b16 %v2234
      %v3259 = vunpack.c.l.b16 %v2235
      %v3260 = vunpack.c.l.b16 %v2236
      %v3261 = vunpack.c.l.b16 %v2237
      %v3262 = vunpack.c.l.b16 %v2238
      %v3263 = vunpack.c.l.b16 %v2239
      %v3264 = vunpack.c.l.b16 %v2240
      %v3265 = vunpack.c.l.b16 %v2241
      %v3266 = vunpack.c.l.b16 %v2242
      %v3267 = vunpack.c.l.b16 %v2243
      %v3268 = vunpack.c.l.b16 %v2244
      %v3269 = vunpack.c.l.b16 %v2245
      %v3270 = vunpack.c.l.b16 %v2246
      %v3271 = vunpack.c.l.b16 %v2247
      %v3272 = vunpack.c.l.b16 %v2248
      %v3273 = vunpack.c.l.b16 %v2249
      %v3274 = vunpack.c.l.b16 %v2250
      %v3275 = vunpack.c.l.b16 %v2251
      %v3276 = vunpack.c.l.b16 %v2252
      %v3277 = vunpack.c.l.b16 %v2253
      %v3278 = vunpack.c.l.b16 %v2254
      %v3279 = vunpack.c.l.b16 %v2255
      %v3280 = vunpack.c.l.b16 %v2256
      %v3281 = vunpack.c.l.b16 %v2257
      %v3282 = vunpack.c.l.b16 %v2258
      %v3283 = vunpack.c.l.b16 %v2259
      %v3284 = vunpack.c.l.b16 %v2260
      %v3285 = vunpack.c.l.b16 %v2261
      %v3286 = vunpack.c.l.b16 %v2262
      %v3287 = vunpack.c.l.b16 %v2263
      %v3288 = vunpack.c.l.b16 %v2264
      %v3289 = vunpack.c.l.b16 %v2265
      %v3290 = vunpack.c.l.b16 %v2266
      %v3291 = vunpack.c.l.b16 %v2267
      %v3292 = vunpack.c.l.b16 %v2268
      %v3293 = vunpack.c.l.b16 %v2269
      %v3294 = vunpack.c.l.b16 %v2270
      %v3295 = vunpack.c.l.b16 %v2271
      %v3296 = vunpack.c.l.b16 %v2272
      %v3297 = vunpack.c.l.b16 %v2273
      %v3298 = vunpack.c.l.b16 %v2274
      %v3299 = vunpack.c.l.b16 %v2275
      %v3300 = vunpack.c.l.b16 %v2276
      %v3301 = vunpack.c.l.b16 %v2277
      %v3302 = vunpack.c.l.b16 %v2278
      %v3303 = vunpack.c.l.b16 %v2279
      %v3304 = vunpack.c.l.b16 %v2280
      %v3305 = vunpack.c.l.b16 %v2281
      %v3306 = vunpack.c.l.b16 %v2282
      %v3307 = vunpack.c.l.b16 %v2283
      %v3308 = vunpack.c.l.b16 %v2284
      %v3309 = vunpack.c.l.b16 %v2285
      %v3310 = vunpack.c.l.b16 %v2286
      %v3311 = vunpack.c.l.b16 %v2287
      %v3312 = vunpack.c.l.b16 %v2288
      %v3313 = vunpack.c.l.b16 %v2289
      %v3314 = vunpack.c.l.b16 %v2290
      %v3315 = vunpack.c.l.b16 %v2291
      %v3316 = vunpack.c.l.b16 %v2292
      %v3317 = vunpack.c.l.b16 %v2293
      %v3318 = vunpack.c.l.b16 %v2294
      %v3319 = vunpack.c.l.b16 %v2295
      %v3320 = vunpack.c.l.b16 %v2296
      %v3321 = vunpack.c.l.b16 %v2297
      %v3322 = vunpack.c.l.b16 %v2298
      %v3323 = vunpack.c.l.b16 %v2299
      %v3324 = vunpack.c.l.b16 %v2300
      %v3325 = vunpack.c.l.b16 %v2301
      %v3326 = vunpack.c.l.b16 %v2302
      %v3327 = vunpack.c.l.b16 %v2303
      %v3328 = vunpack.c.l.b16 %v2304
      %v3329 = vunpack.c.l.b16 %v2305
      %v3330 = vunpack.c.l.b16 %v2306
      %v3331 = vunpack.c.l.b16 %v2307
      %v3332 = vunpack.c.l.b16 %v2308
      %v3333 = vunpack.c.l.b16 %v2309
      %v3334 = vunpack.c.l.b16 %v2310
      %v3335 = vunpack.c.l.b16 %v2311
      %v3336 = vunpack.c.l.b16 %v2312
      %v3337 = vunpack.c.l.b16 %v2313
      %v3338 = vunpack.c.l.b16 %v2314
      %v3339 = vunpack.c.l.b16 %v2315
      %v3340 = vunpack.c.l.b16 %v2316
      %v3341 = vunpack.c.l.b16 %v2317
      %v3342 = vunpack.c.l.b16 %v2318
      %v3343 = vunpack.c.l.b16 %v2319
      %v3344 = vunpack.c.l.b16 %v2320
      %v3345 = vunpack.c.l.b16 %v2321
      %v3346 = vunpack.c.l.b16 %v2322
      %v3347 = vunpack.c.l.b16 %v2323
      %v3348 = vpack.c.b16 %v3205, %v3204
      %v3349 = vpack.c.b16 %v3207, %v3206
      %v3350 = vpack.c.b16 %v3209, %v3208
      %v3351 = vpack.c.b16 %v3211, %v3210
      %v3352 = vpack.c.b16 %v3213, %v3212
      %v3353 = vpack.c.b16 %v3215, %v3214
      %v3354 = vpack.c.b16 %v3217, %v3216
      %v3355 = vpack.c.b16 %v3219, %v3218
      %v3356 = vpack.c.b16 %v3221, %v3220
      %v3357 = vpack.c.b16 %v3223, %v3222
      %v3358 = vpack.c.b16 %v3225, %v3224
      %v3359 = vpack.c.b16 %v3227, %v3226
      %v3360 = vpack.c.b16 %v3229, %v3228
      %v3361 = vpack.c.b16 %v3231, %v3230
      %v3362 = vpack.c.b16 %v3233, %v3232
      %v3363 = vpack.c.b16 %v3235, %v3234
      %v3364 = vpack.c.b16 %v3237, %v3236
      %v3365 = vpack.c.b16 %v3239, %v3238
      %v3366 = vpack.c.b16 %v3241, %v3240
      %v3367 = vpack.c.b16 %v3243, %v3242
      %v3368 = vpack.c.b16 %v3245, %v3244
      %v3369 = vpack.c.b16 %v3247, %v3246
      %v3370 = vpack.c.b16 %v3249, %v3248
      %v3371 = vpack.c.b16 %v3251, %v3250
      %v3372 = vpack.c.b16 %v3253, %v3252
      %v3373 = vpack.c.b16 %v3255, %v3254
      %v3374 = vpack.c.b16 %v3257, %v3256
      %v3375 = vpack.c.b16 %v3259, %v3258
      %v3376 = vpack.c.b16 %v3261, %v3260
      %v3377 = vpack.c.b16 %v3263, %v3262
      %v3378 = vpack.c.b16 %v3265, %v3264
      %v3379 = vpack.c.b16 %v3267, %v3266
      %v3380 = vpack.c.b16 %v3269, %v3268
      %v3381 = vpack.c.b16 %v3271, %v3270
      %v3382 = vpack.c.b16 %v3273, %v3272
      %v3383 = vpack.c.b16 %v3275, %v3274
      %v3384 = vpack.c.b16 %v3277, %v3276
      %v3385 = vpack.c.b16 %v3279, %v3278
      %v3386 = vpack.c.b16 %v3281, %v3280
      %v3387 = vpack.c.b16 %v3283, %v3282
      %v3388 = vpack.c.b16 %v3285, %v3284
      %v3389 = vpack.c.b16 %v3287, %v3286
      %v3390 = vpack.c.b16 %v3289, %v3288
      %v3391 = vpack.c.b16 %v3291, %v3290
      %v3392 = vpack.c.b16 %v3293, %v3292
      %v3393 = vpack.c.b16 %v3295, %v3294
      %v3394 = vpack.c.b16 %v3297, %v3296
      %v3395 = vpack.c.b16 %v3299, %v3298
      %v3396 = vpack.c.b16 %v3301, %v3300
      %v3397 = vpack.c.b16 %v3303, %v3302
      %v3398 = vpack.c.b16 %v3305, %v3304
      %v3399 = vpack.c.b16 %v3307, %v3306
      %v3400 = vpack.c.b16 %v3309, %v3308
      %v3401 = vpack.c.b16 %v3311, %v3310
      %v3402 = vpack.c.b16 %v3313, %v3312
      %v3403 = vpack.c.b16 %v3315, %v3314
      %v3404 = vpack.c.b16 %v3317, %v3316
      %v3405 = vpack.c.b16 %v3319, %v3318
      %v3406 = vpack.c.b16 %v3321, %v3320
      %v3407 = vpack.c.b16 %v3323, %v3322
      %v3408 = vpack.c.b16 %v3325, %v3324
      %v3409 = vpack.c.b16 %v3327, %v3326
      %v3410 = vpack.c.b16 %v3329, %v3328
      %v3411 = vpack.c.b16 %v3331, %v3330
      %v3412 = vpack.c.b16 %v3333, %v3332
      %v3413 = vpack.c.b16 %v3335, %v3334
      %v3414 = vpack.c.b16 %v3337, %v3336
      %v3415 = vpack.c.b16 %v3339, %v3338
      %v3416 = vpack.c.b16 %v3341, %v3340
      %v3417 = vpack.c.b16 %v3343, %v3342
      %v3418 = vpack.c.b16 %v3345, %v3344
      %v3419 = vpack.c.b16 %v3347, %v3346
      %3492 = vmatprep.subr.bf16.mxu0 0
      %3493 = vmatpush1.bf16.msra.mxu0 %v3355
      %3494 = vmatprep.subr.bf16.mxu0 0
      %3495 = vmatpush1.bf16.msra.mxu0 %v3354
      %3496 = vmatprep.subr.bf16.mxu0 0
      %3497 = vmatpush1.bf16.msra.mxu0 %v3353
      %3498 = vmatprep.subr.bf16.mxu0 0
      %3499 = vmatpush1.bf16.msra.mxu0 %v3352
      %3500 = vmatprep.subr.bf16.mxu0 0
      %3501 = vmatpush1.bf16.msra.mxu0 %v3351
      %3502 = vmatprep.subr.bf16.mxu0 0
      %3503 = vmatpush1.bf16.msra.mxu0 %v3350
      %3504 = vmatprep.subr.bf16.mxu0 0
      %3505 = vmatpush1.bf16.msra.mxu0 %v3349
      %3506 = vmatprep.subr.bf16.mxu0 0
      %3507 = vmatpush1.bf16.msra.mxu0 %v3348
      %3508 = vmatprep.subr.bf16.mxu0 0
      %3509 = vmatpush2.bf16.msra.mxu0 %v3363
      %3510 = vmatprep.subr.bf16.mxu0 0
      %3511 = vmatpush2.bf16.msra.mxu0 %v3362
      %3512 = vmatprep.subr.bf16.mxu0 0
      %3513 = vmatpush2.bf16.msra.mxu0 %v3361
      %3514 = vmatprep.subr.bf16.mxu0 0
      %3515 = vmatpush2.bf16.msra.mxu0 %v3360
      %3516 = vmatprep.subr.bf16.mxu0 0
      %3517 = vmatpush2.bf16.msra.mxu0 %v3359
      %3518 = vmatprep.subr.bf16.mxu0 0
      %3519 = vmatpush2.bf16.msra.mxu0 %v3358
      %3520 = vmatprep.subr.bf16.mxu0 0
      %3521 = vmatpush2.bf16.msra.mxu0 %v3357
      %3522 = vmatprep.subr.bf16.mxu0 0
      %3523 = vmatpush2.bf16.msra.mxu0 %v3356
      %3524 = vmatprep.mubr.bf16.mxu0 %v2773
      %3525 = vmatmul.mubr.bf16.gmra.mxu0 %v2772
      %v3526 = vpop.f32.mrf.mxu0
      %v3527 = vadd.f32 0.0, %v3526
      %v3528 = vpop.f32.mrf.mxu0
      %v3529 = vpop.f32.mrf.mxu0
      %v3530 = vadd.f32 0.0, %v3529
      %v3531 = vpop.f32.mrf.mxu0
      %3532 = vmatprep.mubr.bf16.mxu0 %v2782
      %3533 = vmatmul.mubr.bf16.gmra.mxu0 %v2781
      %v3534 = vpop.f32.mrf.mxu0
      %v3535 = vadd.f32 0.0, %v3534
      %v3536 = vpop.f32.mrf.mxu0
      %v3537 = vpop.f32.mrf.mxu0
      %v3538 = vadd.f32 0.0, %v3537
      %v3539 = vpop.f32.mrf.mxu0
      %3540 = vmatprep.mubr.bf16.mxu0 %v2791
      %3541 = vmatmul.mubr.bf16.gmra.mxu0 %v2790
      %v3542 = vpop.f32.mrf.mxu0
      %v3543 = vadd.f32 0.0, %v3542
      %v3544 = vpop.f32.mrf.mxu0
      %v3545 = vpop.f32.mrf.mxu0
      %v3546 = vadd.f32 0.0, %v3545
      %v3547 = vpop.f32.mrf.mxu0
      %3548 = vmatprep.mubr.bf16.mxu0 %v2800
      %3549 = vmatmul.mubr.bf16.gmra.mxu0 %v2799
      %v3550 = vpop.f32.mrf.mxu0
      %v3551 = vadd.f32 0.0, %v3550
      %v3552 = vpop.f32.mrf.mxu0
      %v3553 = vpop.f32.mrf.mxu0
      %v3554 = vadd.f32 0.0, %v3553
      %v3555 = vpop.f32.mrf.mxu0
      %3556 = vmatprep.mubr.bf16.mxu0 %v2809
      %3557 = vmatmul.mubr.bf16.gmra.mxu0 %v2808
      %v3558 = vpop.f32.mrf.mxu0
      %v3559 = vadd.f32 0.0, %v3558
      %v3560 = vpop.f32.mrf.mxu0
      %v3561 = vpop.f32.mrf.mxu0
      %v3562 = vadd.f32 0.0, %v3561
      %v3563 = vpop.f32.mrf.mxu0
      %3564 = vmatprep.mubr.bf16.mxu0 %v2818
      %3565 = vmatmul.mubr.bf16.gmra.mxu0 %v2817
      %v3566 = vpop.f32.mrf.mxu0
      %v3567 = vadd.f32 0.0, %v3566
      %v3568 = vpop.f32.mrf.mxu0
      %v3569 = vpop.f32.mrf.mxu0
      %v3570 = vadd.f32 0.0, %v3569
      %v3571 = vpop.f32.mrf.mxu0
      %3572 = vmatprep.mubr.bf16.mxu0 %v2827
      %3573 = vmatmul.mubr.bf16.gmra.mxu0 %v2826
      %v3574 = vpop.f32.mrf.mxu0
      %v3575 = vadd.f32 0.0, %v3574
      %v3576 = vpop.f32.mrf.mxu0
      %v3577 = vpop.f32.mrf.mxu0
      %v3578 = vadd.f32 0.0, %v3577
      %v3579 = vpop.f32.mrf.mxu0
      %3580 = vmatprep.mubr.bf16.mxu0 %v2836
      %3581 = vmatmul.mubr.bf16.gmra.mxu0 %v2835
      %v3582 = vpop.f32.mrf.mxu0
      %v3583 = vadd.f32 0.0, %v3582
      %v3584 = vpop.f32.mrf.mxu0
      %v3585 = vpop.f32.mrf.mxu0
      %v3586 = vadd.f32 0.0, %v3585
      %v3587 = vpop.f32.mrf.mxu0
      %3588 = vmatprep.mubr.bf16.mxu0 %v2845
      %3589 = vmatmul.mubr.bf16.gmra.mxu0 %v2844
      %v3590 = vpop.f32.mrf.mxu0
      %v3591 = vadd.f32 0.0, %v3590
      %v3592 = vpop.f32.mrf.mxu0
      %v3593 = vpop.f32.mrf.mxu0
      %v3594 = vadd.f32 0.0, %v3593
      %v3595 = vpop.f32.mrf.mxu0
      %3596 = vmatprep.mubr.bf16.mxu0 %v2854
      %3597 = vmatmul.mubr.bf16.gmra.mxu0 %v2853
      %v3598 = vpop.f32.mrf.mxu0
      %v3599 = vadd.f32 0.0, %v3598
      %v3600 = vpop.f32.mrf.mxu0
      %v3601 = vpop.f32.mrf.mxu0
      %v3602 = vadd.f32 0.0, %v3601
      %v3603 = vpop.f32.mrf.mxu0
      %3604 = vmatprep.mubr.bf16.mxu0 %v2863
      %3605 = vmatmul.mubr.bf16.gmra.mxu0 %v2862
      %v3606 = vpop.f32.mrf.mxu0
      %v3607 = vadd.f32 0.0, %v3606
      %v3608 = vpop.f32.mrf.mxu0
      %v3609 = vpop.f32.mrf.mxu0
      %v3610 = vadd.f32 0.0, %v3609
      %v3611 = vpop.f32.mrf.mxu0
      %3612 = vmatprep.mubr.bf16.mxu0 %v2872
      %3613 = vmatmul.mubr.bf16.gmra.mxu0 %v2871
      %v3614 = vpop.f32.mrf.mxu0
      %v3615 = vadd.f32 0.0, %v3614
      %v3616 = vpop.f32.mrf.mxu0
      %v3617 = vpop.f32.mrf.mxu0
      %v3618 = vadd.f32 0.0, %v3617
      %v3619 = vpop.f32.mrf.mxu0
      %3620 = vmatprep.mubr.bf16.mxu0 %v2881
      %3621 = vmatmul.mubr.bf16.gmra.mxu0 %v2880
      %v3622 = vpop.f32.mrf.mxu0
      %v3623 = vadd.f32 0.0, %v3622
      %v3624 = vpop.f32.mrf.mxu0
      %v3625 = vpop.f32.mrf.mxu0
      %v3626 = vadd.f32 0.0, %v3625
      %v3627 = vpop.f32.mrf.mxu0
      %3628 = vmatprep.mubr.bf16.mxu0 %v2890
      %3629 = vmatmul.mubr.bf16.gmra.mxu0 %v2889
      %v3630 = vpop.f32.mrf.mxu0
      %v3631 = vadd.f32 0.0, %v3630
      %v3632 = vpop.f32.mrf.mxu0
      %v3633 = vpop.f32.mrf.mxu0
      %v3634 = vadd.f32 0.0, %v3633
      %v3635 = vpop.f32.mrf.mxu0
      %3636 = vmatprep.mubr.bf16.mxu0 %v2899
      %3637 = vmatmul.mubr.bf16.gmra.mxu0 %v2898
      %v3638 = vpop.f32.mrf.mxu0
      %v3639 = vadd.f32 0.0, %v3638
      %v3640 = vpop.f32.mrf.mxu0
      %v3641 = vpop.f32.mrf.mxu0
      %v3642 = vadd.f32 0.0, %v3641
      %v3643 = vpop.f32.mrf.mxu0
      %3644 = vmatprep.mubr.bf16.mxu0 %v2908
      %3645 = vmatmul.mubr.bf16.gmra.mxu0 %v2907
      %v3646 = vpop.f32.mrf.mxu0
      %v3647 = vadd.f32 0.0, %v3646
      %v3648 = vpop.f32.mrf.mxu0
      %v3649 = vpop.f32.mrf.mxu0
      %v3650 = vadd.f32 0.0, %v3649
      %v3651 = vpop.f32.mrf.mxu0
      %3652 = vdwg.mxu0
      %3653 = vmatprep.subr.bf16.mxu0 0
      %3654 = vmatpush1.bf16.msra.mxu0 %v3371
      %3655 = vmatprep.subr.bf16.mxu0 0
      %3656 = vmatpush1.bf16.msra.mxu0 %v3370
      %3657 = vmatprep.subr.bf16.mxu0 0
      %3658 = vmatpush1.bf16.msra.mxu0 %v3369
      %3659 = vmatprep.subr.bf16.mxu0 0
      %3660 = vmatpush1.bf16.msra.mxu0 %v3368
      %3661 = vmatprep.subr.bf16.mxu0 0
      %3662 = vmatpush1.bf16.msra.mxu0 %v3367
      %3663 = vmatprep.subr.bf16.mxu0 0
      %3664 = vmatpush1.bf16.msra.mxu0 %v3366
      %3665 = vmatprep.subr.bf16.mxu0 0
      %3666 = vmatpush1.bf16.msra.mxu0 %v3365
      %3667 = vmatprep.subr.bf16.mxu0 0
      %3668 = vmatpush1.bf16.msra.mxu0 %v3364
      %3669 = vmatprep.subr.bf16.mxu0 0
      %3670 = vmatpush2.bf16.msra.mxu0 %v3379
      %3671 = vmatprep.subr.bf16.mxu0 0
      %3672 = vmatpush2.bf16.msra.mxu0 %v3378
      %3673 = vmatprep.subr.bf16.mxu0 0
      %3674 = vmatpush2.bf16.msra.mxu0 %v3377
      %3675 = vmatprep.subr.bf16.mxu0 0
      %3676 = vmatpush2.bf16.msra.mxu0 %v3376
      %3677 = vmatprep.subr.bf16.mxu0 0
      %3678 = vmatpush2.bf16.msra.mxu0 %v3375
      %3679 = vmatprep.subr.bf16.mxu0 0
      %3680 = vmatpush2.bf16.msra.mxu0 %v3374
      %3681 = vmatprep.subr.bf16.mxu0 0
      %3682 = vmatpush2.bf16.msra.mxu0 %v3373
      %3683 = vmatprep.subr.bf16.mxu0 0
      %3684 = vmatpush2.bf16.msra.mxu0 %v3372
      %3685 = vmatprep.mubr.bf16.mxu0 %v2775
      %3686 = vmatmul.mubr.bf16.gmra.mxu0 %v2774
      %v3687 = vpop.f32.mrf.mxu0
      %v3688 = vadd.f32 %v3527, %v3687
      %v3689 = vpop.f32.mrf.mxu0
      %v3690 = vpop.f32.mrf.mxu0
      %v3691 = vadd.f32 %v3530, %v3690
      %v3692 = vpop.f32.mrf.mxu0
      %3693 = vmatprep.mubr.bf16.mxu0 %v2784
      %3694 = vmatmul.mubr.bf16.gmra.mxu0 %v2783
      %v3695 = vpop.f32.mrf.mxu0
      %v3696 = vadd.f32 %v3535, %v3695
      %v3697 = vpop.f32.mrf.mxu0
      %v3698 = vpop.f32.mrf.mxu0
      %v3699 = vadd.f32 %v3538, %v3698
      %v3700 = vpop.f32.mrf.mxu0
      %3701 = vmatprep.mubr.bf16.mxu0 %v2793
      %3702 = vmatmul.mubr.bf16.gmra.mxu0 %v2792
      %v3703 = vpop.f32.mrf.mxu0
      %v3704 = vadd.f32 %v3543, %v3703
      %v3705 = vpop.f32.mrf.mxu0
      %v3706 = vpop.f32.mrf.mxu0
      %v3707 = vadd.f32 %v3546, %v3706
      %v3708 = vpop.f32.mrf.mxu0
      %3709 = vmatprep.mubr.bf16.mxu0 %v2802
      %3710 = vmatmul.mubr.bf16.gmra.mxu0 %v2801
      %v3711 = vpop.f32.mrf.mxu0
      %v3712 = vadd.f32 %v3551, %v3711
      %v3713 = vpop.f32.mrf.mxu0
      %v3714 = vpop.f32.mrf.mxu0
      %v3715 = vadd.f32 %v3554, %v3714
      %v3716 = vpop.f32.mrf.mxu0
      %3717 = vmatprep.mubr.bf16.mxu0 %v2811
      %3718 = vmatmul.mubr.bf16.gmra.mxu0 %v2810
      %v3719 = vpop.f32.mrf.mxu0
      %v3720 = vadd.f32 %v3559, %v3719
      %v3721 = vpop.f32.mrf.mxu0
      %v3722 = vpop.f32.mrf.mxu0
      %v3723 = vadd.f32 %v3562, %v3722
      %v3724 = vpop.f32.mrf.mxu0
      %3725 = vmatprep.mubr.bf16.mxu0 %v2820
      %3726 = vmatmul.mubr.bf16.gmra.mxu0 %v2819
      %v3727 = vpop.f32.mrf.mxu0
      %v3728 = vadd.f32 %v3567, %v3727
      %v3729 = vpop.f32.mrf.mxu0
      %v3730 = vpop.f32.mrf.mxu0
      %v3731 = vadd.f32 %v3570, %v3730
      %v3732 = vpop.f32.mrf.mxu0
      %3733 = vmatprep.mubr.bf16.mxu0 %v2829
      %3734 = vmatmul.mubr.bf16.gmra.mxu0 %v2828
      %v3735 = vpop.f32.mrf.mxu0
      %v3736 = vadd.f32 %v3575, %v3735
      %v3737 = vpop.f32.mrf.mxu0
      %v3738 = vpop.f32.mrf.mxu0
      %v3739 = vadd.f32 %v3578, %v3738
      %v3740 = vpop.f32.mrf.mxu0
      %3741 = vmatprep.mubr.bf16.mxu0 %v2838
      %3742 = vmatmul.mubr.bf16.gmra.mxu0 %v2837
      %v3743 = vpop.f32.mrf.mxu0
      %v3744 = vadd.f32 %v3583, %v3743
      %v3745 = vpop.f32.mrf.mxu0
      %v3746 = vpop.f32.mrf.mxu0
      %v3747 = vadd.f32 %v3586, %v3746
      %v3748 = vpop.f32.mrf.mxu0
      %3749 = vmatprep.mubr.bf16.mxu0 %v2847
      %3750 = vmatmul.mubr.bf16.gmra.mxu0 %v2846
      %v3751 = vpop.f32.mrf.mxu0
      %v3752 = vadd.f32 %v3591, %v3751
      %v3753 = vpop.f32.mrf.mxu0
      %v3754 = vpop.f32.mrf.mxu0
      %v3755 = vadd.f32 %v3594, %v3754
      %v3756 = vpop.f32.mrf.mxu0
      %3757 = vmatprep.mubr.bf16.mxu0 %v2856
      %3758 = vmatmul.mubr.bf16.gmra.mxu0 %v2855
      %v3759 = vpop.f32.mrf.mxu0
      %v3760 = vadd.f32 %v3599, %v3759
      %v3761 = vpop.f32.mrf.mxu0
      %v3762 = vpop.f32.mrf.mxu0
      %v3763 = vadd.f32 %v3602, %v3762
      %v3764 = vpop.f32.mrf.mxu0
      %3765 = vmatprep.mubr.bf16.mxu0 %v2865
      %3766 = vmatmul.mubr.bf16.gmra.mxu0 %v2864
      %v3767 = vpop.f32.mrf.mxu0
      %v3768 = vadd.f32 %v3607, %v3767
      %v3769 = vpop.f32.mrf.mxu0
      %v3770 = vpop.f32.mrf.mxu0
      %v3771 = vadd.f32 %v3610, %v3770
      %v3772 = vpop.f32.mrf.mxu0
      %3773 = vmatprep.mubr.bf16.mxu0 %v2874
      %3774 = vmatmul.mubr.bf16.gmra.mxu0 %v2873
      %v3775 = vpop.f32.mrf.mxu0
      %v3776 = vadd.f32 %v3615, %v3775
      %v3777 = vpop.f32.mrf.mxu0
      %v3778 = vpop.f32.mrf.mxu0
      %v3779 = vadd.f32 %v3618, %v3778
      %v3780 = vpop.f32.mrf.mxu0
      %3781 = vmatprep.mubr.bf16.mxu0 %v2883
      %3782 = vmatmul.mubr.bf16.gmra.mxu0 %v2882
      %v3783 = vpop.f32.mrf.mxu0
      %v3784 = vadd.f32 %v3623, %v3783
      %v3785 = vpop.f32.mrf.mxu0
      %v3786 = vpop.f32.mrf.mxu0
      %v3787 = vadd.f32 %v3626, %v3786
      %v3788 = vpop.f32.mrf.mxu0
      %3789 = vmatprep.mubr.bf16.mxu0 %v2892
      %3790 = vmatmul.mubr.bf16.gmra.mxu0 %v2891
      %v3791 = vpop.f32.mrf.mxu0
      %v3792 = vadd.f32 %v3631, %v3791
      %v3793 = vpop.f32.mrf.mxu0
      %v3794 = vpop.f32.mrf.mxu0
      %v3795 = vadd.f32 %v3634, %v3794
      %v3796 = vpop.f32.mrf.mxu0
      %3797 = vmatprep.mubr.bf16.mxu0 %v2901
      %3798 = vmatmul.mubr.bf16.gmra.mxu0 %v2900
      %v3799 = vpop.f32.mrf.mxu0
      %v3800 = vadd.f32 %v3639, %v3799
      %v3801 = vpop.f32.mrf.mxu0
      %v3802 = vpop.f32.mrf.mxu0
      %v3803 = vadd.f32 %v3642, %v3802
      %v3804 = vpop.f32.mrf.mxu0
      %3805 = vmatprep.mubr.bf16.mxu0 %v2910
      %3806 = vmatmul.mubr.bf16.gmra.mxu0 %v2909
      %v3807 = vpop.f32.mrf.mxu0
      %v3808 = vadd.f32 %v3647, %v3807
      %v3809 = vpop.f32.mrf.mxu0
      %v3810 = vpop.f32.mrf.mxu0
      %v3811 = vadd.f32 %v3650, %v3810
      %v3812 = vpop.f32.mrf.mxu0
      %3813 = vdwg.mxu0
      %3814 = vmatprep.subr.bf16.mxu0 0
      %3815 = vmatpush1.bf16.msra.mxu0 %v3387
      %3816 = vmatprep.subr.bf16.mxu0 0
      %3817 = vmatpush1.bf16.msra.mxu0 %v3386
      %3818 = vmatprep.subr.bf16.mxu0 0
      %3819 = vmatpush1.bf16.msra.mxu0 %v3385
      %3820 = vmatprep.subr.bf16.mxu0 0
      %3821 = vmatpush1.bf16.msra.mxu0 %v3384
      %3822 = vmatprep.subr.bf16.mxu0 0
      %3823 = vmatpush1.bf16.msra.mxu0 %v3383
      %3824 = vmatprep.subr.bf16.mxu0 0
      %3825 = vmatpush1.bf16.msra.mxu0 %v3382
      %3826 = vmatprep.subr.bf16.mxu0 0
      %3827 = vmatpush1.bf16.msra.mxu0 %v3381
      %3828 = vmatprep.subr.bf16.mxu0 0
      %3829 = vmatpush1.bf16.msra.mxu0 %v3380
      %3830 = vmatprep.subr.bf16.mxu0 0
      %3831 = vmatpush2.bf16.msra.mxu0 %v3395
      %3832 = vmatprep.subr.bf16.mxu0 0
      %3833 = vmatpush2.bf16.msra.mxu0 %v3394
      %3834 = vmatprep.subr.bf16.mxu0 0
      %3835 = vmatpush2.bf16.msra.mxu0 %v3393
      %3836 = vmatprep.subr.bf16.mxu0 0
      %3837 = vmatpush2.bf16.msra.mxu0 %v3392
      %3838 = vmatprep.subr.bf16.mxu0 0
      %3839 = vmatpush2.bf16.msra.mxu0 %v3391
      %3840 = vmatprep.subr.bf16.mxu0 0
      %3841 = vmatpush2.bf16.msra.mxu0 %v3390
      %3842 = vmatprep.subr.bf16.mxu0 0
      %3843 = vmatpush2.bf16.msra.mxu0 %v3389
      %3844 = vmatprep.subr.bf16.mxu0 0
      %3845 = vmatpush2.bf16.msra.mxu0 %v3388
      %3846 = vmatprep.mubr.bf16.mxu0 %v2777
      %3847 = vmatmul.mubr.bf16.gmra.mxu0 %v2776
      %v3848 = vpop.f32.mrf.mxu0
      %v3849 = vadd.f32 %v3688, %v3848
      %v3850 = vpop.f32.mrf.mxu0
      %v3851 = vpop.f32.mrf.mxu0
      %v3852 = vadd.f32 %v3691, %v3851
      %v3853 = vpop.f32.mrf.mxu0
      %3854 = vmatprep.mubr.bf16.mxu0 %v2786
      %3855 = vmatmul.mubr.bf16.gmra.mxu0 %v2785
      %v3856 = vpop.f32.mrf.mxu0
      %v3857 = vadd.f32 %v3696, %v3856
      %v3858 = vpop.f32.mrf.mxu0
      %v3859 = vpop.f32.mrf.mxu0
      %v3860 = vadd.f32 %v3699, %v3859
      %v3861 = vpop.f32.mrf.mxu0
      %3862 = vmatprep.mubr.bf16.mxu0 %v2795
      %3863 = vmatmul.mubr.bf16.gmra.mxu0 %v2794
      %v3864 = vpop.f32.mrf.mxu0
      %v3865 = vadd.f32 %v3704, %v3864
      %v3866 = vpop.f32.mrf.mxu0
      %v3867 = vpop.f32.mrf.mxu0
      %v3868 = vadd.f32 %v3707, %v3867
      %v3869 = vpop.f32.mrf.mxu0
      %3870 = vmatprep.mubr.bf16.mxu0 %v2804
      %3871 = vmatmul.mubr.bf16.gmra.mxu0 %v2803
      %v3872 = vpop.f32.mrf.mxu0
      %v3873 = vadd.f32 %v3712, %v3872
      %v3874 = vpop.f32.mrf.mxu0
      %v3875 = vpop.f32.mrf.mxu0
      %v3876 = vadd.f32 %v3715, %v3875
      %v3877 = vpop.f32.mrf.mxu0
      %3878 = vmatprep.mubr.bf16.mxu0 %v2813
      %3879 = vmatmul.mubr.bf16.gmra.mxu0 %v2812
      %v3880 = vpop.f32.mrf.mxu0
      %v3881 = vadd.f32 %v3720, %v3880
      %v3882 = vpop.f32.mrf.mxu0
      %v3883 = vpop.f32.mrf.mxu0
      %v3884 = vadd.f32 %v3723, %v3883
      %v3885 = vpop.f32.mrf.mxu0
      %3886 = vmatprep.mubr.bf16.mxu0 %v2822
      %3887 = vmatmul.mubr.bf16.gmra.mxu0 %v2821
      %v3888 = vpop.f32.mrf.mxu0
      %v3889 = vadd.f32 %v3728, %v3888
      %v3890 = vpop.f32.mrf.mxu0
      %v3891 = vpop.f32.mrf.mxu0
      %v3892 = vadd.f32 %v3731, %v3891
      %v3893 = vpop.f32.mrf.mxu0
      %3894 = vmatprep.mubr.bf16.mxu0 %v2831
      %3895 = vmatmul.mubr.bf16.gmra.mxu0 %v2830
      %v3896 = vpop.f32.mrf.mxu0
      %v3897 = vadd.f32 %v3736, %v3896
      %v3898 = vpop.f32.mrf.mxu0
      %v3899 = vpop.f32.mrf.mxu0
      %v3900 = vadd.f32 %v3739, %v3899
      %v3901 = vpop.f32.mrf.mxu0
      %3902 = vmatprep.mubr.bf16.mxu0 %v2840
      %3903 = vmatmul.mubr.bf16.gmra.mxu0 %v2839
      %v3904 = vpop.f32.mrf.mxu0
      %v3905 = vadd.f32 %v3744, %v3904
      %v3906 = vpop.f32.mrf.mxu0
      %v3907 = vpop.f32.mrf.mxu0
      %v3908 = vadd.f32 %v3747, %v3907
      %v3909 = vpop.f32.mrf.mxu0
      %3910 = vmatprep.mubr.bf16.mxu0 %v2849
      %3911 = vmatmul.mubr.bf16.gmra.mxu0 %v2848
      %v3912 = vpop.f32.mrf.mxu0
      %v3913 = vadd.f32 %v3752, %v3912
      %v3914 = vpop.f32.mrf.mxu0
      %v3915 = vpop.f32.mrf.mxu0
      %v3916 = vadd.f32 %v3755, %v3915
      %v3917 = vpop.f32.mrf.mxu0
      %3918 = vmatprep.mubr.bf16.mxu0 %v2858
      %3919 = vmatmul.mubr.bf16.gmra.mxu0 %v2857
      %v3920 = vpop.f32.mrf.mxu0
      %v3921 = vadd.f32 %v3760, %v3920
      %v3922 = vpop.f32.mrf.mxu0
      %v3923 = vpop.f32.mrf.mxu0
      %v3924 = vadd.f32 %v3763, %v3923
      %v3925 = vpop.f32.mrf.mxu0
      %3926 = vmatprep.mubr.bf16.mxu0 %v2867
      %3927 = vmatmul.mubr.bf16.gmra.mxu0 %v2866
      %v3928 = vpop.f32.mrf.mxu0
      %v3929 = vadd.f32 %v3768, %v3928
      %v3930 = vpop.f32.mrf.mxu0
      %v3931 = vpop.f32.mrf.mxu0
      %v3932 = vadd.f32 %v3771, %v3931
      %v3933 = vpop.f32.mrf.mxu0
      %3934 = vmatprep.mubr.bf16.mxu0 %v2876
      %3935 = vmatmul.mubr.bf16.gmra.mxu0 %v2875
      %v3936 = vpop.f32.mrf.mxu0
      %v3937 = vadd.f32 %v3776, %v3936
      %v3938 = vpop.f32.mrf.mxu0
      %v3939 = vpop.f32.mrf.mxu0
      %v3940 = vadd.f32 %v3779, %v3939
      %v3941 = vpop.f32.mrf.mxu0
      %3942 = vmatprep.mubr.bf16.mxu0 %v2885
      %3943 = vmatmul.mubr.bf16.gmra.mxu0 %v2884
      %v3944 = vpop.f32.mrf.mxu0
      %v3945 = vadd.f32 %v3784, %v3944
      %v3946 = vpop.f32.mrf.mxu0
      %v3947 = vpop.f32.mrf.mxu0
      %v3948 = vadd.f32 %v3787, %v3947
      %v3949 = vpop.f32.mrf.mxu0
      %3950 = vmatprep.mubr.bf16.mxu0 %v2894
      %3951 = vmatmul.mubr.bf16.gmra.mxu0 %v2893
      %v3952 = vpop.f32.mrf.mxu0
      %v3953 = vadd.f32 %v3792, %v3952
      %v3954 = vpop.f32.mrf.mxu0
      %v3955 = vpop.f32.mrf.mxu0
      %v3956 = vadd.f32 %v3795, %v3955
      %v3957 = vpop.f32.mrf.mxu0
      %3958 = vmatprep.mubr.bf16.mxu0 %v2903
      %3959 = vmatmul.mubr.bf16.gmra.mxu0 %v2902
      %v3960 = vpop.f32.mrf.mxu0
      %v3961 = vadd.f32 %v3800, %v3960
      %v3962 = vpop.f32.mrf.mxu0
      %v3963 = vpop.f32.mrf.mxu0
      %v3964 = vadd.f32 %v3803, %v3963
      %v3965 = vpop.f32.mrf.mxu0
      %3966 = vmatprep.mubr.bf16.mxu0 %v2912
      %3967 = vmatmul.mubr.bf16.gmra.mxu0 %v2911
      %v3968 = vpop.f32.mrf.mxu0
      %v3969 = vadd.f32 %v3808, %v3968
      %v3970 = vpop.f32.mrf.mxu0
      %v3971 = vpop.f32.mrf.mxu0
      %v3972 = vadd.f32 %v3811, %v3971
      %v3973 = vpop.f32.mrf.mxu0
      %3974 = vdwg.mxu0
      %3975 = vmatprep.subr.bf16.mxu0 0
      %3976 = vmatpush1.bf16.msra.mxu0 %v3403
      %3977 = vmatprep.subr.bf16.mxu0 0
      %3978 = vmatpush1.bf16.msra.mxu0 %v3402
      %3979 = vmatprep.subr.bf16.mxu0 0
      %3980 = vmatpush1.bf16.msra.mxu0 %v3401
      %3981 = vmatprep.subr.bf16.mxu0 0
      %3982 = vmatpush1.bf16.msra.mxu0 %v3400
      %3983 = vmatprep.subr.bf16.mxu0 0
      %3984 = vmatpush1.bf16.msra.mxu0 %v3399
      %3985 = vmatprep.subr.bf16.mxu0 0
      %3986 = vmatpush1.bf16.msra.mxu0 %v3398
      %3987 = vmatprep.subr.bf16.mxu0 0
      %3988 = vmatpush1.bf16.msra.mxu0 %v3397
      %3989 = vmatprep.subr.bf16.mxu0 0
      %3990 = vmatpush1.bf16.msra.mxu0 %v3396
      %3991 = vmatprep.subr.bf16.mxu0 0
      %3992 = vmatpush2.bf16.msra.mxu0 %v3411
      %3993 = vmatprep.subr.bf16.mxu0 0
      %3994 = vmatpush2.bf16.msra.mxu0 %v3410
      %3995 = vmatprep.subr.bf16.mxu0 0
      %3996 = vmatpush2.bf16.msra.mxu0 %v3409
      %3997 = vmatprep.subr.bf16.mxu0 0
      %3998 = vmatpush2.bf16.msra.mxu0 %v3408
      %3999 = vmatprep.subr.bf16.mxu0 0
      %4000 = vmatpush2.bf16.msra.mxu0 %v3407
      %4001 = vmatprep.subr.bf16.mxu0 0
      %4002 = vmatpush2.bf16.msra.mxu0 %v3406
      %4003 = vmatprep.subr.bf16.mxu0 0
      %4004 = vmatpush2.bf16.msra.mxu0 %v3405
      %4005 = vmatprep.subr.bf16.mxu0 0
      %4006 = vmatpush2.bf16.msra.mxu0 %v3404
      %4007 = vmatprep.mubr.bf16.mxu0 %v2779
      %4008 = vmatmul.mubr.bf16.gmra.mxu0 %v2778
      %v4009 = vpop.f32.mrf.mxu0
      %v4010 = vadd.f32 %v3849, %v4009
      %v4011 = vpop.f32.mrf.mxu0
      %v4012 = vpop.f32.mrf.mxu0
      %v4013 = vadd.f32 %v3852, %v4012
      %v4014 = vpop.f32.mrf.mxu0
      %4015 = vmatprep.mubr.bf16.mxu0 %v2788
      %4016 = vmatmul.mubr.bf16.gmra.mxu0 %v2787
      %v4017 = vpop.f32.mrf.mxu0
      %v4018 = vadd.f32 %v3857, %v4017
      %v4019 = vpop.f32.mrf.mxu0
      %v4020 = vpop.f32.mrf.mxu0
      %v4021 = vadd.f32 %v3860, %v4020
      %v4022 = vpop.f32.mrf.mxu0
      %4023 = vmatprep.mubr.bf16.mxu0 %v2797
      %4024 = vmatmul.mubr.bf16.gmra.mxu0 %v2796
      %v4025 = vpop.f32.mrf.mxu0
      %v4026 = vadd.f32 %v3865, %v4025
      %v4027 = vpop.f32.mrf.mxu0
      %v4028 = vpop.f32.mrf.mxu0
      %v4029 = vadd.f32 %v3868, %v4028
      %v4030 = vpop.f32.mrf.mxu0
      %4031 = vmatprep.mubr.bf16.mxu0 %v2806
      %4032 = vmatmul.mubr.bf16.gmra.mxu0 %v2805
      %v4033 = vpop.f32.mrf.mxu0
      %v4034 = vadd.f32 %v3873, %v4033
      %v4035 = vpop.f32.mrf.mxu0
      %v4036 = vpop.f32.mrf.mxu0
      %v4037 = vadd.f32 %v3876, %v4036
      %v4038 = vpop.f32.mrf.mxu0
      %4039 = vmatprep.mubr.bf16.mxu0 %v2815
      %4040 = vmatmul.mubr.bf16.gmra.mxu0 %v2814
      %v4041 = vpop.f32.mrf.mxu0
      %v4042 = vadd.f32 %v3881, %v4041
      %v4043 = vpop.f32.mrf.mxu0
      %v4044 = vpop.f32.mrf.mxu0
      %v4045 = vadd.f32 %v3884, %v4044
      %v4046 = vpop.f32.mrf.mxu0
      %4047 = vmatprep.mubr.bf16.mxu0 %v2824
      %4048 = vmatmul.mubr.bf16.gmra.mxu0 %v2823
      %v4049 = vpop.f32.mrf.mxu0
      %v4050 = vadd.f32 %v3889, %v4049
      %v4051 = vpop.f32.mrf.mxu0
      %v4052 = vpop.f32.mrf.mxu0
      %v4053 = vadd.f32 %v3892, %v4052
      %v4054 = vpop.f32.mrf.mxu0
      %4055 = vmatprep.mubr.bf16.mxu0 %v2833
      %4056 = vmatmul.mubr.bf16.gmra.mxu0 %v2832
      %v4057 = vpop.f32.mrf.mxu0
      %v4058 = vadd.f32 %v3897, %v4057
      %v4059 = vpop.f32.mrf.mxu0
      %v4060 = vpop.f32.mrf.mxu0
      %v4061 = vadd.f32 %v3900, %v4060
      %v4062 = vpop.f32.mrf.mxu0
      %4063 = vmatprep.mubr.bf16.mxu0 %v2842
      %4064 = vmatmul.mubr.bf16.gmra.mxu0 %v2841
      %v4065 = vpop.f32.mrf.mxu0
      %v4066 = vadd.f32 %v3905, %v4065
      %v4067 = vpop.f32.mrf.mxu0
      %v4068 = vpop.f32.mrf.mxu0
      %v4069 = vadd.f32 %v3908, %v4068
      %v4070 = vpop.f32.mrf.mxu0
      %4071 = vmatprep.mubr.bf16.mxu0 %v2851
      %4072 = vmatmul.mubr.bf16.gmra.mxu0 %v2850
      %v4073 = vpop.f32.mrf.mxu0
      %v4074 = vadd.f32 %v3913, %v4073
      %v4075 = vpop.f32.mrf.mxu0
      %v4076 = vpop.f32.mrf.mxu0
      %v4077 = vadd.f32 %v3916, %v4076
      %v4078 = vpop.f32.mrf.mxu0
      %4079 = vmatprep.mubr.bf16.mxu0 %v2860
      %4080 = vmatmul.mubr.bf16.gmra.mxu0 %v2859
      %v4081 = vpop.f32.mrf.mxu0
      %v4082 = vadd.f32 %v3921, %v4081
      %v4083 = vpop.f32.mrf.mxu0
      %v4084 = vpop.f32.mrf.mxu0
      %v4085 = vadd.f32 %v3924, %v4084
      %v4086 = vpop.f32.mrf.mxu0
      %4087 = vmatprep.mubr.bf16.mxu0 %v2869
      %4088 = vmatmul.mubr.bf16.gmra.mxu0 %v2868
      %v4089 = vpop.f32.mrf.mxu0
      %v4090 = vadd.f32 %v3929, %v4089
      %v4091 = vpop.f32.mrf.mxu0
      %v4092 = vpop.f32.mrf.mxu0
      %v4093 = vadd.f32 %v3932, %v4092
      %v4094 = vpop.f32.mrf.mxu0
      %4095 = vmatprep.mubr.bf16.mxu0 %v2878
      %4096 = vmatmul.mubr.bf16.gmra.mxu0 %v2877
      %v4097 = vpop.f32.mrf.mxu0
      %v4098 = vadd.f32 %v3937, %v4097
      %v4099 = vpop.f32.mrf.mxu0
      %v4100 = vpop.f32.mrf.mxu0
      %v4101 = vadd.f32 %v3940, %v4100
      %v4102 = vpop.f32.mrf.mxu0
      %4103 = vmatprep.mubr.bf16.mxu0 %v2887
      %4104 = vmatmul.mubr.bf16.gmra.mxu0 %v2886
      %v4105 = vpop.f32.mrf.mxu0
      %v4106 = vadd.f32 %v3945, %v4105
      %v4107 = vpop.f32.mrf.mxu0
      %v4108 = vpop.f32.mrf.mxu0
      %v4109 = vadd.f32 %v3948, %v4108
      %v4110 = vpop.f32.mrf.mxu0
      %4111 = vmatprep.mubr.bf16.mxu0 %v2896
      %4112 = vmatmul.mubr.bf16.gmra.mxu0 %v2895
      %v4113 = vpop.f32.mrf.mxu0
      %v4114 = vadd.f32 %v3953, %v4113
      %v4115 = vpop.f32.mrf.mxu0
      %v4116 = vpop.f32.mrf.mxu0
      %v4117 = vadd.f32 %v3956, %v4116
      %v4118 = vpop.f32.mrf.mxu0
      %4119 = vmatprep.mubr.bf16.mxu0 %v2905
      %4120 = vmatmul.mubr.bf16.gmra.mxu0 %v2904
      %v4121 = vpop.f32.mrf.mxu0
      %v4122 = vadd.f32 %v3961, %v4121
      %v4123 = vpop.f32.mrf.mxu0
      %v4124 = vpop.f32.mrf.mxu0
      %v4125 = vadd.f32 %v3964, %v4124
      %v4126 = vpop.f32.mrf.mxu0
      %4127 = vmatprep.mubr.bf16.mxu0 %v2914
      %4128 = vmatmul.mubr.bf16.gmra.mxu0 %v2913
      %v4129 = vpop.f32.mrf.mxu0
      %v4130 = vadd.f32 %v3969, %v4129
      %v4131 = vpop.f32.mrf.mxu0
      %v4132 = vpop.f32.mrf.mxu0
      %v4133 = vadd.f32 %v3972, %v4132
      %v4134 = vpop.f32.mrf.mxu0
      %4135 = vdwg.mxu0
      %4136 = vmatprep.subr.bf16.mxu0 0
      %4137 = vmatpush1.bf16.msra.mxu0 %v3419
      %4138 = vmatprep.subr.bf16.mxu0 0
      %4139 = vmatpush1.bf16.msra.mxu0 %v3418
      %4140 = vmatprep.subr.bf16.mxu0 0
      %4141 = vmatpush1.bf16.msra.mxu0 %v3417
      %4142 = vmatprep.subr.bf16.mxu0 0
      %4143 = vmatpush1.bf16.msra.mxu0 %v3416
      %4144 = vmatprep.subr.bf16.mxu0 0
      %4145 = vmatpush1.bf16.msra.mxu0 %v3415
      %4146 = vmatprep.subr.bf16.mxu0 0
      %4147 = vmatpush1.bf16.msra.mxu0 %v3414
      %4148 = vmatprep.subr.bf16.mxu0 0
      %4149 = vmatpush1.bf16.msra.mxu0 %v3413
      %4150 = vmatprep.subr.bf16.mxu0 0
      %4151 = vmatpush1.bf16.msra.mxu0 %v3412
      %4152 = vmatprep.subr.bf16.mxu0 0
      %4153 = vmatpush2.bf16.msra.mxu0 0
      %4154 = vmatprep.subr.bf16.mxu0 0
      %4155 = vmatpush2.bf16.msra.mxu0 0
      %4156 = vmatprep.subr.bf16.mxu0 0
      %4157 = vmatpush2.bf16.msra.mxu0 0
      %4158 = vmatprep.subr.bf16.mxu0 0
      %4159 = vmatpush2.bf16.msra.mxu0 0
      %4160 = vmatprep.subr.bf16.mxu0 0
      %4161 = vmatpush2.bf16.msra.mxu0 0
      %4162 = vmatprep.subr.bf16.mxu0 0
      %4163 = vmatpush2.bf16.msra.mxu0 0
      %4164 = vmatprep.subr.bf16.mxu0 0
      %4165 = vmatpush2.bf16.msra.mxu0 0
      %4166 = vmatprep.subr.bf16.mxu0 0
      %4167 = vmatpush2.bf16.msra.mxu0 0
      %4168 = vmatprep.mubr.bf16.mxu0 0
      %4169 = vmatmul.mubr.bf16.gmra.mxu0 %v2780
      %v4170 = vpop.f32.mrf.mxu0
      %v4171 = vadd.f32 %v4010, %v4170
      %v4172 = vpop.f32.mrf.mxu0
      %v4173 = vpop.f32.mrf.mxu0
      %v4174 = vadd.f32 %v4013, %v4173
      %v4175 = vpop.f32.mrf.mxu0
      %4176 = vmatprep.mubr.bf16.mxu0 0
      %4177 = vmatmul.mubr.bf16.gmra.mxu0 %v2789
      %v4178 = vpop.f32.mrf.mxu0
      %v4179 = vadd.f32 %v4018, %v4178
      %v4180 = vpop.f32.mrf.mxu0
      %v4181 = vpop.f32.mrf.mxu0
      %v4182 = vadd.f32 %v4021, %v4181
      %v4183 = vpop.f32.mrf.mxu0
      %4184 = vmatprep.mubr.bf16.mxu0 0
      %4185 = vmatmul.mubr.bf16.gmra.mxu0 %v2798
      %v4186 = vpop.f32.mrf.mxu0
      %v4187 = vadd.f32 %v4026, %v4186
      %v4188 = vpop.f32.mrf.mxu0
      %v4189 = vpop.f32.mrf.mxu0
      %v4190 = vadd.f32 %v4029, %v4189
      %v4191 = vpop.f32.mrf.mxu0
      %4192 = vmatprep.mubr.bf16.mxu0 0
      %4193 = vmatmul.mubr.bf16.gmra.mxu0 %v2807
      %v4194 = vpop.f32.mrf.mxu0
      %v4195 = vadd.f32 %v4034, %v4194
      %v4196 = vpop.f32.mrf.mxu0
      %v4197 = vpop.f32.mrf.mxu0
      %v4198 = vadd.f32 %v4037, %v4197
      %v4199 = vpop.f32.mrf.mxu0
      %4200 = vmatprep.mubr.bf16.mxu0 0
      %4201 = vmatmul.mubr.bf16.gmra.mxu0 %v2816
      %v4202 = vpop.f32.mrf.mxu0
      %v4203 = vadd.f32 %v4042, %v4202
      %v4204 = vpop.f32.mrf.mxu0
      %v4205 = vpop.f32.mrf.mxu0
      %v4206 = vadd.f32 %v4045, %v4205
      %v4207 = vpop.f32.mrf.mxu0
      %4208 = vmatprep.mubr.bf16.mxu0 0
      %4209 = vmatmul.mubr.bf16.gmra.mxu0 %v2825
      %v4210 = vpop.f32.mrf.mxu0
      %v4211 = vadd.f32 %v4050, %v4210
      %v4212 = vpop.f32.mrf.mxu0
      %v4213 = vpop.f32.mrf.mxu0
      %v4214 = vadd.f32 %v4053, %v4213
      %v4215 = vpop.f32.mrf.mxu0
      %4216 = vmatprep.mubr.bf16.mxu0 0
      %4217 = vmatmul.mubr.bf16.gmra.mxu0 %v2834
      %v4218 = vpop.f32.mrf.mxu0
      %v4219 = vadd.f32 %v4058, %v4218
      %v4220 = vpop.f32.mrf.mxu0
      %v4221 = vpop.f32.mrf.mxu0
      %v4222 = vadd.f32 %v4061, %v4221
      %v4223 = vpop.f32.mrf.mxu0
      %4224 = vmatprep.mubr.bf16.mxu0 0
      %4225 = vmatmul.mubr.bf16.gmra.mxu0 %v2843
      %v4226 = vpop.f32.mrf.mxu0
      %v4227 = vadd.f32 %v4066, %v4226
      %v4228 = vpop.f32.mrf.mxu0
      %v4229 = vpop.f32.mrf.mxu0
      %v4230 = vadd.f32 %v4069, %v4229
      %v4231 = vpop.f32.mrf.mxu0
      %4232 = vmatprep.mubr.bf16.mxu0 0
      %4233 = vmatmul.mubr.bf16.gmra.mxu0 %v2852
      %v4234 = vpop.f32.mrf.mxu0
      %v4235 = vadd.f32 %v4074, %v4234
      %v4236 = vpop.f32.mrf.mxu0
      %v4237 = vpop.f32.mrf.mxu0
      %v4238 = vadd.f32 %v4077, %v4237
      %v4239 = vpop.f32.mrf.mxu0
      %4240 = vmatprep.mubr.bf16.mxu0 0
      %4241 = vmatmul.mubr.bf16.gmra.mxu0 %v2861
      %v4242 = vpop.f32.mrf.mxu0
      %v4243 = vadd.f32 %v4082, %v4242
      %v4244 = vpop.f32.mrf.mxu0
      %v4245 = vpop.f32.mrf.mxu0
      %v4246 = vadd.f32 %v4085, %v4245
      %v4247 = vpop.f32.mrf.mxu0
      %4248 = vmatprep.mubr.bf16.mxu0 0
      %4249 = vmatmul.mubr.bf16.gmra.mxu0 %v2870
      %v4250 = vpop.f32.mrf.mxu0
      %v4251 = vadd.f32 %v4090, %v4250
      %v4252 = vpop.f32.mrf.mxu0
      %v4253 = vpop.f32.mrf.mxu0
      %v4254 = vadd.f32 %v4093, %v4253
      %v4255 = vpop.f32.mrf.mxu0
      %4256 = vmatprep.mubr.bf16.mxu0 0
      %4257 = vmatmul.mubr.bf16.gmra.mxu0 %v2879
      %v4258 = vpop.f32.mrf.mxu0
      %v4259 = vadd.f32 %v4098, %v4258
      %v4260 = vpop.f32.mrf.mxu0
      %v4261 = vpop.f32.mrf.mxu0
      %v4262 = vadd.f32 %v4101, %v4261
      %v4263 = vpop.f32.mrf.mxu0
      %4264 = vmatprep.mubr.bf16.mxu0 0
      %4265 = vmatmul.mubr.bf16.gmra.mxu0 %v2888
      %v4266 = vpop.f32.mrf.mxu0
      %v4267 = vadd.f32 %v4106, %v4266
      %v4268 = vpop.f32.mrf.mxu0
      %v4269 = vpop.f32.mrf.mxu0
      %v4270 = vadd.f32 %v4109, %v4269
      %v4271 = vpop.f32.mrf.mxu0
      %4272 = vmatprep.mubr.bf16.mxu0 0
      %4273 = vmatmul.mubr.bf16.gmra.mxu0 %v2897
      %v4274 = vpop.f32.mrf.mxu0
      %v4275 = vadd.f32 %v4114, %v4274
      %v4276 = vpop.f32.mrf.mxu0
      %v4277 = vpop.f32.mrf.mxu0
      %v4278 = vadd.f32 %v4117, %v4277
      %v4279 = vpop.f32.mrf.mxu0
      %4280 = vmatprep.mubr.bf16.mxu0 0
      %4281 = vmatmul.mubr.bf16.gmra.mxu0 %v2906
      %v4282 = vpop.f32.mrf.mxu0
      %v4283 = vadd.f32 %v4122, %v4282
      %v4284 = vpop.f32.mrf.mxu0
      %v4285 = vpop.f32.mrf.mxu0
      %v4286 = vadd.f32 %v4125, %v4285
      %v4287 = vpop.f32.mrf.mxu0
      %4288 = vmatprep.mubr.bf16.mxu0 0
      %4289 = vmatmul.mubr.bf16.gmra.mxu0 %v2915
      %v4290 = vpop.f32.mrf.mxu0
      %v4291 = vadd.f32 %v4130, %v4290
      %v4292 = vpop.f32.mrf.mxu0
      %v4293 = vpop.f32.mrf.mxu0
      %v4294 = vadd.f32 %v4133, %v4293
      %v4295 = vpop.f32.mrf.mxu0
      %4296 = vdwg.mxu0
      %v4297 = vpack.c.bf16 %v4174, %v4171
      %v4298 = vpack.c.bf16 %v4182, %v4179
      %v4299 = vpack.c.bf16 %v4190, %v4187
      %v4300 = vpack.c.bf16 %v4198, %v4195
      %v4301 = vpack.c.bf16 %v4206, %v4203
      %v4302 = vpack.c.bf16 %v4214, %v4211
      %v4303 = vpack.c.bf16 %v4222, %v4219
      %v4304 = vpack.c.bf16 %v4230, %v4227
      %v4305 = vpack.c.bf16 %v4238, %v4235
      %v4306 = vpack.c.bf16 %v4246, %v4243
      %v4307 = vpack.c.bf16 %v4254, %v4251
      %v4308 = vpack.c.bf16 %v4262, %v4259
      %v4309 = vpack.c.bf16 %v4270, %v4267
      %v4310 = vpack.c.bf16 %v4278, %v4275
      %v4311 = vpack.c.bf16 %v4286, %v4283
      %v4312 = vpack.c.bf16 %v4294, %v4291
      %v4329 = vunpack.c.l.b16 %v4297
      %v4330 = vunpack.c.h.b16 %v4297
      %v4331 = vunpack.c.l.b16 %v4298
      %v4332 = vunpack.c.h.b16 %v4298
      %v4333 = vunpack.c.l.b16 %v4299
      %v4334 = vunpack.c.h.b16 %v4299
      %v4335 = vunpack.c.l.b16 %v4300
      %v4336 = vunpack.c.h.b16 %v4300
      %v4337 = vunpack.c.l.b16 %v4301
      %v4338 = vunpack.c.h.b16 %v4301
      %v4339 = vunpack.c.l.b16 %v4302
      %v4340 = vunpack.c.h.b16 %v4302
      %v4341 = vunpack.c.l.b16 %v4303
      %v4342 = vunpack.c.h.b16 %v4303
      %v4343 = vunpack.c.l.b16 %v4304
      %v4344 = vunpack.c.h.b16 %v4304
      %v4345 = vunpack.c.l.b16 %v4305
      %v4346 = vunpack.c.h.b16 %v4305
      %v4347 = vunpack.c.l.b16 %v4306
      %v4348 = vunpack.c.h.b16 %v4306
      %v4349 = vunpack.c.l.b16 %v4307
      %v4350 = vunpack.c.h.b16 %v4307
      %v4351 = vunpack.c.l.b16 %v4308
      %v4352 = vunpack.c.h.b16 %v4308
      %v4353 = vunpack.c.l.b16 %v4309
      %v4354 = vunpack.c.h.b16 %v4309
      %v4355 = vunpack.c.l.b16 %v4310
      %v4356 = vunpack.c.h.b16 %v4310
      %v4357 = vunpack.c.l.b16 %v4311
      %v4358 = vunpack.c.h.b16 %v4311
      %v4359 = vunpack.c.l.b16 %v4312
      %v4360 = vunpack.c.h.b16 %v4312
      %v4361 = vpack.c.b16 %v4329, %v4329
      %v4362 = vpack.c.b16 %v4330, %v4330
      %v4363 = vpack.c.b16 %v4331, %v4331
      %v4364 = vpack.c.b16 %v4332, %v4332
      %v4365 = vpack.c.b16 %v4333, %v4333
      %v4366 = vpack.c.b16 %v4334, %v4334
      %v4367 = vpack.c.b16 %v4335, %v4335
      %v4368 = vpack.c.b16 %v4336, %v4336
      %v4369 = vpack.c.b16 %v4337, %v4337
      %v4370 = vpack.c.b16 %v4338, %v4338
      %v4371 = vpack.c.b16 %v4339, %v4339
      %v4372 = vpack.c.b16 %v4340, %v4340
      %v4373 = vpack.c.b16 %v4341, %v4341
      %v4374 = vpack.c.b16 %v4342, %v4342
      %v4375 = vpack.c.b16 %v4343, %v4343
      %v4376 = vpack.c.b16 %v4344, %v4344
      %v4377 = vpack.c.b16 %v4345, %v4345
      %v4378 = vpack.c.b16 %v4346, %v4346
      %v4379 = vpack.c.b16 %v4347, %v4347
      %v4380 = vpack.c.b16 %v4348, %v4348
      %v4381 = vpack.c.b16 %v4349, %v4349
      %v4382 = vpack.c.b16 %v4350, %v4350
      %v4383 = vpack.c.b16 %v4351, %v4351
      %v4384 = vpack.c.b16 %v4352, %v4352
      %v4385 = vpack.c.b16 %v4353, %v4353
      %v4386 = vpack.c.b16 %v4354, %v4354
      %v4387 = vpack.c.b16 %v4355, %v4355
      %v4388 = vpack.c.b16 %v4356, %v4356
      %v4389 = vpack.c.b16 %v4357, %v4357
      %v4390 = vpack.c.b16 %v4358, %v4358
      %v4391 = vpack.c.b16 %v4359, %v4359
      %v4392 = vpack.c.b16 %v4360, %v4360
      %4425 = vst [vmem:[%s177] sm:$0xf] %v4361
      %4426 = vst [vmem:[%s177 + $0x4] sm:$0xf] %v4362
      %4427 = vst [vmem:[%s177 + $0x8] sm:$0xf] %v4363
      %4428 = vst [vmem:[%s177 + $0xc] sm:$0xf] %v4364
      %4429 = vst [vmem:[%s177 + $0x10] sm:$0xf] %v4365
      %4430 = vst [vmem:[%s177 + $0x14] sm:$0xf] %v4366
      %4431 = vst [vmem:[%s177 + $0x18] sm:$0xf] %v4367
      %4432 = vst [vmem:[%s177 + $0x1c] sm:$0xf] %v4368
      %4433 = vst [vmem:[%s177 + $0x20] sm:$0xf] %v4369
      %4434 = vst [vmem:[%s177 + $0x24] sm:$0xf] %v4370
      %4435 = vst [vmem:[%s177 + $0x28] sm:$0xf] %v4371
      %4436 = vst [vmem:[%s177 + $0x2c] sm:$0xf] %v4372
      %4437 = vst [vmem:[%s177 + $0x30] sm:$0xf] %v4373
      %4438 = vst [vmem:[%s177 + $0x34] sm:$0xf] %v4374
      %4439 = vst [vmem:[%s177 + $0x38] sm:$0xf] %v4375
      %4440 = vst [vmem:[%s177 + $0x3c] sm:$0xf] %v4376
      %4441 = vst [vmem:[%s177 + $0x40] sm:$0xf] %v4377
      %4442 = vst [vmem:[%s177 + $0x44] sm:$0xf] %v4378
      %4443 = vst [vmem:[%s177 + $0x48] sm:$0xf] %v4379
      %4444 = vst [vmem:[%s177 + $0x4c] sm:$0xf] %v4380
      %4445 = vst [vmem:[%s177 + $0x50] sm:$0xf] %v4381
      %4446 = vst [vmem:[%s177 + $0x54] sm:$0xf] %v4382
      %4447 = vst [vmem:[%s177 + $0x58] sm:$0xf] %v4383
      %4448 = vst [vmem:[%s177 + $0x5c] sm:$0xf] %v4384
      %4449 = vst [vmem:[%s177 + $0x60] sm:$0xf] %v4385
      %4450 = vst [vmem:[%s177 + $0x64] sm:$0xf] %v4386
      %4451 = vst [vmem:[%s177 + $0x68] sm:$0xf] %v4387
      %4452 = vst [vmem:[%s177 + $0x6c] sm:$0xf] %v4388
      %4453 = vst [vmem:[%s177 + $0x70] sm:$0xf] %v4389
      %4454 = vst [vmem:[%s177 + $0x74] sm:$0xf] %v4390
      %4455 = vst [vmem:[%s177 + $0x78] sm:$0xf] %v4391
      %4456 = vst [vmem:[%s177 + $0x7c] sm:$0xf] %v4392
      %v4457 = vadd.f32 %v4171, %v4174
      %v4458 = vadd.f32 %v4457, %v4179
      %v4459 = vadd.f32 %v4458, %v4182
      %v4460 = vadd.f32 %v4459, %v4187
      %v4461 = vadd.f32 %v4460, %v4190
      %v4462 = vadd.f32 %v4461, %v4195
      %v4463 = vadd.f32 %v4462, %v4198
      %v4464 = vadd.f32 %v4463, %v4203
      %v4465 = vadd.f32 %v4464, %v4206
      %v4466 = vadd.f32 %v4465, %v4211
      %v4467 = vadd.f32 %v4466, %v4214
      %v4468 = vadd.f32 %v4467, %v4219
      %v4469 = vadd.f32 %v4468, %v4222
      %v4470 = vadd.f32 %v4469, %v4227
      %v4471 = vadd.f32 %v4470, %v4230
      %v4472 = vadd.f32 %v4471, %v4235
      %v4473 = vadd.f32 %v4472, %v4238
      %v4474 = vadd.f32 %v4473, %v4243
      %v4475 = vadd.f32 %v4474, %v4246
      %v4476 = vadd.f32 %v4475, %v4251
      %v4477 = vadd.f32 %v4476, %v4254
      %v4478 = vadd.f32 %v4477, %v4259
      %v4479 = vadd.f32 %v4478, %v4262
      %v4480 = vadd.f32 %v4479, %v4267
      %v4481 = vadd.f32 %v4480, %v4270
      %v4482 = vadd.f32 %v4481, %v4275
      %v4483 = vadd.f32 %v4482, %v4278
      %v4484 = vadd.f32 %v4483, %v4283
      %v4485 = vadd.f32 %v4484, %v4286
      %v4486 = vadd.f32 %v4485, %v4291
      %v4487 = vadd.f32 %v4486, %v4294
      %v4488 = vrot.slane %v4487, 4
      %v4489 = vadd.f32 %v4487, %v4488
      %v4490 = vrot.slane %v4489, 2
      %v4491 = vadd.f32 %v4489, %v4490
      %v4492 = vrot.slane %v4491, 1
      %v4493 = vadd.f32 %v4491, %v4492
      %v4494 = vmul.f32 %v4171, %v4171
      %v4495 = vmul.f32 %v4174, %v4174
      %v4496 = vmul.f32 %v4179, %v4179
      %v4497 = vmul.f32 %v4182, %v4182
      %v4498 = vmul.f32 %v4187, %v4187
      %v4499 = vmul.f32 %v4190, %v4190
      %v4500 = vmul.f32 %v4195, %v4195
      %v4501 = vmul.f32 %v4198, %v4198
      %v4502 = vmul.f32 %v4203, %v4203
      %v4503 = vmul.f32 %v4206, %v4206
      %v4504 = vmul.f32 %v4211, %v4211
      %v4505 = vmul.f32 %v4214, %v4214
      %v4506 = vmul.f32 %v4219, %v4219
      %v4507 = vmul.f32 %v4222, %v4222
      %v4508 = vmul.f32 %v4227, %v4227
      %v4509 = vmul.f32 %v4230, %v4230
      %v4510 = vmul.f32 %v4235, %v4235
      %v4511 = vmul.f32 %v4238, %v4238
      %v4512 = vmul.f32 %v4243, %v4243
      %v4513 = vmul.f32 %v4246, %v4246
      %v4514 = vmul.f32 %v4251, %v4251
      %v4515 = vmul.f32 %v4254, %v4254
      %v4516 = vmul.f32 %v4259, %v4259
      %v4517 = vmul.f32 %v4262, %v4262
      %v4518 = vmul.f32 %v4267, %v4267
      %v4519 = vmul.f32 %v4270, %v4270
      %v4520 = vmul.f32 %v4275, %v4275
      %v4521 = vmul.f32 %v4278, %v4278
      %v4522 = vmul.f32 %v4283, %v4283
      %v4523 = vmul.f32 %v4286, %v4286
      %v4524 = vmul.f32 %v4291, %v4291
      %v4525 = vmul.f32 %v4294, %v4294
      %v4526 = vadd.f32 %v4494, %v4495
      %v4527 = vadd.f32 %v4526, %v4496
      %v4528 = vadd.f32 %v4527, %v4497
      %v4529 = vadd.f32 %v4528, %v4498
      %v4530 = vadd.f32 %v4529, %v4499
      %v4531 = vadd.f32 %v4530, %v4500
      %v4532 = vadd.f32 %v4531, %v4501
      %v4533 = vadd.f32 %v4532, %v4502
      %v4534 = vadd.f32 %v4533, %v4503
      %v4535 = vadd.f32 %v4534, %v4504
      %v4536 = vadd.f32 %v4535, %v4505
      %v4537 = vadd.f32 %v4536, %v4506
      %v4538 = vadd.f32 %v4537, %v4507
      %v4539 = vadd.f32 %v4538, %v4508
      %v4540 = vadd.f32 %v4539, %v4509
      %v4541 = vadd.f32 %v4540, %v4510
      %v4542 = vadd.f32 %v4541, %v4511
      %v4543 = vadd.f32 %v4542, %v4512
      %v4544 = vadd.f32 %v4543, %v4513
      %v4545 = vadd.f32 %v4544, %v4514
      %v4546 = vadd.f32 %v4545, %v4515
      %v4547 = vadd.f32 %v4546, %v4516
      %v4548 = vadd.f32 %v4547, %v4517
      %v4549 = vadd.f32 %v4548, %v4518
      %v4550 = vadd.f32 %v4549, %v4519
      %v4551 = vadd.f32 %v4550, %v4520
      %v4552 = vadd.f32 %v4551, %v4521
      %v4553 = vadd.f32 %v4552, %v4522
      %v4554 = vadd.f32 %v4553, %v4523
      %v4555 = vadd.f32 %v4554, %v4524
      %v4556 = vadd.f32 %v4555, %v4525
      %v4557 = vrot.slane %v4556, 4
      %v4558 = vadd.f32 %v4556, %v4557
      %v4559 = vrot.slane %v4558, 2
      %v4560 = vadd.f32 %v4558, %v4559
      %v4561 = vrot.slane %v4560, 1
      %v4562 = vadd.f32 %v4560, %v4561
      %vm4563 = vcmask 1040384
      %v4564 = vsel %vm4563, %v4493, %v4562
      %4565 = vst [vmem:[%s181] sm:$0x3] %v4564
      %p4566 = scmp.lt.s32.totalorder %s15, 1
      %s4567 = scalar_select %p4566, %s15, 1
      %s4568 = smul.addr %s4567, 32
      %s4569 = smul.addr %s4568, 4
      %s4570 = scalar_lea.vmem %s2, %s4569
      %p4571 = scmp.lt.s32.totalorder %s15, 1
      %s4572 = scalar_select %p4571, %s15, 1
      %s4573 = smul.addr %s4572, 2
      %s4574 = scalar_lea.vmem %s3, %s4573
      // Predicated region
      $region29: #{residual_block_forward.3} parent=27 // pred_check
        %p4575 = pneg %p80
      $region30: #{residual_block_forward.3} parent=27 // pred_check_branch
        %4577 = sbr.rel (%p4575) target = $region32
      $region31: #{residual_block_forward.3} parent=27 // pred_region
        _
      $region32: #{residual_block_forward.3} parent=27 // pred_fallthru
        _
      // Predicated region
      $region33: #{residual_block_forward.3} parent=27 // pred_check
        %p4578 = pneg %p106
      $region34: #{residual_block_forward.3} parent=27 // pred_check_branch
        %4580 = sbr.rel (%p4578) target = $region36
      $region35: #{residual_block_forward.3} parent=27 // pred_region
        _
      $region36: #{residual_block_forward.3} parent=27 // pred_fallthru
        _
    $region28: #{residual_block_forward.3} parent=5 // pred_fallthru
      _
    %p4581 = scmp.le.s32.totalorder 2, %s10
    // Predicated region
    $region37: #{residual_block_forward.3} parent=5 // pred_check
      %p4582 = pneg %p4581
    $region38: #{residual_block_forward.3} parent=5 // pred_check_branch
      %4584 = sbr.rel (%p4582) target = $region40
    $region39: #{residual_block_forward.3} parent=5 // pred_region
      %s4585 = ssub.s32 %s10, 2
      // Predicated region
      $region41: #{residual_block_forward.3} parent=39 // pred_check
        %p4586 = pneg %p86
      $region42: #{residual_block_forward.3} parent=39 // pred_check_branch
        %4588 = sbr.rel (%p4586) target = $region44
      $region43: #{residual_block_forward.3} parent=39 // pred_region
        %p4589 = scmp.lt.s32.totalorder %s16, 1
        %s4590 = scalar_select %p4589, %s16, 1
        %s4591 = smul.addr %s4590, 32
        %s4592 = smul.addr %s4591, 4
        %s4593 = scalar_lea.vmem %s2, %s4592
      $region44: #{residual_block_forward.3} parent=39 // pred_fallthru
        _
      // Predicated region
      $region45: #{residual_block_forward.3} parent=39 // pred_check
        %p4594 = pneg %p112
      $region46: #{residual_block_forward.3} parent=39 // pred_check_branch
        %4596 = sbr.rel (%p4594) target = $region48
      $region47: #{residual_block_forward.3} parent=39 // pred_region
        %p4597 = scmp.lt.s32.totalorder %s16, 1
        %s4598 = scalar_select %p4597, %s16, 1
        %s4599 = smul.addr %s4598, 2
        %s4600 = scalar_lea.vmem %s3, %s4599
      $region48: #{residual_block_forward.3} parent=39 // pred_fallthru
        _
    $region40: #{residual_block_forward.3} parent=5 // pred_fallthru
      _
  $region6: #{residual_block_forward.3} parent=0 // loop_footer
    %s14 = sadd.s32 1, %s10
  $region7: #{residual_block_forward.3} parent=0 // loop_footer_branch
    %9 = sbr.rel target = $region3
  $region8: #{residual_block_forward.3} parent=0 // loop_exit
    _

// kernel: residual_block_forward.4
$region0: #{residual_block_forward.4}
  #allocation0 [shape = 'u32[]', space=smem, size = 0x4, offset = 0x4, fixed_abs, tag = 'smem constant byte address 0x4 - core index']
  #allocation1 [shape = 'u32[144,128]{1,0:T(1,128)}', space=vmem, size = 0x12000, scoped, tag = 'internal scratch']
  #allocation2 [shape = 'f32[18,18,128]{2,1,0:T(8,128)}', space=vmem, size = 0x36000, scoped, tag = 'scratch operand']
  #allocation3 [shape = 'bf16[256,1152]{1,0:T(8,128)(2,1)}', space=vmem, size = 0x90000, scoped, tag = 'scratch operand']
  %s0 = inlined_call_operand.vmem [shape: bf16[2,16,16,128], index: 0, kind: input, shape index: {}]
  %s1 = inlined_call_operand.vmem [shape: f32[1,128], index: 1, kind: input, shape index: {}]
  %s2 = inlined_call_operand.vmem [shape: f32[1,128], index: 2, kind: input, shape index: {}]
  %s3 = inlined_call_operand.vmem [shape: bf16[1152,128], index: 3, kind: input, shape index: {}]
  %s4 = inlined_call_operand.vmem [shape: bf16[2,16,16,128], index: 4, kind: output, shape index: {0}]
  %s5 = inlined_call_operand.vmem [shape: f32[2,2,128], index: 5, kind: output, shape index: {1}]
  %6 = xla_tuple %s4, %s5
  %s7 = sld [smem:[#allocation0]]
  $region57: #{residual_block_forward.4} parent=0
    _
  %s9 = ssub.s32 1, %s7
  %s10 = scalar_select 0, %s9, %s7
  loop: start=0, step=1, limit=4
  $region2: #{residual_block_forward.4} parent=0 // loop_pre_header
    _
  $region3: #{residual_block_forward.4} parent=0 // loop_header
    %s12 = sphi 0, %s16
    %p13 = scmp.ge.s32.totalorder %s12, 4
    %s22 = sphi 0, %s24
    %s25 = sphi 0, %s22
    %s26 = sphi 0, %s25
    %s42 = sphi 0, %s26
    %s46 = sphi 0, %s46
    %s48 = sphi 0, %s46
    %s49 = sphi 0, %s48
    %s63 = sphi 0, %s49
    %s67 = sphi 0, %s67
    %s69 = sphi 0, %s67
    %s70 = sphi 0, %s69
    %s84 = sphi 0, %s70
    %s88 = sphi 0, %s88
    %s90 = sphi 0, %s88
    %s91 = sphi 0, %s90
    %s105 = sphi 0, %s91
    %s111 = sphi 0, %s113
    %s114 = sphi 0, %s111
    %s115 = sphi 0, %s114
    %s131 = sphi 0, %s115
    %s137 = sphi 0, %s139
    %s140 = sphi 0, %s137
    %s141 = sphi 0, %s140
    %s157 = sphi 0, %s141
  $region4: #{residual_block_forward.4} parent=0 // loop_header_branch
    %15 = sbr.rel (%p13) target = $region8
  $region5: #{residual_block_forward.4} parent=0 // loop_body
    %s17 = ssub.s32 %s12, 1
    %s18 = ssub.s32 %s12, 2
    %s19 = sadd.s32 %s12, 1
    %s20 = ssub.s32 %s12, %s19
    %p21 = scmp.eq.s32.totalorder %s20, 0
    %s23 = sadd.s32 %s22, 1
    %s24 = scalar_select %p21, %s22, %s23
    %p27 = pneg %p21
    %p28 = scmp.eq.s32.totalorder %s12, 1
    %p29 = por %p27, %p28
    %p30 = scmp.ne.s32.totalorder %s22, %s25
    %p31 = scmp.eq.s32.totalorder %s12, 0
    %p32 = por %p30, %p31
    %p33 = scmp.ne.s32.totalorder %s22, %s25
    %p34 = scmp.eq.s32.totalorder %s17, 1
    %p35 = por %p33, %p34
    %p36 = scmp.ne.s32.totalorder %s25, %s26
    %p37 = scmp.eq.s32.totalorder %s17, 0
    %p38 = por %p36, %p37
    %p39 = scmp.ne.s32.totalorder %s25, %s26
    %p40 = scmp.eq.s32.totalorder %s18, 1
    %p41 = por %p39, %p40
    %p43 = scmp.ne.s32.totalorder %s26, %s42
    %p44 = scmp.eq.s32.totalorder %s18, 0
    %p45 = por %p43, %p44
    %s47 = sadd.s32 %s46, 1
    %p50 = scmp.eq.s32.totalorder %s12, 1
    %p51 = scmp.ne.s32.totalorder %s46, %s48
    %p52 = scmp.eq.s32.totalorder %s12, 0
    %p53 = por %p51, %p52
    %p54 = scmp.ne.s32.totalorder %s46, %s48
    %p55 = scmp.eq.s32.totalorder %s17, 1
    %p56 = por %p54, %p55
    %p57 = scmp.ne.s32.totalorder %s48, %s49
    %p58 = scmp.eq.s32.totalorder %s17, 0
    %p59 = por %p57, %p58
    %p60 = scmp.ne.s32.totalorder %s48, %s49
    %p61 = scmp.eq.s32.totalorder %s18, 1
    %p62 = por %p60, %p61
    %p64 = scmp.ne.s32.totalorder %s49, %s63
    %p65 = scmp.eq.s32.totalorder %s18, 0
    %p66 = por %p64, %p65
    %s68 = sadd.s32 %s67, 1
    %p71 = scmp.eq.s32.totalorder %s12, 1
    %p72 = scmp.ne.s32.totalorder %s67, %s69
    %p73 = scmp.eq.s32.totalorder %s12, 0
    %p74 = por %p72, %p73
    %p75 = scmp.ne.s32.totalorder %s67, %s69
    %p76 = scmp.eq.s32.totalorder %s17, 1
    %p77 = por %p75, %p76
    %p78 = scmp.ne.s32.totalorder %s69, %s70
    %p79 = scmp.eq.s32.totalorder %s17, 0
    %p80 = por %p78, %p79
    %p81 = scmp.ne.s32.totalorder %s69, %s70
    %p82 = scmp.eq.s32.totalorder %s18, 1
    %p83 = por %p81, %p82
    %p85 = scmp.ne.s32.totalorder %s70, %s84
    %p86 = scmp.eq.s32.totalorder %s18, 0
    %p87 = por %p85, %p86
    %s89 = sadd.s32 %s88, 1
    %p92 = scmp.eq.s32.totalorder %s12, 1
    %p93 = scmp.ne.s32.totalorder %s88, %s90
    %p94 = scmp.eq.s32.totalorder %s12, 0
    %p95 = por %p93, %p94
    %p96 = scmp.ne.s32.totalorder %s88, %s90
    %p97 = scmp.eq.s32.totalorder %s17, 1
    %p98 = por %p96, %p97
    %p99 = scmp.ne.s32.totalorder %s90, %s91
    %p100 = scmp.eq.s32.totalorder %s17, 0
    %p101 = por %p99, %p100
    %p102 = scmp.ne.s32.totalorder %s90, %s91
    %p103 = scmp.eq.s32.totalorder %s18, 1
    %p104 = por %p102, %p103
    %p106 = scmp.ne.s32.totalorder %s91, %s105
    %p107 = scmp.eq.s32.totalorder %s18, 0
    %p108 = por %p106, %p107
    %s109 = ssub.s32 %s12, %s19
    %p110 = scmp.eq.s32.totalorder %s109, 0
    %s112 = sadd.s32 %s111, 1
    %s113 = scalar_select %p110, %s111, %s112
    %p116 = pneg %p110
    %p117 = scmp.eq.s32.totalorder %s12, 1
    %p118 = por %p116, %p117
    %p119 = scmp.ne.s32.totalorder %s111, %s114
    %p120 = scmp.eq.s32.totalorder %s12, 0
    %p121 = por %p119, %p120
    %p122 = scmp.ne.s32.totalorder %s111, %s114
    %p123 = scmp.eq.s32.totalorder %s17, 1
    %p124 = por %p122, %p123
    %p125 = scmp.ne.s32.totalorder %s114, %s115
    %p126 = scmp.eq.s32.totalorder %s17, 0
    %p127 = por %p125, %p126
    %p128 = scmp.ne.s32.totalorder %s114, %s115
    %p129 = scmp.eq.s32.totalorder %s18, 1
    %p130 = por %p128, %p129
    %p132 = scmp.ne.s32.totalorder %s115, %s131
    %p133 = scmp.eq.s32.totalorder %s18, 0
    %p134 = por %p132, %p133
    %s135 = ssub.s32 %s12, %s19
    %p136 = scmp.eq.s32.totalorder %s135, 0
    %s138 = sadd.s32 %s137, 1
    %s139 = scalar_select %p136, %s137, %s138
    %p142 = pneg %p136
    %p143 = scmp.eq.s32.totalorder %s12, 1
    %p144 = por %p142, %p143
    %p145 = scmp.ne.s32.totalorder %s137, %s140
    %p146 = scmp.eq.s32.totalorder %s12, 0
    %p147 = por %p145, %p146
    %p148 = scmp.ne.s32.totalorder %s137, %s140
    %p149 = scmp.eq.s32.totalorder %s17, 1
    %p150 = por %p148, %p149
    %p151 = scmp.ne.s32.totalorder %s140, %s141
    %p152 = scmp.eq.s32.totalorder %s17, 0
    %p153 = por %p151, %p152
    %p154 = scmp.ne.s32.totalorder %s140, %s141
    %p155 = scmp.eq.s32.totalorder %s18, 1
    %p156 = por %p154, %p155
    %p158 = scmp.ne.s32.totalorder %s141, %s157
    %p159 = scmp.eq.s32.totalorder %s18, 0
    %p160 = por %p158, %p159
    %p161 = scmp.le.s32.totalorder 1, %s12
    %p162 = scmp.lt.s32.totalorder %s12, 3
    %p163 = pnand %p161, %p162
    %p164 = pneg %p163
    // Predicated region
    $region9: #{residual_block_forward.4} parent=5 // pred_check
      _
    $region10: #{residual_block_forward.4} parent=5 // pred_check_branch
      %166 = sbr.rel (%p163) target = $region12
    $region11: #{residual_block_forward.4} parent=5 // pred_region
      %s167 = ssub.s32 %s12, 1
      // Predicated region
      $region13: #{residual_block_forward.4} parent=11 // pred_check
        %p168 = pneg %p59
      $region14: #{residual_block_forward.4} parent=11 // pred_check_branch
        %170 = sbr.rel (%p168) target = $region16
      $region15: #{residual_block_forward.4} parent=11 // pred_region
        _
      $region16: #{residual_block_forward.4} parent=11 // pred_fallthru
        _
      // Predicated region
      $region17: #{residual_block_forward.4} parent=11 // pred_check
        %p171 = pneg %p80
      $region18: #{residual_block_forward.4} parent=11 // pred_check_branch
        %173 = sbr.rel (%p171) target = $region20
      $region19: #{residual_block_forward.4} parent=11 // pred_region
        _
      $region20: #{residual_block_forward.4} parent=11 // pred_fallthru
        _
      // Predicated region
      $region21: #{residual_block_forward.4} parent=11 // pred_check
        %p174 = pneg %p101
      $region22: #{residual_block_forward.4} parent=11 // pred_check_branch
        %176 = sbr.rel (%p174) target = $region24
      $region23: #{residual_block_forward.4} parent=11 // pred_region
        _
      $region24: #{residual_block_forward.4} parent=11 // pred_fallthru
        _
    $region12: #{residual_block_forward.4} parent=5 // pred_fallthru
      _
    %p177 = scmp.lt.s32.totalorder %s12, 2
    // Predicated region
    $region25: #{residual_block_forward.4} parent=5 // pred_check
      %p178 = pneg %p177
    $region26: #{residual_block_forward.4} parent=5 // pred_check_branch
      %180 = sbr.rel (%p178) target = $region28
    $region27: #{residual_block_forward.4} parent=5 // pred_region
      // Predicated region
      $region29: #{residual_block_forward.4} parent=27 // pred_check
        %p181 = pneg %p32
      $region30: #{residual_block_forward.4} parent=27 // pred_check_branch
        %183 = sbr.rel (%p181) target = $region32
      $region31: #{residual_block_forward.4} parent=27 // pred_region
        %p184 = scmp.lt.s32.totalorder %s12, 1
        %s185 = scalar_select %p184, %s12, 1
        %s186 = smul.addr %s185, 32
        %s187 = smul.addr %s186, 4
        %s188 = scalar_lea.vmem %s0, %s187
      $region32: #{residual_block_forward.4} parent=27 // pred_fallthru
        _
    $region28: #{residual_block_forward.4} parent=5 // pred_fallthru
      _
    %p189 = scmp.le.s32.totalorder 1, %s12
    %p190 = scmp.lt.s32.totalorder %s12, 3
    %p191 = pnand %p189, %p190
    %p192 = pneg %p191
    // Predicated region
    $region33: #{residual_block_forward.4} parent=5 // pred_check
      _
    $region34: #{residual_block_forward.4} parent=5 // pred_check_branch
      %194 = sbr.rel (%p191) target = $region36
    $region35: #{residual_block_forward.4} parent=5 // pred_region
      %s195 = ssub.s32 %s12, 1
      %p196 = scmp.lt.s32.totalorder %s17, 1
      %s197 = scalar_select %p196, %s17, 1
      %s198 = smul.addr %s197, 32
      %s199 = smul.addr %s198, 4
      %s200 = scalar_lea.vmem %s0, %s199
      %p201 = pneg %p38
      %p202 = pneg %p35
      %p203 = pneg %p59
      %p204 = pneg %p56
      %p205 = pneg %p80
      %p206 = pneg %p77
      %p207 = pneg %p101
      %p208 = pneg %p98
      %p209 = pneg %p127
      %p210 = pneg %p124
      %p211 = scmp.lt.s32.totalorder %s17, 1
      %s212 = scalar_select %p211, %s17, 1
      %s213 = smul.addr %s212, 32
      %s214 = smul.addr %s213, 4
      %s215 = scalar_lea.vmem %s4, %s214
      %p216 = pneg %p153
      %p217 = pneg %p150
      %p218 = scmp.lt.s32.totalorder %s17, 1
      %s219 = scalar_select %p218, %s17, 1
      %s220 = smul.addr %s219, 2
      %s221 = scalar_lea.vmem %s5, %s220
      %p222 = scmp.lt.s32.totalorder %s17, 1
      %s223 = scalar_select %p222, %s17, 1
      %s224 = smul.addr %s223, 32
      %s225 = smul.addr %s224, 4
      %s226 = scalar_lea.vmem %s0, %s225
      %p227 = scmp.lt.s32.totalorder %s17, 1
      %s228 = scalar_select %p227, %s17, 1
      %s229 = smul.addr %s228, 32
      %s230 = smul.addr %s229, 4
      %s231 = scalar_lea.vmem %s4, %s230
      %p232 = scmp.lt.s32.totalorder %s17, 1
      %s233 = scalar_select %p232, %s17, 1
      %s234 = smul.addr %s233, 2
      %s235 = scalar_lea.vmem %s5, %s234
      %237 = vst [vmem:[#allocation2] sm:$0xff] 0.0
      %238 = vst [vmem:[#allocation2 + $0x8] sm:$0xff] 0.0
      %239 = vst [vmem:[#allocation2 + $0x10] sm:$0x3] 0.0
      %s240 = scalar_lea.vmem [#allocation2], 408
      %241 = vst [vmem:[%s240] sm:$0xff] 0.0
      %242 = vst [vmem:[%s240 + $0x8] sm:$0xff] 0.0
      %243 = vst [vmem:[%s240 + $0x10] sm:$0x3] 0.0
      %244 = vst [vmem:[#allocation2] sm:$0x1] 0.0
      %245 = vst [vmem:[#allocation2 + $0x18] sm:$0x1] 0.0
      %246 = vst [vmem:[#allocation2 + $0x30] sm:$0x1] 0.0
      %247 = vst [vmem:[#allocation2 + $0x48] sm:$0x1] 0.0
      %248 = vst [vmem:[#allocation2 + $0x60] sm:$0x1] 0.0
      %249 = vst [vmem:[#allocation2 + $0x78] sm:$0x1] 0.0
      %250 = vst [vmem:[#allocation2 + $0x90] sm:$0x1] 0.0
      %251 = vst [vmem:[#allocation2 + $0xa8] sm:$0x1] 0.0
      %252 = vst [vmem:[#allocation2 + $0xc0] sm:$0x1] 0.0
      %253 = vst [vmem:[#allocation2 + $0xd8] sm:$0x1] 0.0
      %254 = vst [vmem:[#allocation2 + $0xf0] sm:$0x1] 0.0
      %255 = vst [vmem:[#allocation2 + $0x108] sm:$0x1] 0.0
      %256 = vst [vmem:[#allocation2 + $0x120] sm:$0x1] 0.0
      %257 = vst [vmem:[#allocation2 + $0x138] sm:$0x1] 0.0
      %258 = vst [vmem:[#allocation2 + $0x150] sm:$0x1] 0.0
      %259 = vst [vmem:[#allocation2 + $0x168] sm:$0x1] 0.0
      %260 = vst [vmem:[#allocation2 + $0x180] sm:$0x1] 0.0
      %261 = vst [vmem:[#allocation2 + $0x198] sm:$0x1] 0.0
      %262 = vst [vmem:[#allocation2 + $0x11] sm:$0x1] 0.0
      %263 = vst [vmem:[#allocation2 + $0x29] sm:$0x1] 0.0
      %264 = vst [vmem:[#allocation2 + $0x41] sm:$0x1] 0.0
      %265 = vst [vmem:[#allocation2 + $0x59] sm:$0x1] 0.0
      %266 = vst [vmem:[#allocation2 + $0x71] sm:$0x1] 0.0
      %267 = vst [vmem:[#allocation2 + $0x89] sm:$0x1] 0.0
      %268 = vst [vmem:[#allocation2 + $0xa1] sm:$0x1] 0.0
      %269 = vst [vmem:[#allocation2 + $0xb9] sm:$0x1] 0.0
      %270 = vst [vmem:[#allocation2 + $0xd1] sm:$0x1] 0.0
      %271 = vst [vmem:[#allocation2 + $0xe9] sm:$0x1] 0.0
      %272 = vst [vmem:[#allocation2 + $0x101] sm:$0x1] 0.0
      %273 = vst [vmem:[#allocation2 + $0x119] sm:$0x1] 0.0
      %274 = vst [vmem:[#allocation2 + $0x131] sm:$0x1] 0.0
      %275 = vst [vmem:[#allocation2 + $0x149] sm:$0x1] 0.0
      %276 = vst [vmem:[#allocation2 + $0x161] sm:$0x1] 0.0
      %277 = vst [vmem:[#allocation2 + $0x179] sm:$0x1] 0.0
      %278 = vst [vmem:[#allocation2 + $0x191] sm:$0x1] 0.0
      %279 = vst [vmem:[#allocation2 + $0x1a9] sm:$0x1] 0.0
      %v280 = vld [vmem:[%s226] sm:$0xf]
      %v281 = vld [vmem:[%s226 + $0x4] sm:$0xf]
      %v282 = vld [vmem:[%s226 + $0x8] sm:$0xf]
      %v283 = vld [vmem:[%s226 + $0xc] sm:$0xf]
      %v284 = vld [vmem:[%s226 + $0x10] sm:$0xf]
      %v285 = vld [vmem:[%s226 + $0x14] sm:$0xf]
      %v286 = vld [vmem:[%s226 + $0x18] sm:$0xf]
      %v287 = vld [vmem:[%s226 + $0x1c] sm:$0xf]
      %v288 = vld [vmem:[%s226 + $0x20] sm:$0xf]
      %v289 = vld [vmem:[%s226 + $0x24] sm:$0xf]
      %v290 = vld [vmem:[%s226 + $0x28] sm:$0xf]
      %v291 = vld [vmem:[%s226 + $0x2c] sm:$0xf]
      %v292 = vld [vmem:[%s226 + $0x30] sm:$0xf]
      %v293 = vld [vmem:[%s226 + $0x34] sm:$0xf]
      %v294 = vld [vmem:[%s226 + $0x38] sm:$0xf]
      %v295 = vld [vmem:[%s226 + $0x3c] sm:$0xf]
      %v296 = vld [vmem:[%s226 + $0x40] sm:$0xf]
      %v297 = vld [vmem:[%s226 + $0x44] sm:$0xf]
      %v298 = vld [vmem:[%s226 + $0x48] sm:$0xf]
      %v299 = vld [vmem:[%s226 + $0x4c] sm:$0xf]
      %v300 = vld [vmem:[%s226 + $0x50] sm:$0xf]
      %v301 = vld [vmem:[%s226 + $0x54] sm:$0xf]
      %v302 = vld [vmem:[%s226 + $0x58] sm:$0xf]
      %v303 = vld [vmem:[%s226 + $0x5c] sm:$0xf]
      %v304 = vld [vmem:[%s226 + $0x60] sm:$0xf]
      %v305 = vld [vmem:[%s226 + $0x64] sm:$0xf]
      %v306 = vld [vmem:[%s226 + $0x68] sm:$0xf]
      %v307 = vld [vmem:[%s226 + $0x6c] sm:$0xf]
      %v308 = vld [vmem:[%s226 + $0x70] sm:$0xf]
      %v309 = vld [vmem:[%s226 + $0x74] sm:$0xf]
      %v310 = vld [vmem:[%s226 + $0x78] sm:$0xf]
      %v311 = vld [vmem:[%s226 + $0x7c] sm:$0xf]
      %v312 = vunpack.c.l.bf16 %v280
      %v313 = vunpack.c.l.bf16 %v281
      %v314 = vunpack.c.l.bf16 %v282
      %v315 = vunpack.c.l.bf16 %v283
      %v316 = vunpack.c.l.bf16 %v284
      %v317 = vunpack.c.l.bf16 %v285
      %v318 = vunpack.c.l.bf16 %v286
      %v319 = vunpack.c.l.bf16 %v287
      %v320 = vunpack.c.l.bf16 %v288
      %v321 = vunpack.c.l.bf16 %v289
      %v322 = vunpack.c.l.bf16 %v290
      %v323 = vunpack.c.l.bf16 %v291
      %v324 = vunpack.c.l.bf16 %v292
      %v325 = vunpack.c.l.bf16 %v293
      %v326 = vunpack.c.l.bf16 %v294
      %v327 = vunpack.c.l.bf16 %v295
      %v328 = vunpack.c.l.bf16 %v296
      %v329 = vunpack.c.l.bf16 %v297
      %v330 = vunpack.c.l.bf16 %v298
      %v331 = vunpack.c.l.bf16 %v299
      %v332 = vunpack.c.l.bf16 %v300
      %v333 = vunpack.c.l.bf16 %v301
      %v334 = vunpack.c.l.bf16 %v302
      %v335 = vunpack.c.l.bf16 %v303
      %v336 = vunpack.c.l.bf16 %v304
      %v337 = vunpack.c.l.bf16 %v305
      %v338 = vunpack.c.l.bf16 %v306
      %v339 = vunpack.c.l.bf16 %v307
      %v340 = vunpack.c.l.bf16 %v308
      %v341 = vunpack.c.l.bf16 %v309
      %v342 = vunpack.c.l.bf16 %v310
      %v343 = vunpack.c.l.bf16 %v311
      %v344 = vld [vmem:[%s1] sm:$0x1]
      %v346 = vlaneseq
      %v347 = vshrl.u32 %v346, 7
      %v348 = vsub.s32 0, %v347
      %v349 = vrot.slane %v344, %v348
      %v351 = vmul.f32 %v312, %v349
      %v352 = vmul.f32 %v313, %v349
      %v353 = vmul.f32 %v314, %v349
      %v354 = vmul.f32 %v315, %v349
      %v355 = vmul.f32 %v316, %v349
      %v356 = vmul.f32 %v317, %v349
      %v357 = vmul.f32 %v318, %v349
      %v358 = vmul.f32 %v319, %v349
      %v359 = vmul.f32 %v320, %v349
      %v360 = vmul.f32 %v321, %v349
      %v361 = vmul.f32 %v322, %v349
      %v362 = vmul.f32 %v323, %v349
      %v363 = vmul.f32 %v324, %v349
      %v364 = vmul.f32 %v325, %v349
      %v365 = vmul.f32 %v326, %v349
      %v366 = vmul.f32 %v327, %v349
      %v367 = vmul.f32 %v328, %v349
      %v368 = vmul.f32 %v329, %v349
      %v369 = vmul.f32 %v330, %v349
      %v370 = vmul.f32 %v331, %v349
      %v371 = vmul.f32 %v332, %v349
      %v372 = vmul.f32 %v333, %v349
      %v373 = vmul.f32 %v334, %v349
      %v374 = vmul.f32 %v335, %v349
      %v375 = vmul.f32 %v336, %v349
      %v376 = vmul.f32 %v337, %v349
      %v377 = vmul.f32 %v338, %v349
      %v378 = vmul.f32 %v339, %v349
      %v379 = vmul.f32 %v340, %v349
      %v380 = vmul.f32 %v341, %v349
      %v381 = vmul.f32 %v342, %v349
      %v382 = vmul.f32 %v343, %v349
      %v383 = vld [vmem:[%s2] sm:$0x1]
      %v385 = vlaneseq
      %v386 = vshrl.u32 %v385, 7
      %v387 = vsub.s32 0, %v386
      %v388 = vrot.slane %v383, %v387
      %v390 = vadd.f32 %v351, %v388
      %v391 = vadd.f32 %v352, %v388
      %v392 = vadd.f32 %v353, %v388
      %v393 = vadd.f32 %v354, %v388
      %v394 = vadd.f32 %v355, %v388
      %v395 = vadd.f32 %v356, %v388
      %v396 = vadd.f32 %v357, %v388
      %v397 = vadd.f32 %v358, %v388
      %v398 = vadd.f32 %v359, %v388
      %v399 = vadd.f32 %v360, %v388
      %v400 = vadd.f32 %v361, %v388
      %v401 = vadd.f32 %v362, %v388
      %v402 = vadd.f32 %v363, %v388
      %v403 = vadd.f32 %v364, %v388
      %v404 = vadd.f32 %v365, %v388
      %v405 = vadd.f32 %v366, %v388
      %v406 = vadd.f32 %v367, %v388
      %v407 = vadd.f32 %v368, %v388
      %v408 = vadd.f32 %v369, %v388
      %v409 = vadd.f32 %v370, %v388
      %v410 = vadd.f32 %v371, %v388
      %v411 = vadd.f32 %v372, %v388
      %v412 = vadd.f32 %v373, %v388
      %v413 = vadd.f32 %v374, %v388
      %v414 = vadd.f32 %v375, %v388
      %v415 = vadd.f32 %v376, %v388
      %v416 = vadd.f32 %v377, %v388
      %v417 = vadd.f32 %v378, %v388
      %v418 = vadd.f32 %v379, %v388
      %v419 = vadd.f32 %v380, %v388
      %v420 = vadd.f32 %v381, %v388
      %v421 = vadd.f32 %v382, %v388
      %v422 = vmax.f32 %v390, 0.0
      %v423 = vmax.f32 %v391, 0.0
      %v424 = vmax.f32 %v392, 0.0
      %v425 = vmax.f32 %v393, 0.0
      %v426 = vmax.f32 %v394, 0.0
      %v427 = vmax.f32 %v395, 0.0
      %v428 = vmax.f32 %v396, 0.0
      %v429 = vmax.f32 %v397, 0.0
      %v430 = vmax.f32 %v398, 0.0
      %v431 = vmax.f32 %v399, 0.0
      %v432 = vmax.f32 %v400, 0.0
      %v433 = vmax.f32 %v401, 0.0
      %v434 = vmax.f32 %v402, 0.0
      %v435 = vmax.f32 %v403, 0.0
      %v436 = vmax.f32 %v404, 0.0
      %v437 = vmax.f32 %v405, 0.0
      %v438 = vmax.f32 %v406, 0.0
      %v439 = vmax.f32 %v407, 0.0
      %v440 = vmax.f32 %v408, 0.0
      %v441 = vmax.f32 %v409, 0.0
      %v442 = vmax.f32 %v410, 0.0
      %v443 = vmax.f32 %v411, 0.0
      %v444 = vmax.f32 %v412, 0.0
      %v445 = vmax.f32 %v413, 0.0
      %v446 = vmax.f32 %v414, 0.0
      %v447 = vmax.f32 %v415, 0.0
      %v448 = vmax.f32 %v416, 0.0
      %v449 = vmax.f32 %v417, 0.0
      %v450 = vmax.f32 %v418, 0.0
      %v451 = vmax.f32 %v419, 0.0
      %v452 = vmax.f32 %v420, 0.0
      %v453 = vmax.f32 %v421, 0.0
      %s454 = scalar_lea.vmem [#allocation2], 24
      %455 = vst [vmem:[%s454 + $0x1] sm:$0xff] %v422
      %456 = vst [vmem:[%s454 + $0x9] sm:$0xff] %v423
      %457 = vst [vmem:[%s454 + $0x19] sm:$0xff] %v424
      %458 = vst [vmem:[%s454 + $0x21] sm:$0xff] %v425
      %459 = vst [vmem:[%s454 + $0x31] sm:$0xff] %v426
      %460 = vst [vmem:[%s454 + $0x39] sm:$0xff] %v427
      %461 = vst [vmem:[%s454 + $0x49] sm:$0xff] %v428
      %462 = vst [vmem:[%s454 + $0x51] sm:$0xff] %v429
      %463 = vst [vmem:[%s454 + $0x61] sm:$0xff] %v430
      %464 = vst [vmem:[%s454 + $0x69] sm:$0xff] %v431
      %465 = vst [vmem:[%s454 + $0x79] sm:$0xff] %v432
      %466 = vst [vmem:[%s454 + $0x81] sm:$0xff] %v433
      %467 = vst [vmem:[%s454 + $0x91] sm:$0xff] %v434
      %468 = vst [vmem:[%s454 + $0x99] sm:$0xff] %v435
      %469 = vst [vmem:[%s454 + $0xa9] sm:$0xff] %v436
      %470 = vst [vmem:[%s454 + $0xb1] sm:$0xff] %v437
      %471 = vst [vmem:[%s454 + $0xc1] sm:$0xff] %v438
      %472 = vst [vmem:[%s454 + $0xc9] sm:$0xff] %v439
      %473 = vst [vmem:[%s454 + $0xd9] sm:$0xff] %v440
      %474 = vst [vmem:[%s454 + $0xe1] sm:$0xff] %v441
      %475 = vst [vmem:[%s454 + $0xf1] sm:$0xff] %v442
      %476 = vst [vmem:[%s454 + $0xf9] sm:$0xff] %v443
      %477 = vst [vmem:[%s454 + $0x109] sm:$0xff] %v444
      %478 = vst [vmem:[%s454 + $0x111] sm:$0xff] %v445
      %479 = vst [vmem:[%s454 + $0x121] sm:$0xff] %v446
      %480 = vst [vmem:[%s454 + $0x129] sm:$0xff] %v447
      %481 = vst [vmem:[%s454 + $0x139] sm:$0xff] %v448
      %482 = vst [vmem:[%s454 + $0x141] sm:$0xff] %v449
      %483 = vst [vmem:[%s454 + $0x151] sm:$0xff] %v450
      %484 = vst [vmem:[%s454 + $0x159] sm:$0xff] %v451
      %485 = vst [vmem:[%s454 + $0x169] sm:$0xff] %v452
      %486 = vst [vmem:[%s454 + $0x171] sm:$0xff] %v453
      %v487 = vld [vmem:[#allocation2] sm:$0xff]
      %v488 = vld [vmem:[#allocation2 + $0x8] sm:$0xff]
      %v489 = vld [vmem:[#allocation2 + $0x18] sm:$0xff]
      %v490 = vld [vmem:[#allocation2 + $0x20] sm:$0xff]
      %v491 = vld [vmem:[#allocation2 + $0x30] sm:$0xff]
      %v492 = vld [vmem:[#allocation2 + $0x38] sm:$0xff]
      %v493 = vld [vmem:[#allocation2 + $0x48] sm:$0xff]
      %v494 = vld [vmem:[#allocation2 + $0x50] sm:$0xff]
      %v495 = vld [vmem:[#allocation2 + $0x60] sm:$0xff]
      %v496 = vld [vmem:[#allocation2 + $0x68] sm:$0xff]
      %v497 = vld [vmem:[#allocation2 + $0x78] sm:$0xff]
      %v498 = vld [vmem:[#allocation2 + $0x80] sm:$0xff]
      %v499 = vld [vmem:[#allocation2 + $0x90] sm:$0xff]
      %v500 = vld [vmem:[#allocation2 + $0x98] sm:$0xff]
      %v501 = vld [vmem:[#allocation2 + $0xa8] sm:$0xff]
      %v502 = vld [vmem:[#allocation2 + $0xb0] sm:$0xff]
      %v503 = vld [vmem:[#allocation2 + $0xc0] sm:$0xff]
      %v504 = vld [vmem:[#allocation2 + $0xc8] sm:$0xff]
      %v505 = vld [vmem:[#allocation2 + $0xd8] sm:$0xff]
      %v506 = vld [vmem:[#allocation2 + $0xe0] sm:$0xff]
      %v507 = vld [vmem:[#allocation2 + $0xf0] sm:$0xff]
      %v508 = vld [vmem:[#allocation2 + $0xf8] sm:$0xff]
      %v509 = vld [vmem:[#allocation2 + $0x108] sm:$0xff]
      %v510 = vld [vmem:[#allocation2 + $0x110] sm:$0xff]
      %v511 = vld [vmem:[#allocation2 + $0x120] sm:$0xff]
      %v512 = vld [vmem:[#allocation2 + $0x128] sm:$0xff]
      %v513 = vld [vmem:[#allocation2 + $0x138] sm:$0xff]
      %v514 = vld [vmem:[#allocation2 + $0x140] sm:$0xff]
      %v515 = vld [vmem:[#allocation2 + $0x150] sm:$0xff]
      %v516 = vld [vmem:[#allocation2 + $0x158] sm:$0xff]
      %v517 = vld [vmem:[#allocation2 + $0x168] sm:$0xff]
      %v518 = vld [vmem:[#allocation2 + $0x170] sm:$0xff]
      %v519 = vpack.c.bf16 %v488, %v487
      %v520 = vpack.c.bf16 %v490, %v489
      %v521 = vpack.c.bf16 %v492, %v491
      %v522 = vpack.c.bf16 %v494, %v493
      %v523 = vpack.c.bf16 %v496, %v495
      %v524 = vpack.c.bf16 %v498, %v497
      %v525 = vpack.c.bf16 %v500, %v499
      %v526 = vpack.c.bf16 %v502, %v501
      %v527 = vpack.c.bf16 %v504, %v503
      %v528 = vpack.c.bf16 %v506, %v505
      %v529 = vpack.c.bf16 %v508, %v507
      %v530 = vpack.c.bf16 %v510, %v509
      %v531 = vpack.c.bf16 %v512, %v511
      %v532 = vpack.c.bf16 %v514, %v513
      %v533 = vpack.c.bf16 %v516, %v515
      %v534 = vpack.c.bf16 %v518, %v517
      %v551 = vunpack.c.l.b16 %v519
      %v552 = vunpack.c.h.b16 %v519
      %v553 = vunpack.c.l.b16 %v520
      %v554 = vunpack.c.h.b16 %v520
      %v555 = vunpack.c.l.b16 %v521
      %v556 = vunpack.c.h.b16 %v521
      %v557 = vunpack.c.l.b16 %v522
      %v558 = vunpack.c.h.b16 %v522
      %v559 = vunpack.c.l.b16 %v523
      %v560 = vunpack.c.h.b16 %v523
      %v561 = vunpack.c.l.b16 %v524
      %v562 = vunpack.c.h.b16 %v524
      %v563 = vunpack.c.l.b16 %v525
      %v564 = vunpack.c.h.b16 %v525
      %v565 = vunpack.c.l.b16 %v526
      %v566 = vunpack.c.h.b16 %v526
      %v567 = vunpack.c.l.b16 %v527
      %v568 = vunpack.c.h.b16 %v527
      %v569 = vunpack.c.l.b16 %v528
      %v570 = vunpack.c.h.b16 %v528
      %v571 = vunpack.c.l.b16 %v529
      %v572 = vunpack.c.h.b16 %v529
      %v573 = vunpack.c.l.b16 %v530
      %v574 = vunpack.c.h.b16 %v530
      %v575 = vunpack.c.l.b16 %v531
      %v576 = vunpack.c.h.b16 %v531
      %v577 = vunpack.c.l.b16 %v532
      %v578 = vunpack.c.h.b16 %v532
      %v579 = vunpack.c.l.b16 %v533
      %v580 = vunpack.c.h.b16 %v533
      %v581 = vunpack.c.l.b16 %v534
      %v582 = vunpack.c.h.b16 %v534
      %v583 = vpack.c.b16 %v551, %v551
      %v584 = vpack.c.b16 %v552, %v552
      %v585 = vpack.c.b16 %v553, %v553
      %v586 = vpack.c.b16 %v554, %v554
      %v587 = vpack.c.b16 %v555, %v555
      %v588 = vpack.c.b16 %v556, %v556
      %v589 = vpack.c.b16 %v557, %v557
      %v590 = vpack.c.b16 %v558, %v558
      %v591 = vpack.c.b16 %v559, %v559
      %v592 = vpack.c.b16 %v560, %v560
      %v593 = vpack.c.b16 %v561, %v561
      %v594 = vpack.c.b16 %v562, %v562
      %v595 = vpack.c.b16 %v563, %v563
      %v596 = vpack.c.b16 %v564, %v564
      %v597 = vpack.c.b16 %v565, %v565
      %v598 = vpack.c.b16 %v566, %v566
      %v599 = vpack.c.b16 %v567, %v567
      %v600 = vpack.c.b16 %v568, %v568
      %v601 = vpack.c.b16 %v569, %v569
      %v602 = vpack.c.b16 %v570, %v570
      %v603 = vpack.c.b16 %v571, %v571
      %v604 = vpack.c.b16 %v572, %v572
      %v605 = vpack.c.b16 %v573, %v573
      %v606 = vpack.c.b16 %v574, %v574
      %v607 = vpack.c.b16 %v575, %v575
      %v608 = vpack.c.b16 %v576, %v576
      %v609 = vpack.c.b16 %v577, %v577
      %v610 = vpack.c.b16 %v578, %v578
      %v611 = vpack.c.b16 %v579, %v579
      %v612 = vpack.c.b16 %v580, %v580
      %v613 = vpack.c.b16 %v581, %v581
      %v614 = vpack.c.b16 %v582, %v582
      %647 = vst [vmem:[#allocation3] sm:$0xf] %v583
      %648 = vst [vmem:[#allocation3 + $0x24] sm:$0xf] %v584
      %649 = vst [vmem:[#allocation3 + $0x48] sm:$0xf] %v585
      %650 = vst [vmem:[#allocation3 + $0x6c] sm:$0xf] %v586
      %651 = vst [vmem:[#allocation3 + $0x90] sm:$0xf] %v587
      %652 = vst [vmem:[#allocation3 + $0xb4] sm:$0xf] %v588
      %653 = vst [vmem:[#allocation3 + $0xd8] sm:$0xf] %v589
      %654 = vst [vmem:[#allocation3 + $0xfc] sm:$0xf] %v590
      %655 = vst [vmem:[#allocation3 + $0x120] sm:$0xf] %v591
      %656 = vst [vmem:[#allocation3 + $0x144] sm:$0xf] %v592
      %657 = vst [vmem:[#allocation3 + $0x168] sm:$0xf] %v593
      %658 = vst [vmem:[#allocation3 + $0x18c] sm:$0xf] %v594
      %659 = vst [vmem:[#allocation3 + $0x1b0] sm:$0xf] %v595
      %660 = vst [vmem:[#allocation3 + $0x1d4] sm:$0xf] %v596
      %661 = vst [vmem:[#allocation3 + $0x1f8] sm:$0xf] %v597
      %662 = vst [vmem:[#allocation3 + $0x21c] sm:$0xf] %v598
      %663 = vst [vmem:[#allocation3 + $0x240] sm:$0xf] %v599
      %664 = vst [vmem:[#allocation3 + $0x264] sm:$0xf] %v600
      %665 = vst [vmem:[#allocation3 + $0x288] sm:$0xf] %v601
      %666 = vst [vmem:[#allocation3 + $0x2ac] sm:$0xf] %v602
      %667 = vst [vmem:[#allocation3 + $0x2d0] sm:$0xf] %v603
      %668 = vst [vmem:[#allocation3 + $0x2f4] sm:$0xf] %v604
      %669 = vst [vmem:[#allocation3 + $0x318] sm:$0xf] %v605
      %670 = vst [vmem:[#allocation3 + $0x33c] sm:$0xf] %v606
      %671 = vst [vmem:[#allocation3 + $0x360] sm:$0xf] %v607
      %672 = vst [vmem:[#allocation3 + $0x384] sm:$0xf] %v608
      %673 = vst [vmem:[#allocation3 + $0x3a8] sm:$0xf] %v609
      %674 = vst [vmem:[#allocation3 + $0x3cc] sm:$0xf] %v610
      %675 = vst [vmem:[#allocation3 + $0x3f0] sm:$0xf] %v611
      %676 = vst [vmem:[#allocation3 + $0x414] sm:$0xf] %v612
      %677 = vst [vmem:[#allocation3 + $0x438] sm:$0xf] %v613
      %678 = vst [vmem:[#allocation3 + $0x45c] sm:$0xf] %v614
      %v679 = vld [vmem:[#allocation2 + $0x1] sm:$0xff]
      %v680 = vld [vmem:[#allocation2 + $0x9] sm:$0xff]
      %v681 = vld [vmem:[#allocation2 + $0x19] sm:$0xff]
      %v682 = vld [vmem:[#allocation2 + $0x21] sm:$0xff]
      %v683 = vld [vmem:[#allocation2 + $0x31] sm:$0xff]
      %v684 = vld [vmem:[#allocation2 + $0x39] sm:$0xff]
      %v685 = vld [vmem:[#allocation2 + $0x49] sm:$0xff]
      %v686 = vld [vmem:[#allocation2 + $0x51] sm:$0xff]
      %v687 = vld [vmem:[#allocation2 + $0x61] sm:$0xff]
      %v688 = vld [vmem:[#allocation2 + $0x69] sm:$0xff]
      %v689 = vld [vmem:[#allocation2 + $0x79] sm:$0xff]
      %v690 = vld [vmem:[#allocation2 + $0x81] sm:$0xff]
      %v691 = vld [vmem:[#allocation2 + $0x91] sm:$0xff]
      %v692 = vld [vmem:[#allocation2 + $0x99] sm:$0xff]
      %v693 = vld [vmem:[#allocation2 + $0xa9] sm:$0xff]
      %v694 = vld [vmem:[#allocation2 + $0xb1] sm:$0xff]
      %v695 = vld [vmem:[#allocation2 + $0xc1] sm:$0xff]
      %v696 = vld [vmem:[#allocation2 + $0xc9] sm:$0xff]
      %v697 = vld [vmem:[#allocation2 + $0xd9] sm:$0xff]
      %v698 = vld [vmem:[#allocation2 + $0xe1] sm:$0xff]
      %v699 = vld [vmem:[#allocation2 + $0xf1] sm:$0xff]
      %v700 = vld [vmem:[#allocation2 + $0xf9] sm:$0xff]
      %v701 = vld [vmem:[#allocation2 + $0x109] sm:$0xff]
      %v702 = vld [vmem:[#allocation2 + $0x111] sm:$0xff]
      %v703 = vld [vmem:[#allocation2 + $0x121] sm:$0xff]
      %v704 = vld [vmem:[#allocation2 + $0x129] sm:$0xff]
      %v705 = vld [vmem:[#allocation2 + $0x139] sm:$0xff]
      %v706 = vld [vmem:[#allocation2 + $0x141] sm:$0xff]
      %v707 = vld [vmem:[#allocation2 + $0x151] sm:$0xff]
      %v708 = vld [vmem:[#allocation2 + $0x159] sm:$0xff]
      %v709 = vld [vmem:[#allocation2 + $0x169] sm:$0xff]
      %v710 = vld [vmem:[#allocation2 + $0x171] sm:$0xff]
      %v711 = vpack.c.bf16 %v680, %v679
      %v712 = vpack.c.bf16 %v682, %v681
      %v713 = vpack.c.bf16 %v684, %v683
      %v714 = vpack.c.bf16 %v686, %v685
      %v715 = vpack.c.bf16 %v688, %v687
      %v716 = vpack.c.bf16 %v690, %v689
      %v717 = vpack.c.bf16 %v692, %v691
      %v718 = vpack.c.bf16 %v694, %v693
      %v719 = vpack.c.bf16 %v696, %v695
      %v720 = vpack.c.bf16 %v698, %v697
      %v721 = vpack.c.bf16 %v700, %v699
      %v722 = vpack.c.bf16 %v702, %v701
      %v723 = vpack.c.bf16 %v704, %v703
      %v724 = vpack.c.bf16 %v706, %v705
      %v725 = vpack.c.bf16 %v708, %v707
      %v726 = vpack.c.bf16 %v710, %v709
      %v743 = vunpack.c.l.b16 %v711
      %v744 = vunpack.c.h.b16 %v711
      %v745 = vunpack.c.l.b16 %v712
      %v746 = vunpack.c.h.b16 %v712
      %v747 = vunpack.c.l.b16 %v713
      %v748 = vunpack.c.h.b16 %v713
      %v749 = vunpack.c.l.b16 %v714
      %v750 = vunpack.c.h.b16 %v714
      %v751 = vunpack.c.l.b16 %v715
      %v752 = vunpack.c.h.b16 %v715
      %v753 = vunpack.c.l.b16 %v716
      %v754 = vunpack.c.h.b16 %v716
      %v755 = vunpack.c.l.b16 %v717
      %v756 = vunpack.c.h.b16 %v717
      %v757 = vunpack.c.l.b16 %v718
      %v758 = vunpack.c.h.b16 %v718
      %v759 = vunpack.c.l.b16 %v719
      %v760 = vunpack.c.h.b16 %v719
      %v761 = vunpack.c.l.b16 %v720
      %v762 = vunpack.c.h.b16 %v720
      %v763 = vunpack.c.l.b16 %v721
      %v764 = vunpack.c.h.b16 %v721
      %v765 = vunpack.c.l.b16 %v722
      %v766 = vunpack.c.h.b16 %v722
      %v767 = vunpack.c.l.b16 %v723
      %v768 = vunpack.c.h.b16 %v723
      %v769 = vunpack.c.l.b16 %v724
      %v770 = vunpack.c.h.b16 %v724
      %v771 = vunpack.c.l.b16 %v725
      %v772 = vunpack.c.h.b16 %v725
      %v773 = vunpack.c.l.b16 %v726
      %v774 = vunpack.c.h.b16 %v726
      %v775 = vpack.c.b16 %v743, %v743
      %v776 = vpack.c.b16 %v744, %v744
      %v777 = vpack.c.b16 %v745, %v745
      %v778 = vpack.c.b16 %v746, %v746
      %v779 = vpack.c.b16 %v747, %v747
      %v780 = vpack.c.b16 %v748, %v748
      %v781 = vpack.c.b16 %v749, %v749
      %v782 = vpack.c.b16 %v750, %v750
      %v783 = vpack.c.b16 %v751, %v751
      %v784 = vpack.c.b16 %v752, %v752
      %v785 = vpack.c.b16 %v753, %v753
      %v786 = vpack.c.b16 %v754, %v754
      %v787 = vpack.c.b16 %v755, %v755
      %v788 = vpack.c.b16 %v756, %v756
      %v789 = vpack.c.b16 %v757, %v757
      %v790 = vpack.c.b16 %v758, %v758
      %v791 = vpack.c.b16 %v759, %v759
      %v792 = vpack.c.b16 %v760, %v760
      %v793 = vpack.c.b16 %v761, %v761
      %v794 = vpack.c.b16 %v762, %v762
      %v795 = vpack.c.b16 %v763, %v763
      %v796 = vpack.c.b16 %v764, %v764
      %v797 = vpack.c.b16 %v765, %v765
      %v798 = vpack.c.b16 %v766, %v766
      %v799 = vpack.c.b16 %v767, %v767
      %v800 = vpack.c.b16 %v768, %v768
      %v801 = vpack.c.b16 %v769, %v769
      %v802 = vpack.c.b16 %v770, %v770
      %v803 = vpack.c.b16 %v771, %v771
      %v804 = vpack.c.b16 %v772, %v772
      %v805 = vpack.c.b16 %v773, %v773
      %v806 = vpack.c.b16 %v774, %v774
      %839 = vst [vmem:[#allocation3 + $0x4] sm:$0xf] %v775
      %840 = vst [vmem:[#allocation3 + $0x28] sm:$0xf] %v776
      %841 = vst [vmem:[#allocation3 + $0x4c] sm:$0xf] %v777
      %842 = vst [vmem:[#allocation3 + $0x70] sm:$0xf] %v778
      %843 = vst [vmem:[#allocation3 + $0x94] sm:$0xf] %v779
      %844 = vst [vmem:[#allocation3 + $0xb8] sm:$0xf] %v780
      %845 = vst [vmem:[#allocation3 + $0xdc] sm:$0xf] %v781
      %846 = vst [vmem:[#allocation3 + $0x100] sm:$0xf] %v782
      %847 = vst [vmem:[#allocation3 + $0x124] sm:$0xf] %v783
      %848 = vst [vmem:[#allocation3 + $0x148] sm:$0xf] %v784
      %849 = vst [vmem:[#allocation3 + $0x16c] sm:$0xf] %v785
      %850 = vst [vmem:[#allocation3 + $0x190] sm:$0xf] %v786
      %851 = vst [vmem:[#allocation3 + $0x1b4] sm:$0xf] %v787
      %852 = vst [vmem:[#allocation3 + $0x1d8] sm:$0xf] %v788
      %853 = vst [vmem:[#allocation3 + $0x1fc] sm:$0xf] %v789
      %854 = vst [vmem:[#allocation3 + $0x220] sm:$0xf] %v790
      %855 = vst [vmem:[#allocation3 + $0x244] sm:$0xf] %v791
      %856 = vst [vmem:[#allocation3 + $0x268] sm:$0xf] %v792
      %857 = vst [vmem:[#allocation3 + $0x28c] sm:$0xf] %v793
      %858 = vst [vmem:[#allocation3 + $0x2b0] sm:$0xf] %v794
      %859 = vst [vmem:[#allocation3 + $0x2d4] sm:$0xf] %v795
      %860 = vst [vmem:[#allocation3 + $0x2f8] sm:$0xf] %v796
      %861 = vst [vmem:[#allocation3 + $0x31c] sm:$0xf] %v797
      %862 = vst [vmem:[#allocation3 + $0x340] sm:$0xf] %v798
      %863 = vst [vmem:[#allocation3 + $0x364] sm:$0xf] %v799
      %864 = vst [vmem:[#allocation3 + $0x388] sm:$0xf] %v800
      %865 = vst [vmem:[#allocation3 + $0x3ac] sm:$0xf] %v801
      %866 = vst [vmem:[#allocation3 + $0x3d0] sm:$0xf] %v802
      %867 = vst [vmem:[#allocation3 + $0x3f4] sm:$0xf] %v803
      %868 = vst [vmem:[#allocation3 + $0x418] sm:$0xf] %v804
      %869 = vst [vmem:[#allocation3 + $0x43c] sm:$0xf] %v805
      %870 = vst [vmem:[#allocation3 + $0x460] sm:$0xf] %v806
      %v871 = vld [vmem:[#allocation2 + $0x2] sm:$0xff]
      %v872 = vld [vmem:[#allocation2 + $0xa] sm:$0xff]
      %v873 = vld [vmem:[#allocation2 + $0x1a] sm:$0xff]
      %v874 = vld [vmem:[#allocation2 + $0x22] sm:$0xff]
      %v875 = vld [vmem:[#allocation2 + $0x32] sm:$0xff]
      %v876 = vld [vmem:[#allocation2 + $0x3a] sm:$0xff]
      %v877 = vld [vmem:[#allocation2 + $0x4a] sm:$0xff]
      %v878 = vld [vmem:[#allocation2 + $0x52] sm:$0xff]
      %v879 = vld [vmem:[#allocation2 + $0x62] sm:$0xff]
      %v880 = vld [vmem:[#allocation2 + $0x6a] sm:$0xff]
      %v881 = vld [vmem:[#allocation2 + $0x7a] sm:$0xff]
      %v882 = vld [vmem:[#allocation2 + $0x82] sm:$0xff]
      %v883 = vld [vmem:[#allocation2 + $0x92] sm:$0xff]
      %v884 = vld [vmem:[#allocation2 + $0x9a] sm:$0xff]
      %v885 = vld [vmem:[#allocation2 + $0xaa] sm:$0xff]
      %v886 = vld [vmem:[#allocation2 + $0xb2] sm:$0xff]
      %v887 = vld [vmem:[#allocation2 + $0xc2] sm:$0xff]
      %v888 = vld [vmem:[#allocation2 + $0xca] sm:$0xff]
      %v889 = vld [vmem:[#allocation2 + $0xda] sm:$0xff]
      %v890 = vld [vmem:[#allocation2 + $0xe2] sm:$0xff]
      %v891 = vld [vmem:[#allocation2 + $0xf2] sm:$0xff]
      %v892 = vld [vmem:[#allocation2 + $0xfa] sm:$0xff]
      %v893 = vld [vmem:[#allocation2 + $0x10a] sm:$0xff]
      %v894 = vld [vmem:[#allocation2 + $0x112] sm:$0xff]
      %v895 = vld [vmem:[#allocation2 + $0x122] sm:$0xff]
      %v896 = vld [vmem:[#allocation2 + $0x12a] sm:$0xff]
      %v897 = vld [vmem:[#allocation2 + $0x13a] sm:$0xff]
      %v898 = vld [vmem:[#allocation2 + $0x142] sm:$0xff]
      %v899 = vld [vmem:[#allocation2 + $0x152] sm:$0xff]
      %v900 = vld [vmem:[#allocation2 + $0x15a] sm:$0xff]
      %v901 = vld [vmem:[#allocation2 + $0x16a] sm:$0xff]
      %v902 = vld [vmem:[#allocation2 + $0x172] sm:$0xff]
      %v903 = vpack.c.bf16 %v872, %v871
      %v904 = vpack.c.bf16 %v874, %v873
      %v905 = vpack.c.bf16 %v876, %v875
      %v906 = vpack.c.bf16 %v878, %v877
      %v907 = vpack.c.bf16 %v880, %v879
      %v908 = vpack.c.bf16 %v882, %v881
      %v909 = vpack.c.bf16 %v884, %v883
      %v910 = vpack.c.bf16 %v886, %v885
      %v911 = vpack.c.bf16 %v888, %v887
      %v912 = vpack.c.bf16 %v890, %v889
      %v913 = vpack.c.bf16 %v892, %v891
      %v914 = vpack.c.bf16 %v894, %v893
      %v915 = vpack.c.bf16 %v896, %v895
      %v916 = vpack.c.bf16 %v898, %v897
      %v917 = vpack.c.bf16 %v900, %v899
      %v918 = vpack.c.bf16 %v902, %v901
      %v935 = vunpack.c.l.b16 %v903
      %v936 = vunpack.c.h.b16 %v903
      %v937 = vunpack.c.l.b16 %v904
      %v938 = vunpack.c.h.b16 %v904
      %v939 = vunpack.c.l.b16 %v905
      %v940 = vunpack.c.h.b16 %v905
      %v941 = vunpack.c.l.b16 %v906
      %v942 = vunpack.c.h.b16 %v906
      %v943 = vunpack.c.l.b16 %v907
      %v944 = vunpack.c.h.b16 %v907
      %v945 = vunpack.c.l.b16 %v908
      %v946 = vunpack.c.h.b16 %v908
      %v947 = vunpack.c.l.b16 %v909
      %v948 = vunpack.c.h.b16 %v909
      %v949 = vunpack.c.l.b16 %v910
      %v950 = vunpack.c.h.b16 %v910
      %v951 = vunpack.c.l.b16 %v911
      %v952 = vunpack.c.h.b16 %v911
      %v953 = vunpack.c.l.b16 %v912
      %v954 = vunpack.c.h.b16 %v912
      %v955 = vunpack.c.l.b16 %v913
      %v956 = vunpack.c.h.b16 %v913
      %v957 = vunpack.c.l.b16 %v914
      %v958 = vunpack.c.h.b16 %v914
      %v959 = vunpack.c.l.b16 %v915
      %v960 = vunpack.c.h.b16 %v915
      %v961 = vunpack.c.l.b16 %v916
      %v962 = vunpack.c.h.b16 %v916
      %v963 = vunpack.c.l.b16 %v917
      %v964 = vunpack.c.h.b16 %v917
      %v965 = vunpack.c.l.b16 %v918
      %v966 = vunpack.c.h.b16 %v918
      %v967 = vpack.c.b16 %v935, %v935
      %v968 = vpack.c.b16 %v936, %v936
      %v969 = vpack.c.b16 %v937, %v937
      %v970 = vpack.c.b16 %v938, %v938
      %v971 = vpack.c.b16 %v939, %v939
      %v972 = vpack.c.b16 %v940, %v940
      %v973 = vpack.c.b16 %v941, %v941
      %v974 = vpack.c.b16 %v942, %v942
      %v975 = vpack.c.b16 %v943, %v943
      %v976 = vpack.c.b16 %v944, %v944
      %v977 = vpack.c.b16 %v945, %v945
      %v978 = vpack.c.b16 %v946, %v946
      %v979 = vpack.c.b16 %v947, %v947
      %v980 = vpack.c.b16 %v948, %v948
      %v981 = vpack.c.b16 %v949, %v949
      %v982 = vpack.c.b16 %v950, %v950
      %v983 = vpack.c.b16 %v951, %v951
      %v984 = vpack.c.b16 %v952, %v952
      %v985 = vpack.c.b16 %v953, %v953
      %v986 = vpack.c.b16 %v954, %v954
      %v987 = vpack.c.b16 %v955, %v955
      %v988 = vpack.c.b16 %v956, %v956
      %v989 = vpack.c.b16 %v957, %v957
      %v990 = vpack.c.b16 %v958, %v958
      %v991 = vpack.c.b16 %v959, %v959
      %v992 = vpack.c.b16 %v960, %v960
      %v993 = vpack.c.b16 %v961, %v961
      %v994 = vpack.c.b16 %v962, %v962
      %v995 = vpack.c.b16 %v963, %v963
      %v996 = vpack.c.b16 %v964, %v964
      %v997 = vpack.c.b16 %v965, %v965
      %v998 = vpack.c.b16 %v966, %v966
      %1031 = vst [vmem:[#allocation3 + $0x8] sm:$0xf] %v967
      %1032 = vst [vmem:[#allocation3 + $0x2c] sm:$0xf] %v968
      %1033 = vst [vmem:[#allocation3 + $0x50] sm:$0xf] %v969
      %1034 = vst [vmem:[#allocation3 + $0x74] sm:$0xf] %v970
      %1035 = vst [vmem:[#allocation3 + $0x98] sm:$0xf] %v971
      %1036 = vst [vmem:[#allocation3 + $0xbc] sm:$0xf] %v972
      %1037 = vst [vmem:[#allocation3 + $0xe0] sm:$0xf] %v973
      %1038 = vst [vmem:[#allocation3 + $0x104] sm:$0xf] %v974
      %1039 = vst [vmem:[#allocation3 + $0x128] sm:$0xf] %v975
      %1040 = vst [vmem:[#allocation3 + $0x14c] sm:$0xf] %v976
      %1041 = vst [vmem:[#allocation3 + $0x170] sm:$0xf] %v977
      %1042 = vst [vmem:[#allocation3 + $0x194] sm:$0xf] %v978
      %1043 = vst [vmem:[#allocation3 + $0x1b8] sm:$0xf] %v979
      %1044 = vst [vmem:[#allocation3 + $0x1dc] sm:$0xf] %v980
      %1045 = vst [vmem:[#allocation3 + $0x200] sm:$0xf] %v981
      %1046 = vst [vmem:[#allocation3 + $0x224] sm:$0xf] %v982
      %1047 = vst [vmem:[#allocation3 + $0x248] sm:$0xf] %v983
      %1048 = vst [vmem:[#allocation3 + $0x26c] sm:$0xf] %v984
      %1049 = vst [vmem:[#allocation3 + $0x290] sm:$0xf] %v985
      %1050 = vst [vmem:[#allocation3 + $0x2b4] sm:$0xf] %v986
      %1051 = vst [vmem:[#allocation3 + $0x2d8] sm:$0xf] %v987
      %1052 = vst [vmem:[#allocation3 + $0x2fc] sm:$0xf] %v988
      %1053 = vst [vmem:[#allocation3 + $0x320] sm:$0xf] %v989
      %1054 = vst [vmem:[#allocation3 + $0x344] sm:$0xf] %v990
      %1055 = vst [vmem:[#allocation3 + $0x368] sm:$0xf] %v991
      %1056 = vst [vmem:[#allocation3 + $0x38c] sm:$0xf] %v992
      %1057 = vst [vmem:[#allocation3 + $0x3b0] sm:$0xf] %v993
      %1058 = vst [vmem:[#allocation3 + $0x3d4] sm:$0xf] %v994
      %1059 = vst [vmem:[#allocation3 + $0x3f8] sm:$0xf] %v995
      %1060 = vst [vmem:[#allocation3 + $0x41c] sm:$0xf] %v996
      %1061 = vst [vmem:[#allocation3 + $0x440] sm:$0xf] %v997
      %1062 = vst [vmem:[#allocation3 + $0x464] sm:$0xf] %v998
      %v1063 = vld [vmem:[%s454] sm:$0xff]
      %v1064 = vld [vmem:[%s454 + $0x8] sm:$0xff]
      %v1065 = vld [vmem:[%s454 + $0x18] sm:$0xff]
      %v1066 = vld [vmem:[%s454 + $0x20] sm:$0xff]
      %v1067 = vld [vmem:[%s454 + $0x30] sm:$0xff]
      %v1068 = vld [vmem:[%s454 + $0x38] sm:$0xff]
      %v1069 = vld [vmem:[%s454 + $0x48] sm:$0xff]
      %v1070 = vld [vmem:[%s454 + $0x50] sm:$0xff]
      %v1071 = vld [vmem:[%s454 + $0x60] sm:$0xff]
      %v1072 = vld [vmem:[%s454 + $0x68] sm:$0xff]
      %v1073 = vld [vmem:[%s454 + $0x78] sm:$0xff]
      %v1074 = vld [vmem:[%s454 + $0x80] sm:$0xff]
      %v1075 = vld [vmem:[%s454 + $0x90] sm:$0xff]
      %v1076 = vld [vmem:[%s454 + $0x98] sm:$0xff]
      %v1077 = vld [vmem:[%s454 + $0xa8] sm:$0xff]
      %v1078 = vld [vmem:[%s454 + $0xb0] sm:$0xff]
      %v1079 = vld [vmem:[%s454 + $0xc0] sm:$0xff]
      %v1080 = vld [vmem:[%s454 + $0xc8] sm:$0xff]
      %v1081 = vld [vmem:[%s454 + $0xd8] sm:$0xff]
      %v1082 = vld [vmem:[%s454 + $0xe0] sm:$0xff]
      %v1083 = vld [vmem:[%s454 + $0xf0] sm:$0xff]
      %v1084 = vld [vmem:[%s454 + $0xf8] sm:$0xff]
      %v1085 = vld [vmem:[%s454 + $0x108] sm:$0xff]
      %v1086 = vld [vmem:[%s454 + $0x110] sm:$0xff]
      %v1087 = vld [vmem:[%s454 + $0x120] sm:$0xff]
      %v1088 = vld [vmem:[%s454 + $0x128] sm:$0xff]
      %v1089 = vld [vmem:[%s454 + $0x138] sm:$0xff]
      %v1090 = vld [vmem:[%s454 + $0x140] sm:$0xff]
      %v1091 = vld [vmem:[%s454 + $0x150] sm:$0xff]
      %v1092 = vld [vmem:[%s454 + $0x158] sm:$0xff]
      %v1093 = vld [vmem:[%s454 + $0x168] sm:$0xff]
      %v1094 = vld [vmem:[%s454 + $0x170] sm:$0xff]
      %v1095 = vpack.c.bf16 %v1064, %v1063
      %v1096 = vpack.c.bf16 %v1066, %v1065
      %v1097 = vpack.c.bf16 %v1068, %v1067
      %v1098 = vpack.c.bf16 %v1070, %v1069
      %v1099 = vpack.c.bf16 %v1072, %v1071
      %v1100 = vpack.c.bf16 %v1074, %v1073
      %v1101 = vpack.c.bf16 %v1076, %v1075
      %v1102 = vpack.c.bf16 %v1078, %v1077
      %v1103 = vpack.c.bf16 %v1080, %v1079
      %v1104 = vpack.c.bf16 %v1082, %v1081
      %v1105 = vpack.c.bf16 %v1084, %v1083
      %v1106 = vpack.c.bf16 %v1086, %v1085
      %v1107 = vpack.c.bf16 %v1088, %v1087
      %v1108 = vpack.c.bf16 %v1090, %v1089
      %v1109 = vpack.c.bf16 %v1092, %v1091
      %v1110 = vpack.c.bf16 %v1094, %v1093
      %v1127 = vunpack.c.l.b16 %v1095
      %v1128 = vunpack.c.h.b16 %v1095
      %v1129 = vunpack.c.l.b16 %v1096
      %v1130 = vunpack.c.h.b16 %v1096
      %v1131 = vunpack.c.l.b16 %v1097
      %v1132 = vunpack.c.h.b16 %v1097
      %v1133 = vunpack.c.l.b16 %v1098
      %v1134 = vunpack.c.h.b16 %v1098
      %v1135 = vunpack.c.l.b16 %v1099
      %v1136 = vunpack.c.h.b16 %v1099
      %v1137 = vunpack.c.l.b16 %v1100
      %v1138 = vunpack.c.h.b16 %v1100
      %v1139 = vunpack.c.l.b16 %v1101
      %v1140 = vunpack.c.h.b16 %v1101
      %v1141 = vunpack.c.l.b16 %v1102
      %v1142 = vunpack.c.h.b16 %v1102
      %v1143 = vunpack.c.l.b16 %v1103
      %v1144 = vunpack.c.h.b16 %v1103
      %v1145 = vunpack.c.l.b16 %v1104
      %v1146 = vunpack.c.h.b16 %v1104
      %v1147 = vunpack.c.l.b16 %v1105
      %v1148 = vunpack.c.h.b16 %v1105
      %v1149 = vunpack.c.l.b16 %v1106
      %v1150 = vunpack.c.h.b16 %v1106
      %v1151 = vunpack.c.l.b16 %v1107
      %v1152 = vunpack.c.h.b16 %v1107
      %v1153 = vunpack.c.l.b16 %v1108
      %v1154 = vunpack.c.h.b16 %v1108
      %v1155 = vunpack.c.l.b16 %v1109
      %v1156 = vunpack.c.h.b16 %v1109
      %v1157 = vunpack.c.l.b16 %v1110
      %v1158 = vunpack.c.h.b16 %v1110
      %v1159 = vpack.c.b16 %v1127, %v1127
      %v1160 = vpack.c.b16 %v1128, %v1128
      %v1161 = vpack.c.b16 %v1129, %v1129
      %v1162 = vpack.c.b16 %v1130, %v1130
      %v1163 = vpack.c.b16 %v1131, %v1131
      %v1164 = vpack.c.b16 %v1132, %v1132
      %v1165 = vpack.c.b16 %v1133, %v1133
      %v1166 = vpack.c.b16 %v1134, %v1134
      %v1167 = vpack.c.b16 %v1135, %v1135
      %v1168 = vpack.c.b16 %v1136, %v1136
      %v1169 = vpack.c.b16 %v1137, %v1137
      %v1170 = vpack.c.b16 %v1138, %v1138
      %v1171 = vpack.c.b16 %v1139, %v1139
      %v1172 = vpack.c.b16 %v1140, %v1140
      %v1173 = vpack.c.b16 %v1141, %v1141
      %v1174 = vpack.c.b16 %v1142, %v1142
      %v1175 = vpack.c.b16 %v1143, %v1143
      %v1176 = vpack.c.b16 %v1144, %v1144
      %v1177 = vpack.c.b16 %v1145, %v1145
      %v1178 = vpack.c.b16 %v1146, %v1146
      %v1179 = vpack.c.b16 %v1147, %v1147
      %v1180 = vpack.c.b16 %v1148, %v1148
      %v1181 = vpack.c.b16 %v1149, %v1149
      %v1182 = vpack.c.b16 %v1150, %v1150
      %v1183 = vpack.c.b16 %v1151, %v1151
      %v1184 = vpack.c.b16 %v1152, %v1152
      %v1185 = vpack.c.b16 %v1153, %v1153
      %v1186 = vpack.c.b16 %v1154, %v1154
      %v1187 = vpack.c.b16 %v1155, %v1155
      %v1188 = vpack.c.b16 %v1156, %v1156
      %v1189 = vpack.c.b16 %v1157, %v1157
      %v1190 = vpack.c.b16 %v1158, %v1158
      %1223 = vst [vmem:[#allocation3 + $0xc] sm:$0xf] %v1159
      %1224 = vst [vmem:[#allocation3 + $0x30] sm:$0xf] %v1160
      %1225 = vst [vmem:[#allocation3 + $0x54] sm:$0xf] %v1161
      %1226 = vst [vmem:[#allocation3 + $0x78] sm:$0xf] %v1162
      %1227 = vst [vmem:[#allocation3 + $0x9c] sm:$0xf] %v1163
      %1228 = vst [vmem:[#allocation3 + $0xc0] sm:$0xf] %v1164
      %1229 = vst [vmem:[#allocation3 + $0xe4] sm:$0xf] %v1165
      %1230 = vst [vmem:[#allocation3 + $0x108] sm:$0xf] %v1166
      %1231 = vst [vmem:[#allocation3 + $0x12c] sm:$0xf] %v1167
      %1232 = vst [vmem:[#allocation3 + $0x150] sm:$0xf] %v1168
      %1233 = vst [vmem:[#allocation3 + $0x174] sm:$0xf] %v1169
      %1234 = vst [vmem:[#allocation3 + $0x198] sm:$0xf] %v1170
      %1235 = vst [vmem:[#allocation3 + $0x1bc] sm:$0xf] %v1171
      %1236 = vst [vmem:[#allocation3 + $0x1e0] sm:$0xf] %v1172
      %1237 = vst [vmem:[#allocation3 + $0x204] sm:$0xf] %v1173
      %1238 = vst [vmem:[#allocation3 + $0x228] sm:$0xf] %v1174
      %1239 = vst [vmem:[#allocation3 + $0x24c] sm:$0xf] %v1175
      %1240 = vst [vmem:[#allocation3 + $0x270] sm:$0xf] %v1176
      %1241 = vst [vmem:[#allocation3 + $0x294] sm:$0xf] %v1177
      %1242 = vst [vmem:[#allocation3 + $0x2b8] sm:$0xf] %v1178
      %1243 = vst [vmem:[#allocation3 + $0x2dc] sm:$0xf] %v1179
      %1244 = vst [vmem:[#allocation3 + $0x300] sm:$0xf] %v1180
      %1245 = vst [vmem:[#allocation3 + $0x324] sm:$0xf] %v1181
      %1246 = vst [vmem:[#allocation3 + $0x348] sm:$0xf] %v1182
      %1247 = vst [vmem:[#allocation3 + $0x36c] sm:$0xf] %v1183
      %1248 = vst [vmem:[#allocation3 + $0x390] sm:$0xf] %v1184
      %1249 = vst [vmem:[#allocation3 + $0x3b4] sm:$0xf] %v1185
      %1250 = vst [vmem:[#allocation3 + $0x3d8] sm:$0xf] %v1186
      %1251 = vst [vmem:[#allocation3 + $0x3fc] sm:$0xf] %v1187
      %1252 = vst [vmem:[#allocation3 + $0x420] sm:$0xf] %v1188
      %1253 = vst [vmem:[#allocation3 + $0x444] sm:$0xf] %v1189
      %1254 = vst [vmem:[#allocation3 + $0x468] sm:$0xf] %v1190
      %v1255 = vld [vmem:[%s454 + $0x1] sm:$0xff]
      %v1256 = vld [vmem:[%s454 + $0x9] sm:$0xff]
      %v1257 = vld [vmem:[%s454 + $0x19] sm:$0xff]
      %v1258 = vld [vmem:[%s454 + $0x21] sm:$0xff]
      %v1259 = vld [vmem:[%s454 + $0x31] sm:$0xff]
      %v1260 = vld [vmem:[%s454 + $0x39] sm:$0xff]
      %v1261 = vld [vmem:[%s454 + $0x49] sm:$0xff]
      %v1262 = vld [vmem:[%s454 + $0x51] sm:$0xff]
      %v1263 = vld [vmem:[%s454 + $0x61] sm:$0xff]
      %v1264 = vld [vmem:[%s454 + $0x69] sm:$0xff]
      %v1265 = vld [vmem:[%s454 + $0x79] sm:$0xff]
      %v1266 = vld [vmem:[%s454 + $0x81] sm:$0xff]
      %v1267 = vld [vmem:[%s454 + $0x91] sm:$0xff]
      %v1268 = vld [vmem:[%s454 + $0x99] sm:$0xff]
      %v1269 = vld [vmem:[%s454 + $0xa9] sm:$0xff]
      %v1270 = vld [vmem:[%s454 + $0xb1] sm:$0xff]
      %v1271 = vld [vmem:[%s454 + $0xc1] sm:$0xff]
      %v1272 = vld [vmem:[%s454 + $0xc9] sm:$0xff]
      %v1273 = vld [vmem:[%s454 + $0xd9] sm:$0xff]
      %v1274 = vld [vmem:[%s454 + $0xe1] sm:$0xff]
      %v1275 = vld [vmem:[%s454 + $0xf1] sm:$0xff]
      %v1276 = vld [vmem:[%s454 + $0xf9] sm:$0xff]
      %v1277 = vld [vmem:[%s454 + $0x109] sm:$0xff]
      %v1278 = vld [vmem:[%s454 + $0x111] sm:$0xff]
      %v1279 = vld [vmem:[%s454 + $0x121] sm:$0xff]
      %v1280 = vld [vmem:[%s454 + $0x129] sm:$0xff]
      %v1281 = vld [vmem:[%s454 + $0x139] sm:$0xff]
      %v1282 = vld [vmem:[%s454 + $0x141] sm:$0xff]
      %v1283 = vld [vmem:[%s454 + $0x151] sm:$0xff]
      %v1284 = vld [vmem:[%s454 + $0x159] sm:$0xff]
      %v1285 = vld [vmem:[%s454 + $0x169] sm:$0xff]
      %v1286 = vld [vmem:[%s454 + $0x171] sm:$0xff]
      %v1287 = vpack.c.bf16 %v1256, %v1255
      %v1288 = vpack.c.bf16 %v1258, %v1257
      %v1289 = vpack.c.bf16 %v1260, %v1259
      %v1290 = vpack.c.bf16 %v1262, %v1261
      %v1291 = vpack.c.bf16 %v1264, %v1263
      %v1292 = vpack.c.bf16 %v1266, %v1265
      %v1293 = vpack.c.bf16 %v1268, %v1267
      %v1294 = vpack.c.bf16 %v1270, %v1269
      %v1295 = vpack.c.bf16 %v1272, %v1271
      %v1296 = vpack.c.bf16 %v1274, %v1273
      %v1297 = vpack.c.bf16 %v1276, %v1275
      %v1298 = vpack.c.bf16 %v1278, %v1277
      %v1299 = vpack.c.bf16 %v1280, %v1279
      %v1300 = vpack.c.bf16 %v1282, %v1281
      %v1301 = vpack.c.bf16 %v1284, %v1283
      %v1302 = vpack.c.bf16 %v1286, %v1285
      %v1319 = vunpack.c.l.b16 %v1287
      %v1320 = vunpack.c.h.b16 %v1287
      %v1321 = vunpack.c.l.b16 %v1288
      %v1322 = vunpack.c.h.b16 %v1288
      %v1323 = vunpack.c.l.b16 %v1289
      %v1324 = vunpack.c.h.b16 %v1289
      %v1325 = vunpack.c.l.b16 %v1290
      %v1326 = vunpack.c.h.b16 %v1290
      %v1327 = vunpack.c.l.b16 %v1291
      %v1328 = vunpack.c.h.b16 %v1291
      %v1329 = vunpack.c.l.b16 %v1292
      %v1330 = vunpack.c.h.b16 %v1292
      %v1331 = vunpack.c.l.b16 %v1293
      %v1332 = vunpack.c.h.b16 %v1293
      %v1333 = vunpack.c.l.b16 %v1294
      %v1334 = vunpack.c.h.b16 %v1294
      %v1335 = vunpack.c.l.b16 %v1295
      %v1336 = vunpack.c.h.b16 %v1295
      %v1337 = vunpack.c.l.b16 %v1296
      %v1338 = vunpack.c.h.b16 %v1296
      %v1339 = vunpack.c.l.b16 %v1297
      %v1340 = vunpack.c.h.b16 %v1297
      %v1341 = vunpack.c.l.b16 %v1298
      %v1342 = vunpack.c.h.b16 %v1298
      %v1343 = vunpack.c.l.b16 %v1299
      %v1344 = vunpack.c.h.b16 %v1299
      %v1345 = vunpack.c.l.b16 %v1300
      %v1346 = vunpack.c.h.b16 %v1300
      %v1347 = vunpack.c.l.b16 %v1301
      %v1348 = vunpack.c.h.b16 %v1301
      %v1349 = vunpack.c.l.b16 %v1302
      %v1350 = vunpack.c.h.b16 %v1302
      %v1351 = vpack.c.b16 %v1319, %v1319
      %v1352 = vpack.c.b16 %v1320, %v1320
      %v1353 = vpack.c.b16 %v1321, %v1321
      %v1354 = vpack.c.b16 %v1322, %v1322
      %v1355 = vpack.c.b16 %v1323, %v1323
      %v1356 = vpack.c.b16 %v1324, %v1324
      %v1357 = vpack.c.b16 %v1325, %v1325
      %v1358 = vpack.c.b16 %v1326, %v1326
      %v1359 = vpack.c.b16 %v1327, %v1327
      %v1360 = vpack.c.b16 %v1328, %v1328
      %v1361 = vpack.c.b16 %v1329, %v1329
      %v1362 = vpack.c.b16 %v1330, %v1330
      %v1363 = vpack.c.b16 %v1331, %v1331
      %v1364 = vpack.c.b16 %v1332, %v1332
      %v1365 = vpack.c.b16 %v1333, %v1333
      %v1366 = vpack.c.b16 %v1334, %v1334
      %v1367 = vpack.c.b16 %v1335, %v1335
      %v1368 = vpack.c.b16 %v1336, %v1336
      %v1369 = vpack.c.b16 %v1337, %v1337
      %v1370 = vpack.c.b16 %v1338, %v1338
      %v1371 = vpack.c.b16 %v1339, %v1339
      %v1372 = vpack.c.b16 %v1340, %v1340
      %v1373 = vpack.c.b16 %v1341, %v1341
      %v1374 = vpack.c.b16 %v1342, %v1342
      %v1375 = vpack.c.b16 %v1343, %v1343
      %v1376 = vpack.c.b16 %v1344, %v1344
      %v1377 = vpack.c.b16 %v1345, %v1345
      %v1378 = vpack.c.b16 %v1346, %v1346
      %v1379 = vpack.c.b16 %v1347, %v1347
      %v1380 = vpack.c.b16 %v1348, %v1348
      %v1381 = vpack.c.b16 %v1349, %v1349
      %v1382 = vpack.c.b16 %v1350, %v1350
      %1415 = vst [vmem:[#allocation3 + $0x10] sm:$0xf] %v1351
      %1416 = vst [vmem:[#allocation3 + $0x34] sm:$0xf] %v1352
      %1417 = vst [vmem:[#allocation3 + $0x58] sm:$0xf] %v1353
      %1418 = vst [vmem:[#allocation3 + $0x7c] sm:$0xf] %v1354
      %1419 = vst [vmem:[#allocation3 + $0xa0] sm:$0xf] %v1355
      %1420 = vst [vmem:[#allocation3 + $0xc4] sm:$0xf] %v1356
      %1421 = vst [vmem:[#allocation3 + $0xe8] sm:$0xf] %v1357
      %1422 = vst [vmem:[#allocation3 + $0x10c] sm:$0xf] %v1358
      %1423 = vst [vmem:[#allocation3 + $0x130] sm:$0xf] %v1359
      %1424 = vst [vmem:[#allocation3 + $0x154] sm:$0xf] %v1360
      %1425 = vst [vmem:[#allocation3 + $0x178] sm:$0xf] %v1361
      %1426 = vst [vmem:[#allocation3 + $0x19c] sm:$0xf] %v1362
      %1427 = vst [vmem:[#allocation3 + $0x1c0] sm:$0xf] %v1363
      %1428 = vst [vmem:[#allocation3 + $0x1e4] sm:$0xf] %v1364
      %1429 = vst [vmem:[#allocation3 + $0x208] sm:$0xf] %v1365
      %1430 = vst [vmem:[#allocation3 + $0x22c] sm:$0xf] %v1366
      %1431 = vst [vmem:[#allocation3 + $0x250] sm:$0xf] %v1367
      %1432 = vst [vmem:[#allocation3 + $0x274] sm:$0xf] %v1368
      %1433 = vst [vmem:[#allocation3 + $0x298] sm:$0xf] %v1369
      %1434 = vst [vmem:[#allocation3 + $0x2bc] sm:$0xf] %v1370
      %1435 = vst [vmem:[#allocation3 + $0x2e0] sm:$0xf] %v1371
      %1436 = vst [vmem:[#allocation3 + $0x304] sm:$0xf] %v1372
      %1437 = vst [vmem:[#allocation3 + $0x328] sm:$0xf] %v1373
      %1438 = vst [vmem:[#allocation3 + $0x34c] sm:$0xf] %v1374
      %1439 = vst [vmem:[#allocation3 + $0x370] sm:$0xf] %v1375
      %1440 = vst [vmem:[#allocation3 + $0x394] sm:$0xf] %v1376
      %1441 = vst [vmem:[#allocation3 + $0x3b8] sm:$0xf] %v1377
      %1442 = vst [vmem:[#allocation3 + $0x3dc] sm:$0xf] %v1378
      %1443 = vst [vmem:[#allocation3 + $0x400] sm:$0xf] %v1379
      %1444 = vst [vmem:[#allocation3 + $0x424] sm:$0xf] %v1380
      %1445 = vst [vmem:[#allocation3 + $0x448] sm:$0xf] %v1381
      %1446 = vst [vmem:[#allocation3 + $0x46c] sm:$0xf] %v1382
      %v1447 = vld [vmem:[%s454 + $0x2] sm:$0xff]
      %v1448 = vld [vmem:[%s454 + $0xa] sm:$0xff]
      %v1449 = vld [vmem:[%s454 + $0x1a] sm:$0xff]
      %v1450 = vld [vmem:[%s454 + $0x22] sm:$0xff]
      %v1451 = vld [vmem:[%s454 + $0x32] sm:$0xff]
      %v1452 = vld [vmem:[%s454 + $0x3a] sm:$0xff]
      %v1453 = vld [vmem:[%s454 + $0x4a] sm:$0xff]
      %v1454 = vld [vmem:[%s454 + $0x52] sm:$0xff]
      %v1455 = vld [vmem:[%s454 + $0x62] sm:$0xff]
      %v1456 = vld [vmem:[%s454 + $0x6a] sm:$0xff]
      %v1457 = vld [vmem:[%s454 + $0x7a] sm:$0xff]
      %v1458 = vld [vmem:[%s454 + $0x82] sm:$0xff]
      %v1459 = vld [vmem:[%s454 + $0x92] sm:$0xff]
      %v1460 = vld [vmem:[%s454 + $0x9a] sm:$0xff]
      %v1461 = vld [vmem:[%s454 + $0xaa] sm:$0xff]
      %v1462 = vld [vmem:[%s454 + $0xb2] sm:$0xff]
      %v1463 = vld [vmem:[%s454 + $0xc2] sm:$0xff]
      %v1464 = vld [vmem:[%s454 + $0xca] sm:$0xff]
      %v1465 = vld [vmem:[%s454 + $0xda] sm:$0xff]
      %v1466 = vld [vmem:[%s454 + $0xe2] sm:$0xff]
      %v1467 = vld [vmem:[%s454 + $0xf2] sm:$0xff]
      %v1468 = vld [vmem:[%s454 + $0xfa] sm:$0xff]
      %v1469 = vld [vmem:[%s454 + $0x10a] sm:$0xff]
      %v1470 = vld [vmem:[%s454 + $0x112] sm:$0xff]
      %v1471 = vld [vmem:[%s454 + $0x122] sm:$0xff]
      %v1472 = vld [vmem:[%s454 + $0x12a] sm:$0xff]
      %v1473 = vld [vmem:[%s454 + $0x13a] sm:$0xff]
      %v1474 = vld [vmem:[%s454 + $0x142] sm:$0xff]
      %v1475 = vld [vmem:[%s454 + $0x152] sm:$0xff]
      %v1476 = vld [vmem:[%s454 + $0x15a] sm:$0xff]
      %v1477 = vld [vmem:[%s454 + $0x16a] sm:$0xff]
      %v1478 = vld [vmem:[%s454 + $0x172] sm:$0xff]
      %v1479 = vpack.c.bf16 %v1448, %v1447
      %v1480 = vpack.c.bf16 %v1450, %v1449
      %v1481 = vpack.c.bf16 %v1452, %v1451
      %v1482 = vpack.c.bf16 %v1454, %v1453
      %v1483 = vpack.c.bf16 %v1456, %v1455
      %v1484 = vpack.c.bf16 %v1458, %v1457
      %v1485 = vpack.c.bf16 %v1460, %v1459
      %v1486 = vpack.c.bf16 %v1462, %v1461
      %v1487 = vpack.c.bf16 %v1464, %v1463
      %v1488 = vpack.c.bf16 %v1466, %v1465
      %v1489 = vpack.c.bf16 %v1468, %v1467
      %v1490 = vpack.c.bf16 %v1470, %v1469
      %v1491 = vpack.c.bf16 %v1472, %v1471
      %v1492 = vpack.c.bf16 %v1474, %v1473
      %v1493 = vpack.c.bf16 %v1476, %v1475
      %v1494 = vpack.c.bf16 %v1478, %v1477
      %v1511 = vunpack.c.l.b16 %v1479
      %v1512 = vunpack.c.h.b16 %v1479
      %v1513 = vunpack.c.l.b16 %v1480
      %v1514 = vunpack.c.h.b16 %v1480
      %v1515 = vunpack.c.l.b16 %v1481
      %v1516 = vunpack.c.h.b16 %v1481
      %v1517 = vunpack.c.l.b16 %v1482
      %v1518 = vunpack.c.h.b16 %v1482
      %v1519 = vunpack.c.l.b16 %v1483
      %v1520 = vunpack.c.h.b16 %v1483
      %v1521 = vunpack.c.l.b16 %v1484
      %v1522 = vunpack.c.h.b16 %v1484
      %v1523 = vunpack.c.l.b16 %v1485
      %v1524 = vunpack.c.h.b16 %v1485
      %v1525 = vunpack.c.l.b16 %v1486
      %v1526 = vunpack.c.h.b16 %v1486
      %v1527 = vunpack.c.l.b16 %v1487
      %v1528 = vunpack.c.h.b16 %v1487
      %v1529 = vunpack.c.l.b16 %v1488
      %v1530 = vunpack.c.h.b16 %v1488
      %v1531 = vunpack.c.l.b16 %v1489
      %v1532 = vunpack.c.h.b16 %v1489
      %v1533 = vunpack.c.l.b16 %v1490
      %v1534 = vunpack.c.h.b16 %v1490
      %v1535 = vunpack.c.l.b16 %v1491
      %v1536 = vunpack.c.h.b16 %v1491
      %v1537 = vunpack.c.l.b16 %v1492
      %v1538 = vunpack.c.h.b16 %v1492
      %v1539 = vunpack.c.l.b16 %v1493
      %v1540 = vunpack.c.h.b16 %v1493
      %v1541 = vunpack.c.l.b16 %v1494
      %v1542 = vunpack.c.h.b16 %v1494
      %v1543 = vpack.c.b16 %v1511, %v1511
      %v1544 = vpack.c.b16 %v1512, %v1512
      %v1545 = vpack.c.b16 %v1513, %v1513
      %v1546 = vpack.c.b16 %v1514, %v1514
      %v1547 = vpack.c.b16 %v1515, %v1515
      %v1548 = vpack.c.b16 %v1516, %v1516
      %v1549 = vpack.c.b16 %v1517, %v1517
      %v1550 = vpack.c.b16 %v1518, %v1518
      %v1551 = vpack.c.b16 %v1519, %v1519
      %v1552 = vpack.c.b16 %v1520, %v1520
      %v1553 = vpack.c.b16 %v1521, %v1521
      %v1554 = vpack.c.b16 %v1522, %v1522
      %v1555 = vpack.c.b16 %v1523, %v1523
      %v1556 = vpack.c.b16 %v1524, %v1524
      %v1557 = vpack.c.b16 %v1525, %v1525
      %v1558 = vpack.c.b16 %v1526, %v1526
      %v1559 = vpack.c.b16 %v1527, %v1527
      %v1560 = vpack.c.b16 %v1528, %v1528
      %v1561 = vpack.c.b16 %v1529, %v1529
      %v1562 = vpack.c.b16 %v1530, %v1530
      %v1563 = vpack.c.b16 %v1531, %v1531
      %v1564 = vpack.c.b16 %v1532, %v1532
      %v1565 = vpack.c.b16 %v1533, %v1533
      %v1566 = vpack.c.b16 %v1534, %v1534
      %v1567 = vpack.c.b16 %v1535, %v1535
      %v1568 = vpack.c.b16 %v1536, %v1536
      %v1569 = vpack.c.b16 %v1537, %v1537
      %v1570 = vpack.c.b16 %v1538, %v1538
      %v1571 = vpack.c.b16 %v1539, %v1539
      %v1572 = vpack.c.b16 %v1540, %v1540
      %v1573 = vpack.c.b16 %v1541, %v1541
      %v1574 = vpack.c.b16 %v1542, %v1542
      %1607 = vst [vmem:[#allocation3 + $0x14] sm:$0xf] %v1543
      %1608 = vst [vmem:[#allocation3 + $0x38] sm:$0xf] %v1544
      %1609 = vst [vmem:[#allocation3 + $0x5c] sm:$0xf] %v1545
      %1610 = vst [vmem:[#allocation3 + $0x80] sm:$0xf] %v1546
      %1611 = vst [vmem:[#allocation3 + $0xa4] sm:$0xf] %v1547
      %1612 = vst [vmem:[#allocation3 + $0xc8] sm:$0xf] %v1548
      %1613 = vst [vmem:[#allocation3 + $0xec] sm:$0xf] %v1549
      %1614 = vst [vmem:[#allocation3 + $0x110] sm:$0xf] %v1550
      %1615 = vst [vmem:[#allocation3 + $0x134] sm:$0xf] %v1551
      %1616 = vst [vmem:[#allocation3 + $0x158] sm:$0xf] %v1552
      %1617 = vst [vmem:[#allocation3 + $0x17c] sm:$0xf] %v1553
      %1618 = vst [vmem:[#allocation3 + $0x1a0] sm:$0xf] %v1554
      %1619 = vst [vmem:[#allocation3 + $0x1c4] sm:$0xf] %v1555
      %1620 = vst [vmem:[#allocation3 + $0x1e8] sm:$0xf] %v1556
      %1621 = vst [vmem:[#allocation3 + $0x20c] sm:$0xf] %v1557
      %1622 = vst [vmem:[#allocation3 + $0x230] sm:$0xf] %v1558
      %1623 = vst [vmem:[#allocation3 + $0x254] sm:$0xf] %v1559
      %1624 = vst [vmem:[#allocation3 + $0x278] sm:$0xf] %v1560
      %1625 = vst [vmem:[#allocation3 + $0x29c] sm:$0xf] %v1561
      %1626 = vst [vmem:[#allocation3 + $0x2c0] sm:$0xf] %v1562
      %1627 = vst [vmem:[#allocation3 + $0x2e4] sm:$0xf] %v1563
      %1628 = vst [vmem:[#allocation3 + $0x308] sm:$0xf] %v1564
      %1629 = vst [vmem:[#allocation3 + $0x32c] sm:$0xf] %v1565
      %1630 = vst [vmem:[#allocation3 + $0x350] sm:$0xf] %v1566
      %1631 = vst [vmem:[#allocation3 + $0x374] sm:$0xf] %v1567
      %1632 = vst [vmem:[#allocation3 + $0x398] sm:$0xf] %v1568
      %1633 = vst [vmem:[#allocation3 + $0x3bc] sm:$0xf] %v1569
      %1634 = vst [vmem:[#allocation3 + $0x3e0] sm:$0xf] %v1570
      %1635 = vst [vmem:[#allocation3 + $0x404] sm:$0xf] %v1571
      %1636 = vst [vmem:[#allocation3 + $0x428] sm:$0xf] %v1572
      %1637 = vst [vmem:[#allocation3 + $0x44c] sm:$0xf] %v1573
      %1638 = vst [vmem:[#allocation3 + $0x470] sm:$0xf] %v1574
      %s1639 = scalar_lea.vmem [#allocation2], 48
      %v1640 = vld [vmem:[%s1639] sm:$0xff]
      %v1641 = vld [vmem:[%s1639 + $0x8] sm:$0xff]
      %v1642 = vld [vmem:[%s1639 + $0x18] sm:$0xff]
      %v1643 = vld [vmem:[%s1639 + $0x20] sm:$0xff]
      %v1644 = vld [vmem:[%s1639 + $0x30] sm:$0xff]
      %v1645 = vld [vmem:[%s1639 + $0x38] sm:$0xff]
      %v1646 = vld [vmem:[%s1639 + $0x48] sm:$0xff]
      %v1647 = vld [vmem:[%s1639 + $0x50] sm:$0xff]
      %v1648 = vld [vmem:[%s1639 + $0x60] sm:$0xff]
      %v1649 = vld [vmem:[%s1639 + $0x68] sm:$0xff]
      %v1650 = vld [vmem:[%s1639 + $0x78] sm:$0xff]
      %v1651 = vld [vmem:[%s1639 + $0x80] sm:$0xff]
      %v1652 = vld [vmem:[%s1639 + $0x90] sm:$0xff]
      %v1653 = vld [vmem:[%s1639 + $0x98] sm:$0xff]
      %v1654 = vld [vmem:[%s1639 + $0xa8] sm:$0xff]
      %v1655 = vld [vmem:[%s1639 + $0xb0] sm:$0xff]
      %v1656 = vld [vmem:[%s1639 + $0xc0] sm:$0xff]
      %v1657 = vld [vmem:[%s1639 + $0xc8] sm:$0xff]
      %v1658 = vld [vmem:[%s1639 + $0xd8] sm:$0xff]
      %v1659 = vld [vmem:[%s1639 + $0xe0] sm:$0xff]
      %v1660 = vld [vmem:[%s1639 + $0xf0] sm:$0xff]
      %v1661 = vld [vmem:[%s1639 + $0xf8] sm:$0xff]
      %v1662 = vld [vmem:[%s1639 + $0x108] sm:$0xff]
      %v1663 = vld [vmem:[%s1639 + $0x110] sm:$0xff]
      %v1664 = vld [vmem:[%s1639 + $0x120] sm:$0xff]
      %v1665 = vld [vmem:[%s1639 + $0x128] sm:$0xff]
      %v1666 = vld [vmem:[%s1639 + $0x138] sm:$0xff]
      %v1667 = vld [vmem:[%s1639 + $0x140] sm:$0xff]
      %v1668 = vld [vmem:[%s1639 + $0x150] sm:$0xff]
      %v1669 = vld [vmem:[%s1639 + $0x158] sm:$0xff]
      %v1670 = vld [vmem:[%s1639 + $0x168] sm:$0xff]
      %v1671 = vld [vmem:[%s1639 + $0x170] sm:$0xff]
      %v1672 = vpack.c.bf16 %v1641, %v1640
      %v1673 = vpack.c.bf16 %v1643, %v1642
      %v1674 = vpack.c.bf16 %v1645, %v1644
      %v1675 = vpack.c.bf16 %v1647, %v1646
      %v1676 = vpack.c.bf16 %v1649, %v1648
      %v1677 = vpack.c.bf16 %v1651, %v1650
      %v1678 = vpack.c.bf16 %v1653, %v1652
      %v1679 = vpack.c.bf16 %v1655, %v1654
      %v1680 = vpack.c.bf16 %v1657, %v1656
      %v1681 = vpack.c.bf16 %v1659, %v1658
      %v1682 = vpack.c.bf16 %v1661, %v1660
      %v1683 = vpack.c.bf16 %v1663, %v1662
      %v1684 = vpack.c.bf16 %v1665, %v1664
      %v1685 = vpack.c.bf16 %v1667, %v1666
      %v1686 = vpack.c.bf16 %v1669, %v1668
      %v1687 = vpack.c.bf16 %v1671, %v1670
      %v1704 = vunpack.c.l.b16 %v1672
      %v1705 = vunpack.c.h.b16 %v1672
      %v1706 = vunpack.c.l.b16 %v1673
      %v1707 = vunpack.c.h.b16 %v1673
      %v1708 = vunpack.c.l.b16 %v1674
      %v1709 = vunpack.c.h.b16 %v1674
      %v1710 = vunpack.c.l.b16 %v1675
      %v1711 = vunpack.c.h.b16 %v1675
      %v1712 = vunpack.c.l.b16 %v1676
      %v1713 = vunpack.c.h.b16 %v1676
      %v1714 = vunpack.c.l.b16 %v1677
      %v1715 = vunpack.c.h.b16 %v1677
      %v1716 = vunpack.c.l.b16 %v1678
      %v1717 = vunpack.c.h.b16 %v1678
      %v1718 = vunpack.c.l.b16 %v1679
      %v1719 = vunpack.c.h.b16 %v1679
      %v1720 = vunpack.c.l.b16 %v1680
      %v1721 = vunpack.c.h.b16 %v1680
      %v1722 = vunpack.c.l.b16 %v1681
      %v1723 = vunpack.c.h.b16 %v1681
      %v1724 = vunpack.c.l.b16 %v1682
      %v1725 = vunpack.c.h.b16 %v1682
      %v1726 = vunpack.c.l.b16 %v1683
      %v1727 = vunpack.c.h.b16 %v1683
      %v1728 = vunpack.c.l.b16 %v1684
      %v1729 = vunpack.c.h.b16 %v1684
      %v1730 = vunpack.c.l.b16 %v1685
      %v1731 = vunpack.c.h.b16 %v1685
      %v1732 = vunpack.c.l.b16 %v1686
      %v1733 = vunpack.c.h.b16 %v1686
      %v1734 = vunpack.c.l.b16 %v1687
      %v1735 = vunpack.c.h.b16 %v1687
      %v1736 = vpack.c.b16 %v1704, %v1704
      %v1737 = vpack.c.b16 %v1705, %v1705
      %v1738 = vpack.c.b16 %v1706, %v1706
      %v1739 = vpack.c.b16 %v1707, %v1707
      %v1740 = vpack.c.b16 %v1708, %v1708
      %v1741 = vpack.c.b16 %v1709, %v1709
      %v1742 = vpack.c.b16 %v1710, %v1710
      %v1743 = vpack.c.b16 %v1711, %v1711
      %v1744 = vpack.c.b16 %v1712, %v1712
      %v1745 = vpack.c.b16 %v1713, %v1713
      %v1746 = vpack.c.b16 %v1714, %v1714
      %v1747 = vpack.c.b16 %v1715, %v1715
      %v1748 = vpack.c.b16 %v1716, %v1716
      %v1749 = vpack.c.b16 %v1717, %v1717
      %v1750 = vpack.c.b16 %v1718, %v1718
      %v1751 = vpack.c.b16 %v1719, %v1719
      %v1752 = vpack.c.b16 %v1720, %v1720
      %v1753 = vpack.c.b16 %v1721, %v1721
      %v1754 = vpack.c.b16 %v1722, %v1722
      %v1755 = vpack.c.b16 %v1723, %v1723
      %v1756 = vpack.c.b16 %v1724, %v1724
      %v1757 = vpack.c.b16 %v1725, %v1725
      %v1758 = vpack.c.b16 %v1726, %v1726
      %v1759 = vpack.c.b16 %v1727, %v1727
      %v1760 = vpack.c.b16 %v1728, %v1728
      %v1761 = vpack.c.b16 %v1729, %v1729
      %v1762 = vpack.c.b16 %v1730, %v1730
      %v1763 = vpack.c.b16 %v1731, %v1731
      %v1764 = vpack.c.b16 %v1732, %v1732
      %v1765 = vpack.c.b16 %v1733, %v1733
      %v1766 = vpack.c.b16 %v1734, %v1734
      %v1767 = vpack.c.b16 %v1735, %v1735
      %1800 = vst [vmem:[#allocation3 + $0x18] sm:$0xf] %v1736
      %1801 = vst [vmem:[#allocation3 + $0x3c] sm:$0xf] %v1737
      %1802 = vst [vmem:[#allocation3 + $0x60] sm:$0xf] %v1738
      %1803 = vst [vmem:[#allocation3 + $0x84] sm:$0xf] %v1739
      %1804 = vst [vmem:[#allocation3 + $0xa8] sm:$0xf] %v1740
      %1805 = vst [vmem:[#allocation3 + $0xcc] sm:$0xf] %v1741
      %1806 = vst [vmem:[#allocation3 + $0xf0] sm:$0xf] %v1742
      %1807 = vst [vmem:[#allocation3 + $0x114] sm:$0xf] %v1743
      %1808 = vst [vmem:[#allocation3 + $0x138] sm:$0xf] %v1744
      %1809 = vst [vmem:[#allocation3 + $0x15c] sm:$0xf] %v1745
      %1810 = vst [vmem:[#allocation3 + $0x180] sm:$0xf] %v1746
      %1811 = vst [vmem:[#allocation3 + $0x1a4] sm:$0xf] %v1747
      %1812 = vst [vmem:[#allocation3 + $0x1c8] sm:$0xf] %v1748
      %1813 = vst [vmem:[#allocation3 + $0x1ec] sm:$0xf] %v1749
      %1814 = vst [vmem:[#allocation3 + $0x210] sm:$0xf] %v1750
      %1815 = vst [vmem:[#allocation3 + $0x234] sm:$0xf] %v1751
      %1816 = vst [vmem:[#allocation3 + $0x258] sm:$0xf] %v1752
      %1817 = vst [vmem:[#allocation3 + $0x27c] sm:$0xf] %v1753
      %1818 = vst [vmem:[#allocation3 + $0x2a0] sm:$0xf] %v1754
      %1819 = vst [vmem:[#allocation3 + $0x2c4] sm:$0xf] %v1755
      %1820 = vst [vmem:[#allocation3 + $0x2e8] sm:$0xf] %v1756
      %1821 = vst [vmem:[#allocation3 + $0x30c] sm:$0xf] %v1757
      %1822 = vst [vmem:[#allocation3 + $0x330] sm:$0xf] %v1758
      %1823 = vst [vmem:[#allocation3 + $0x354] sm:$0xf] %v1759
      %1824 = vst [vmem:[#allocation3 + $0x378] sm:$0xf] %v1760
      %1825 = vst [vmem:[#allocation3 + $0x39c] sm:$0xf] %v1761
      %1826 = vst [vmem:[#allocation3 + $0x3c0] sm:$0xf] %v1762
      %1827 = vst [vmem:[#allocation3 + $0x3e4] sm:$0xf] %v1763
      %1828 = vst [vmem:[#allocation3 + $0x408] sm:$0xf] %v1764
      %1829 = vst [vmem:[#allocation3 + $0x42c] sm:$0xf] %v1765
      %1830 = vst [vmem:[#allocation3 + $0x450] sm:$0xf] %v1766
      %1831 = vst [vmem:[#allocation3 + $0x474] sm:$0xf] %v1767
      %v1832 = vld [vmem:[%s1639 + $0x1] sm:$0xff]
      %v1833 = vld [vmem:[%s1639 + $0x9] sm:$0xff]
      %v1834 = vld [vmem:[%s1639 + $0x19] sm:$0xff]
      %v1835 = vld [vmem:[%s1639 + $0x21] sm:$0xff]
      %v1836 = vld [vmem:[%s1639 + $0x31] sm:$0xff]
      %v1837 = vld [vmem:[%s1639 + $0x39] sm:$0xff]
      %v1838 = vld [vmem:[%s1639 + $0x49] sm:$0xff]
      %v1839 = vld [vmem:[%s1639 + $0x51] sm:$0xff]
      %v1840 = vld [vmem:[%s1639 + $0x61] sm:$0xff]
      %v1841 = vld [vmem:[%s1639 + $0x69] sm:$0xff]
      %v1842 = vld [vmem:[%s1639 + $0x79] sm:$0xff]
      %v1843 = vld [vmem:[%s1639 + $0x81] sm:$0xff]
      %v1844 = vld [vmem:[%s1639 + $0x91] sm:$0xff]
      %v1845 = vld [vmem:[%s1639 + $0x99] sm:$0xff]
      %v1846 = vld [vmem:[%s1639 + $0xa9] sm:$0xff]
      %v1847 = vld [vmem:[%s1639 + $0xb1] sm:$0xff]
      %v1848 = vld [vmem:[%s1639 + $0xc1] sm:$0xff]
      %v1849 = vld [vmem:[%s1639 + $0xc9] sm:$0xff]
      %v1850 = vld [vmem:[%s1639 + $0xd9] sm:$0xff]
      %v1851 = vld [vmem:[%s1639 + $0xe1] sm:$0xff]
      %v1852 = vld [vmem:[%s1639 + $0xf1] sm:$0xff]
      %v1853 = vld [vmem:[%s1639 + $0xf9] sm:$0xff]
      %v1854 = vld [vmem:[%s1639 + $0x109] sm:$0xff]
      %v1855 = vld [vmem:[%s1639 + $0x111] sm:$0xff]
      %v1856 = vld [vmem:[%s1639 + $0x121] sm:$0xff]
      %v1857 = vld [vmem:[%s1639 + $0x129] sm:$0xff]
      %v1858 = vld [vmem:[%s1639 + $0x139] sm:$0xff]
      %v1859 = vld [vmem:[%s1639 + $0x141] sm:$0xff]
      %v1860 = vld [vmem:[%s1639 + $0x151] sm:$0xff]
      %v1861 = vld [vmem:[%s1639 + $0x159] sm:$0xff]
      %v1862 = vld [vmem:[%s1639 + $0x169] sm:$0xff]
      %v1863 = vld [vmem:[%s1639 + $0x171] sm:$0xff]
      %v1864 = vpack.c.bf16 %v1833, %v1832
      %v1865 = vpack.c.bf16 %v1835, %v1834
      %v1866 = vpack.c.bf16 %v1837, %v1836
      %v1867 = vpack.c.bf16 %v1839, %v1838
      %v1868 = vpack.c.bf16 %v1841, %v1840
      %v1869 = vpack.c.bf16 %v1843, %v1842
      %v1870 = vpack.c.bf16 %v1845, %v1844
      %v1871 = vpack.c.bf16 %v1847, %v1846
      %v1872 = vpack.c.bf16 %v1849, %v1848
      %v1873 = vpack.c.bf16 %v1851, %v1850
      %v1874 = vpack.c.bf16 %v1853, %v1852
      %v1875 = vpack.c.bf16 %v1855, %v1854
      %v1876 = vpack.c.bf16 %v1857, %v1856
      %v1877 = vpack.c.bf16 %v1859, %v1858
      %v1878 = vpack.c.bf16 %v1861, %v1860
      %v1879 = vpack.c.bf16 %v1863, %v1862
      %v1896 = vunpack.c.l.b16 %v1864
      %v1897 = vunpack.c.h.b16 %v1864
      %v1898 = vunpack.c.l.b16 %v1865
      %v1899 = vunpack.c.h.b16 %v1865
      %v1900 = vunpack.c.l.b16 %v1866
      %v1901 = vunpack.c.h.b16 %v1866
      %v1902 = vunpack.c.l.b16 %v1867
      %v1903 = vunpack.c.h.b16 %v1867
      %v1904 = vunpack.c.l.b16 %v1868
      %v1905 = vunpack.c.h.b16 %v1868
      %v1906 = vunpack.c.l.b16 %v1869
      %v1907 = vunpack.c.h.b16 %v1869
      %v1908 = vunpack.c.l.b16 %v1870
      %v1909 = vunpack.c.h.b16 %v1870
      %v1910 = vunpack.c.l.b16 %v1871
      %v1911 = vunpack.c.h.b16 %v1871
      %v1912 = vunpack.c.l.b16 %v1872
      %v1913 = vunpack.c.h.b16 %v1872
      %v1914 = vunpack.c.l.b16 %v1873
      %v1915 = vunpack.c.h.b16 %v1873
      %v1916 = vunpack.c.l.b16 %v1874
      %v1917 = vunpack.c.h.b16 %v1874
      %v1918 = vunpack.c.l.b16 %v1875
      %v1919 = vunpack.c.h.b16 %v1875
      %v1920 = vunpack.c.l.b16 %v1876
      %v1921 = vunpack.c.h.b16 %v1876
      %v1922 = vunpack.c.l.b16 %v1877
      %v1923 = vunpack.c.h.b16 %v1877
      %v1924 = vunpack.c.l.b16 %v1878
      %v1925 = vunpack.c.h.b16 %v1878
      %v1926 = vunpack.c.l.b16 %v1879
      %v1927 = vunpack.c.h.b16 %v1879
      %v1928 = vpack.c.b16 %v1896, %v1896
      %v1929 = vpack.c.b16 %v1897, %v1897
      %v1930 = vpack.c.b16 %v1898, %v1898
      %v1931 = vpack.c.b16 %v1899, %v1899
      %v1932 = vpack.c.b16 %v1900, %v1900
      %v1933 = vpack.c.b16 %v1901, %v1901
      %v1934 = vpack.c.b16 %v1902, %v1902
      %v1935 = vpack.c.b16 %v1903, %v1903
      %v1936 = vpack.c.b16 %v1904, %v1904
      %v1937 = vpack.c.b16 %v1905, %v1905
      %v1938 = vpack.c.b16 %v1906, %v1906
      %v1939 = vpack.c.b16 %v1907, %v1907
      %v1940 = vpack.c.b16 %v1908, %v1908
      %v1941 = vpack.c.b16 %v1909, %v1909
      %v1942 = vpack.c.b16 %v1910, %v1910
      %v1943 = vpack.c.b16 %v1911, %v1911
      %v1944 = vpack.c.b16 %v1912, %v1912
      %v1945 = vpack.c.b16 %v1913, %v1913
      %v1946 = vpack.c.b16 %v1914, %v1914
      %v1947 = vpack.c.b16 %v1915, %v1915
      %v1948 = vpack.c.b16 %v1916, %v1916
      %v1949 = vpack.c.b16 %v1917, %v1917
      %v1950 = vpack.c.b16 %v1918, %v1918
      %v1951 = vpack.c.b16 %v1919, %v1919
      %v1952 = vpack.c.b16 %v1920, %v1920
      %v1953 = vpack.c.b16 %v1921, %v1921
      %v1954 = vpack.c.b16 %v1922, %v1922
      %v1955 = vpack.c.b16 %v1923, %v1923
      %v1956 = vpack.c.b16 %v1924, %v1924
      %v1957 = vpack.c.b16 %v1925, %v1925
      %v1958 = vpack.c.b16 %v1926, %v1926
      %v1959 = vpack.c.b16 %v1927, %v1927
      %1992 = vst [vmem:[#allocation3 + $0x1c] sm:$0xf] %v1928
      %1993 = vst [vmem:[#allocation3 + $0x40] sm:$0xf] %v1929
      %1994 = vst [vmem:[#allocation3 + $0x64] sm:$0xf] %v1930
      %1995 = vst [vmem:[#allocation3 + $0x88] sm:$0xf] %v1931
      %1996 = vst [vmem:[#allocation3 + $0xac] sm:$0xf] %v1932
      %1997 = vst [vmem:[#allocation3 + $0xd0] sm:$0xf] %v1933
      %1998 = vst [vmem:[#allocation3 + $0xf4] sm:$0xf] %v1934
      %1999 = vst [vmem:[#allocation3 + $0x118] sm:$0xf] %v1935
      %2000 = vst [vmem:[#allocation3 + $0x13c] sm:$0xf] %v1936
      %2001 = vst [vmem:[#allocation3 + $0x160] sm:$0xf] %v1937
      %2002 = vst [vmem:[#allocation3 + $0x184] sm:$0xf] %v1938
      %2003 = vst [vmem:[#allocation3 + $0x1a8] sm:$0xf] %v1939
      %2004 = vst [vmem:[#allocation3 + $0x1cc] sm:$0xf] %v1940
      %2005 = vst [vmem:[#allocation3 + $0x1f0] sm:$0xf] %v1941
      %2006 = vst [vmem:[#allocation3 + $0x214] sm:$0xf] %v1942
      %2007 = vst [vmem:[#allocation3 + $0x238] sm:$0xf] %v1943
      %2008 = vst [vmem:[#allocation3 + $0x25c] sm:$0xf] %v1944
      %2009 = vst [vmem:[#allocation3 + $0x280] sm:$0xf] %v1945
      %2010 = vst [vmem:[#allocation3 + $0x2a4] sm:$0xf] %v1946
      %2011 = vst [vmem:[#allocation3 + $0x2c8] sm:$0xf] %v1947
      %2012 = vst [vmem:[#allocation3 + $0x2ec] sm:$0xf] %v1948
      %2013 = vst [vmem:[#allocation3 + $0x310] sm:$0xf] %v1949
      %2014 = vst [vmem:[#allocation3 + $0x334] sm:$0xf] %v1950
      %2015 = vst [vmem:[#allocation3 + $0x358] sm:$0xf] %v1951
      %2016 = vst [vmem:[#allocation3 + $0x37c] sm:$0xf] %v1952
      %2017 = vst [vmem:[#allocation3 + $0x3a0] sm:$0xf] %v1953
      %2018 = vst [vmem:[#allocation3 + $0x3c4] sm:$0xf] %v1954
      %2019 = vst [vmem:[#allocation3 + $0x3e8] sm:$0xf] %v1955
      %2020 = vst [vmem:[#allocation3 + $0x40c] sm:$0xf] %v1956
      %2021 = vst [vmem:[#allocation3 + $0x430] sm:$0xf] %v1957
      %2022 = vst [vmem:[#allocation3 + $0x454] sm:$0xf] %v1958
      %2023 = vst [vmem:[#allocation3 + $0x478] sm:$0xf] %v1959
      %v2024 = vld [vmem:[%s1639 + $0x2] sm:$0xff]
      %v2025 = vld [vmem:[%s1639 + $0xa] sm:$0xff]
      %v2026 = vld [vmem:[%s1639 + $0x1a] sm:$0xff]
      %v2027 = vld [vmem:[%s1639 + $0x22] sm:$0xff]
      %v2028 = vld [vmem:[%s1639 + $0x32] sm:$0xff]
      %v2029 = vld [vmem:[%s1639 + $0x3a] sm:$0xff]
      %v2030 = vld [vmem:[%s1639 + $0x4a] sm:$0xff]
      %v2031 = vld [vmem:[%s1639 + $0x52] sm:$0xff]
      %v2032 = vld [vmem:[%s1639 + $0x62] sm:$0xff]
      %v2033 = vld [vmem:[%s1639 + $0x6a] sm:$0xff]
      %v2034 = vld [vmem:[%s1639 + $0x7a] sm:$0xff]
      %v2035 = vld [vmem:[%s1639 + $0x82] sm:$0xff]
      %v2036 = vld [vmem:[%s1639 + $0x92] sm:$0xff]
      %v2037 = vld [vmem:[%s1639 + $0x9a] sm:$0xff]
      %v2038 = vld [vmem:[%s1639 + $0xaa] sm:$0xff]
      %v2039 = vld [vmem:[%s1639 + $0xb2] sm:$0xff]
      %v2040 = vld [vmem:[%s1639 + $0xc2] sm:$0xff]
      %v2041 = vld [vmem:[%s1639 + $0xca] sm:$0xff]
      %v2042 = vld [vmem:[%s1639 + $0xda] sm:$0xff]
      %v2043 = vld [vmem:[%s1639 + $0xe2] sm:$0xff]
      %v2044 = vld [vmem:[%s1639 + $0xf2] sm:$0xff]
      %v2045 = vld [vmem:[%s1639 + $0xfa] sm:$0xff]
      %v2046 = vld [vmem:[%s1639 + $0x10a] sm:$0xff]
      %v2047 = vld [vmem:[%s1639 + $0x112] sm:$0xff]
      %v2048 = vld [vmem:[%s1639 + $0x122] sm:$0xff]
      %v2049 = vld [vmem:[%s1639 + $0x12a] sm:$0xff]
      %v2050 = vld [vmem:[%s1639 + $0x13a] sm:$0xff]
      %v2051 = vld [vmem:[%s1639 + $0x142] sm:$0xff]
      %v2052 = vld [vmem:[%s1639 + $0x152] sm:$0xff]
      %v2053 = vld [vmem:[%s1639 + $0x15a] sm:$0xff]
      %v2054 = vld [vmem:[%s1639 + $0x16a] sm:$0xff]
      %v2055 = vld [vmem:[%s1639 + $0x172] sm:$0xff]
      %v2056 = vpack.c.bf16 %v2025, %v2024
      %v2057 = vpack.c.bf16 %v2027, %v2026
      %v2058 = vpack.c.bf16 %v2029, %v2028
      %v2059 = vpack.c.bf16 %v2031, %v2030
      %v2060 = vpack.c.bf16 %v2033, %v2032
      %v2061 = vpack.c.bf16 %v2035, %v2034
      %v2062 = vpack.c.bf16 %v2037, %v2036
      %v2063 = vpack.c.bf16 %v2039, %v2038
      %v2064 = vpack.c.bf16 %v2041, %v2040
      %v2065 = vpack.c.bf16 %v2043, %v2042
      %v2066 = vpack.c.bf16 %v2045, %v2044
      %v2067 = vpack.c.bf16 %v2047, %v2046
      %v2068 = vpack.c.bf16 %v2049, %v2048
      %v2069 = vpack.c.bf16 %v2051, %v2050
      %v2070 = vpack.c.bf16 %v2053, %v2052
      %v2071 = vpack.c.bf16 %v2055, %v2054
      %v2088 = vunpack.c.l.b16 %v2056
      %v2089 = vunpack.c.h.b16 %v2056
      %v2090 = vunpack.c.l.b16 %v2057
      %v2091 = vunpack.c.h.b16 %v2057
      %v2092 = vunpack.c.l.b16 %v2058
      %v2093 = vunpack.c.h.b16 %v2058
      %v2094 = vunpack.c.l.b16 %v2059
      %v2095 = vunpack.c.h.b16 %v2059
      %v2096 = vunpack.c.l.b16 %v2060
      %v2097 = vunpack.c.h.b16 %v2060
      %v2098 = vunpack.c.l.b16 %v2061
      %v2099 = vunpack.c.h.b16 %v2061
      %v2100 = vunpack.c.l.b16 %v2062
      %v2101 = vunpack.c.h.b16 %v2062
      %v2102 = vunpack.c.l.b16 %v2063
      %v2103 = vunpack.c.h.b16 %v2063
      %v2104 = vunpack.c.l.b16 %v2064
      %v2105 = vunpack.c.h.b16 %v2064
      %v2106 = vunpack.c.l.b16 %v2065
      %v2107 = vunpack.c.h.b16 %v2065
      %v2108 = vunpack.c.l.b16 %v2066
      %v2109 = vunpack.c.h.b16 %v2066
      %v2110 = vunpack.c.l.b16 %v2067
      %v2111 = vunpack.c.h.b16 %v2067
      %v2112 = vunpack.c.l.b16 %v2068
      %v2113 = vunpack.c.h.b16 %v2068
      %v2114 = vunpack.c.l.b16 %v2069
      %v2115 = vunpack.c.h.b16 %v2069
      %v2116 = vunpack.c.l.b16 %v2070
      %v2117 = vunpack.c.h.b16 %v2070
      %v2118 = vunpack.c.l.b16 %v2071
      %v2119 = vunpack.c.h.b16 %v2071
      %v2120 = vpack.c.b16 %v2088, %v2088
      %v2121 = vpack.c.b16 %v2089, %v2089
      %v2122 = vpack.c.b16 %v2090, %v2090
      %v2123 = vpack.c.b16 %v2091, %v2091
      %v2124 = vpack.c.b16 %v2092, %v2092
      %v2125 = vpack.c.b16 %v2093, %v2093
      %v2126 = vpack.c.b16 %v2094, %v2094
      %v2127 = vpack.c.b16 %v2095, %v2095
      %v2128 = vpack.c.b16 %v2096, %v2096
      %v2129 = vpack.c.b16 %v2097, %v2097
      %v2130 = vpack.c.b16 %v2098, %v2098
      %v2131 = vpack.c.b16 %v2099, %v2099
      %v2132 = vpack.c.b16 %v2100, %v2100
      %v2133 = vpack.c.b16 %v2101, %v2101
      %v2134 = vpack.c.b16 %v2102, %v2102
      %v2135 = vpack.c.b16 %v2103, %v2103
      %v2136 = vpack.c.b16 %v2104, %v2104
      %v2137 = vpack.c.b16 %v2105, %v2105
      %v2138 = vpack.c.b16 %v2106, %v2106
      %v2139 = vpack.c.b16 %v2107, %v2107
      %v2140 = vpack.c.b16 %v2108, %v2108
      %v2141 = vpack.c.b16 %v2109, %v2109
      %v2142 = vpack.c.b16 %v2110, %v2110
      %v2143 = vpack.c.b16 %v2111, %v2111
      %v2144 = vpack.c.b16 %v2112, %v2112
      %v2145 = vpack.c.b16 %v2113, %v2113
      %v2146 = vpack.c.b16 %v2114, %v2114
      %v2147 = vpack.c.b16 %v2115, %v2115
      %v2148 = vpack.c.b16 %v2116, %v2116
      %v2149 = vpack.c.b16 %v2117, %v2117
      %v2150 = vpack.c.b16 %v2118, %v2118
      %v2151 = vpack.c.b16 %v2119, %v2119
      %2184 = vst [vmem:[#allocation3 + $0x20] sm:$0xf] %v2120
      %2185 = vst [vmem:[#allocation3 + $0x44] sm:$0xf] %v2121
      %2186 = vst [vmem:[#allocation3 + $0x68] sm:$0xf] %v2122
      %2187 = vst [vmem:[#allocation3 + $0x8c] sm:$0xf] %v2123
      %2188 = vst [vmem:[#allocation3 + $0xb0] sm:$0xf] %v2124
      %2189 = vst [vmem:[#allocation3 + $0xd4] sm:$0xf] %v2125
      %2190 = vst [vmem:[#allocation3 + $0xf8] sm:$0xf] %v2126
      %2191 = vst [vmem:[#allocation3 + $0x11c] sm:$0xf] %v2127
      %2192 = vst [vmem:[#allocation3 + $0x140] sm:$0xf] %v2128
      %2193 = vst [vmem:[#allocation3 + $0x164] sm:$0xf] %v2129
      %2194 = vst [vmem:[#allocation3 + $0x188] sm:$0xf] %v2130
      %2195 = vst [vmem:[#allocation3 + $0x1ac] sm:$0xf] %v2131
      %2196 = vst [vmem:[#allocation3 + $0x1d0] sm:$0xf] %v2132
      %2197 = vst [vmem:[#allocation3 + $0x1f4] sm:$0xf] %v2133
      %2198 = vst [vmem:[#allocation3 + $0x218] sm:$0xf] %v2134
      %2199 = vst [vmem:[#allocation3 + $0x23c] sm:$0xf] %v2135
      %2200 = vst [vmem:[#allocation3 + $0x260] sm:$0xf] %v2136
      %2201 = vst [vmem:[#allocation3 + $0x284] sm:$0xf] %v2137
      %2202 = vst [vmem:[#allocation3 + $0x2a8] sm:$0xf] %v2138
      %2203 = vst [vmem:[#allocation3 + $0x2cc] sm:$0xf] %v2139
      %2204 = vst [vmem:[#allocation3 + $0x2f0] sm:$0xf] %v2140
      %2205 = vst [vmem:[#allocation3 + $0x314] sm:$0xf] %v2141
      %2206 = vst [vmem:[#allocation3 + $0x338] sm:$0xf] %v2142
      %2207 = vst [vmem:[#allocation3 + $0x35c] sm:$0xf] %v2143
      %2208 = vst [vmem:[#allocation3 + $0x380] sm:$0xf] %v2144
      %2209 = vst [vmem:[#allocation3 + $0x3a4] sm:$0xf] %v2145
      %2210 = vst [vmem:[#allocation3 + $0x3c8] sm:$0xf] %v2146
      %2211 = vst [vmem:[#allocation3 + $0x3ec] sm:$0xf] %v2147
      %2212 = vst [vmem:[#allocation3 + $0x410] sm:$0xf] %v2148
      %2213 = vst [vmem:[#allocation3 + $0x434] sm:$0xf] %v2149
      %2214 = vst [vmem:[#allocation3 + $0x458] sm:$0xf] %v2150
      %2215 = vst [vmem:[#allocation3 + $0x47c] sm:$0xf] %v2151
      %v2216 = vld [vmem:[#allocation3] sm:$0xff]
      %v2217 = vld [vmem:[#allocation3 + $0x8] sm:$0xff]
      %v2218 = vld [vmem:[#allocation3 + $0x10] sm:$0xff]
      %v2219 = vld [vmem:[#allocation3 + $0x18] sm:$0xff]
      %v2220 = vld [vmem:[#allocation3 + $0x20] sm:$0xf]
      %v2221 = vld [vmem:[#allocation3 + $0x24] sm:$0xff]
      %v2222 = vld [vmem:[#allocation3 + $0x2c] sm:$0xff]
      %v2223 = vld [vmem:[#allocation3 + $0x34] sm:$0xff]
      %v2224 = vld [vmem:[#allocation3 + $0x3c] sm:$0xff]
      %v2225 = vld [vmem:[#allocation3 + $0x44] sm:$0xf]
      %v2226 = vld [vmem:[#allocation3 + $0x48] sm:$0xff]
      %v2227 = vld [vmem:[#allocation3 + $0x50] sm:$0xff]
      %v2228 = vld [vmem:[#allocation3 + $0x58] sm:$0xff]
      %v2229 = vld [vmem:[#allocation3 + $0x60] sm:$0xff]
      %v2230 = vld [vmem:[#allocation3 + $0x68] sm:$0xf]
      %v2231 = vld [vmem:[#allocation3 + $0x6c] sm:$0xff]
      %v2232 = vld [vmem:[#allocation3 + $0x74] sm:$0xff]
      %v2233 = vld [vmem:[#allocation3 + $0x7c] sm:$0xff]
      %v2234 = vld [vmem:[#allocation3 + $0x84] sm:$0xff]
      %v2235 = vld [vmem:[#allocation3 + $0x8c] sm:$0xf]
      %v2236 = vld [vmem:[#allocation3 + $0x90] sm:$0xff]
      %v2237 = vld [vmem:[#allocation3 + $0x98] sm:$0xff]
      %v2238 = vld [vmem:[#allocation3 + $0xa0] sm:$0xff]
      %v2239 = vld [vmem:[#allocation3 + $0xa8] sm:$0xff]
      %v2240 = vld [vmem:[#allocation3 + $0xb0] sm:$0xf]
      %v2241 = vld [vmem:[#allocation3 + $0xb4] sm:$0xff]
      %v2242 = vld [vmem:[#allocation3 + $0xbc] sm:$0xff]
      %v2243 = vld [vmem:[#allocation3 + $0xc4] sm:$0xff]
      %v2244 = vld [vmem:[#allocation3 + $0xcc] sm:$0xff]
      %v2245 = vld [vmem:[#allocation3 + $0xd4] sm:$0xf]
      %v2246 = vld [vmem:[#allocation3 + $0xd8] sm:$0xff]
      %v2247 = vld [vmem:[#allocation3 + $0xe0] sm:$0xff]
      %v2248 = vld [vmem:[#allocation3 + $0xe8] sm:$0xff]
      %v2249 = vld [vmem:[#allocation3 + $0xf0] sm:$0xff]
      %v2250 = vld [vmem:[#allocation3 + $0xf8] sm:$0xf]
      %v2251 = vld [vmem:[#allocation3 + $0xfc] sm:$0xff]
      %v2252 = vld [vmem:[#allocation3 + $0x104] sm:$0xff]
      %v2253 = vld [vmem:[#allocation3 + $0x10c] sm:$0xff]
      %v2254 = vld [vmem:[#allocation3 + $0x114] sm:$0xff]
      %v2255 = vld [vmem:[#allocation3 + $0x11c] sm:$0xf]
      %v2256 = vld [vmem:[#allocation3 + $0x120] sm:$0xff]
      %v2257 = vld [vmem:[#allocation3 + $0x128] sm:$0xff]
      %v2258 = vld [vmem:[#allocation3 + $0x130] sm:$0xff]
      %v2259 = vld [vmem:[#allocation3 + $0x138] sm:$0xff]
      %v2260 = vld [vmem:[#allocation3 + $0x140] sm:$0xf]
      %v2261 = vld [vmem:[#allocation3 + $0x144] sm:$0xff]
      %v2262 = vld [vmem:[#allocation3 + $0x14c] sm:$0xff]
      %v2263 = vld [vmem:[#allocation3 + $0x154] sm:$0xff]
      %v2264 = vld [vmem:[#allocation3 + $0x15c] sm:$0xff]
      %v2265 = vld [vmem:[#allocation3 + $0x164] sm:$0xf]
      %v2266 = vld [vmem:[#allocation3 + $0x168] sm:$0xff]
      %v2267 = vld [vmem:[#allocation3 + $0x170] sm:$0xff]
      %v2268 = vld [vmem:[#allocation3 + $0x178] sm:$0xff]
      %v2269 = vld [vmem:[#allocation3 + $0x180] sm:$0xff]
      %v2270 = vld [vmem:[#allocation3 + $0x188] sm:$0xf]
      %v2271 = vld [vmem:[#allocation3 + $0x18c] sm:$0xff]
      %v2272 = vld [vmem:[#allocation3 + $0x194] sm:$0xff]
      %v2273 = vld [vmem:[#allocation3 + $0x19c] sm:$0xff]
      %v2274 = vld [vmem:[#allocation3 + $0x1a4] sm:$0xff]
      %v2275 = vld [vmem:[#allocation3 + $0x1ac] sm:$0xf]
      %v2276 = vld [vmem:[#allocation3 + $0x1b0] sm:$0xff]
      %v2277 = vld [vmem:[#allocation3 + $0x1b8] sm:$0xff]
      %v2278 = vld [vmem:[#allocation3 + $0x1c0] sm:$0xff]
      %v2279 = vld [vmem:[#allocation3 + $0x1c8] sm:$0xff]
      %v2280 = vld [vmem:[#allocation3 + $0x1d0] sm:$0xf]
      %v2281 = vld [vmem:[#allocation3 + $0x1d4] sm:$0xff]
      %v2282 = vld [vmem:[#allocation3 + $0x1dc] sm:$0xff]
      %v2283 = vld [vmem:[#allocation3 + $0x1e4] sm:$0xff]
      %v2284 = vld [vmem:[#allocation3 + $0x1ec] sm:$0xff]
      %v2285 = vld [vmem:[#allocation3 + $0x1f4] sm:$0xf]
      %v2286 = vld [vmem:[#allocation3 + $0x1f8] sm:$0xff]
      %v2287 = vld [vmem:[#allocation3 + $0x200] sm:$0xff]
      %v2288 = vld [vmem:[#allocation3 + $0x208] sm:$0xff]
      %v2289 = vld [vmem:[#allocation3 + $0x210] sm:$0xff]
      %v2290 = vld [vmem:[#allocation3 + $0x218] sm:$0xf]
      %v2291 = vld [vmem:[#allocation3 + $0x21c] sm:$0xff]
      %v2292 = vld [vmem:[#allocation3 + $0x224] sm:$0xff]
      %v2293 = vld [vmem:[#allocation3 + $0x22c] sm:$0xff]
      %v2294 = vld [vmem:[#allocation3 + $0x234] sm:$0xff]
      %v2295 = vld [vmem:[#allocation3 + $0x23c] sm:$0xf]
      %v2296 = vld [vmem:[#allocation3 + $0x240] sm:$0xff]
      %v2297 = vld [vmem:[#allocation3 + $0x248] sm:$0xff]
      %v2298 = vld [vmem:[#allocation3 + $0x250] sm:$0xff]
      %v2299 = vld [vmem:[#allocation3 + $0x258] sm:$0xff]
      %v2300 = vld [vmem:[#allocation3 + $0x260] sm:$0xf]
      %v2301 = vld [vmem:[#allocation3 + $0x264] sm:$0xff]
      %v2302 = vld [vmem:[#allocation3 + $0x26c] sm:$0xff]
      %v2303 = vld [vmem:[#allocation3 + $0x274] sm:$0xff]
      %v2304 = vld [vmem:[#allocation3 + $0x27c] sm:$0xff]
      %v2305 = vld [vmem:[#allocation3 + $0x284] sm:$0xf]
      %v2306 = vld [vmem:[#allocation3 + $0x288] sm:$0xff]
      %v2307 = vld [vmem:[#allocation3 + $0x290] sm:$0xff]
      %v2308 = vld [vmem:[#allocation3 + $0x298] sm:$0xff]
      %v2309 = vld [vmem:[#allocation3 + $0x2a0] sm:$0xff]
      %v2310 = vld [vmem:[#allocation3 + $0x2a8] sm:$0xf]
      %v2311 = vld [vmem:[#allocation3 + $0x2ac] sm:$0xff]
      %v2312 = vld [vmem:[#allocation3 + $0x2b4] sm:$0xff]
      %v2313 = vld [vmem:[#allocation3 + $0x2bc] sm:$0xff]
      %v2314 = vld [vmem:[#allocation3 + $0x2c4] sm:$0xff]
      %v2315 = vld [vmem:[#allocation3 + $0x2cc] sm:$0xf]
      %v2316 = vld [vmem:[#allocation3 + $0x2d0] sm:$0xff]
      %v2317 = vld [vmem:[#allocation3 + $0x2d8] sm:$0xff]
      %v2318 = vld [vmem:[#allocation3 + $0x2e0] sm:$0xff]
      %v2319 = vld [vmem:[#allocation3 + $0x2e8] sm:$0xff]
      %v2320 = vld [vmem:[#allocation3 + $0x2f0] sm:$0xf]
      %v2321 = vld [vmem:[#allocation3 + $0x2f4] sm:$0xff]
      %v2322 = vld [vmem:[#allocation3 + $0x2fc] sm:$0xff]
      %v2323 = vld [vmem:[#allocation3 + $0x304] sm:$0xff]
      %v2324 = vld [vmem:[#allocation3 + $0x30c] sm:$0xff]
      %v2325 = vld [vmem:[#allocation3 + $0x314] sm:$0xf]
      %v2326 = vld [vmem:[#allocation3 + $0x318] sm:$0xff]
      %v2327 = vld [vmem:[#allocation3 + $0x320] sm:$0xff]
      %v2328 = vld [vmem:[#allocation3 + $0x328] sm:$0xff]
      %v2329 = vld [vmem:[#allocation3 + $0x330] sm:$0xff]
      %v2330 = vld [vmem:[#allocation3 + $0x338] sm:$0xf]
      %v2331 = vld [vmem:[#allocation3 + $0x33c] sm:$0xff]
      %v2332 = vld [vmem:[#allocation3 + $0x344] sm:$0xff]
      %v2333 = vld [vmem:[#allocation3 + $0x34c] sm:$0xff]
      %v2334 = vld [vmem:[#allocation3 + $0x354] sm:$0xff]
      %v2335 = vld [vmem:[#allocation3 + $0x35c] sm:$0xf]
      %v2336 = vld [vmem:[#allocation3 + $0x360] sm:$0xff]
      %v2337 = vld [vmem:[#allocation3 + $0x368] sm:$0xff]
      %v2338 = vld [vmem:[#allocation3 + $0x370] sm:$0xff]
      %v2339 = vld [vmem:[#allocation3 + $0x378] sm:$0xff]
      %v2340 = vld [vmem:[#allocation3 + $0x380] sm:$0xf]
      %v2341 = vld [vmem:[#allocation3 + $0x384] sm:$0xff]
      %v2342 = vld [vmem:[#allocation3 + $0x38c] sm:$0xff]
      %v2343 = vld [vmem:[#allocation3 + $0x394] sm:$0xff]
      %v2344 = vld [vmem:[#allocation3 + $0x39c] sm:$0xff]
      %v2345 = vld [vmem:[#allocation3 + $0x3a4] sm:$0xf]
      %v2346 = vld [vmem:[#allocation3 + $0x3a8] sm:$0xff]
      %v2347 = vld [vmem:[#allocation3 + $0x3b0] sm:$0xff]
      %v2348 = vld [vmem:[#allocation3 + $0x3b8] sm:$0xff]
      %v2349 = vld [vmem:[#allocation3 + $0x3c0] sm:$0xff]
      %v2350 = vld [vmem:[#allocation3 + $0x3c8] sm:$0xf]
      %v2351 = vld [vmem:[#allocation3 + $0x3cc] sm:$0xff]
      %v2352 = vld [vmem:[#allocation3 + $0x3d4] sm:$0xff]
      %v2353 = vld [vmem:[#allocation3 + $0x3dc] sm:$0xff]
      %v2354 = vld [vmem:[#allocation3 + $0x3e4] sm:$0xff]
      %v2355 = vld [vmem:[#allocation3 + $0x3ec] sm:$0xf]
      %v2356 = vld [vmem:[#allocation3 + $0x3f0] sm:$0xff]
      %v2357 = vld [vmem:[#allocation3 + $0x3f8] sm:$0xff]
      %v2358 = vld [vmem:[#allocation3 + $0x400] sm:$0xff]
      %v2359 = vld [vmem:[#allocation3 + $0x408] sm:$0xff]
      %v2360 = vld [vmem:[#allocation3 + $0x410] sm:$0xf]
      %v2361 = vld [vmem:[#allocation3 + $0x414] sm:$0xff]
      %v2362 = vld [vmem:[#allocation3 + $0x41c] sm:$0xff]
      %v2363 = vld [vmem:[#allocation3 + $0x424] sm:$0xff]
      %v2364 = vld [vmem:[#allocation3 + $0x42c] sm:$0xff]
      %v2365 = vld [vmem:[#allocation3 + $0x434] sm:$0xf]
      %v2366 = vld [vmem:[#allocation3 + $0x438] sm:$0xff]
      %v2367 = vld [vmem:[#allocation3 + $0x440] sm:$0xff]
      %v2368 = vld [vmem:[#allocation3 + $0x448] sm:$0xff]
      %v2369 = vld [vmem:[#allocation3 + $0x450] sm:$0xff]
      %v2370 = vld [vmem:[#allocation3 + $0x458] sm:$0xf]
      %v2371 = vld [vmem:[#allocation3 + $0x45c] sm:$0xff]
      %v2372 = vld [vmem:[#allocation3 + $0x464] sm:$0xff]
      %v2373 = vld [vmem:[#allocation3 + $0x46c] sm:$0xff]
      %v2374 = vld [vmem:[#allocation3 + $0x474] sm:$0xff]
      %v2375 = vld [vmem:[#allocation3 + $0x47c] sm:$0xf]
      %v2376 = vld [vmem:[%s3] sm:$0xf]
      %v2377 = vld [vmem:[%s3 + $0x4] sm:$0xf]
      %v2378 = vld [vmem:[%s3 + $0x8] sm:$0xf]
      %v2379 = vld [vmem:[%s3 + $0xc] sm:$0xf]
      %v2380 = vld [vmem:[%s3 + $0x10] sm:$0xf]
      %v2381 = vld [vmem:[%s3 + $0x14] sm:$0xf]
      %v2382 = vld [vmem:[%s3 + $0x18] sm:$0xf]
      %v2383 = vld [vmem:[%s3 + $0x1c] sm:$0xf]
      %v2384 = vld [vmem:[%s3 + $0x20] sm:$0xf]
      %v2385 = vld [vmem:[%s3 + $0x24] sm:$0xf]
      %v2386 = vld [vmem:[%s3 + $0x28] sm:$0xf]
      %v2387 = vld [vmem:[%s3 + $0x2c] sm:$0xf]
      %v2388 = vld [vmem:[%s3 + $0x30] sm:$0xf]
      %v2389 = vld [vmem:[%s3 + $0x34] sm:$0xf]
      %v2390 = vld [vmem:[%s3 + $0x38] sm:$0xf]
      %v2391 = vld [vmem:[%s3 + $0x3c] sm:$0xf]
      %v2392 = vld [vmem:[%s3 + $0x40] sm:$0xf]
      %v2393 = vld [vmem:[%s3 + $0x44] sm:$0xf]
      %v2394 = vld [vmem:[%s3 + $0x48] sm:$0xf]
      %v2395 = vld [vmem:[%s3 + $0x4c] sm:$0xf]
      %v2396 = vld [vmem:[%s3 + $0x50] sm:$0xf]
      %v2397 = vld [vmem:[%s3 + $0x54] sm:$0xf]
      %v2398 = vld [vmem:[%s3 + $0x58] sm:$0xf]
      %v2399 = vld [vmem:[%s3 + $0x5c] sm:$0xf]
      %v2400 = vld [vmem:[%s3 + $0x60] sm:$0xf]
      %v2401 = vld [vmem:[%s3 + $0x64] sm:$0xf]
      %v2402 = vld [vmem:[%s3 + $0x68] sm:$0xf]
      %v2403 = vld [vmem:[%s3 + $0x6c] sm:$0xf]
      %v2404 = vld [vmem:[%s3 + $0x70] sm:$0xf]
      %v2405 = vld [vmem:[%s3 + $0x74] sm:$0xf]
      %v2406 = vld [vmem:[%s3 + $0x78] sm:$0xf]
      %v2407 = vld [vmem:[%s3 + $0x7c] sm:$0xf]
      %v2408 = vld [vmem:[%s3 + $0x80] sm:$0xf]
      %v2409 = vld [vmem:[%s3 + $0x84] sm:$0xf]
      %v2410 = vld [vmem:[%s3 + $0x88] sm:$0xf]
      %v2411 = vld [vmem:[%s3 + $0x8c] sm:$0xf]
      %v2412 = vld [vmem:[%s3 + $0x90] sm:$0xf]
      %v2413 = vld [vmem:[%s3 + $0x94] sm:$0xf]
      %v2414 = vld [vmem:[%s3 + $0x98] sm:$0xf]
      %v2415 = vld [vmem:[%s3 + $0x9c] sm:$0xf]
      %v2416 = vld [vmem:[%s3 + $0xa0] sm:$0xf]
      %v2417 = vld [vmem:[%s3 + $0xa4] sm:$0xf]
      %v2418 = vld [vmem:[%s3 + $0xa8] sm:$0xf]
      %v2419 = vld [vmem:[%s3 + $0xac] sm:$0xf]
      %v2420 = vld [vmem:[%s3 + $0xb0] sm:$0xf]
      %v2421 = vld [vmem:[%s3 + $0xb4] sm:$0xf]
      %v2422 = vld [vmem:[%s3 + $0xb8] sm:$0xf]
      %v2423 = vld [vmem:[%s3 + $0xbc] sm:$0xf]
      %v2424 = vld [vmem:[%s3 + $0xc0] sm:$0xf]
      %v2425 = vld [vmem:[%s3 + $0xc4] sm:$0xf]
      %v2426 = vld [vmem:[%s3 + $0xc8] sm:$0xf]
      %v2427 = vld [vmem:[%s3 + $0xcc] sm:$0xf]
      %v2428 = vld [vmem:[%s3 + $0xd0] sm:$0xf]
      %v2429 = vld [vmem:[%s3 + $0xd4] sm:$0xf]
      %v2430 = vld [vmem:[%s3 + $0xd8] sm:$0xf]
      %v2431 = vld [vmem:[%s3 + $0xdc] sm:$0xf]
      %v2432 = vld [vmem:[%s3 + $0xe0] sm:$0xf]
      %v2433 = vld [vmem:[%s3 + $0xe4] sm:$0xf]
      %v2434 = vld [vmem:[%s3 + $0xe8] sm:$0xf]
      %v2435 = vld [vmem:[%s3 + $0xec] sm:$0xf]
      %v2436 = vld [vmem:[%s3 + $0xf0] sm:$0xf]
      %v2437 = vld [vmem:[%s3 + $0xf4] sm:$0xf]
      %v2438 = vld [vmem:[%s3 + $0xf8] sm:$0xf]
      %v2439 = vld [vmem:[%s3 + $0xfc] sm:$0xf]
      %v2440 = vld [vmem:[%s3 + $0x100] sm:$0xf]
      %v2441 = vld [vmem:[%s3 + $0x104] sm:$0xf]
      %v2442 = vld [vmem:[%s3 + $0x108] sm:$0xf]
      %v2443 = vld [vmem:[%s3 + $0x10c] sm:$0xf]
      %v2444 = vld [vmem:[%s3 + $0x110] sm:$0xf]
      %v2445 = vld [vmem:[%s3 + $0x114] sm:$0xf]
      %v2446 = vld [vmem:[%s3 + $0x118] sm:$0xf]
      %v2447 = vld [vmem:[%s3 + $0x11c] sm:$0xf]
      %v2448 = vld [vmem:[%s3 + $0x120] sm:$0xf]
      %v2449 = vld [vmem:[%s3 + $0x124] sm:$0xf]
      %v2450 = vld [vmem:[%s3 + $0x128] sm:$0xf]
      %v2451 = vld [vmem:[%s3 + $0x12c] sm:$0xf]
      %v2452 = vld [vmem:[%s3 + $0x130] sm:$0xf]
      %v2453 = vld [vmem:[%s3 + $0x134] sm:$0xf]
      %v2454 = vld [vmem:[%s3 + $0x138] sm:$0xf]
      %v2455 = vld [vmem:[%s3 + $0x13c] sm:$0xf]
      %v2456 = vld [vmem:[%s3 + $0x140] sm:$0xf]
      %v2457 = vld [vmem:[%s3 + $0x144] sm:$0xf]
      %v2458 = vld [vmem:[%s3 + $0x148] sm:$0xf]
      %v2459 = vld [vmem:[%s3 + $0x14c] sm:$0xf]
      %v2460 = vld [vmem:[%s3 + $0x150] sm:$0xf]
      %v2461 = vld [vmem:[%s3 + $0x154] sm:$0xf]
      %v2462 = vld [vmem:[%s3 + $0x158] sm:$0xf]
      %v2463 = vld [vmem:[%s3 + $0x15c] sm:$0xf]
      %v2464 = vld [vmem:[%s3 + $0x160] sm:$0xf]
      %v2465 = vld [vmem:[%s3 + $0x164] sm:$0xf]
      %v2466 = vld [vmem:[%s3 + $0x168] sm:$0xf]
      %v2467 = vld [vmem:[%s3 + $0x16c] sm:$0xf]
      %v2468 = vld [vmem:[%s3 + $0x170] sm:$0xf]
      %v2469 = vld [vmem:[%s3 + $0x174] sm:$0xf]
      %v2470 = vld [vmem:[%s3 + $0x178] sm:$0xf]
      %v2471 = vld [vmem:[%s3 + $0x17c] sm:$0xf]
      %v2472 = vld [vmem:[%s3 + $0x180] sm:$0xf]
      %v2473 = vld [vmem:[%s3 + $0x184] sm:$0xf]
      %v2474 = vld [vmem:[%s3 + $0x188] sm:$0xf]
      %v2475 = vld [vmem:[%s3 + $0x18c] sm:$0xf]
      %v2476 = vld [vmem:[%s3 + $0x190] sm:$0xf]
      %v2477 = vld [vmem:[%s3 + $0x194] sm:$0xf]
      %v2478 = vld [vmem:[%s3 + $0x198] sm:$0xf]
      %v2479 = vld [vmem:[%s3 + $0x19c] sm:$0xf]
      %v2480 = vld [vmem:[%s3 + $0x1a0] sm:$0xf]
      %v2481 = vld [vmem:[%s3 + $0x1a4] sm:$0xf]
      %v2482 = vld [vmem:[%s3 + $0x1a8] sm:$0xf]
      %v2483 = vld [vmem:[%s3 + $0x1ac] sm:$0xf]
      %v2484 = vld [vmem:[%s3 + $0x1b0] sm:$0xf]
      %v2485 = vld [vmem:[%s3 + $0x1b4] sm:$0xf]
      %v2486 = vld [vmem:[%s3 + $0x1b8] sm:$0xf]
      %v2487 = vld [vmem:[%s3 + $0x1bc] sm:$0xf]
      %v2488 = vld [vmem:[%s3 + $0x1c0] sm:$0xf]
      %v2489 = vld [vmem:[%s3 + $0x1c4] sm:$0xf]
      %v2490 = vld [vmem:[%s3 + $0x1c8] sm:$0xf]
      %v2491 = vld [vmem:[%s3 + $0x1cc] sm:$0xf]
      %v2492 = vld [vmem:[%s3 + $0x1d0] sm:$0xf]
      %v2493 = vld [vmem:[%s3 + $0x1d4] sm:$0xf]
      %v2494 = vld [vmem:[%s3 + $0x1d8] sm:$0xf]
      %v2495 = vld [vmem:[%s3 + $0x1dc] sm:$0xf]
      %v2496 = vld [vmem:[%s3 + $0x1e0] sm:$0xf]
      %v2497 = vld [vmem:[%s3 + $0x1e4] sm:$0xf]
      %v2498 = vld [vmem:[%s3 + $0x1e8] sm:$0xf]
      %v2499 = vld [vmem:[%s3 + $0x1ec] sm:$0xf]
      %v2500 = vld [vmem:[%s3 + $0x1f0] sm:$0xf]
      %v2501 = vld [vmem:[%s3 + $0x1f4] sm:$0xf]
      %v2502 = vld [vmem:[%s3 + $0x1f8] sm:$0xf]
      %v2503 = vld [vmem:[%s3 + $0x1fc] sm:$0xf]
      %v2504 = vld [vmem:[%s3 + $0x200] sm:$0xf]
      %v2505 = vld [vmem:[%s3 + $0x204] sm:$0xf]
      %v2506 = vld [vmem:[%s3 + $0x208] sm:$0xf]
      %v2507 = vld [vmem:[%s3 + $0x20c] sm:$0xf]
      %v2508 = vld [vmem:[%s3 + $0x210] sm:$0xf]
      %v2509 = vld [vmem:[%s3 + $0x214] sm:$0xf]
      %v2510 = vld [vmem:[%s3 + $0x218] sm:$0xf]
      %v2511 = vld [vmem:[%s3 + $0x21c] sm:$0xf]
      %v2512 = vld [vmem:[%s3 + $0x220] sm:$0xf]
      %v2513 = vld [vmem:[%s3 + $0x224] sm:$0xf]
      %v2514 = vld [vmem:[%s3 + $0x228] sm:$0xf]
      %v2515 = vld [vmem:[%s3 + $0x22c] sm:$0xf]
      %v2516 = vld [vmem:[%s3 + $0x230] sm:$0xf]
      %v2517 = vld [vmem:[%s3 + $0x234] sm:$0xf]
      %v2518 = vld [vmem:[%s3 + $0x238] sm:$0xf]
      %v2519 = vld [vmem:[%s3 + $0x23c] sm:$0xf]
      %v2680 = vunpack.c.l.b16 %v2216
      %v2681 = vunpack.c.h.b16 %v2216
      %v2682 = vunpack.c.l.b16 %v2217
      %v2683 = vunpack.c.h.b16 %v2217
      %v2684 = vunpack.c.l.b16 %v2218
      %v2685 = vunpack.c.h.b16 %v2218
      %v2686 = vunpack.c.l.b16 %v2219
      %v2687 = vunpack.c.h.b16 %v2219
      %v2688 = vunpack.c.l.b16 %v2220
      %v2689 = vunpack.c.l.b16 %v2221
      %v2690 = vunpack.c.h.b16 %v2221
      %v2691 = vunpack.c.l.b16 %v2222
      %v2692 = vunpack.c.h.b16 %v2222
      %v2693 = vunpack.c.l.b16 %v2223
      %v2694 = vunpack.c.h.b16 %v2223
      %v2695 = vunpack.c.l.b16 %v2224
      %v2696 = vunpack.c.h.b16 %v2224
      %v2697 = vunpack.c.l.b16 %v2225
      %v2698 = vunpack.c.l.b16 %v2226
      %v2699 = vunpack.c.h.b16 %v2226
      %v2700 = vunpack.c.l.b16 %v2227
      %v2701 = vunpack.c.h.b16 %v2227
      %v2702 = vunpack.c.l.b16 %v2228
      %v2703 = vunpack.c.h.b16 %v2228
      %v2704 = vunpack.c.l.b16 %v2229
      %v2705 = vunpack.c.h.b16 %v2229
      %v2706 = vunpack.c.l.b16 %v2230
      %v2707 = vunpack.c.l.b16 %v2231
      %v2708 = vunpack.c.h.b16 %v2231
      %v2709 = vunpack.c.l.b16 %v2232
      %v2710 = vunpack.c.h.b16 %v2232
      %v2711 = vunpack.c.l.b16 %v2233
      %v2712 = vunpack.c.h.b16 %v2233
      %v2713 = vunpack.c.l.b16 %v2234
      %v2714 = vunpack.c.h.b16 %v2234
      %v2715 = vunpack.c.l.b16 %v2235
      %v2716 = vunpack.c.l.b16 %v2236
      %v2717 = vunpack.c.h.b16 %v2236
      %v2718 = vunpack.c.l.b16 %v2237
      %v2719 = vunpack.c.h.b16 %v2237
      %v2720 = vunpack.c.l.b16 %v2238
      %v2721 = vunpack.c.h.b16 %v2238
      %v2722 = vunpack.c.l.b16 %v2239
      %v2723 = vunpack.c.h.b16 %v2239
      %v2724 = vunpack.c.l.b16 %v2240
      %v2725 = vunpack.c.l.b16 %v2241
      %v2726 = vunpack.c.h.b16 %v2241
      %v2727 = vunpack.c.l.b16 %v2242
      %v2728 = vunpack.c.h.b16 %v2242
      %v2729 = vunpack.c.l.b16 %v2243
      %v2730 = vunpack.c.h.b16 %v2243
      %v2731 = vunpack.c.l.b16 %v2244
      %v2732 = vunpack.c.h.b16 %v2244
      %v2733 = vunpack.c.l.b16 %v2245
      %v2734 = vunpack.c.l.b16 %v2246
      %v2735 = vunpack.c.h.b16 %v2246
      %v2736 = vunpack.c.l.b16 %v2247
      %v2737 = vunpack.c.h.b16 %v2247
      %v2738 = vunpack.c.l.b16 %v2248
      %v2739 = vunpack.c.h.b16 %v2248
      %v2740 = vunpack.c.l.b16 %v2249
      %v2741 = vunpack.c.h.b16 %v2249
      %v2742 = vunpack.c.l.b16 %v2250
      %v2743 = vunpack.c.l.b16 %v2251
      %v2744 = vunpack.c.h.b16 %v2251
      %v2745 = vunpack.c.l.b16 %v2252
      %v2746 = vunpack.c.h.b16 %v2252
      %v2747 = vunpack.c.l.b16 %v2253
      %v2748 = vunpack.c.h.b16 %v2253
      %v2749 = vunpack.c.l.b16 %v2254
      %v2750 = vunpack.c.h.b16 %v2254
      %v2751 = vunpack.c.l.b16 %v2255
      %v2752 = vunpack.c.l.b16 %v2256
      %v2753 = vunpack.c.h.b16 %v2256
      %v2754 = vunpack.c.l.b16 %v2257
      %v2755 = vunpack.c.h.b16 %v2257
      %v2756 = vunpack.c.l.b16 %v2258
      %v2757 = vunpack.c.h.b16 %v2258
      %v2758 = vunpack.c.l.b16 %v2259
      %v2759 = vunpack.c.h.b16 %v2259
      %v2760 = vunpack.c.l.b16 %v2260
      %v2761 = vunpack.c.l.b16 %v2261
      %v2762 = vunpack.c.h.b16 %v2261
      %v2763 = vunpack.c.l.b16 %v2262
      %v2764 = vunpack.c.h.b16 %v2262
      %v2765 = vunpack.c.l.b16 %v2263
      %v2766 = vunpack.c.h.b16 %v2263
      %v2767 = vunpack.c.l.b16 %v2264
      %v2768 = vunpack.c.h.b16 %v2264
      %v2769 = vunpack.c.l.b16 %v2265
      %v2770 = vunpack.c.l.b16 %v2266
      %v2771 = vunpack.c.h.b16 %v2266
      %v2772 = vunpack.c.l.b16 %v2267
      %v2773 = vunpack.c.h.b16 %v2267
      %v2774 = vunpack.c.l.b16 %v2268
      %v2775 = vunpack.c.h.b16 %v2268
      %v2776 = vunpack.c.l.b16 %v2269
      %v2777 = vunpack.c.h.b16 %v2269
      %v2778 = vunpack.c.l.b16 %v2270
      %v2779 = vunpack.c.l.b16 %v2271
      %v2780 = vunpack.c.h.b16 %v2271
      %v2781 = vunpack.c.l.b16 %v2272
      %v2782 = vunpack.c.h.b16 %v2272
      %v2783 = vunpack.c.l.b16 %v2273
      %v2784 = vunpack.c.h.b16 %v2273
      %v2785 = vunpack.c.l.b16 %v2274
      %v2786 = vunpack.c.h.b16 %v2274
      %v2787 = vunpack.c.l.b16 %v2275
      %v2788 = vunpack.c.l.b16 %v2276
      %v2789 = vunpack.c.h.b16 %v2276
      %v2790 = vunpack.c.l.b16 %v2277
      %v2791 = vunpack.c.h.b16 %v2277
      %v2792 = vunpack.c.l.b16 %v2278
      %v2793 = vunpack.c.h.b16 %v2278
      %v2794 = vunpack.c.l.b16 %v2279
      %v2795 = vunpack.c.h.b16 %v2279
      %v2796 = vunpack.c.l.b16 %v2280
      %v2797 = vunpack.c.l.b16 %v2281
      %v2798 = vunpack.c.h.b16 %v2281
      %v2799 = vunpack.c.l.b16 %v2282
      %v2800 = vunpack.c.h.b16 %v2282
      %v2801 = vunpack.c.l.b16 %v2283
      %v2802 = vunpack.c.h.b16 %v2283
      %v2803 = vunpack.c.l.b16 %v2284
      %v2804 = vunpack.c.h.b16 %v2284
      %v2805 = vunpack.c.l.b16 %v2285
      %v2806 = vunpack.c.l.b16 %v2286
      %v2807 = vunpack.c.h.b16 %v2286
      %v2808 = vunpack.c.l.b16 %v2287
      %v2809 = vunpack.c.h.b16 %v2287
      %v2810 = vunpack.c.l.b16 %v2288
      %v2811 = vunpack.c.h.b16 %v2288
      %v2812 = vunpack.c.l.b16 %v2289
      %v2813 = vunpack.c.h.b16 %v2289
      %v2814 = vunpack.c.l.b16 %v2290
      %v2815 = vunpack.c.l.b16 %v2291
      %v2816 = vunpack.c.h.b16 %v2291
      %v2817 = vunpack.c.l.b16 %v2292
      %v2818 = vunpack.c.h.b16 %v2292
      %v2819 = vunpack.c.l.b16 %v2293
      %v2820 = vunpack.c.h.b16 %v2293
      %v2821 = vunpack.c.l.b16 %v2294
      %v2822 = vunpack.c.h.b16 %v2294
      %v2823 = vunpack.c.l.b16 %v2295
      %v2824 = vunpack.c.l.b16 %v2296
      %v2825 = vunpack.c.h.b16 %v2296
      %v2826 = vunpack.c.l.b16 %v2297
      %v2827 = vunpack.c.h.b16 %v2297
      %v2828 = vunpack.c.l.b16 %v2298
      %v2829 = vunpack.c.h.b16 %v2298
      %v2830 = vunpack.c.l.b16 %v2299
      %v2831 = vunpack.c.h.b16 %v2299
      %v2832 = vunpack.c.l.b16 %v2300
      %v2833 = vunpack.c.l.b16 %v2301
      %v2834 = vunpack.c.h.b16 %v2301
      %v2835 = vunpack.c.l.b16 %v2302
      %v2836 = vunpack.c.h.b16 %v2302
      %v2837 = vunpack.c.l.b16 %v2303
      %v2838 = vunpack.c.h.b16 %v2303
      %v2839 = vunpack.c.l.b16 %v2304
      %v2840 = vunpack.c.h.b16 %v2304
      %v2841 = vunpack.c.l.b16 %v2305
      %v2842 = vunpack.c.l.b16 %v2306
      %v2843 = vunpack.c.h.b16 %v2306
      %v2844 = vunpack.c.l.b16 %v2307
      %v2845 = vunpack.c.h.b16 %v2307
      %v2846 = vunpack.c.l.b16 %v2308
      %v2847 = vunpack.c.h.b16 %v2308
      %v2848 = vunpack.c.l.b16 %v2309
      %v2849 = vunpack.c.h.b16 %v2309
      %v2850 = vunpack.c.l.b16 %v2310
      %v2851 = vunpack.c.l.b16 %v2311
      %v2852 = vunpack.c.h.b16 %v2311
      %v2853 = vunpack.c.l.b16 %v2312
      %v2854 = vunpack.c.h.b16 %v2312
      %v2855 = vunpack.c.l.b16 %v2313
      %v2856 = vunpack.c.h.b16 %v2313
      %v2857 = vunpack.c.l.b16 %v2314
      %v2858 = vunpack.c.h.b16 %v2314
      %v2859 = vunpack.c.l.b16 %v2315
      %v2860 = vunpack.c.l.b16 %v2316
      %v2861 = vunpack.c.h.b16 %v2316
      %v2862 = vunpack.c.l.b16 %v2317
      %v2863 = vunpack.c.h.b16 %v2317
      %v2864 = vunpack.c.l.b16 %v2318
      %v2865 = vunpack.c.h.b16 %v2318
      %v2866 = vunpack.c.l.b16 %v2319
      %v2867 = vunpack.c.h.b16 %v2319
      %v2868 = vunpack.c.l.b16 %v2320
      %v2869 = vunpack.c.l.b16 %v2321
      %v2870 = vunpack.c.h.b16 %v2321
      %v2871 = vunpack.c.l.b16 %v2322
      %v2872 = vunpack.c.h.b16 %v2322
      %v2873 = vunpack.c.l.b16 %v2323
      %v2874 = vunpack.c.h.b16 %v2323
      %v2875 = vunpack.c.l.b16 %v2324
      %v2876 = vunpack.c.h.b16 %v2324
      %v2877 = vunpack.c.l.b16 %v2325
      %v2878 = vunpack.c.l.b16 %v2326
      %v2879 = vunpack.c.h.b16 %v2326
      %v2880 = vunpack.c.l.b16 %v2327
      %v2881 = vunpack.c.h.b16 %v2327
      %v2882 = vunpack.c.l.b16 %v2328
      %v2883 = vunpack.c.h.b16 %v2328
      %v2884 = vunpack.c.l.b16 %v2329
      %v2885 = vunpack.c.h.b16 %v2329
      %v2886 = vunpack.c.l.b16 %v2330
      %v2887 = vunpack.c.l.b16 %v2331
      %v2888 = vunpack.c.h.b16 %v2331
      %v2889 = vunpack.c.l.b16 %v2332
      %v2890 = vunpack.c.h.b16 %v2332
      %v2891 = vunpack.c.l.b16 %v2333
      %v2892 = vunpack.c.h.b16 %v2333
      %v2893 = vunpack.c.l.b16 %v2334
      %v2894 = vunpack.c.h.b16 %v2334
      %v2895 = vunpack.c.l.b16 %v2335
      %v2896 = vunpack.c.l.b16 %v2336
      %v2897 = vunpack.c.h.b16 %v2336
      %v2898 = vunpack.c.l.b16 %v2337
      %v2899 = vunpack.c.h.b16 %v2337
      %v2900 = vunpack.c.l.b16 %v2338
      %v2901 = vunpack.c.h.b16 %v2338
      %v2902 = vunpack.c.l.b16 %v2339
      %v2903 = vunpack.c.h.b16 %v2339
      %v2904 = vunpack.c.l.b16 %v2340
      %v2905 = vunpack.c.l.b16 %v2341
      %v2906 = vunpack.c.h.b16 %v2341
      %v2907 = vunpack.c.l.b16 %v2342
      %v2908 = vunpack.c.h.b16 %v2342
      %v2909 = vunpack.c.l.b16 %v2343
      %v2910 = vunpack.c.h.b16 %v2343
      %v2911 = vunpack.c.l.b16 %v2344
      %v2912 = vunpack.c.h.b16 %v2344
      %v2913 = vunpack.c.l.b16 %v2345
      %v2914 = vunpack.c.l.b16 %v2346
      %v2915 = vunpack.c.h.b16 %v2346
      %v2916 = vunpack.c.l.b16 %v2347
      %v2917 = vunpack.c.h.b16 %v2347
      %v2918 = vunpack.c.l.b16 %v2348
      %v2919 = vunpack.c.h.b16 %v2348
      %v2920 = vunpack.c.l.b16 %v2349
      %v2921 = vunpack.c.h.b16 %v2349
      %v2922 = vunpack.c.l.b16 %v2350
      %v2923 = vunpack.c.l.b16 %v2351
      %v2924 = vunpack.c.h.b16 %v2351
      %v2925 = vunpack.c.l.b16 %v2352
      %v2926 = vunpack.c.h.b16 %v2352
      %v2927 = vunpack.c.l.b16 %v2353
      %v2928 = vunpack.c.h.b16 %v2353
      %v2929 = vunpack.c.l.b16 %v2354
      %v2930 = vunpack.c.h.b16 %v2354
      %v2931 = vunpack.c.l.b16 %v2355
      %v2932 = vunpack.c.l.b16 %v2356
      %v2933 = vunpack.c.h.b16 %v2356
      %v2934 = vunpack.c.l.b16 %v2357
      %v2935 = vunpack.c.h.b16 %v2357
      %v2936 = vunpack.c.l.b16 %v2358
      %v2937 = vunpack.c.h.b16 %v2358
      %v2938 = vunpack.c.l.b16 %v2359
      %v2939 = vunpack.c.h.b16 %v2359
      %v2940 = vunpack.c.l.b16 %v2360
      %v2941 = vunpack.c.l.b16 %v2361
      %v2942 = vunpack.c.h.b16 %v2361
      %v2943 = vunpack.c.l.b16 %v2362
      %v2944 = vunpack.c.h.b16 %v2362
      %v2945 = vunpack.c.l.b16 %v2363
      %v2946 = vunpack.c.h.b16 %v2363
      %v2947 = vunpack.c.l.b16 %v2364
      %v2948 = vunpack.c.h.b16 %v2364
      %v2949 = vunpack.c.l.b16 %v2365
      %v2950 = vunpack.c.l.b16 %v2366
      %v2951 = vunpack.c.h.b16 %v2366
      %v2952 = vunpack.c.l.b16 %v2367
      %v2953 = vunpack.c.h.b16 %v2367
      %v2954 = vunpack.c.l.b16 %v2368
      %v2955 = vunpack.c.h.b16 %v2368
      %v2956 = vunpack.c.l.b16 %v2369
      %v2957 = vunpack.c.h.b16 %v2369
      %v2958 = vunpack.c.l.b16 %v2370
      %v2959 = vunpack.c.l.b16 %v2371
      %v2960 = vunpack.c.h.b16 %v2371
      %v2961 = vunpack.c.l.b16 %v2372
      %v2962 = vunpack.c.h.b16 %v2372
      %v2963 = vunpack.c.l.b16 %v2373
      %v2964 = vunpack.c.h.b16 %v2373
      %v2965 = vunpack.c.l.b16 %v2374
      %v2966 = vunpack.c.h.b16 %v2374
      %v2967 = vunpack.c.l.b16 %v2375
      %v2968 = vpack.c.b16 %v2689, %v2680
      %v2969 = vpack.c.b16 %v2690, %v2681
      %v2970 = vpack.c.b16 %v2691, %v2682
      %v2971 = vpack.c.b16 %v2692, %v2683
      %v2972 = vpack.c.b16 %v2693, %v2684
      %v2973 = vpack.c.b16 %v2694, %v2685
      %v2974 = vpack.c.b16 %v2695, %v2686
      %v2975 = vpack.c.b16 %v2696, %v2687
      %v2976 = vpack.c.b16 %v2697, %v2688
      %v2977 = vpack.c.b16 %v2707, %v2698
      %v2978 = vpack.c.b16 %v2708, %v2699
      %v2979 = vpack.c.b16 %v2709, %v2700
      %v2980 = vpack.c.b16 %v2710, %v2701
      %v2981 = vpack.c.b16 %v2711, %v2702
      %v2982 = vpack.c.b16 %v2712, %v2703
      %v2983 = vpack.c.b16 %v2713, %v2704
      %v2984 = vpack.c.b16 %v2714, %v2705
      %v2985 = vpack.c.b16 %v2715, %v2706
      %v2986 = vpack.c.b16 %v2725, %v2716
      %v2987 = vpack.c.b16 %v2726, %v2717
      %v2988 = vpack.c.b16 %v2727, %v2718
      %v2989 = vpack.c.b16 %v2728, %v2719
      %v2990 = vpack.c.b16 %v2729, %v2720
      %v2991 = vpack.c.b16 %v2730, %v2721
      %v2992 = vpack.c.b16 %v2731, %v2722
      %v2993 = vpack.c.b16 %v2732, %v2723
      %v2994 = vpack.c.b16 %v2733, %v2724
      %v2995 = vpack.c.b16 %v2743, %v2734
      %v2996 = vpack.c.b16 %v2744, %v2735
      %v2997 = vpack.c.b16 %v2745, %v2736
      %v2998 = vpack.c.b16 %v2746, %v2737
      %v2999 = vpack.c.b16 %v2747, %v2738
      %v3000 = vpack.c.b16 %v2748, %v2739
      %v3001 = vpack.c.b16 %v2749, %v2740
      %v3002 = vpack.c.b16 %v2750, %v2741
      %v3003 = vpack.c.b16 %v2751, %v2742
      %v3004 = vpack.c.b16 %v2761, %v2752
      %v3005 = vpack.c.b16 %v2762, %v2753
      %v3006 = vpack.c.b16 %v2763, %v2754
      %v3007 = vpack.c.b16 %v2764, %v2755
      %v3008 = vpack.c.b16 %v2765, %v2756
      %v3009 = vpack.c.b16 %v2766, %v2757
      %v3010 = vpack.c.b16 %v2767, %v2758
      %v3011 = vpack.c.b16 %v2768, %v2759
      %v3012 = vpack.c.b16 %v2769, %v2760
      %v3013 = vpack.c.b16 %v2779, %v2770
      %v3014 = vpack.c.b16 %v2780, %v2771
      %v3015 = vpack.c.b16 %v2781, %v2772
      %v3016 = vpack.c.b16 %v2782, %v2773
      %v3017 = vpack.c.b16 %v2783, %v2774
      %v3018 = vpack.c.b16 %v2784, %v2775
      %v3019 = vpack.c.b16 %v2785, %v2776
      %v3020 = vpack.c.b16 %v2786, %v2777
      %v3021 = vpack.c.b16 %v2787, %v2778
      %v3022 = vpack.c.b16 %v2797, %v2788
      %v3023 = vpack.c.b16 %v2798, %v2789
      %v3024 = vpack.c.b16 %v2799, %v2790
      %v3025 = vpack.c.b16 %v2800, %v2791
      %v3026 = vpack.c.b16 %v2801, %v2792
      %v3027 = vpack.c.b16 %v2802, %v2793
      %v3028 = vpack.c.b16 %v2803, %v2794
      %v3029 = vpack.c.b16 %v2804, %v2795
      %v3030 = vpack.c.b16 %v2805, %v2796
      %v3031 = vpack.c.b16 %v2815, %v2806
      %v3032 = vpack.c.b16 %v2816, %v2807
      %v3033 = vpack.c.b16 %v2817, %v2808
      %v3034 = vpack.c.b16 %v2818, %v2809
      %v3035 = vpack.c.b16 %v2819, %v2810
      %v3036 = vpack.c.b16 %v2820, %v2811
      %v3037 = vpack.c.b16 %v2821, %v2812
      %v3038 = vpack.c.b16 %v2822, %v2813
      %v3039 = vpack.c.b16 %v2823, %v2814
      %v3040 = vpack.c.b16 %v2833, %v2824
      %v3041 = vpack.c.b16 %v2834, %v2825
      %v3042 = vpack.c.b16 %v2835, %v2826
      %v3043 = vpack.c.b16 %v2836, %v2827
      %v3044 = vpack.c.b16 %v2837, %v2828
      %v3045 = vpack.c.b16 %v2838, %v2829
      %v3046 = vpack.c.b16 %v2839, %v2830
      %v3047 = vpack.c.b16 %v2840, %v2831
      %v3048 = vpack.c.b16 %v2841, %v2832
      %v3049 = vpack.c.b16 %v2851, %v2842
      %v3050 = vpack.c.b16 %v2852, %v2843
      %v3051 = vpack.c.b16 %v2853, %v2844
      %v3052 = vpack.c.b16 %v2854, %v2845
      %v3053 = vpack.c.b16 %v2855, %v2846
      %v3054 = vpack.c.b16 %v2856, %v2847
      %v3055 = vpack.c.b16 %v2857, %v2848
      %v3056 = vpack.c.b16 %v2858, %v2849
      %v3057 = vpack.c.b16 %v2859, %v2850
      %v3058 = vpack.c.b16 %v2869, %v2860
      %v3059 = vpack.c.b16 %v2870, %v2861
      %v3060 = vpack.c.b16 %v2871, %v2862
      %v3061 = vpack.c.b16 %v2872, %v2863
      %v3062 = vpack.c.b16 %v2873, %v2864
      %v3063 = vpack.c.b16 %v2874, %v2865
      %v3064 = vpack.c.b16 %v2875, %v2866
      %v3065 = vpack.c.b16 %v2876, %v2867
      %v3066 = vpack.c.b16 %v2877, %v2868
      %v3067 = vpack.c.b16 %v2887, %v2878
      %v3068 = vpack.c.b16 %v2888, %v2879
      %v3069 = vpack.c.b16 %v2889, %v2880
      %v3070 = vpack.c.b16 %v2890, %v2881
      %v3071 = vpack.c.b16 %v2891, %v2882
      %v3072 = vpack.c.b16 %v2892, %v2883
      %v3073 = vpack.c.b16 %v2893, %v2884
      %v3074 = vpack.c.b16 %v2894, %v2885
      %v3075 = vpack.c.b16 %v2895, %v2886
      %v3076 = vpack.c.b16 %v2905, %v2896
      %v3077 = vpack.c.b16 %v2906, %v2897
      %v3078 = vpack.c.b16 %v2907, %v2898
      %v3079 = vpack.c.b16 %v2908, %v2899
      %v3080 = vpack.c.b16 %v2909, %v2900
      %v3081 = vpack.c.b16 %v2910, %v2901
      %v3082 = vpack.c.b16 %v2911, %v2902
      %v3083 = vpack.c.b16 %v2912, %v2903
      %v3084 = vpack.c.b16 %v2913, %v2904
      %v3085 = vpack.c.b16 %v2923, %v2914
      %v3086 = vpack.c.b16 %v2924, %v2915
      %v3087 = vpack.c.b16 %v2925, %v2916
      %v3088 = vpack.c.b16 %v2926, %v2917
      %v3089 = vpack.c.b16 %v2927, %v2918
      %v3090 = vpack.c.b16 %v2928, %v2919
      %v3091 = vpack.c.b16 %v2929, %v2920
      %v3092 = vpack.c.b16 %v2930, %v2921
      %v3093 = vpack.c.b16 %v2931, %v2922
      %v3094 = vpack.c.b16 %v2941, %v2932
      %v3095 = vpack.c.b16 %v2942, %v2933
      %v3096 = vpack.c.b16 %v2943, %v2934
      %v3097 = vpack.c.b16 %v2944, %v2935
      %v3098 = vpack.c.b16 %v2945, %v2936
      %v3099 = vpack.c.b16 %v2946, %v2937
      %v3100 = vpack.c.b16 %v2947, %v2938
      %v3101 = vpack.c.b16 %v2948, %v2939
      %v3102 = vpack.c.b16 %v2949, %v2940
      %v3103 = vpack.c.b16 %v2959, %v2950
      %v3104 = vpack.c.b16 %v2960, %v2951
      %v3105 = vpack.c.b16 %v2961, %v2952
      %v3106 = vpack.c.b16 %v2962, %v2953
      %v3107 = vpack.c.b16 %v2963, %v2954
      %v3108 = vpack.c.b16 %v2964, %v2955
      %v3109 = vpack.c.b16 %v2965, %v2956
      %v3110 = vpack.c.b16 %v2966, %v2957
      %v3111 = vpack.c.b16 %v2967, %v2958
      %v3400 = vunpack.c.l.b16 %v2376
      %v3401 = vunpack.c.l.b16 %v2377
      %v3402 = vunpack.c.l.b16 %v2378
      %v3403 = vunpack.c.l.b16 %v2379
      %v3404 = vunpack.c.l.b16 %v2380
      %v3405 = vunpack.c.l.b16 %v2381
      %v3406 = vunpack.c.l.b16 %v2382
      %v3407 = vunpack.c.l.b16 %v2383
      %v3408 = vunpack.c.l.b16 %v2384
      %v3409 = vunpack.c.l.b16 %v2385
      %v3410 = vunpack.c.l.b16 %v2386
      %v3411 = vunpack.c.l.b16 %v2387
      %v3412 = vunpack.c.l.b16 %v2388
      %v3413 = vunpack.c.l.b16 %v2389
      %v3414 = vunpack.c.l.b16 %v2390
      %v3415 = vunpack.c.l.b16 %v2391
      %v3416 = vunpack.c.l.b16 %v2392
      %v3417 = vunpack.c.l.b16 %v2393
      %v3418 = vunpack.c.l.b16 %v2394
      %v3419 = vunpack.c.l.b16 %v2395
      %v3420 = vunpack.c.l.b16 %v2396
      %v3421 = vunpack.c.l.b16 %v2397
      %v3422 = vunpack.c.l.b16 %v2398
      %v3423 = vunpack.c.l.b16 %v2399
      %v3424 = vunpack.c.l.b16 %v2400
      %v3425 = vunpack.c.l.b16 %v2401
      %v3426 = vunpack.c.l.b16 %v2402
      %v3427 = vunpack.c.l.b16 %v2403
      %v3428 = vunpack.c.l.b16 %v2404
      %v3429 = vunpack.c.l.b16 %v2405
      %v3430 = vunpack.c.l.b16 %v2406
      %v3431 = vunpack.c.l.b16 %v2407
      %v3432 = vunpack.c.l.b16 %v2408
      %v3433 = vunpack.c.l.b16 %v2409
      %v3434 = vunpack.c.l.b16 %v2410
      %v3435 = vunpack.c.l.b16 %v2411
      %v3436 = vunpack.c.l.b16 %v2412
      %v3437 = vunpack.c.l.b16 %v2413
      %v3438 = vunpack.c.l.b16 %v2414
      %v3439 = vunpack.c.l.b16 %v2415
      %v3440 = vunpack.c.l.b16 %v2416
      %v3441 = vunpack.c.l.b16 %v2417
      %v3442 = vunpack.c.l.b16 %v2418
      %v3443 = vunpack.c.l.b16 %v2419
      %v3444 = vunpack.c.l.b16 %v2420
      %v3445 = vunpack.c.l.b16 %v2421
      %v3446 = vunpack.c.l.b16 %v2422
      %v3447 = vunpack.c.l.b16 %v2423
      %v3448 = vunpack.c.l.b16 %v2424
      %v3449 = vunpack.c.l.b16 %v2425
      %v3450 = vunpack.c.l.b16 %v2426
      %v3451 = vunpack.c.l.b16 %v2427
      %v3452 = vunpack.c.l.b16 %v2428
      %v3453 = vunpack.c.l.b16 %v2429
      %v3454 = vunpack.c.l.b16 %v2430
      %v3455 = vunpack.c.l.b16 %v2431
      %v3456 = vunpack.c.l.b16 %v2432
      %v3457 = vunpack.c.l.b16 %v2433
      %v3458 = vunpack.c.l.b16 %v2434
      %v3459 = vunpack.c.l.b16 %v2435
      %v3460 = vunpack.c.l.b16 %v2436
      %v3461 = vunpack.c.l.b16 %v2437
      %v3462 = vunpack.c.l.b16 %v2438
      %v3463 = vunpack.c.l.b16 %v2439
      %v3464 = vunpack.c.l.b16 %v2440
      %v3465 = vunpack.c.l.b16 %v2441
      %v3466 = vunpack.c.l.b16 %v2442
      %v3467 = vunpack.c.l.b16 %v2443
      %v3468 = vunpack.c.l.b16 %v2444
      %v3469 = vunpack.c.l.b16 %v2445
      %v3470 = vunpack.c.l.b16 %v2446
      %v3471 = vunpack.c.l.b16 %v2447
      %v3472 = vunpack.c.l.b16 %v2448
      %v3473 = vunpack.c.l.b16 %v2449
      %v3474 = vunpack.c.l.b16 %v2450
      %v3475 = vunpack.c.l.b16 %v2451
      %v3476 = vunpack.c.l.b16 %v2452
      %v3477 = vunpack.c.l.b16 %v2453
      %v3478 = vunpack.c.l.b16 %v2454
      %v3479 = vunpack.c.l.b16 %v2455
      %v3480 = vunpack.c.l.b16 %v2456
      %v3481 = vunpack.c.l.b16 %v2457
      %v3482 = vunpack.c.l.b16 %v2458
      %v3483 = vunpack.c.l.b16 %v2459
      %v3484 = vunpack.c.l.b16 %v2460
      %v3485 = vunpack.c.l.b16 %v2461
      %v3486 = vunpack.c.l.b16 %v2462
      %v3487 = vunpack.c.l.b16 %v2463
      %v3488 = vunpack.c.l.b16 %v2464
      %v3489 = vunpack.c.l.b16 %v2465
      %v3490 = vunpack.c.l.b16 %v2466
      %v3491 = vunpack.c.l.b16 %v2467
      %v3492 = vunpack.c.l.b16 %v2468
      %v3493 = vunpack.c.l.b16 %v2469
      %v3494 = vunpack.c.l.b16 %v2470
      %v3495 = vunpack.c.l.b16 %v2471
      %v3496 = vunpack.c.l.b16 %v2472
      %v3497 = vunpack.c.l.b16 %v2473
      %v3498 = vunpack.c.l.b16 %v2474
      %v3499 = vunpack.c.l.b16 %v2475
      %v3500 = vunpack.c.l.b16 %v2476
      %v3501 = vunpack.c.l.b16 %v2477
      %v3502 = vunpack.c.l.b16 %v2478
      %v3503 = vunpack.c.l.b16 %v2479
      %v3504 = vunpack.c.l.b16 %v2480
      %v3505 = vunpack.c.l.b16 %v2481
      %v3506 = vunpack.c.l.b16 %v2482
      %v3507 = vunpack.c.l.b16 %v2483
      %v3508 = vunpack.c.l.b16 %v2484
      %v3509 = vunpack.c.l.b16 %v2485
      %v3510 = vunpack.c.l.b16 %v2486
      %v3511 = vunpack.c.l.b16 %v2487
      %v3512 = vunpack.c.l.b16 %v2488
      %v3513 = vunpack.c.l.b16 %v2489
      %v3514 = vunpack.c.l.b16 %v2490
      %v3515 = vunpack.c.l.b16 %v2491
      %v3516 = vunpack.c.l.b16 %v2492
      %v3517 = vunpack.c.l.b16 %v2493
      %v3518 = vunpack.c.l.b16 %v2494
      %v3519 = vunpack.c.l.b16 %v2495
      %v3520 = vunpack.c.l.b16 %v2496
      %v3521 = vunpack.c.l.b16 %v2497
      %v3522 = vunpack.c.l.b16 %v2498
      %v3523 = vunpack.c.l.b16 %v2499
      %v3524 = vunpack.c.l.b16 %v2500
      %v3525 = vunpack.c.l.b16 %v2501
      %v3526 = vunpack.c.l.b16 %v2502
      %v3527 = vunpack.c.l.b16 %v2503
      %v3528 = vunpack.c.l.b16 %v2504
      %v3529 = vunpack.c.l.b16 %v2505
      %v3530 = vunpack.c.l.b16 %v2506
      %v3531 = vunpack.c.l.b16 %v2507
      %v3532 = vunpack.c.l.b16 %v2508
      %v3533 = vunpack.c.l.b16 %v2509
      %v3534 = vunpack.c.l.b16 %v2510
      %v3535 = vunpack.c.l.b16 %v2511
      %v3536 = vunpack.c.l.b16 %v2512
      %v3537 = vunpack.c.l.b16 %v2513
      %v3538 = vunpack.c.l.b16 %v2514
      %v3539 = vunpack.c.l.b16 %v2515
      %v3540 = vunpack.c.l.b16 %v2516
      %v3541 = vunpack.c.l.b16 %v2517
      %v3542 = vunpack.c.l.b16 %v2518
      %v3543 = vunpack.c.l.b16 %v2519
      %v3544 = vpack.c.b16 %v3401, %v3400
      %v3545 = vpack.c.b16 %v3403, %v3402
      %v3546 = vpack.c.b16 %v3405, %v3404
      %v3547 = vpack.c.b16 %v3407, %v3406
      %v3548 = vpack.c.b16 %v3409, %v3408
      %v3549 = vpack.c.b16 %v3411, %v3410
      %v3550 = vpack.c.b16 %v3413, %v3412
      %v3551 = vpack.c.b16 %v3415, %v3414
      %v3552 = vpack.c.b16 %v3417, %v3416
      %v3553 = vpack.c.b16 %v3419, %v3418
      %v3554 = vpack.c.b16 %v3421, %v3420
      %v3555 = vpack.c.b16 %v3423, %v3422
      %v3556 = vpack.c.b16 %v3425, %v3424
      %v3557 = vpack.c.b16 %v3427, %v3426
      %v3558 = vpack.c.b16 %v3429, %v3428
      %v3559 = vpack.c.b16 %v3431, %v3430
      %v3560 = vpack.c.b16 %v3433, %v3432
      %v3561 = vpack.c.b16 %v3435, %v3434
      %v3562 = vpack.c.b16 %v3437, %v3436
      %v3563 = vpack.c.b16 %v3439, %v3438
      %v3564 = vpack.c.b16 %v3441, %v3440
      %v3565 = vpack.c.b16 %v3443, %v3442
      %v3566 = vpack.c.b16 %v3445, %v3444
      %v3567 = vpack.c.b16 %v3447, %v3446
      %v3568 = vpack.c.b16 %v3449, %v3448
      %v3569 = vpack.c.b16 %v3451, %v3450
      %v3570 = vpack.c.b16 %v3453, %v3452
      %v3571 = vpack.c.b16 %v3455, %v3454
      %v3572 = vpack.c.b16 %v3457, %v3456
      %v3573 = vpack.c.b16 %v3459, %v3458
      %v3574 = vpack.c.b16 %v3461, %v3460
      %v3575 = vpack.c.b16 %v3463, %v3462
      %v3576 = vpack.c.b16 %v3465, %v3464
      %v3577 = vpack.c.b16 %v3467, %v3466
      %v3578 = vpack.c.b16 %v3469, %v3468
      %v3579 = vpack.c.b16 %v3471, %v3470
      %v3580 = vpack.c.b16 %v3473, %v3472
      %v3581 = vpack.c.b16 %v3475, %v3474
      %v3582 = vpack.c.b16 %v3477, %v3476
      %v3583 = vpack.c.b16 %v3479, %v3478
      %v3584 = vpack.c.b16 %v3481, %v3480
      %v3585 = vpack.c.b16 %v3483, %v3482
      %v3586 = vpack.c.b16 %v3485, %v3484
      %v3587 = vpack.c.b16 %v3487, %v3486
      %v3588 = vpack.c.b16 %v3489, %v3488
      %v3589 = vpack.c.b16 %v3491, %v3490
      %v3590 = vpack.c.b16 %v3493, %v3492
      %v3591 = vpack.c.b16 %v3495, %v3494
      %v3592 = vpack.c.b16 %v3497, %v3496
      %v3593 = vpack.c.b16 %v3499, %v3498
      %v3594 = vpack.c.b16 %v3501, %v3500
      %v3595 = vpack.c.b16 %v3503, %v3502
      %v3596 = vpack.c.b16 %v3505, %v3504
      %v3597 = vpack.c.b16 %v3507, %v3506
      %v3598 = vpack.c.b16 %v3509, %v3508
      %v3599 = vpack.c.b16 %v3511, %v3510
      %v3600 = vpack.c.b16 %v3513, %v3512
      %v3601 = vpack.c.b16 %v3515, %v3514
      %v3602 = vpack.c.b16 %v3517, %v3516
      %v3603 = vpack.c.b16 %v3519, %v3518
      %v3604 = vpack.c.b16 %v3521, %v3520
      %v3605 = vpack.c.b16 %v3523, %v3522
      %v3606 = vpack.c.b16 %v3525, %v3524
      %v3607 = vpack.c.b16 %v3527, %v3526
      %v3608 = vpack.c.b16 %v3529, %v3528
      %v3609 = vpack.c.b16 %v3531, %v3530
      %v3610 = vpack.c.b16 %v3533, %v3532
      %v3611 = vpack.c.b16 %v3535, %v3534
      %v3612 = vpack.c.b16 %v3537, %v3536
      %v3613 = vpack.c.b16 %v3539, %v3538
      %v3614 = vpack.c.b16 %v3541, %v3540
      %v3615 = vpack.c.b16 %v3543, %v3542
      %3688 = vmatprep.subr.bf16.mxu0 0
      %3689 = vmatpush1.bf16.msra.mxu0 %v3551
      %3690 = vmatprep.subr.bf16.mxu0 0
      %3691 = vmatpush1.bf16.msra.mxu0 %v3550
      %3692 = vmatprep.subr.bf16.mxu0 0
      %3693 = vmatpush1.bf16.msra.mxu0 %v3549
      %3694 = vmatprep.subr.bf16.mxu0 0
      %3695 = vmatpush1.bf16.msra.mxu0 %v3548
      %3696 = vmatprep.subr.bf16.mxu0 0
      %3697 = vmatpush1.bf16.msra.mxu0 %v3547
      %3698 = vmatprep.subr.bf16.mxu0 0
      %3699 = vmatpush1.bf16.msra.mxu0 %v3546
      %3700 = vmatprep.subr.bf16.mxu0 0
      %3701 = vmatpush1.bf16.msra.mxu0 %v3545
      %3702 = vmatprep.subr.bf16.mxu0 0
      %3703 = vmatpush1.bf16.msra.mxu0 %v3544
      %3704 = vmatprep.subr.bf16.mxu0 0
      %3705 = vmatpush2.bf16.msra.mxu0 %v3559
      %3706 = vmatprep.subr.bf16.mxu0 0
      %3707 = vmatpush2.bf16.msra.mxu0 %v3558
      %3708 = vmatprep.subr.bf16.mxu0 0
      %3709 = vmatpush2.bf16.msra.mxu0 %v3557
      %3710 = vmatprep.subr.bf16.mxu0 0
      %3711 = vmatpush2.bf16.msra.mxu0 %v3556
      %3712 = vmatprep.subr.bf16.mxu0 0
      %3713 = vmatpush2.bf16.msra.mxu0 %v3555
      %3714 = vmatprep.subr.bf16.mxu0 0
      %3715 = vmatpush2.bf16.msra.mxu0 %v3554
      %3716 = vmatprep.subr.bf16.mxu0 0
      %3717 = vmatpush2.bf16.msra.mxu0 %v3553
      %3718 = vmatprep.subr.bf16.mxu0 0
      %3719 = vmatpush2.bf16.msra.mxu0 %v3552
      %3720 = vmatprep.mubr.bf16.mxu0 %v2969
      %3721 = vmatmul.mubr.bf16.gmra.mxu0 %v2968
      %v3722 = vpop.f32.mrf.mxu0
      %v3723 = vadd.f32 0.0, %v3722
      %v3724 = vpop.f32.mrf.mxu0
      %v3725 = vpop.f32.mrf.mxu0
      %v3726 = vadd.f32 0.0, %v3725
      %v3727 = vpop.f32.mrf.mxu0
      %3728 = vmatprep.mubr.bf16.mxu0 %v2978
      %3729 = vmatmul.mubr.bf16.gmra.mxu0 %v2977
      %v3730 = vpop.f32.mrf.mxu0
      %v3731 = vadd.f32 0.0, %v3730
      %v3732 = vpop.f32.mrf.mxu0
      %v3733 = vpop.f32.mrf.mxu0
      %v3734 = vadd.f32 0.0, %v3733
      %v3735 = vpop.f32.mrf.mxu0
      %3736 = vmatprep.mubr.bf16.mxu0 %v2987
      %3737 = vmatmul.mubr.bf16.gmra.mxu0 %v2986
      %v3738 = vpop.f32.mrf.mxu0
      %v3739 = vadd.f32 0.0, %v3738
      %v3740 = vpop.f32.mrf.mxu0
      %v3741 = vpop.f32.mrf.mxu0
      %v3742 = vadd.f32 0.0, %v3741
      %v3743 = vpop.f32.mrf.mxu0
      %3744 = vmatprep.mubr.bf16.mxu0 %v2996
      %3745 = vmatmul.mubr.bf16.gmra.mxu0 %v2995
      %v3746 = vpop.f32.mrf.mxu0
      %v3747 = vadd.f32 0.0, %v3746
      %v3748 = vpop.f32.mrf.mxu0
      %v3749 = vpop.f32.mrf.mxu0
      %v3750 = vadd.f32 0.0, %v3749
      %v3751 = vpop.f32.mrf.mxu0
      %3752 = vmatprep.mubr.bf16.mxu0 %v3005
      %3753 = vmatmul.mubr.bf16.gmra.mxu0 %v3004
      %v3754 = vpop.f32.mrf.mxu0
      %v3755 = vadd.f32 0.0, %v3754
      %v3756 = vpop.f32.mrf.mxu0
      %v3757 = vpop.f32.mrf.mxu0
      %v3758 = vadd.f32 0.0, %v3757
      %v3759 = vpop.f32.mrf.mxu0
      %3760 = vmatprep.mubr.bf16.mxu0 %v3014
      %3761 = vmatmul.mubr.bf16.gmra.mxu0 %v3013
      %v3762 = vpop.f32.mrf.mxu0
      %v3763 = vadd.f32 0.0, %v3762
      %v3764 = vpop.f32.mrf.mxu0
      %v3765 = vpop.f32.mrf.mxu0
      %v3766 = vadd.f32 0.0, %v3765
      %v3767 = vpop.f32.mrf.mxu0
      %3768 = vmatprep.mubr.bf16.mxu0 %v3023
      %3769 = vmatmul.mubr.bf16.gmra.mxu0 %v3022
      %v3770 = vpop.f32.mrf.mxu0
      %v3771 = vadd.f32 0.0, %v3770
      %v3772 = vpop.f32.mrf.mxu0
      %v3773 = vpop.f32.mrf.mxu0
      %v3774 = vadd.f32 0.0, %v3773
      %v3775 = vpop.f32.mrf.mxu0
      %3776 = vmatprep.mubr.bf16.mxu0 %v3032
      %3777 = vmatmul.mubr.bf16.gmra.mxu0 %v3031
      %v3778 = vpop.f32.mrf.mxu0
      %v3779 = vadd.f32 0.0, %v3778
      %v3780 = vpop.f32.mrf.mxu0
      %v3781 = vpop.f32.mrf.mxu0
      %v3782 = vadd.f32 0.0, %v3781
      %v3783 = vpop.f32.mrf.mxu0
      %3784 = vmatprep.mubr.bf16.mxu0 %v3041
      %3785 = vmatmul.mubr.bf16.gmra.mxu0 %v3040
      %v3786 = vpop.f32.mrf.mxu0
      %v3787 = vadd.f32 0.0, %v3786
      %v3788 = vpop.f32.mrf.mxu0
      %v3789 = vpop.f32.mrf.mxu0
      %v3790 = vadd.f32 0.0, %v3789
      %v3791 = vpop.f32.mrf.mxu0
      %3792 = vmatprep.mubr.bf16.mxu0 %v3050
      %3793 = vmatmul.mubr.bf16.gmra.mxu0 %v3049
      %v3794 = vpop.f32.mrf.mxu0
      %v3795 = vadd.f32 0.0, %v3794
      %v3796 = vpop.f32.mrf.mxu0
      %v3797 = vpop.f32.mrf.mxu0
      %v3798 = vadd.f32 0.0, %v3797
      %v3799 = vpop.f32.mrf.mxu0
      %3800 = vmatprep.mubr.bf16.mxu0 %v3059
      %3801 = vmatmul.mubr.bf16.gmra.mxu0 %v3058
      %v3802 = vpop.f32.mrf.mxu0
      %v3803 = vadd.f32 0.0, %v3802
      %v3804 = vpop.f32.mrf.mxu0
      %v3805 = vpop.f32.mrf.mxu0
      %v3806 = vadd.f32 0.0, %v3805
      %v3807 = vpop.f32.mrf.mxu0
      %3808 = vmatprep.mubr.bf16.mxu0 %v3068
      %3809 = vmatmul.mubr.bf16.gmra.mxu0 %v3067
      %v3810 = vpop.f32.mrf.mxu0
      %v3811 = vadd.f32 0.0, %v3810
      %v3812 = vpop.f32.mrf.mxu0
      %v3813 = vpop.f32.mrf.mxu0
      %v3814 = vadd.f32 0.0, %v3813
      %v3815 = vpop.f32.mrf.mxu0
      %3816 = vmatprep.mubr.bf16.mxu0 %v3077
      %3817 = vmatmul.mubr.bf16.gmra.mxu0 %v3076
      %v3818 = vpop.f32.mrf.mxu0
      %v3819 = vadd.f32 0.0, %v3818
      %v3820 = vpop.f32.mrf.mxu0
      %v3821 = vpop.f32.mrf.mxu0
      %v3822 = vadd.f32 0.0, %v3821
      %v3823 = vpop.f32.mrf.mxu0
      %3824 = vmatprep.mubr.bf16.mxu0 %v3086
      %3825 = vmatmul.mubr.bf16.gmra.mxu0 %v3085
      %v3826 = vpop.f32.mrf.mxu0
      %v3827 = vadd.f32 0.0, %v3826
      %v3828 = vpop.f32.mrf.mxu0
      %v3829 = vpop.f32.mrf.mxu0
      %v3830 = vadd.f32 0.0, %v3829
      %v3831 = vpop.f32.mrf.mxu0
      %3832 = vmatprep.mubr.bf16.mxu0 %v3095
      %3833 = vmatmul.mubr.bf16.gmra.mxu0 %v3094
      %v3834 = vpop.f32.mrf.mxu0
      %v3835 = vadd.f32 0.0, %v3834
      %v3836 = vpop.f32.mrf.mxu0
      %v3837 = vpop.f32.mrf.mxu0
      %v3838 = vadd.f32 0.0, %v3837
      %v3839 = vpop.f32.mrf.mxu0
      %3840 = vmatprep.mubr.bf16.mxu0 %v3104
      %3841 = vmatmul.mubr.bf16.gmra.mxu0 %v3103
      %v3842 = vpop.f32.mrf.mxu0
      %v3843 = vadd.f32 0.0, %v3842
      %v3844 = vpop.f32.mrf.mxu0
      %v3845 = vpop.f32.mrf.mxu0
      %v3846 = vadd.f32 0.0, %v3845
      %v3847 = vpop.f32.mrf.mxu0
      %3848 = vdwg.mxu0
      %3849 = vmatprep.subr.bf16.mxu0 0
      %3850 = vmatpush1.bf16.msra.mxu0 %v3567
      %3851 = vmatprep.subr.bf16.mxu0 0
      %3852 = vmatpush1.bf16.msra.mxu0 %v3566
      %3853 = vmatprep.subr.bf16.mxu0 0
      %3854 = vmatpush1.bf16.msra.mxu0 %v3565
      %3855 = vmatprep.subr.bf16.mxu0 0
      %3856 = vmatpush1.bf16.msra.mxu0 %v3564
      %3857 = vmatprep.subr.bf16.mxu0 0
      %3858 = vmatpush1.bf16.msra.mxu0 %v3563
      %3859 = vmatprep.subr.bf16.mxu0 0
      %3860 = vmatpush1.bf16.msra.mxu0 %v3562
      %3861 = vmatprep.subr.bf16.mxu0 0
      %3862 = vmatpush1.bf16.msra.mxu0 %v3561
      %3863 = vmatprep.subr.bf16.mxu0 0
      %3864 = vmatpush1.bf16.msra.mxu0 %v3560
      %3865 = vmatprep.subr.bf16.mxu0 0
      %3866 = vmatpush2.bf16.msra.mxu0 %v3575
      %3867 = vmatprep.subr.bf16.mxu0 0
      %3868 = vmatpush2.bf16.msra.mxu0 %v3574
      %3869 = vmatprep.subr.bf16.mxu0 0
      %3870 = vmatpush2.bf16.msra.mxu0 %v3573
      %3871 = vmatprep.subr.bf16.mxu0 0
      %3872 = vmatpush2.bf16.msra.mxu0 %v3572
      %3873 = vmatprep.subr.bf16.mxu0 0
      %3874 = vmatpush2.bf16.msra.mxu0 %v3571
      %3875 = vmatprep.subr.bf16.mxu0 0
      %3876 = vmatpush2.bf16.msra.mxu0 %v3570
      %3877 = vmatprep.subr.bf16.mxu0 0
      %3878 = vmatpush2.bf16.msra.mxu0 %v3569
      %3879 = vmatprep.subr.bf16.mxu0 0
      %3880 = vmatpush2.bf16.msra.mxu0 %v3568
      %3881 = vmatprep.mubr.bf16.mxu0 %v2971
      %3882 = vmatmul.mubr.bf16.gmra.mxu0 %v2970
      %v3883 = vpop.f32.mrf.mxu0
      %v3884 = vadd.f32 %v3723, %v3883
      %v3885 = vpop.f32.mrf.mxu0
      %v3886 = vpop.f32.mrf.mxu0
      %v3887 = vadd.f32 %v3726, %v3886
      %v3888 = vpop.f32.mrf.mxu0
      %3889 = vmatprep.mubr.bf16.mxu0 %v2980
      %3890 = vmatmul.mubr.bf16.gmra.mxu0 %v2979
      %v3891 = vpop.f32.mrf.mxu0
      %v3892 = vadd.f32 %v3731, %v3891
      %v3893 = vpop.f32.mrf.mxu0
      %v3894 = vpop.f32.mrf.mxu0
      %v3895 = vadd.f32 %v3734, %v3894
      %v3896 = vpop.f32.mrf.mxu0
      %3897 = vmatprep.mubr.bf16.mxu0 %v2989
      %3898 = vmatmul.mubr.bf16.gmra.mxu0 %v2988
      %v3899 = vpop.f32.mrf.mxu0
      %v3900 = vadd.f32 %v3739, %v3899
      %v3901 = vpop.f32.mrf.mxu0
      %v3902 = vpop.f32.mrf.mxu0
      %v3903 = vadd.f32 %v3742, %v3902
      %v3904 = vpop.f32.mrf.mxu0
      %3905 = vmatprep.mubr.bf16.mxu0 %v2998
      %3906 = vmatmul.mubr.bf16.gmra.mxu0 %v2997
      %v3907 = vpop.f32.mrf.mxu0
      %v3908 = vadd.f32 %v3747, %v3907
      %v3909 = vpop.f32.mrf.mxu0
      %v3910 = vpop.f32.mrf.mxu0
      %v3911 = vadd.f32 %v3750, %v3910
      %v3912 = vpop.f32.mrf.mxu0
      %3913 = vmatprep.mubr.bf16.mxu0 %v3007
      %3914 = vmatmul.mubr.bf16.gmra.mxu0 %v3006
      %v3915 = vpop.f32.mrf.mxu0
      %v3916 = vadd.f32 %v3755, %v3915
      %v3917 = vpop.f32.mrf.mxu0
      %v3918 = vpop.f32.mrf.mxu0
      %v3919 = vadd.f32 %v3758, %v3918
      %v3920 = vpop.f32.mrf.mxu0
      %3921 = vmatprep.mubr.bf16.mxu0 %v3016
      %3922 = vmatmul.mubr.bf16.gmra.mxu0 %v3015
      %v3923 = vpop.f32.mrf.mxu0
      %v3924 = vadd.f32 %v3763, %v3923
      %v3925 = vpop.f32.mrf.mxu0
      %v3926 = vpop.f32.mrf.mxu0
      %v3927 = vadd.f32 %v3766, %v3926
      %v3928 = vpop.f32.mrf.mxu0
      %3929 = vmatprep.mubr.bf16.mxu0 %v3025
      %3930 = vmatmul.mubr.bf16.gmra.mxu0 %v3024
      %v3931 = vpop.f32.mrf.mxu0
      %v3932 = vadd.f32 %v3771, %v3931
      %v3933 = vpop.f32.mrf.mxu0
      %v3934 = vpop.f32.mrf.mxu0
      %v3935 = vadd.f32 %v3774, %v3934
      %v3936 = vpop.f32.mrf.mxu0
      %3937 = vmatprep.mubr.bf16.mxu0 %v3034
      %3938 = vmatmul.mubr.bf16.gmra.mxu0 %v3033
      %v3939 = vpop.f32.mrf.mxu0
      %v3940 = vadd.f32 %v3779, %v3939
      %v3941 = vpop.f32.mrf.mxu0
      %v3942 = vpop.f32.mrf.mxu0
      %v3943 = vadd.f32 %v3782, %v3942
      %v3944 = vpop.f32.mrf.mxu0
      %3945 = vmatprep.mubr.bf16.mxu0 %v3043
      %3946 = vmatmul.mubr.bf16.gmra.mxu0 %v3042
      %v3947 = vpop.f32.mrf.mxu0
      %v3948 = vadd.f32 %v3787, %v3947
      %v3949 = vpop.f32.mrf.mxu0
      %v3950 = vpop.f32.mrf.mxu0
      %v3951 = vadd.f32 %v3790, %v3950
      %v3952 = vpop.f32.mrf.mxu0
      %3953 = vmatprep.mubr.bf16.mxu0 %v3052
      %3954 = vmatmul.mubr.bf16.gmra.mxu0 %v3051
      %v3955 = vpop.f32.mrf.mxu0
      %v3956 = vadd.f32 %v3795, %v3955
      %v3957 = vpop.f32.mrf.mxu0
      %v3958 = vpop.f32.mrf.mxu0
      %v3959 = vadd.f32 %v3798, %v3958
      %v3960 = vpop.f32.mrf.mxu0
      %3961 = vmatprep.mubr.bf16.mxu0 %v3061
      %3962 = vmatmul.mubr.bf16.gmra.mxu0 %v3060
      %v3963 = vpop.f32.mrf.mxu0
      %v3964 = vadd.f32 %v3803, %v3963
      %v3965 = vpop.f32.mrf.mxu0
      %v3966 = vpop.f32.mrf.mxu0
      %v3967 = vadd.f32 %v3806, %v3966
      %v3968 = vpop.f32.mrf.mxu0
      %3969 = vmatprep.mubr.bf16.mxu0 %v3070
      %3970 = vmatmul.mubr.bf16.gmra.mxu0 %v3069
      %v3971 = vpop.f32.mrf.mxu0
      %v3972 = vadd.f32 %v3811, %v3971
      %v3973 = vpop.f32.mrf.mxu0
      %v3974 = vpop.f32.mrf.mxu0
      %v3975 = vadd.f32 %v3814, %v3974
      %v3976 = vpop.f32.mrf.mxu0
      %3977 = vmatprep.mubr.bf16.mxu0 %v3079
      %3978 = vmatmul.mubr.bf16.gmra.mxu0 %v3078
      %v3979 = vpop.f32.mrf.mxu0
      %v3980 = vadd.f32 %v3819, %v3979
      %v3981 = vpop.f32.mrf.mxu0
      %v3982 = vpop.f32.mrf.mxu0
      %v3983 = vadd.f32 %v3822, %v3982
      %v3984 = vpop.f32.mrf.mxu0
      %3985 = vmatprep.mubr.bf16.mxu0 %v3088
      %3986 = vmatmul.mubr.bf16.gmra.mxu0 %v3087
      %v3987 = vpop.f32.mrf.mxu0
      %v3988 = vadd.f32 %v3827, %v3987
      %v3989 = vpop.f32.mrf.mxu0
      %v3990 = vpop.f32.mrf.mxu0
      %v3991 = vadd.f32 %v3830, %v3990
      %v3992 = vpop.f32.mrf.mxu0
      %3993 = vmatprep.mubr.bf16.mxu0 %v3097
      %3994 = vmatmul.mubr.bf16.gmra.mxu0 %v3096
      %v3995 = vpop.f32.mrf.mxu0
      %v3996 = vadd.f32 %v3835, %v3995
      %v3997 = vpop.f32.mrf.mxu0
      %v3998 = vpop.f32.mrf.mxu0
      %v3999 = vadd.f32 %v3838, %v3998
      %v4000 = vpop.f32.mrf.mxu0
      %4001 = vmatprep.mubr.bf16.mxu0 %v3106
      %4002 = vmatmul.mubr.bf16.gmra.mxu0 %v3105
      %v4003 = vpop.f32.mrf.mxu0
      %v4004 = vadd.f32 %v3843, %v4003
      %v4005 = vpop.f32.mrf.mxu0
      %v4006 = vpop.f32.mrf.mxu0
      %v4007 = vadd.f32 %v3846, %v4006
      %v4008 = vpop.f32.mrf.mxu0
      %4009 = vdwg.mxu0
      %4010 = vmatprep.subr.bf16.mxu0 0
      %4011 = vmatpush1.bf16.msra.mxu0 %v3583
      %4012 = vmatprep.subr.bf16.mxu0 0
      %4013 = vmatpush1.bf16.msra.mxu0 %v3582
      %4014 = vmatprep.subr.bf16.mxu0 0
      %4015 = vmatpush1.bf16.msra.mxu0 %v3581
      %4016 = vmatprep.subr.bf16.mxu0 0
      %4017 = vmatpush1.bf16.msra.mxu0 %v3580
      %4018 = vmatprep.subr.bf16.mxu0 0
      %4019 = vmatpush1.bf16.msra.mxu0 %v3579
      %4020 = vmatprep.subr.bf16.mxu0 0
      %4021 = vmatpush1.bf16.msra.mxu0 %v3578
      %4022 = vmatprep.subr.bf16.mxu0 0
      %4023 = vmatpush1.bf16.msra.mxu0 %v3577
      %4024 = vmatprep.subr.bf16.mxu0 0
      %4025 = vmatpush1.bf16.msra.mxu0 %v3576
      %4026 = vmatprep.subr.bf16.mxu0 0
      %4027 = vmatpush2.bf16.msra.mxu0 %v3591
      %4028 = vmatprep.subr.bf16.mxu0 0
      %4029 = vmatpush2.bf16.msra.mxu0 %v3590
      %4030 = vmatprep.subr.bf16.mxu0 0
      %4031 = vmatpush2.bf16.msra.mxu0 %v3589
      %4032 = vmatprep.subr.bf16.mxu0 0
      %4033 = vmatpush2.bf16.msra.mxu0 %v3588
      %4034 = vmatprep.subr.bf16.mxu0 0
      %4035 = vmatpush2.bf16.msra.mxu0 %v3587
      %4036 = vmatprep.subr.bf16.mxu0 0
      %4037 = vmatpush2.bf16.msra.mxu0 %v3586
      %4038 = vmatprep.subr.bf16.mxu0 0
      %4039 = vmatpush2.bf16.msra.mxu0 %v3585
      %4040 = vmatprep.subr.bf16.mxu0 0
      %4041 = vmatpush2.bf16.msra.mxu0 %v3584
      %4042 = vmatprep.mubr.bf16.mxu0 %v2973
      %4043 = vmatmul.mubr.bf16.gmra.mxu0 %v2972
      %v4044 = vpop.f32.mrf.mxu0
      %v4045 = vadd.f32 %v3884, %v4044
      %v4046 = vpop.f32.mrf.mxu0
      %v4047 = vpop.f32.mrf.mxu0
      %v4048 = vadd.f32 %v3887, %v4047
      %v4049 = vpop.f32.mrf.mxu0
      %4050 = vmatprep.mubr.bf16.mxu0 %v2982
      %4051 = vmatmul.mubr.bf16.gmra.mxu0 %v2981
      %v4052 = vpop.f32.mrf.mxu0
      %v4053 = vadd.f32 %v3892, %v4052
      %v4054 = vpop.f32.mrf.mxu0
      %v4055 = vpop.f32.mrf.mxu0
      %v4056 = vadd.f32 %v3895, %v4055
      %v4057 = vpop.f32.mrf.mxu0
      %4058 = vmatprep.mubr.bf16.mxu0 %v2991
      %4059 = vmatmul.mubr.bf16.gmra.mxu0 %v2990
      %v4060 = vpop.f32.mrf.mxu0
      %v4061 = vadd.f32 %v3900, %v4060
      %v4062 = vpop.f32.mrf.mxu0
      %v4063 = vpop.f32.mrf.mxu0
      %v4064 = vadd.f32 %v3903, %v4063
      %v4065 = vpop.f32.mrf.mxu0
      %4066 = vmatprep.mubr.bf16.mxu0 %v3000
      %4067 = vmatmul.mubr.bf16.gmra.mxu0 %v2999
      %v4068 = vpop.f32.mrf.mxu0
      %v4069 = vadd.f32 %v3908, %v4068
      %v4070 = vpop.f32.mrf.mxu0
      %v4071 = vpop.f32.mrf.mxu0
      %v4072 = vadd.f32 %v3911, %v4071
      %v4073 = vpop.f32.mrf.mxu0
      %4074 = vmatprep.mubr.bf16.mxu0 %v3009
      %4075 = vmatmul.mubr.bf16.gmra.mxu0 %v3008
      %v4076 = vpop.f32.mrf.mxu0
      %v4077 = vadd.f32 %v3916, %v4076
      %v4078 = vpop.f32.mrf.mxu0
      %v4079 = vpop.f32.mrf.mxu0
      %v4080 = vadd.f32 %v3919, %v4079
      %v4081 = vpop.f32.mrf.mxu0
      %4082 = vmatprep.mubr.bf16.mxu0 %v3018
      %4083 = vmatmul.mubr.bf16.gmra.mxu0 %v3017
      %v4084 = vpop.f32.mrf.mxu0
      %v4085 = vadd.f32 %v3924, %v4084
      %v4086 = vpop.f32.mrf.mxu0
      %v4087 = vpop.f32.mrf.mxu0
      %v4088 = vadd.f32 %v3927, %v4087
      %v4089 = vpop.f32.mrf.mxu0
      %4090 = vmatprep.mubr.bf16.mxu0 %v3027
      %4091 = vmatmul.mubr.bf16.gmra.mxu0 %v3026
      %v4092 = vpop.f32.mrf.mxu0
      %v4093 = vadd.f32 %v3932, %v4092
      %v4094 = vpop.f32.mrf.mxu0
      %v4095 = vpop.f32.mrf.mxu0
      %v4096 = vadd.f32 %v3935, %v4095
      %v4097 = vpop.f32.mrf.mxu0
      %4098 = vmatprep.mubr.bf16.mxu0 %v3036
      %4099 = vmatmul.mubr.bf16.gmra.mxu0 %v3035
      %v4100 = vpop.f32.mrf.mxu0
      %v4101 = vadd.f32 %v3940, %v4100
      %v4102 = vpop.f32.mrf.mxu0
      %v4103 = vpop.f32.mrf.mxu0
      %v4104 = vadd.f32 %v3943, %v4103
      %v4105 = vpop.f32.mrf.mxu0
      %4106 = vmatprep.mubr.bf16.mxu0 %v3045
      %4107 = vmatmul.mubr.bf16.gmra.mxu0 %v3044
      %v4108 = vpop.f32.mrf.mxu0
      %v4109 = vadd.f32 %v3948, %v4108
      %v4110 = vpop.f32.mrf.mxu0
      %v4111 = vpop.f32.mrf.mxu0
      %v4112 = vadd.f32 %v3951, %v4111
      %v4113 = vpop.f32.mrf.mxu0
      %4114 = vmatprep.mubr.bf16.mxu0 %v3054
      %4115 = vmatmul.mubr.bf16.gmra.mxu0 %v3053
      %v4116 = vpop.f32.mrf.mxu0
      %v4117 = vadd.f32 %v3956, %v4116
      %v4118 = vpop.f32.mrf.mxu0
      %v4119 = vpop.f32.mrf.mxu0
      %v4120 = vadd.f32 %v3959, %v4119
      %v4121 = vpop.f32.mrf.mxu0
      %4122 = vmatprep.mubr.bf16.mxu0 %v3063
      %4123 = vmatmul.mubr.bf16.gmra.mxu0 %v3062
      %v4124 = vpop.f32.mrf.mxu0
      %v4125 = vadd.f32 %v3964, %v4124
      %v4126 = vpop.f32.mrf.mxu0
      %v4127 = vpop.f32.mrf.mxu0
      %v4128 = vadd.f32 %v3967, %v4127
      %v4129 = vpop.f32.mrf.mxu0
      %4130 = vmatprep.mubr.bf16.mxu0 %v3072
      %4131 = vmatmul.mubr.bf16.gmra.mxu0 %v3071
      %v4132 = vpop.f32.mrf.mxu0
      %v4133 = vadd.f32 %v3972, %v4132
      %v4134 = vpop.f32.mrf.mxu0
      %v4135 = vpop.f32.mrf.mxu0
      %v4136 = vadd.f32 %v3975, %v4135
      %v4137 = vpop.f32.mrf.mxu0
      %4138 = vmatprep.mubr.bf16.mxu0 %v3081
      %4139 = vmatmul.mubr.bf16.gmra.mxu0 %v3080
      %v4140 = vpop.f32.mrf.mxu0
      %v4141 = vadd.f32 %v3980, %v4140
      %v4142 = vpop.f32.mrf.mxu0
      %v4143 = vpop.f32.mrf.mxu0
      %v4144 = vadd.f32 %v3983, %v4143
      %v4145 = vpop.f32.mrf.mxu0
      %4146 = vmatprep.mubr.bf16.mxu0 %v3090
      %4147 = vmatmul.mubr.bf16.gmra.mxu0 %v3089
      %v4148 = vpop.f32.mrf.mxu0
      %v4149 = vadd.f32 %v3988, %v4148
      %v4150 = vpop.f32.mrf.mxu0
      %v4151 = vpop.f32.mrf.mxu0
      %v4152 = vadd.f32 %v3991, %v4151
      %v4153 = vpop.f32.mrf.mxu0
      %4154 = vmatprep.mubr.bf16.mxu0 %v3099
      %4155 = vmatmul.mubr.bf16.gmra.mxu0 %v3098
      %v4156 = vpop.f32.mrf.mxu0
      %v4157 = vadd.f32 %v3996, %v4156
      %v4158 = vpop.f32.mrf.mxu0
      %v4159 = vpop.f32.mrf.mxu0
      %v4160 = vadd.f32 %v3999, %v4159
      %v4161 = vpop.f32.mrf.mxu0
      %4162 = vmatprep.mubr.bf16.mxu0 %v3108
      %4163 = vmatmul.mubr.bf16.gmra.mxu0 %v3107
      %v4164 = vpop.f32.mrf.mxu0
      %v4165 = vadd.f32 %v4004, %v4164
      %v4166 = vpop.f32.mrf.mxu0
      %v4167 = vpop.f32.mrf.mxu0
      %v4168 = vadd.f32 %v4007, %v4167
      %v4169 = vpop.f32.mrf.mxu0
      %4170 = vdwg.mxu0
      %4171 = vmatprep.subr.bf16.mxu0 0
      %4172 = vmatpush1.bf16.msra.mxu0 %v3599
      %4173 = vmatprep.subr.bf16.mxu0 0
      %4174 = vmatpush1.bf16.msra.mxu0 %v3598
      %4175 = vmatprep.subr.bf16.mxu0 0
      %4176 = vmatpush1.bf16.msra.mxu0 %v3597
      %4177 = vmatprep.subr.bf16.mxu0 0
      %4178 = vmatpush1.bf16.msra.mxu0 %v3596
      %4179 = vmatprep.subr.bf16.mxu0 0
      %4180 = vmatpush1.bf16.msra.mxu0 %v3595
      %4181 = vmatprep.subr.bf16.mxu0 0
      %4182 = vmatpush1.bf16.msra.mxu0 %v3594
      %4183 = vmatprep.subr.bf16.mxu0 0
      %4184 = vmatpush1.bf16.msra.mxu0 %v3593
      %4185 = vmatprep.subr.bf16.mxu0 0
      %4186 = vmatpush1.bf16.msra.mxu0 %v3592
      %4187 = vmatprep.subr.bf16.mxu0 0
      %4188 = vmatpush2.bf16.msra.mxu0 %v3607
      %4189 = vmatprep.subr.bf16.mxu0 0
      %4190 = vmatpush2.bf16.msra.mxu0 %v3606
      %4191 = vmatprep.subr.bf16.mxu0 0
      %4192 = vmatpush2.bf16.msra.mxu0 %v3605
      %4193 = vmatprep.subr.bf16.mxu0 0
      %4194 = vmatpush2.bf16.msra.mxu0 %v3604
      %4195 = vmatprep.subr.bf16.mxu0 0
      %4196 = vmatpush2.bf16.msra.mxu0 %v3603
      %4197 = vmatprep.subr.bf16.mxu0 0
      %4198 = vmatpush2.bf16.msra.mxu0 %v3602
      %4199 = vmatprep.subr.bf16.mxu0 0
      %4200 = vmatpush2.bf16.msra.mxu0 %v3601
      %4201 = vmatprep.subr.bf16.mxu0 0
      %4202 = vmatpush2.bf16.msra.mxu0 %v3600
      %4203 = vmatprep.mubr.bf16.mxu0 %v2975
      %4204 = vmatmul.mubr.bf16.gmra.mxu0 %v2974
      %v4205 = vpop.f32.mrf.mxu0
      %v4206 = vadd.f32 %v4045, %v4205
      %v4207 = vpop.f32.mrf.mxu0
      %v4208 = vpop.f32.mrf.mxu0
      %v4209 = vadd.f32 %v4048, %v4208
      %v4210 = vpop.f32.mrf.mxu0
      %4211 = vmatprep.mubr.bf16.mxu0 %v2984
      %4212 = vmatmul.mubr.bf16.gmra.mxu0 %v2983
      %v4213 = vpop.f32.mrf.mxu0
      %v4214 = vadd.f32 %v4053, %v4213
      %v4215 = vpop.f32.mrf.mxu0
      %v4216 = vpop.f32.mrf.mxu0
      %v4217 = vadd.f32 %v4056, %v4216
      %v4218 = vpop.f32.mrf.mxu0
      %4219 = vmatprep.mubr.bf16.mxu0 %v2993
      %4220 = vmatmul.mubr.bf16.gmra.mxu0 %v2992
      %v4221 = vpop.f32.mrf.mxu0
      %v4222 = vadd.f32 %v4061, %v4221
      %v4223 = vpop.f32.mrf.mxu0
      %v4224 = vpop.f32.mrf.mxu0
      %v4225 = vadd.f32 %v4064, %v4224
      %v4226 = vpop.f32.mrf.mxu0
      %4227 = vmatprep.mubr.bf16.mxu0 %v3002
      %4228 = vmatmul.mubr.bf16.gmra.mxu0 %v3001
      %v4229 = vpop.f32.mrf.mxu0
      %v4230 = vadd.f32 %v4069, %v4229
      %v4231 = vpop.f32.mrf.mxu0
      %v4232 = vpop.f32.mrf.mxu0
      %v4233 = vadd.f32 %v4072, %v4232
      %v4234 = vpop.f32.mrf.mxu0
      %4235 = vmatprep.mubr.bf16.mxu0 %v3011
      %4236 = vmatmul.mubr.bf16.gmra.mxu0 %v3010
      %v4237 = vpop.f32.mrf.mxu0
      %v4238 = vadd.f32 %v4077, %v4237
      %v4239 = vpop.f32.mrf.mxu0
      %v4240 = vpop.f32.mrf.mxu0
      %v4241 = vadd.f32 %v4080, %v4240
      %v4242 = vpop.f32.mrf.mxu0
      %4243 = vmatprep.mubr.bf16.mxu0 %v3020
      %4244 = vmatmul.mubr.bf16.gmra.mxu0 %v3019
      %v4245 = vpop.f32.mrf.mxu0
      %v4246 = vadd.f32 %v4085, %v4245
      %v4247 = vpop.f32.mrf.mxu0
      %v4248 = vpop.f32.mrf.mxu0
      %v4249 = vadd.f32 %v4088, %v4248
      %v4250 = vpop.f32.mrf.mxu0
      %4251 = vmatprep.mubr.bf16.mxu0 %v3029
      %4252 = vmatmul.mubr.bf16.gmra.mxu0 %v3028
      %v4253 = vpop.f32.mrf.mxu0
      %v4254 = vadd.f32 %v4093, %v4253
      %v4255 = vpop.f32.mrf.mxu0
      %v4256 = vpop.f32.mrf.mxu0
      %v4257 = vadd.f32 %v4096, %v4256
      %v4258 = vpop.f32.mrf.mxu0
      %4259 = vmatprep.mubr.bf16.mxu0 %v3038
      %4260 = vmatmul.mubr.bf16.gmra.mxu0 %v3037
      %v4261 = vpop.f32.mrf.mxu0
      %v4262 = vadd.f32 %v4101, %v4261
      %v4263 = vpop.f32.mrf.mxu0
      %v4264 = vpop.f32.mrf.mxu0
      %v4265 = vadd.f32 %v4104, %v4264
      %v4266 = vpop.f32.mrf.mxu0
      %4267 = vmatprep.mubr.bf16.mxu0 %v3047
      %4268 = vmatmul.mubr.bf16.gmra.mxu0 %v3046
      %v4269 = vpop.f32.mrf.mxu0
      %v4270 = vadd.f32 %v4109, %v4269
      %v4271 = vpop.f32.mrf.mxu0
      %v4272 = vpop.f32.mrf.mxu0
      %v4273 = vadd.f32 %v4112, %v4272
      %v4274 = vpop.f32.mrf.mxu0
      %4275 = vmatprep.mubr.bf16.mxu0 %v3056
      %4276 = vmatmul.mubr.bf16.gmra.mxu0 %v3055
      %v4277 = vpop.f32.mrf.mxu0
      %v4278 = vadd.f32 %v4117, %v4277
      %v4279 = vpop.f32.mrf.mxu0
      %v4280 = vpop.f32.mrf.mxu0
      %v4281 = vadd.f32 %v4120, %v4280
      %v4282 = vpop.f32.mrf.mxu0
      %4283 = vmatprep.mubr.bf16.mxu0 %v3065
      %4284 = vmatmul.mubr.bf16.gmra.mxu0 %v3064
      %v4285 = vpop.f32.mrf.mxu0
      %v4286 = vadd.f32 %v4125, %v4285
      %v4287 = vpop.f32.mrf.mxu0
      %v4288 = vpop.f32.mrf.mxu0
      %v4289 = vadd.f32 %v4128, %v4288
      %v4290 = vpop.f32.mrf.mxu0
      %4291 = vmatprep.mubr.bf16.mxu0 %v3074
      %4292 = vmatmul.mubr.bf16.gmra.mxu0 %v3073
      %v4293 = vpop.f32.mrf.mxu0
      %v4294 = vadd.f32 %v4133, %v4293
      %v4295 = vpop.f32.mrf.mxu0
      %v4296 = vpop.f32.mrf.mxu0
      %v4297 = vadd.f32 %v4136, %v4296
      %v4298 = vpop.f32.mrf.mxu0
      %4299 = vmatprep.mubr.bf16.mxu0 %v3083
      %4300 = vmatmul.mubr.bf16.gmra.mxu0 %v3082
      %v4301 = vpop.f32.mrf.mxu0
      %v4302 = vadd.f32 %v4141, %v4301
      %v4303 = vpop.f32.mrf.mxu0
      %v4304 = vpop.f32.mrf.mxu0
      %v4305 = vadd.f32 %v4144, %v4304
      %v4306 = vpop.f32.mrf.mxu0
      %4307 = vmatprep.mubr.bf16.mxu0 %v3092
      %4308 = vmatmul.mubr.bf16.gmra.mxu0 %v3091
      %v4309 = vpop.f32.mrf.mxu0
      %v4310 = vadd.f32 %v4149, %v4309
      %v4311 = vpop.f32.mrf.mxu0
      %v4312 = vpop.f32.mrf.mxu0
      %v4313 = vadd.f32 %v4152, %v4312
      %v4314 = vpop.f32.mrf.mxu0
      %4315 = vmatprep.mubr.bf16.mxu0 %v3101
      %4316 = vmatmul.mubr.bf16.gmra.mxu0 %v3100
      %v4317 = vpop.f32.mrf.mxu0
      %v4318 = vadd.f32 %v4157, %v4317
      %v4319 = vpop.f32.mrf.mxu0
      %v4320 = vpop.f32.mrf.mxu0
      %v4321 = vadd.f32 %v4160, %v4320
      %v4322 = vpop.f32.mrf.mxu0
      %4323 = vmatprep.mubr.bf16.mxu0 %v3110
      %4324 = vmatmul.mubr.bf16.gmra.mxu0 %v3109
      %v4325 = vpop.f32.mrf.mxu0
      %v4326 = vadd.f32 %v4165, %v4325
      %v4327 = vpop.f32.mrf.mxu0
      %v4328 = vpop.f32.mrf.mxu0
      %v4329 = vadd.f32 %v4168, %v4328
      %v4330 = vpop.f32.mrf.mxu0
      %4331 = vdwg.mxu0
      %4332 = vmatprep.subr.bf16.mxu0 0
      %4333 = vmatpush1.bf16.msra.mxu0 %v3615
      %4334 = vmatprep.subr.bf16.mxu0 0
      %4335 = vmatpush1.bf16.msra.mxu0 %v3614
      %4336 = vmatprep.subr.bf16.mxu0 0
      %4337 = vmatpush1.bf16.msra.mxu0 %v3613
      %4338 = vmatprep.subr.bf16.mxu0 0
      %4339 = vmatpush1.bf16.msra.mxu0 %v3612
      %4340 = vmatprep.subr.bf16.mxu0 0
      %4341 = vmatpush1.bf16.msra.mxu0 %v3611
      %4342 = vmatprep.subr.bf16.mxu0 0
      %4343 = vmatpush1.bf16.msra.mxu0 %v3610
      %4344 = vmatprep.subr.bf16.mxu0 0
      %4345 = vmatpush1.bf16.msra.mxu0 %v3609
      %4346 = vmatprep.subr.bf16.mxu0 0
      %4347 = vmatpush1.bf16.msra.mxu0 %v3608
      %4348 = vmatprep.subr.bf16.mxu0 0
      %4349 = vmatpush2.bf16.msra.mxu0 0
      %4350 = vmatprep.subr.bf16.mxu0 0
      %4351 = vmatpush2.bf16.msra.mxu0 0
      %4352 = vmatprep.subr.bf16.mxu0 0
      %4353 = vmatpush2.bf16.msra.mxu0 0
      %4354 = vmatprep.subr.bf16.mxu0 0
      %4355 = vmatpush2.bf16.msra.mxu0 0
      %4356 = vmatprep.subr.bf16.mxu0 0
      %4357 = vmatpush2.bf16.msra.mxu0 0
      %4358 = vmatprep.subr.bf16.mxu0 0
      %4359 = vmatpush2.bf16.msra.mxu0 0
      %4360 = vmatprep.subr.bf16.mxu0 0
      %4361 = vmatpush2.bf16.msra.mxu0 0
      %4362 = vmatprep.subr.bf16.mxu0 0
      %4363 = vmatpush2.bf16.msra.mxu0 0
      %4364 = vmatprep.mubr.bf16.mxu0 0
      %4365 = vmatmul.mubr.bf16.gmra.mxu0 %v2976
      %v4366 = vpop.f32.mrf.mxu0
      %v4367 = vadd.f32 %v4206, %v4366
      %v4368 = vpop.f32.mrf.mxu0
      %v4369 = vpop.f32.mrf.mxu0
      %v4370 = vadd.f32 %v4209, %v4369
      %v4371 = vpop.f32.mrf.mxu0
      %4372 = vmatprep.mubr.bf16.mxu0 0
      %4373 = vmatmul.mubr.bf16.gmra.mxu0 %v2985
      %v4374 = vpop.f32.mrf.mxu0
      %v4375 = vadd.f32 %v4214, %v4374
      %v4376 = vpop.f32.mrf.mxu0
      %v4377 = vpop.f32.mrf.mxu0
      %v4378 = vadd.f32 %v4217, %v4377
      %v4379 = vpop.f32.mrf.mxu0
      %4380 = vmatprep.mubr.bf16.mxu0 0
      %4381 = vmatmul.mubr.bf16.gmra.mxu0 %v2994
      %v4382 = vpop.f32.mrf.mxu0
      %v4383 = vadd.f32 %v4222, %v4382
      %v4384 = vpop.f32.mrf.mxu0
      %v4385 = vpop.f32.mrf.mxu0
      %v4386 = vadd.f32 %v4225, %v4385
      %v4387 = vpop.f32.mrf.mxu0
      %4388 = vmatprep.mubr.bf16.mxu0 0
      %4389 = vmatmul.mubr.bf16.gmra.mxu0 %v3003
      %v4390 = vpop.f32.mrf.mxu0
      %v4391 = vadd.f32 %v4230, %v4390
      %v4392 = vpop.f32.mrf.mxu0
      %v4393 = vpop.f32.mrf.mxu0
      %v4394 = vadd.f32 %v4233, %v4393
      %v4395 = vpop.f32.mrf.mxu0
      %4396 = vmatprep.mubr.bf16.mxu0 0
      %4397 = vmatmul.mubr.bf16.gmra.mxu0 %v3012
      %v4398 = vpop.f32.mrf.mxu0
      %v4399 = vadd.f32 %v4238, %v4398
      %v4400 = vpop.f32.mrf.mxu0
      %v4401 = vpop.f32.mrf.mxu0
      %v4402 = vadd.f32 %v4241, %v4401
      %v4403 = vpop.f32.mrf.mxu0
      %4404 = vmatprep.mubr.bf16.mxu0 0
      %4405 = vmatmul.mubr.bf16.gmra.mxu0 %v3021
      %v4406 = vpop.f32.mrf.mxu0
      %v4407 = vadd.f32 %v4246, %v4406
      %v4408 = vpop.f32.mrf.mxu0
      %v4409 = vpop.f32.mrf.mxu0
      %v4410 = vadd.f32 %v4249, %v4409
      %v4411 = vpop.f32.mrf.mxu0
      %4412 = vmatprep.mubr.bf16.mxu0 0
      %4413 = vmatmul.mubr.bf16.gmra.mxu0 %v3030
      %v4414 = vpop.f32.mrf.mxu0
      %v4415 = vadd.f32 %v4254, %v4414
      %v4416 = vpop.f32.mrf.mxu0
      %v4417 = vpop.f32.mrf.mxu0
      %v4418 = vadd.f32 %v4257, %v4417
      %v4419 = vpop.f32.mrf.mxu0
      %4420 = vmatprep.mubr.bf16.mxu0 0
      %4421 = vmatmul.mubr.bf16.gmra.mxu0 %v3039
      %v4422 = vpop.f32.mrf.mxu0
      %v4423 = vadd.f32 %v4262, %v4422
      %v4424 = vpop.f32.mrf.mxu0
      %v4425 = vpop.f32.mrf.mxu0
      %v4426 = vadd.f32 %v4265, %v4425
      %v4427 = vpop.f32.mrf.mxu0
      %4428 = vmatprep.mubr.bf16.mxu0 0
      %4429 = vmatmul.mubr.bf16.gmra.mxu0 %v3048
      %v4430 = vpop.f32.mrf.mxu0
      %v4431 = vadd.f32 %v4270, %v4430
      %v4432 = vpop.f32.mrf.mxu0
      %v4433 = vpop.f32.mrf.mxu0
      %v4434 = vadd.f32 %v4273, %v4433
      %v4435 = vpop.f32.mrf.mxu0
      %4436 = vmatprep.mubr.bf16.mxu0 0
      %4437 = vmatmul.mubr.bf16.gmra.mxu0 %v3057
      %v4438 = vpop.f32.mrf.mxu0
      %v4439 = vadd.f32 %v4278, %v4438
      %v4440 = vpop.f32.mrf.mxu0
      %v4441 = vpop.f32.mrf.mxu0
      %v4442 = vadd.f32 %v4281, %v4441
      %v4443 = vpop.f32.mrf.mxu0
      %4444 = vmatprep.mubr.bf16.mxu0 0
      %4445 = vmatmul.mubr.bf16.gmra.mxu0 %v3066
      %v4446 = vpop.f32.mrf.mxu0
      %v4447 = vadd.f32 %v4286, %v4446
      %v4448 = vpop.f32.mrf.mxu0
      %v4449 = vpop.f32.mrf.mxu0
      %v4450 = vadd.f32 %v4289, %v4449
      %v4451 = vpop.f32.mrf.mxu0
      %4452 = vmatprep.mubr.bf16.mxu0 0
      %4453 = vmatmul.mubr.bf16.gmra.mxu0 %v3075
      %v4454 = vpop.f32.mrf.mxu0
      %v4455 = vadd.f32 %v4294, %v4454
      %v4456 = vpop.f32.mrf.mxu0
      %v4457 = vpop.f32.mrf.mxu0
      %v4458 = vadd.f32 %v4297, %v4457
      %v4459 = vpop.f32.mrf.mxu0
      %4460 = vmatprep.mubr.bf16.mxu0 0
      %4461 = vmatmul.mubr.bf16.gmra.mxu0 %v3084
      %v4462 = vpop.f32.mrf.mxu0
      %v4463 = vadd.f32 %v4302, %v4462
      %v4464 = vpop.f32.mrf.mxu0
      %v4465 = vpop.f32.mrf.mxu0
      %v4466 = vadd.f32 %v4305, %v4465
      %v4467 = vpop.f32.mrf.mxu0
      %4468 = vmatprep.mubr.bf16.mxu0 0
      %4469 = vmatmul.mubr.bf16.gmra.mxu0 %v3093
      %v4470 = vpop.f32.mrf.mxu0
      %v4471 = vadd.f32 %v4310, %v4470
      %v4472 = vpop.f32.mrf.mxu0
      %v4473 = vpop.f32.mrf.mxu0
      %v4474 = vadd.f32 %v4313, %v4473
      %v4475 = vpop.f32.mrf.mxu0
      %4476 = vmatprep.mubr.bf16.mxu0 0
      %4477 = vmatmul.mubr.bf16.gmra.mxu0 %v3102
      %v4478 = vpop.f32.mrf.mxu0
      %v4479 = vadd.f32 %v4318, %v4478
      %v4480 = vpop.f32.mrf.mxu0
      %v4481 = vpop.f32.mrf.mxu0
      %v4482 = vadd.f32 %v4321, %v4481
      %v4483 = vpop.f32.mrf.mxu0
      %4484 = vmatprep.mubr.bf16.mxu0 0
      %4485 = vmatmul.mubr.bf16.gmra.mxu0 %v3111
      %v4486 = vpop.f32.mrf.mxu0
      %v4487 = vadd.f32 %v4326, %v4486
      %v4488 = vpop.f32.mrf.mxu0
      %v4489 = vpop.f32.mrf.mxu0
      %v4490 = vadd.f32 %v4329, %v4489
      %v4491 = vpop.f32.mrf.mxu0
      %4492 = vdwg.mxu0
      %v4493 = vpack.c.bf16 %v4370, %v4367
      %v4494 = vpack.c.bf16 %v4378, %v4375
      %v4495 = vpack.c.bf16 %v4386, %v4383
      %v4496 = vpack.c.bf16 %v4394, %v4391
      %v4497 = vpack.c.bf16 %v4402, %v4399
      %v4498 = vpack.c.bf16 %v4410, %v4407
      %v4499 = vpack.c.bf16 %v4418, %v4415
      %v4500 = vpack.c.bf16 %v4426, %v4423
      %v4501 = vpack.c.bf16 %v4434, %v4431
      %v4502 = vpack.c.bf16 %v4442, %v4439
      %v4503 = vpack.c.bf16 %v4450, %v4447
      %v4504 = vpack.c.bf16 %v4458, %v4455
      %v4505 = vpack.c.bf16 %v4466, %v4463
      %v4506 = vpack.c.bf16 %v4474, %v4471
      %v4507 = vpack.c.bf16 %v4482, %v4479
      %v4508 = vpack.c.bf16 %v4490, %v4487
      %v4525 = vunpack.c.l.b16 %v4493
      %v4526 = vunpack.c.h.b16 %v4493
      %v4527 = vunpack.c.l.b16 %v4494
      %v4528 = vunpack.c.h.b16 %v4494
      %v4529 = vunpack.c.l.b16 %v4495
      %v4530 = vunpack.c.h.b16 %v4495
      %v4531 = vunpack.c.l.b16 %v4496
      %v4532 = vunpack.c.h.b16 %v4496
      %v4533 = vunpack.c.l.b16 %v4497
      %v4534 = vunpack.c.h.b16 %v4497
      %v4535 = vunpack.c.l.b16 %v4498
      %v4536 = vunpack.c.h.b16 %v4498
      %v4537 = vunpack.c.l.b16 %v4499
      %v4538 = vunpack.c.h.b16 %v4499
      %v4539 = vunpack.c.l.b16 %v4500
      %v4540 = vunpack.c.h.b16 %v4500
      %v4541 = vunpack.c.l.b16 %v4501
      %v4542 = vunpack.c.h.b16 %v4501
      %v4543 = vunpack.c.l.b16 %v4502
      %v4544 = vunpack.c.h.b16 %v4502
      %v4545 = vunpack.c.l.b16 %v4503
      %v4546 = vunpack.c.h.b16 %v4503
      %v4547 = vunpack.c.l.b16 %v4504
      %v4548 = vunpack.c.h.b16 %v4504
      %v4549 = vunpack.c.l.b16 %v4505
      %v4550 = vunpack.c.h.b16 %v4505
      %v4551 = vunpack.c.l.b16 %v4506
      %v4552 = vunpack.c.h.b16 %v4506
      %v4553 = vunpack.c.l.b16 %v4507
      %v4554 = vunpack.c.h.b16 %v4507
      %v4555 = vunpack.c.l.b16 %v4508
      %v4556 = vunpack.c.h.b16 %v4508
      %v4557 = vpack.c.b16 %v4525, %v4525
      %v4558 = vpack.c.b16 %v4526, %v4526
      %v4559 = vpack.c.b16 %v4527, %v4527
      %v4560 = vpack.c.b16 %v4528, %v4528
      %v4561 = vpack.c.b16 %v4529, %v4529
      %v4562 = vpack.c.b16 %v4530, %v4530
      %v4563 = vpack.c.b16 %v4531, %v4531
      %v4564 = vpack.c.b16 %v4532, %v4532
      %v4565 = vpack.c.b16 %v4533, %v4533
      %v4566 = vpack.c.b16 %v4534, %v4534
      %v4567 = vpack.c.b16 %v4535, %v4535
      %v4568 = vpack.c.b16 %v4536, %v4536
      %v4569 = vpack.c.b16 %v4537, %v4537
      %v4570 = vpack.c.b16 %v4538, %v4538
      %v4571 = vpack.c.b16 %v4539, %v4539
      %v4572 = vpack.c.b16 %v4540, %v4540
      %v4573 = vpack.c.b16 %v4541, %v4541
      %v4574 = vpack.c.b16 %v4542, %v4542
      %v4575 = vpack.c.b16 %v4543, %v4543
      %v4576 = vpack.c.b16 %v4544, %v4544
      %v4577 = vpack.c.b16 %v4545, %v4545
      %v4578 = vpack.c.b16 %v4546, %v4546
      %v4579 = vpack.c.b16 %v4547, %v4547
      %v4580 = vpack.c.b16 %v4548, %v4548
      %v4581 = vpack.c.b16 %v4549, %v4549
      %v4582 = vpack.c.b16 %v4550, %v4550
      %v4583 = vpack.c.b16 %v4551, %v4551
      %v4584 = vpack.c.b16 %v4552, %v4552
      %v4585 = vpack.c.b16 %v4553, %v4553
      %v4586 = vpack.c.b16 %v4554, %v4554
      %v4587 = vpack.c.b16 %v4555, %v4555
      %v4588 = vpack.c.b16 %v4556, %v4556
      %4621 = vst [vmem:[%s231] sm:$0xf] %v4557
      %4622 = vst [vmem:[%s231 + $0x4] sm:$0xf] %v4558
      %4623 = vst [vmem:[%s231 + $0x8] sm:$0xf] %v4559
      %4624 = vst [vmem:[%s231 + $0xc] sm:$0xf] %v4560
      %4625 = vst [vmem:[%s231 + $0x10] sm:$0xf] %v4561
      %4626 = vst [vmem:[%s231 + $0x14] sm:$0xf] %v4562
      %4627 = vst [vmem:[%s231 + $0x18] sm:$0xf] %v4563
      %4628 = vst [vmem:[%s231 + $0x1c] sm:$0xf] %v4564
      %4629 = vst [vmem:[%s231 + $0x20] sm:$0xf] %v4565
      %4630 = vst [vmem:[%s231 + $0x24] sm:$0xf] %v4566
      %4631 = vst [vmem:[%s231 + $0x28] sm:$0xf] %v4567
      %4632 = vst [vmem:[%s231 + $0x2c] sm:$0xf] %v4568
      %4633 = vst [vmem:[%s231 + $0x30] sm:$0xf] %v4569
      %4634 = vst [vmem:[%s231 + $0x34] sm:$0xf] %v4570
      %4635 = vst [vmem:[%s231 + $0x38] sm:$0xf] %v4571
      %4636 = vst [vmem:[%s231 + $0x3c] sm:$0xf] %v4572
      %4637 = vst [vmem:[%s231 + $0x40] sm:$0xf] %v4573
      %4638 = vst [vmem:[%s231 + $0x44] sm:$0xf] %v4574
      %4639 = vst [vmem:[%s231 + $0x48] sm:$0xf] %v4575
      %4640 = vst [vmem:[%s231 + $0x4c] sm:$0xf] %v4576
      %4641 = vst [vmem:[%s231 + $0x50] sm:$0xf] %v4577
      %4642 = vst [vmem:[%s231 + $0x54] sm:$0xf] %v4578
      %4643 = vst [vmem:[%s231 + $0x58] sm:$0xf] %v4579
      %4644 = vst [vmem:[%s231 + $0x5c] sm:$0xf] %v4580
      %4645 = vst [vmem:[%s231 + $0x60] sm:$0xf] %v4581
      %4646 = vst [vmem:[%s231 + $0x64] sm:$0xf] %v4582
      %4647 = vst [vmem:[%s231 + $0x68] sm:$0xf] %v4583
      %4648 = vst [vmem:[%s231 + $0x6c] sm:$0xf] %v4584
      %4649 = vst [vmem:[%s231 + $0x70] sm:$0xf] %v4585
      %4650 = vst [vmem:[%s231 + $0x74] sm:$0xf] %v4586
      %4651 = vst [vmem:[%s231 + $0x78] sm:$0xf] %v4587
      %4652 = vst [vmem:[%s231 + $0x7c] sm:$0xf] %v4588
      %v4653 = vadd.f32 %v4367, %v4370
      %v4654 = vadd.f32 %v4653, %v4375
      %v4655 = vadd.f32 %v4654, %v4378
      %v4656 = vadd.f32 %v4655, %v4383
      %v4657 = vadd.f32 %v4656, %v4386
      %v4658 = vadd.f32 %v4657, %v4391
      %v4659 = vadd.f32 %v4658, %v4394
      %v4660 = vadd.f32 %v4659, %v4399
      %v4661 = vadd.f32 %v4660, %v4402
      %v4662 = vadd.f32 %v4661, %v4407
      %v4663 = vadd.f32 %v4662, %v4410
      %v4664 = vadd.f32 %v4663, %v4415
      %v4665 = vadd.f32 %v4664, %v4418
      %v4666 = vadd.f32 %v4665, %v4423
      %v4667 = vadd.f32 %v4666, %v4426
      %v4668 = vadd.f32 %v4667, %v4431
      %v4669 = vadd.f32 %v4668, %v4434
      %v4670 = vadd.f32 %v4669, %v4439
      %v4671 = vadd.f32 %v4670, %v4442
      %v4672 = vadd.f32 %v4671, %v4447
      %v4673 = vadd.f32 %v4672, %v4450
      %v4674 = vadd.f32 %v4673, %v4455
      %v4675 = vadd.f32 %v4674, %v4458
      %v4676 = vadd.f32 %v4675, %v4463
      %v4677 = vadd.f32 %v4676, %v4466
      %v4678 = vadd.f32 %v4677, %v4471
      %v4679 = vadd.f32 %v4678, %v4474
      %v4680 = vadd.f32 %v4679, %v4479
      %v4681 = vadd.f32 %v4680, %v4482
      %v4682 = vadd.f32 %v4681, %v4487
      %v4683 = vadd.f32 %v4682, %v4490
      %v4684 = vrot.slane %v4683, 4
      %v4685 = vadd.f32 %v4683, %v4684
      %v4686 = vrot.slane %v4685, 2
      %v4687 = vadd.f32 %v4685, %v4686
      %v4688 = vrot.slane %v4687, 1
      %v4689 = vadd.f32 %v4687, %v4688
      %v4690 = vmul.f32 %v4367, %v4367
      %v4691 = vmul.f32 %v4370, %v4370
      %v4692 = vmul.f32 %v4375, %v4375
      %v4693 = vmul.f32 %v4378, %v4378
      %v4694 = vmul.f32 %v4383, %v4383
      %v4695 = vmul.f32 %v4386, %v4386
      %v4696 = vmul.f32 %v4391, %v4391
      %v4697 = vmul.f32 %v4394, %v4394
      %v4698 = vmul.f32 %v4399, %v4399
      %v4699 = vmul.f32 %v4402, %v4402
      %v4700 = vmul.f32 %v4407, %v4407
      %v4701 = vmul.f32 %v4410, %v4410
      %v4702 = vmul.f32 %v4415, %v4415
      %v4703 = vmul.f32 %v4418, %v4418
      %v4704 = vmul.f32 %v4423, %v4423
      %v4705 = vmul.f32 %v4426, %v4426
      %v4706 = vmul.f32 %v4431, %v4431
      %v4707 = vmul.f32 %v4434, %v4434
      %v4708 = vmul.f32 %v4439, %v4439
      %v4709 = vmul.f32 %v4442, %v4442
      %v4710 = vmul.f32 %v4447, %v4447
      %v4711 = vmul.f32 %v4450, %v4450
      %v4712 = vmul.f32 %v4455, %v4455
      %v4713 = vmul.f32 %v4458, %v4458
      %v4714 = vmul.f32 %v4463, %v4463
      %v4715 = vmul.f32 %v4466, %v4466
      %v4716 = vmul.f32 %v4471, %v4471
      %v4717 = vmul.f32 %v4474, %v4474
      %v4718 = vmul.f32 %v4479, %v4479
      %v4719 = vmul.f32 %v4482, %v4482
      %v4720 = vmul.f32 %v4487, %v4487
      %v4721 = vmul.f32 %v4490, %v4490
      %v4722 = vadd.f32 %v4690, %v4691
      %v4723 = vadd.f32 %v4722, %v4692
      %v4724 = vadd.f32 %v4723, %v4693
      %v4725 = vadd.f32 %v4724, %v4694
      %v4726 = vadd.f32 %v4725, %v4695
      %v4727 = vadd.f32 %v4726, %v4696
      %v4728 = vadd.f32 %v4727, %v4697
      %v4729 = vadd.f32 %v4728, %v4698
      %v4730 = vadd.f32 %v4729, %v4699
      %v4731 = vadd.f32 %v4730, %v4700
      %v4732 = vadd.f32 %v4731, %v4701
      %v4733 = vadd.f32 %v4732, %v4702
      %v4734 = vadd.f32 %v4733, %v4703
      %v4735 = vadd.f32 %v4734, %v4704
      %v4736 = vadd.f32 %v4735, %v4705
      %v4737 = vadd.f32 %v4736, %v4706
      %v4738 = vadd.f32 %v4737, %v4707
      %v4739 = vadd.f32 %v4738, %v4708
      %v4740 = vadd.f32 %v4739, %v4709
      %v4741 = vadd.f32 %v4740, %v4710
      %v4742 = vadd.f32 %v4741, %v4711
      %v4743 = vadd.f32 %v4742, %v4712
      %v4744 = vadd.f32 %v4743, %v4713
      %v4745 = vadd.f32 %v4744, %v4714
      %v4746 = vadd.f32 %v4745, %v4715
      %v4747 = vadd.f32 %v4746, %v4716
      %v4748 = vadd.f32 %v4747, %v4717
      %v4749 = vadd.f32 %v4748, %v4718
      %v4750 = vadd.f32 %v4749, %v4719
      %v4751 = vadd.f32 %v4750, %v4720
      %v4752 = vadd.f32 %v4751, %v4721
      %v4753 = vrot.slane %v4752, 4
      %v4754 = vadd.f32 %v4752, %v4753
      %v4755 = vrot.slane %v4754, 2
      %v4756 = vadd.f32 %v4754, %v4755
      %v4757 = vrot.slane %v4756, 1
      %v4758 = vadd.f32 %v4756, %v4757
      %vm4759 = vcmask 1040384
      %v4760 = vsel %vm4759, %v4689, %v4758
      %4761 = vst [vmem:[%s235] sm:$0x3] %v4760
      %p4762 = scmp.lt.s32.totalorder %s17, 1
      %s4763 = scalar_select %p4762, %s17, 1
      %s4764 = smul.addr %s4763, 32
      %s4765 = smul.addr %s4764, 4
      %s4766 = scalar_lea.vmem %s4, %s4765
      %p4767 = scmp.lt.s32.totalorder %s17, 1
      %s4768 = scalar_select %p4767, %s17, 1
      %s4769 = smul.addr %s4768, 2
      %s4770 = scalar_lea.vmem %s5, %s4769
      // Predicated region
      $region37: #{residual_block_forward.4} parent=35 // pred_check
        %p4771 = pneg %p124
      $region38: #{residual_block_forward.4} parent=35 // pred_check_branch
        %4773 = sbr.rel (%p4771) target = $region40
      $region39: #{residual_block_forward.4} parent=35 // pred_region
        _
      $region40: #{residual_block_forward.4} parent=35 // pred_fallthru
        _
      // Predicated region
      $region41: #{residual_block_forward.4} parent=35 // pred_check
        %p4774 = pneg %p150
      $region42: #{residual_block_forward.4} parent=35 // pred_check_branch
        %4776 = sbr.rel (%p4774) target = $region44
      $region43: #{residual_block_forward.4} parent=35 // pred_region
        _
      $region44: #{residual_block_forward.4} parent=35 // pred_fallthru
        _
    $region36: #{residual_block_forward.4} parent=5 // pred_fallthru
      _
    %p4777 = scmp.le.s32.totalorder 2, %s12
    // Predicated region
    $region45: #{residual_block_forward.4} parent=5 // pred_check
      %p4778 = pneg %p4777
    $region46: #{residual_block_forward.4} parent=5 // pred_check_branch
      %4780 = sbr.rel (%p4778) target = $region48
    $region47: #{residual_block_forward.4} parent=5 // pred_region
      %s4781 = ssub.s32 %s12, 2
      // Predicated region
      $region49: #{residual_block_forward.4} parent=47 // pred_check
        %p4782 = pneg %p130
      $region50: #{residual_block_forward.4} parent=47 // pred_check_branch
        %4784 = sbr.rel (%p4782) target = $region52
      $region51: #{residual_block_forward.4} parent=47 // pred_region
        %p4785 = scmp.lt.s32.totalorder %s18, 1
        %s4786 = scalar_select %p4785, %s18, 1
        %s4787 = smul.addr %s4786, 32
        %s4788 = smul.addr %s4787, 4
        %s4789 = scalar_lea.vmem %s4, %s4788
      $region52: #{residual_block_forward.4} parent=47 // pred_fallthru
        _
      // Predicated region
      $region53: #{residual_block_forward.4} parent=47 // pred_check
        %p4790 = pneg %p156
      $region54: #{residual_block_forward.4} parent=47 // pred_check_branch
        %4792 = sbr.rel (%p4790) target = $region56
      $region55: #{residual_block_forward.4} parent=47 // pred_region
        %p4793 = scmp.lt.s32.totalorder %s18, 1
        %s4794 = scalar_select %p4793, %s18, 1
        %s4795 = smul.addr %s4794, 2
        %s4796 = scalar_lea.vmem %s5, %s4795
      $region56: #{residual_block_forward.4} parent=47 // pred_fallthru
        _
    $region48: #{residual_block_forward.4} parent=5 // pred_fallthru
      _
  $region6: #{residual_block_forward.4} parent=0 // loop_footer
    %s16 = sadd.s32 1, %s12
  $region7: #{residual_block_forward.4} parent=0 // loop_footer_branch
    %11 = sbr.rel target = $region3
  $region8: #{residual_block_forward.4} parent=0 // loop_exit
    _

</llo_original>
